<compile_context>
chip_gen: v5e
topology: v5e:2x2
jax: 0.10.0
libtpu: 0.0.40
codegen_flags: <defaults>
</compile_context>

<pallas_src>
import functools

import jax
import jax.numpy as jnp
from jax.experimental import pallas as pl
from jax.experimental.pallas import tpu as pltpu

C = 64          # backbone channels
CP = 128        # channel dim padded to a full lane tile
F_OUT = 1049    # num_classes
F_PAD = 1152    # 9 * 128 -> lane-dense FC output


def _fused_kernel(lhs1_ref, mask_ref, w1_ref, b1_ref, w2_ref, b2_ref,
                  w3_ref, b3_ref, wfc_ref, bfc_ref, o_ref, act_ref,
                  *, n_imgs, p_img, wp, hw):
    total = n_imgs * p_img
    mask = mask_ref[...]                                    # (total, CP) f32

    # ---- conv1 + ReLU: im2col prepared in the wrapper -> one K=32 matmul ---
    y1 = jnp.dot(lhs1_ref[...], w1_ref[...], preferred_element_type=jnp.float32)
    act_ref[...] = jnp.maximum(y1 + b1_ref[...], 0.0) * mask

    # Flat-layout offsets of the 9 taps: s = (kh-1)*Wp + (kw-1).
    shifts = [(kh - 1) * wp + (kw - 1) for kh in range(3) for kw in range(3)]

    def conv3x3(w_ref, b_ref):
        a = act_ref[...]                                    # (total, CP) f32
        acc = None
        for t, s in enumerate(shifts):
            # shifted[p] = a[p + s] (pltpu.roll follows the jnp.roll
            # convention out[i] = in[i - shift]).  Roll wrap-around only
            # lands on border/tail rows, which the interior mask zeroes.
            tap = a if s == 0 else pltpu.roll(a, shift=(-s) % total, axis=0)
            part = jnp.dot(tap, w_ref[t], preferred_element_type=jnp.float32)
            acc = part if acc is None else acc + part
        return jnp.maximum(acc + b_ref[...], 0.0) * mask    # (total, CP) f32

    act_ref[...] = conv3x3(w2_ref, b2_ref)                  # conv2 + ReLU
    y3 = conv3x3(w3_ref, b3_ref)                            # conv3 + ReLU

    # ---- per-image global average pool fused with the FC head --------------
    pooled = jnp.concatenate(
        [jnp.sum(y3[n * p_img:(n + 1) * p_img], axis=0, keepdims=True)
         for n in range(n_imgs)], axis=0) * (1.0 / hw)      # (N, CP)
    o_ref[...] = (jnp.dot(pooled, wfc_ref[...],
                          preferred_element_type=jnp.float32) + bfc_ref[...])


def make_params(key):
    ks = jax.random.split(key, 8)
    scale = 0.05
    return {
        # HWIO conv weights / (in, out) FC weight.  NOTE: real PyTorch weights
        # are OIHW / (out, in): transpose (2, 3, 1, 0) / .T before loading.
        "w1": scale * jax.random.normal(ks[0], (3, 3, 3, C), jnp.float32),
        "b1": scale * jax.random.normal(ks[1], (C,), jnp.float32),
        "w2": scale * jax.random.normal(ks[2], (3, 3, C, C), jnp.float32),
        "b2": scale * jax.random.normal(ks[3], (C,), jnp.float32),
        "w3": scale * jax.random.normal(ks[4], (3, 3, C, C), jnp.float32),
        "b3": scale * jax.random.normal(ks[5], (C,), jnp.float32),
        "wfc": scale * jax.random.normal(ks[6], (C, F_OUT), jnp.float32),
        "bfc": scale * jax.random.normal(ks[7], (F_OUT,), jnp.float32),
    }


@jax.jit
def efficientnet_forward(params, x_nchw):
    x = jnp.transpose(x_nchw, (0, 2, 3, 1)).astype(jnp.float32)   # NHWC
    N, H, W, Cin = x.shape
    Hp, Wp = H + 2, W + 2
    P = Hp * Wp
    p_img = ((P + 7) // 8) * 8            # per-image flat rows, sublane-aligned
    total = N * p_img

    # conv1 im2col over the *padded* output grid (border rows masked in-kernel).
    xp2 = jnp.pad(x, ((0, 0), (2, 2), (2, 2), (0, 0)))
    cols = [xp2[:, kh:kh + Hp, kw:kw + Wp, :]
            for kh in range(3) for kw in range(3)]
    k1, k1p = 9 * Cin, 32
    lhs1 = jnp.stack(cols, axis=3).reshape(N, P, k1)
    lhs1 = jnp.pad(lhs1, ((0, 0), (0, p_img - P), (0, k1p - k1)))
    lhs1 = lhs1.reshape(total, k1p)                               # (total, 32)

    # Interior mask over the flat padded layout (also zeroes the tail pad rows).
    ii = jax.lax.broadcasted_iota(jnp.int32, (Hp, Wp), 0)
    jj = jax.lax.broadcasted_iota(jnp.int32, (Hp, Wp), 1)
    interior = (ii >= 1) & (ii <= H) & (jj >= 1) & (jj <= W)
    m = jnp.pad(interior.reshape(P).astype(jnp.float32), (0, p_img - P))
    mask = jnp.broadcast_to(jnp.tile(m, N)[:, None], (total, CP))

    # Pad channel dims 64 -> 128 with zeros so all in-kernel tensors are
    # 128-lane dense; padded channels stay exactly zero through every layer.
    w1f = jnp.pad(params["w1"].reshape(k1, C), ((0, k1p - k1), (0, CP - C)))
    b1 = jnp.pad(params["b1"], (0, CP - C)).reshape(1, CP)
    w2f = jnp.pad(params["w2"].reshape(9, C, C), ((0, 0), (0, CP - C), (0, CP - C)))
    b2 = jnp.pad(params["b2"], (0, CP - C)).reshape(1, CP)
    w3f = jnp.pad(params["w3"].reshape(9, C, C), ((0, 0), (0, CP - C), (0, CP - C)))
    b3 = jnp.pad(params["b3"], (0, CP - C)).reshape(1, CP)
    wfc = jnp.pad(params["wfc"], ((0, CP - C), (0, F_PAD - F_OUT)))
    bfc = jnp.pad(params["bfc"], (0, F_PAD - F_OUT)).reshape(1, F_PAD)

    kernel = functools.partial(_fused_kernel, n_imgs=N, p_img=p_img,
                               wp=Wp, hw=H * W)

    out = pl.pallas_call(
        kernel,
        out_shape=jax.ShapeDtypeStruct((N, F_PAD), jnp.float32),
        grid=(1,),
        in_specs=[
            pl.BlockSpec((total, k1p), lambda i: (0, 0)),      # conv1 im2col
            pl.BlockSpec((total, CP), lambda i: (0, 0)),       # interior mask
            pl.BlockSpec((k1p, CP), lambda i: (0, 0)),         # w1
            pl.BlockSpec((1, CP), lambda i: (0, 0)),           # b1
            pl.BlockSpec((9, CP, CP), lambda i: (0, 0, 0)),    # w2 (tap-major)
            pl.BlockSpec((1, CP), lambda i: (0, 0)),           # b2
            pl.BlockSpec((9, CP, CP), lambda i: (0, 0, 0)),    # w3 (tap-major)
            pl.BlockSpec((1, CP), lambda i: (0, 0)),           # b3
            pl.BlockSpec((CP, F_PAD), lambda i: (0, 0)),       # wfc
            pl.BlockSpec((1, F_PAD), lambda i: (0, 0)),        # bfc
        ],
        out_specs=pl.BlockSpec((N, F_PAD), lambda i: (0, 0)),
        scratch_shapes=[
            pltpu.VMEM((total, CP), jnp.float32),              # flat activations
        ],
        compiler_params=pltpu.CompilerParams(
            dimension_semantics=("arbitrary",)),
    )(lhs1, mask, w1f, b1, w2f, b2, w3f, b3, wfc, bfc)

    return out[:, :F_OUT]


if __name__ == "__main__":
    key = jax.random.PRNGKey(0)
    pkey, xkey = jax.random.split(key)
    params = make_params(pkey)

    # Small deterministic NCHW input like PyTorch: batch=2, C=3, 16x16.
    x = jax.random.normal(xkey, (2, 3, 16, 16), jnp.float32)

    out = efficientnet_forward(params, x)
    out = jax.block_until_ready(out)

    assert out.shape == (2, F_OUT), out.shape
    assert out.dtype == jnp.float32
    assert bool(jnp.all(jnp.isfinite(out)))
    print("KERNEL_OK")
</pallas_src>

<mosaic_0001>
module attributes {stable_mosaic.version = 11 : i64} {
  func.func @_fused_kernel(%arg0: i32, %arg1: memref<656x32xf32, #tpu.memory_space<vmem>>, %arg2: memref<656x128xf32, #tpu.memory_space<vmem>>, %arg3: memref<32x128xf32, #tpu.memory_space<vmem>>, %arg4: memref<1x128xf32, #tpu.memory_space<vmem>>, %arg5: memref<9x128x128xf32, #tpu.memory_space<vmem>>, %arg6: memref<1x128xf32, #tpu.memory_space<vmem>>, %arg7: memref<9x128x128xf32, #tpu.memory_space<vmem>>, %arg8: memref<1x128xf32, #tpu.memory_space<vmem>>, %arg9: memref<128x1152xf32, #tpu.memory_space<vmem>>, %arg10: memref<1x1152xf32, #tpu.memory_space<vmem>>, %arg11: memref<2x1152xf32, #tpu.memory_space<vmem>>, %arg12: memref<656x128xf32, #tpu.memory_space<vmem>>) attributes {dimension_semantics = [#tpu.dimension_semantics<arbitrary>], iteration_bounds = array<i64: 1>, scalar_prefetch = 0 : i64, scratch_operands = 1 : i64, tpu.core_type = #tpu.core_type<tc>, window_params = [{pipeline_mode = #tpu.pipeline_mode<synchronous>, transform_indices = @transform_0, window_bounds = array<i64: 656, 32>}, {pipeline_mode = #tpu.pipeline_mode<synchronous>, transform_indices = @transform_1, window_bounds = array<i64: 656, 128>}, {pipeline_mode = #tpu.pipeline_mode<synchronous>, transform_indices = @transform_2, window_bounds = array<i64: 32, 128>}, {pipeline_mode = #tpu.pipeline_mode<synchronous>, transform_indices = @transform_3, window_bounds = array<i64: 1, 128>}, {pipeline_mode = #tpu.pipeline_mode<synchronous>, transform_indices = @transform_4, window_bounds = array<i64: 9, 128, 128>}, {pipeline_mode = #tpu.pipeline_mode<synchronous>, transform_indices = @transform_5, window_bounds = array<i64: 1, 128>}, {pipeline_mode = #tpu.pipeline_mode<synchronous>, transform_indices = @transform_6, window_bounds = array<i64: 9, 128, 128>}, {pipeline_mode = #tpu.pipeline_mode<synchronous>, transform_indices = @transform_7, window_bounds = array<i64: 1, 128>}, {pipeline_mode = #tpu.pipeline_mode<synchronous>, transform_indices = @transform_8, window_bounds = array<i64: 128, 1152>}, {pipeline_mode = #tpu.pipeline_mode<synchronous>, transform_indices = @transform_9, window_bounds = array<i64: 1, 1152>}, {pipeline_mode = #tpu.pipeline_mode<synchronous>, transform_indices = @transform_10, window_bounds = array<i64: 2, 1152>}]} {
    %c0 = arith.constant 0 : index
    %c0_0 = arith.constant 0 : index
    %0 = vector.load %arg2[%c0, %c0_0] : memref<656x128xf32, #tpu.memory_space<vmem>>, vector<656x128xf32>
    %c0_1 = arith.constant 0 : index
    %c0_2 = arith.constant 0 : index
    %1 = vector.load %arg1[%c0_1, %c0_2] : memref<656x32xf32, #tpu.memory_space<vmem>>, vector<656x32xf32>
    %c0_3 = arith.constant 0 : index
    %c0_4 = arith.constant 0 : index
    %2 = vector.load %arg3[%c0_3, %c0_4] : memref<32x128xf32, #tpu.memory_space<vmem>>, vector<32x128xf32>
    %cst = arith.constant dense<0.000000e+00> : vector<656x128xf32>
    %3 = tpu.matmul %1, %2, %cst {dimension_numbers = #tpu.dot_dimension_numbers<[1], [0], [0], [1], [0, 0, 1, 1], [], []>} : vector<656x32xf32>, vector<32x128xf32>, vector<656x128xf32> -> vector<656x128xf32>
    %c0_5 = arith.constant 0 : index
    %c0_6 = arith.constant 0 : index
    %4 = vector.load %arg4[%c0_5, %c0_6] : memref<1x128xf32, #tpu.memory_space<vmem>>, vector<1x128xf32>
    %5 = vector.broadcast %4 : vector<1x128xf32> to vector<656x128xf32>
    %6 = arith.addf %3, %5 : vector<656x128xf32>
    %cst_7 = arith.constant 0.000000e+00 : f32
    %7 = vector.broadcast %cst_7 : f32 to vector<656x128xf32>
    %8 = arith.maximumf %6, %7 : vector<656x128xf32>
    %9 = arith.mulf %8, %0 : vector<656x128xf32>
    %c0_8 = arith.constant 0 : index
    %c0_9 = arith.constant 0 : index
    %10 = vector.load %arg12[%c0_8, %c0_9] : memref<656x128xf32, #tpu.memory_space<vmem>>, vector<656x128xf32>
    tpu.vector_store %arg12[%c0_8, %c0_9], %9 {strides = array<i32>} : memref<656x128xf32, #tpu.memory_space<vmem>>, vector<656x128xf32>,
    %c0_10 = arith.constant 0 : index
    %c0_11 = arith.constant 0 : index
    %11 = vector.load %arg12[%c0_10, %c0_11] : memref<656x128xf32, #tpu.memory_space<vmem>>, vector<656x128xf32>
    %c19_i32 = arith.constant 19 : i32
    %12 = tpu.dynamic_rotate %11 by %c19_i32 dim 0 : vector<656x128xf32>, i32 -> vector<656x128xf32>
    %c0_12 = arith.constant 0 : index
    %c0_13 = arith.constant 0 : index
    %c0_14 = arith.constant 0 : index
    %13 = vector.load %arg5[%c0_12, %c0_13, %c0_14] : memref<9x128x128xf32, #tpu.memory_space<vmem>>, vector<1x128x128xf32>
    %14 = vector.shape_cast %13 : vector<1x128x128xf32> to vector<128x128xf32>
    %cst_15 = arith.constant dense<0.000000e+00> : vector<656x128xf32>
    %15 = tpu.matmul %12, %14, %cst_15 {dimension_numbers = #tpu.dot_dimension_numbers<[1], [0], [0], [1], [0, 0, 1, 1], [], []>} : vector<656x128xf32>, vector<128x128xf32>, vector<656x128xf32> -> vector<656x128xf32>
    %c18_i32 = arith.constant 18 : i32
    %16 = tpu.dynamic_rotate %11 by %c18_i32 dim 0 : vector<656x128xf32>, i32 -> vector<656x128xf32>
    %c1 = arith.constant 1 : index
    %c0_16 = arith.constant 0 : index
    %c0_17 = arith.constant 0 : index
    %17 = vector.load %arg5[%c1, %c0_16, %c0_17] : memref<9x128x128xf32, #tpu.memory_space<vmem>>, vector<1x128x128xf32>
    %18 = vector.shape_cast %17 : vector<1x128x128xf32> to vector<128x128xf32>
    %cst_18 = arith.constant dense<0.000000e+00> : vector<656x128xf32>
    %19 = tpu.matmul %16, %18, %cst_18 {dimension_numbers = #tpu.dot_dimension_numbers<[1], [0], [0], [1], [0, 0, 1, 1], [], []>} : vector<656x128xf32>, vector<128x128xf32>, vector<656x128xf32> -> vector<656x128xf32>
    %20 = arith.addf %15, %19 : vector<656x128xf32>
    %c17_i32 = arith.constant 17 : i32
    %21 = tpu.dynamic_rotate %11 by %c17_i32 dim 0 : vector<656x128xf32>, i32 -> vector<656x128xf32>
    %c2 = arith.constant 2 : index
    %c0_19 = arith.constant 0 : index
    %c0_20 = arith.constant 0 : index
    %22 = vector.load %arg5[%c2, %c0_19, %c0_20] : memref<9x128x128xf32, #tpu.memory_space<vmem>>, vector<1x128x128xf32>
    %23 = vector.shape_cast %22 : vector<1x128x128xf32> to vector<128x128xf32>
    %cst_21 = arith.constant dense<0.000000e+00> : vector<656x128xf32>
    %24 = tpu.matmul %21, %23, %cst_21 {dimension_numbers = #tpu.dot_dimension_numbers<[1], [0], [0], [1], [0, 0, 1, 1], [], []>} : vector<656x128xf32>, vector<128x128xf32>, vector<656x128xf32> -> vector<656x128xf32>
    %25 = arith.addf %20, %24 : vector<656x128xf32>
    %c1_i32 = arith.constant 1 : i32
    %26 = tpu.dynamic_rotate %11 by %c1_i32 dim 0 : vector<656x128xf32>, i32 -> vector<656x128xf32>
    %c3 = arith.constant 3 : index
    %c0_22 = arith.constant 0 : index
    %c0_23 = arith.constant 0 : index
    %27 = vector.load %arg5[%c3, %c0_22, %c0_23] : memref<9x128x128xf32, #tpu.memory_space<vmem>>, vector<1x128x128xf32>
    %28 = vector.shape_cast %27 : vector<1x128x128xf32> to vector<128x128xf32>
    %cst_24 = arith.constant dense<0.000000e+00> : vector<656x128xf32>
    %29 = tpu.matmul %26, %28, %cst_24 {dimension_numbers = #tpu.dot_dimension_numbers<[1], [0], [0], [1], [0, 0, 1, 1], [], []>} : vector<656x128xf32>, vector<128x128xf32>, vector<656x128xf32> -> vector<656x128xf32>
    %30 = arith.addf %25, %29 : vector<656x128xf32>
    %c4 = arith.constant 4 : index
    %c0_25 = arith.constant 0 : index
    %c0_26 = arith.constant 0 : index
    %31 = vector.load %arg5[%c4, %c0_25, %c0_26] : memref<9x128x128xf32, #tpu.memory_space<vmem>>, vector<1x128x128xf32>
    %32 = vector.shape_cast %31 : vector<1x128x128xf32> to vector<128x128xf32>
    %cst_27 = arith.constant dense<0.000000e+00> : vector<656x128xf32>
    %33 = tpu.matmul %11, %32, %cst_27 {dimension_numbers = #tpu.dot_dimension_numbers<[1], [0], [0], [1], [0, 0, 1, 1], [], []>} : vector<656x128xf32>, vector<128x128xf32>, vector<656x128xf32> -> vector<656x128xf32>
    %34 = arith.addf %30, %33 : vector<656x128xf32>
    %c655_i32 = arith.constant 655 : i32
    %35 = tpu.dynamic_rotate %11 by %c655_i32 dim 0 : vector<656x128xf32>, i32 -> vector<656x128xf32>
    %c5 = arith.constant 5 : index
    %c0_28 = arith.constant 0 : index
    %c0_29 = arith.constant 0 : index
    %36 = vector.load %arg5[%c5, %c0_28, %c0_29] : memref<9x128x128xf32, #tpu.memory_space<vmem>>, vector<1x128x128xf32>
    %37 = vector.shape_cast %36 : vector<1x128x128xf32> to vector<128x128xf32>
    %cst_30 = arith.constant dense<0.000000e+00> : vector<656x128xf32>
    %38 = tpu.matmul %35, %37, %cst_30 {dimension_numbers = #tpu.dot_dimension_numbers<[1], [0], [0], [1], [0, 0, 1, 1], [], []>} : vector<656x128xf32>, vector<128x128xf32>, vector<656x128xf32> -> vector<656x128xf32>
    %39 = arith.addf %34, %38 : vector<656x128xf32>
    %c639_i32 = arith.constant 639 : i32
    %40 = tpu.dynamic_rotate %11 by %c639_i32 dim 0 : vector<656x128xf32>, i32 -> vector<656x128xf32>
    %c6 = arith.constant 6 : index
    %c0_31 = arith.constant 0 : index
    %c0_32 = arith.constant 0 : index
    %41 = vector.load %arg5[%c6, %c0_31, %c0_32] : memref<9x128x128xf32, #tpu.memory_space<vmem>>, vector<1x128x128xf32>
    %42 = vector.shape_cast %41 : vector<1x128x128xf32> to vector<128x128xf32>
    %cst_33 = arith.constant dense<0.000000e+00> : vector<656x128xf32>
    %43 = tpu.matmul %40, %42, %cst_33 {dimension_numbers = #tpu.dot_dimension_numbers<[1], [0], [0], [1], [0, 0, 1, 1], [], []>} : vector<656x128xf32>, vector<128x128xf32>, vector<656x128xf32> -> vector<656x128xf32>
    %44 = arith.addf %39, %43 : vector<656x128xf32>
    %c638_i32 = arith.constant 638 : i32
    %45 = tpu.dynamic_rotate %11 by %c638_i32 dim 0 : vector<656x128xf32>, i32 -> vector<656x128xf32>
    %c7 = arith.constant 7 : index
    %c0_34 = arith.constant 0 : index
    %c0_35 = arith.constant 0 : index
    %46 = vector.load %arg5[%c7, %c0_34, %c0_35] : memref<9x128x128xf32, #tpu.memory_space<vmem>>, vector<1x128x128xf32>
    %47 = vector.shape_cast %46 : vector<1x128x128xf32> to vector<128x128xf32>
    %cst_36 = arith.constant dense<0.000000e+00> : vector<656x128xf32>
    %48 = tpu.matmul %45, %47, %cst_36 {dimension_numbers = #tpu.dot_dimension_numbers<[1], [0], [0], [1], [0, 0, 1, 1], [], []>} : vector<656x128xf32>, vector<128x128xf32>, vector<656x128xf32> -> vector<656x128xf32>
    %49 = arith.addf %44, %48 : vector<656x128xf32>
    %c637_i32 = arith.constant 637 : i32
    %50 = tpu.dynamic_rotate %11 by %c637_i32 dim 0 : vector<656x128xf32>, i32 -> vector<656x128xf32>
    %c8 = arith.constant 8 : index
    %c0_37 = arith.constant 0 : index
    %c0_38 = arith.constant 0 : index
    %51 = vector.load %arg5[%c8, %c0_37, %c0_38] : memref<9x128x128xf32, #tpu.memory_space<vmem>>, vector<1x128x128xf32>
    %52 = vector.shape_cast %51 : vector<1x128x128xf32> to vector<128x128xf32>
    %cst_39 = arith.constant dense<0.000000e+00> : vector<656x128xf32>
    %53 = tpu.matmul %50, %52, %cst_39 {dimension_numbers = #tpu.dot_dimension_numbers<[1], [0], [0], [1], [0, 0, 1, 1], [], []>} : vector<656x128xf32>, vector<128x128xf32>, vector<656x128xf32> -> vector<656x128xf32>
    %54 = arith.addf %49, %53 : vector<656x128xf32>
    %c0_40 = arith.constant 0 : index
    %c0_41 = arith.constant 0 : index
    %55 = vector.load %arg6[%c0_40, %c0_41] : memref<1x128xf32, #tpu.memory_space<vmem>>, vector<1x128xf32>
    %56 = vector.broadcast %55 : vector<1x128xf32> to vector<656x128xf32>
    %57 = arith.addf %54, %56 : vector<656x128xf32>
    %cst_42 = arith.constant 0.000000e+00 : f32
    %58 = vector.broadcast %cst_42 : f32 to vector<656x128xf32>
    %59 = arith.maximumf %57, %58 : vector<656x128xf32>
    %60 = arith.mulf %59, %0 : vector<656x128xf32>
    %c0_43 = arith.constant 0 : index
    %c0_44 = arith.constant 0 : index
    %61 = vector.load %arg12[%c0_43, %c0_44] : memref<656x128xf32, #tpu.memory_space<vmem>>, vector<656x128xf32>
    tpu.vector_store %arg12[%c0_43, %c0_44], %60 {strides = array<i32>} : memref<656x128xf32, #tpu.memory_space<vmem>>, vector<656x128xf32>,
    %c0_45 = arith.constant 0 : index
    %c0_46 = arith.constant 0 : index
    %62 = vector.load %arg12[%c0_45, %c0_46] : memref<656x128xf32, #tpu.memory_space<vmem>>, vector<656x128xf32>
    %c19_i32_47 = arith.constant 19 : i32
    %63 = tpu.dynamic_rotate %62 by %c19_i32_47 dim 0 : vector<656x128xf32>, i32 -> vector<656x128xf32>
    %c0_48 = arith.constant 0 : index
    %c0_49 = arith.constant 0 : index
    %c0_50 = arith.constant 0 : index
    %64 = vector.load %arg7[%c0_48, %c0_49, %c0_50] : memref<9x128x128xf32, #tpu.memory_space<vmem>>, vector<1x128x128xf32>
    %65 = vector.shape_cast %64 : vector<1x128x128xf32> to vector<128x128xf32>
    %cst_51 = arith.constant dense<0.000000e+00> : vector<656x128xf32>
    %66 = tpu.matmul %63, %65, %cst_51 {dimension_numbers = #tpu.dot_dimension_numbers<[1], [0], [0], [1], [0, 0, 1, 1], [], []>} : vector<656x128xf32>, vector<128x128xf32>, vector<656x128xf32> -> vector<656x128xf32>
    %c18_i32_52 = arith.constant 18 : i32
    %67 = tpu.dynamic_rotate %62 by %c18_i32_52 dim 0 : vector<656x128xf32>, i32 -> vector<656x128xf32>
    %c1_53 = arith.constant 1 : index
    %c0_54 = arith.constant 0 : index
    %c0_55 = arith.constant 0 : index
    %68 = vector.load %arg7[%c1_53, %c0_54, %c0_55] : memref<9x128x128xf32, #tpu.memory_space<vmem>>, vector<1x128x128xf32>
    %69 = vector.shape_cast %68 : vector<1x128x128xf32> to vector<128x128xf32>
    %cst_56 = arith.constant dense<0.000000e+00> : vector<656x128xf32>
    %70 = tpu.matmul %67, %69, %cst_56 {dimension_numbers = #tpu.dot_dimension_numbers<[1], [0], [0], [1], [0, 0, 1, 1], [], []>} : vector<656x128xf32>, vector<128x128xf32>, vector<656x128xf32> -> vector<656x128xf32>
    %71 = arith.addf %66, %70 : vector<656x128xf32>
    %c17_i32_57 = arith.constant 17 : i32
    %72 = tpu.dynamic_rotate %62 by %c17_i32_57 dim 0 : vector<656x128xf32>, i32 -> vector<656x128xf32>
    %c2_58 = arith.constant 2 : index
    %c0_59 = arith.constant 0 : index
    %c0_60 = arith.constant 0 : index
    %73 = vector.load %arg7[%c2_58, %c0_59, %c0_60] : memref<9x128x128xf32, #tpu.memory_space<vmem>>, vector<1x128x128xf32>
    %74 = vector.shape_cast %73 : vector<1x128x128xf32> to vector<128x128xf32>
    %cst_61 = arith.constant dense<0.000000e+00> : vector<656x128xf32>
    %75 = tpu.matmul %72, %74, %cst_61 {dimension_numbers = #tpu.dot_dimension_numbers<[1], [0], [0], [1], [0, 0, 1, 1], [], []>} : vector<656x128xf32>, vector<128x128xf32>, vector<656x128xf32> -> vector<656x128xf32>
    %76 = arith.addf %71, %75 : vector<656x128xf32>
    %c1_i32_62 = arith.constant 1 : i32
    %77 = tpu.dynamic_rotate %62 by %c1_i32_62 dim 0 : vector<656x128xf32>, i32 -> vector<656x128xf32>
    %c3_63 = arith.constant 3 : index
    %c0_64 = arith.constant 0 : index
    %c0_65 = arith.constant 0 : index
    %78 = vector.load %arg7[%c3_63, %c0_64, %c0_65] : memref<9x128x128xf32, #tpu.memory_space<vmem>>, vector<1x128x128xf32>
    %79 = vector.shape_cast %78 : vector<1x128x128xf32> to vector<128x128xf32>
    %cst_66 = arith.constant dense<0.000000e+00> : vector<656x128xf32>
    %80 = tpu.matmul %77, %79, %cst_66 {dimension_numbers = #tpu.dot_dimension_numbers<[1], [0], [0], [1], [0, 0, 1, 1], [], []>} : vector<656x128xf32>, vector<128x128xf32>, vector<656x128xf32> -> vector<656x128xf32>
    %81 = arith.addf %76, %80 : vector<656x128xf32>
    %c4_67 = arith.constant 4 : index
    %c0_68 = arith.constant 0 : index
    %c0_69 = arith.constant 0 : index
    %82 = vector.load %arg7[%c4_67, %c0_68, %c0_69] : memref<9x128x128xf32, #tpu.memory_space<vmem>>, vector<1x128x128xf32>
    %83 = vector.shape_cast %82 : vector<1x128x128xf32> to vector<128x128xf32>
    %cst_70 = arith.constant dense<0.000000e+00> : vector<656x128xf32>
    %84 = tpu.matmul %62, %83, %cst_70 {dimension_numbers = #tpu.dot_dimension_numbers<[1], [0], [0], [1], [0, 0, 1, 1], [], []>} : vector<656x128xf32>, vector<128x128xf32>, vector<656x128xf32> -> vector<656x128xf32>
    %85 = arith.addf %81, %84 : vector<656x128xf32>
    %c655_i32_71 = arith.constant 655 : i32
    %86 = tpu.dynamic_rotate %62 by %c655_i32_71 dim 0 : vector<656x128xf32>, i32 -> vector<656x128xf32>
    %c5_72 = arith.constant 5 : index
    %c0_73 = arith.constant 0 : index
    %c0_74 = arith.constant 0 : index
    %87 = vector.load %arg7[%c5_72, %c0_73, %c0_74] : memref<9x128x128xf32, #tpu.memory_space<vmem>>, vector<1x128x128xf32>
    %88 = vector.shape_cast %87 : vector<1x128x128xf32> to vector<128x128xf32>
    %cst_75 = arith.constant dense<0.000000e+00> : vector<656x128xf32>
    %89 = tpu.matmul %86, %88, %cst_75 {dimension_numbers = #tpu.dot_dimension_numbers<[1], [0], [0], [1], [0, 0, 1, 1], [], []>} : vector<656x128xf32>, vector<128x128xf32>, vector<656x128xf32> -> vector<656x128xf32>
    %90 = arith.addf %85, %89 : vector<656x128xf32>
    %c639_i32_76 = arith.constant 639 : i32
    %91 = tpu.dynamic_rotate %62 by %c639_i32_76 dim 0 : vector<656x128xf32>, i32 -> vector<656x128xf32>
    %c6_77 = arith.constant 6 : index
    %c0_78 = arith.constant 0 : index
    %c0_79 = arith.constant 0 : index
    %92 = vector.load %arg7[%c6_77, %c0_78, %c0_79] : memref<9x128x128xf32, #tpu.memory_space<vmem>>, vector<1x128x128xf32>
    %93 = vector.shape_cast %92 : vector<1x128x128xf32> to vector<128x128xf32>
    %cst_80 = arith.constant dense<0.000000e+00> : vector<656x128xf32>
    %94 = tpu.matmul %91, %93, %cst_80 {dimension_numbers = #tpu.dot_dimension_numbers<[1], [0], [0], [1], [0, 0, 1, 1], [], []>} : vector<656x128xf32>, vector<128x128xf32>, vector<656x128xf32> -> vector<656x128xf32>
    %95 = arith.addf %90, %94 : vector<656x128xf32>
    %c638_i32_81 = arith.constant 638 : i32
    %96 = tpu.dynamic_rotate %62 by %c638_i32_81 dim 0 : vector<656x128xf32>, i32 -> vector<656x128xf32>
    %c7_82 = arith.constant 7 : index
    %c0_83 = arith.constant 0 : index
    %c0_84 = arith.constant 0 : index
    %97 = vector.load %arg7[%c7_82, %c0_83, %c0_84] : memref<9x128x128xf32, #tpu.memory_space<vmem>>, vector<1x128x128xf32>
    %98 = vector.shape_cast %97 : vector<1x128x128xf32> to vector<128x128xf32>
    %cst_85 = arith.constant dense<0.000000e+00> : vector<656x128xf32>
    %99 = tpu.matmul %96, %98, %cst_85 {dimension_numbers = #tpu.dot_dimension_numbers<[1], [0], [0], [1], [0, 0, 1, 1], [], []>} : vector<656x128xf32>, vector<128x128xf32>, vector<656x128xf32> -> vector<656x128xf32>
    %100 = arith.addf %95, %99 : vector<656x128xf32>
    %c637_i32_86 = arith.constant 637 : i32
    %101 = tpu.dynamic_rotate %62 by %c637_i32_86 dim 0 : vector<656x128xf32>, i32 -> vector<656x128xf32>
    %c8_87 = arith.constant 8 : index
    %c0_88 = arith.constant 0 : index
    %c0_89 = arith.constant 0 : index
    %102 = vector.load %arg7[%c8_87, %c0_88, %c0_89] : memref<9x128x128xf32, #tpu.memory_space<vmem>>, vector<1x128x128xf32>
    %103 = vector.shape_cast %102 : vector<1x128x128xf32> to vector<128x128xf32>
    %cst_90 = arith.constant dense<0.000000e+00> : vector<656x128xf32>
    %104 = tpu.matmul %101, %103, %cst_90 {dimension_numbers = #tpu.dot_dimension_numbers<[1], [0], [0], [1], [0, 0, 1, 1], [], []>} : vector<656x128xf32>, vector<128x128xf32>, vector<656x128xf32> -> vector<656x128xf32>
    %105 = arith.addf %100, %104 : vector<656x128xf32>
    %c0_91 = arith.constant 0 : index
    %c0_92 = arith.constant 0 : index
    %106 = vector.load %arg8[%c0_91, %c0_92] : memref<1x128xf32, #tpu.memory_space<vmem>>, vector<1x128xf32>
    %107 = vector.broadcast %106 : vector<1x128xf32> to vector<656x128xf32>
    %108 = arith.addf %105, %107 : vector<656x128xf32>
    %cst_93 = arith.constant 0.000000e+00 : f32
    %109 = vector.broadcast %cst_93 : f32 to vector<656x128xf32>
    %110 = arith.maximumf %108, %109 : vector<656x128xf32>
    %111 = arith.mulf %110, %0 : vector<656x128xf32>
    %112 = vector.extract_strided_slice %111 {offsets = [0, 0], sizes = [328, 128], strides = [1, 1]} : vector<656x128xf32> to vector<328x128xf32>
    %cst_94 = arith.constant dense<0.000000e+00> : vector<128xf32>
    %113 = vector.multi_reduction <add>, %112, %cst_94 [0] : vector<328x128xf32> to vector<128xf32>
    %114 = vector.shape_cast %113 : vector<128xf32> to vector<1x128xf32>
    %115 = vector.extract_strided_slice %111 {offsets = [328, 0], sizes = [328, 128], strides = [1, 1]} : vector<656x128xf32> to vector<328x128xf32>
    %cst_95 = arith.constant dense<0.000000e+00> : vector<128xf32>
    %116 = vector.multi_reduction <add>, %115, %cst_95 [0] : vector<328x128xf32> to vector<128xf32>
    %117 = vector.shape_cast %116 : vector<128xf32> to vector<1x128xf32>
    %118 = tpu.concatenate %114, %117 in 0 : vector<1x128xf32>, vector<1x128xf32> -> vector<2x128xf32>
    %cst_96 = arith.constant 3.906250e-03 : f32
    %119 = vector.broadcast %cst_96 : f32 to vector<2x128xf32>
    %120 = arith.mulf %118, %119 : vector<2x128xf32>
    %c0_97 = arith.constant 0 : index
    %c0_98 = arith.constant 0 : index
    %121 = vector.load %arg9[%c0_97, %c0_98] : memref<128x1152xf32, #tpu.memory_space<vmem>>, vector<128x1152xf32>
    %cst_99 = arith.constant dense<0.000000e+00> : vector<2x1152xf32>
    %122 = tpu.matmul %120, %121, %cst_99 {dimension_numbers = #tpu.dot_dimension_numbers<[1], [0], [0], [1], [0, 0, 1, 1], [], []>} : vector<2x128xf32>, vector<128x1152xf32>, vector<2x1152xf32> -> vector<2x1152xf32>
    %c0_100 = arith.constant 0 : index
    %c0_101 = arith.constant 0 : index
    %123 = vector.load %arg10[%c0_100, %c0_101] : memref<1x1152xf32, #tpu.memory_space<vmem>>, vector<1x1152xf32>
    %124 = vector.broadcast %123 : vector<1x1152xf32> to vector<2x1152xf32>
    %125 = arith.addf %122, %124 : vector<2x1152xf32>
    %c0_102 = arith.constant 0 : index
    %c0_103 = arith.constant 0 : index
    %126 = vector.load %arg11[%c0_102, %c0_103] : memref<2x1152xf32, #tpu.memory_space<vmem>>, vector<2x1152xf32>
    tpu.vector_store %arg11[%c0_102, %c0_103], %125 {strides = array<i32>} : memref<2x1152xf32, #tpu.memory_space<vmem>>, vector<2x1152xf32>,
    return
  }
  func.func @transform_0(%arg0: i32) -> (i32, i32) {
    %c0_i32 = arith.constant 0 : i32
    %c0_i32_0 = arith.constant 0 : i32
    %c0_i32_1 = arith.constant 0 : i32
    return %c0_i32, %c0_i32_0 : i32, i32
  }
  func.func @transform_1(%arg0: i32) -> (i32, i32) {
    %c0_i32 = arith.constant 0 : i32
    %c0_i32_0 = arith.constant 0 : i32
    %c0_i32_1 = arith.constant 0 : i32
    return %c0_i32, %c0_i32_0 : i32, i32
  }
  func.func @transform_2(%arg0: i32) -> (i32, i32) {
    %c0_i32 = arith.constant 0 : i32
    %c0_i32_0 = arith.constant 0 : i32
    %c0_i32_1 = arith.constant 0 : i32
    return %c0_i32, %c0_i32_0 : i32, i32
  }
  func.func @transform_3(%arg0: i32) -> (i32, i32) {
    %c0_i32 = arith.constant 0 : i32
    %c0_i32_0 = arith.constant 0 : i32
    %c0_i32_1 = arith.constant 0 : i32
    return %c0_i32, %c0_i32_0 : i32, i32
  }
  func.func @transform_4(%arg0: i32) -> (i32, i32, i32) {
    %c0_i32 = arith.constant 0 : i32
    %c0_i32_0 = arith.constant 0 : i32
    %c0_i32_1 = arith.constant 0 : i32
    %c0_i32_2 = arith.constant 0 : i32
    return %c0_i32, %c0_i32_0, %c0_i32_1 : i32, i32, i32
  }
  func.func @transform_5(%arg0: i32) -> (i32, i32) {
    %c0_i32 = arith.constant 0 : i32
    %c0_i32_0 = arith.constant 0 : i32
    %c0_i32_1 = arith.constant 0 : i32
    return %c0_i32, %c0_i32_0 : i32, i32
  }
  func.func @transform_6(%arg0: i32) -> (i32, i32, i32) {
    %c0_i32 = arith.constant 0 : i32
    %c0_i32_0 = arith.constant 0 : i32
    %c0_i32_1 = arith.constant 0 : i32
    %c0_i32_2 = arith.constant 0 : i32
    return %c0_i32, %c0_i32_0, %c0_i32_1 : i32, i32, i32
  }
  func.func @transform_7(%arg0: i32) -> (i32, i32) {
    %c0_i32 = arith.constant 0 : i32
    %c0_i32_0 = arith.constant 0 : i32
    %c0_i32_1 = arith.constant 0 : i32
    return %c0_i32, %c0_i32_0 : i32, i32
  }
  func.func @transform_8(%arg0: i32) -> (i32, i32) {
    %c0_i32 = arith.constant 0 : i32
    %c0_i32_0 = arith.constant 0 : i32
    %c0_i32_1 = arith.constant 0 : i32
    return %c0_i32, %c0_i32_0 : i32, i32
  }
  func.func @transform_9(%arg0: i32) -> (i32, i32) {
    %c0_i32 = arith.constant 0 : i32
    %c0_i32_0 = arith.constant 0 : i32
    %c0_i32_1 = arith.constant 0 : i32
    return %c0_i32, %c0_i32_0 : i32, i32
  }
  func.func @transform_10(%arg0: i32) -> (i32, i32) {
    %c0_i32 = arith.constant 0 : i32
    %c0_i32_0 = arith.constant 0 : i32
    %c0_i32_1 = arith.constant 0 : i32
    return %c0_i32, %c0_i32_0 : i32, i32
  }
}

</mosaic_0001>

<llo_original>
// kernel: tile.8
$region0: #{tile.8}
  #allocation0 [shape = 's32[1]{0}', space=sflag, size = 0x4, scoped, tag = 'scoped memory for tile.8']
  %s0 = inlined_call_operand.vmem [shape: f32[328], index: 0, kind: input, shape index: {}]
  %s1 = inlined_call_operand.vmem [shape: f32[2,328], index: 1, kind: output, shape index: {}]
  // Predicated region
  $region2: #{tile.8} parent=0 // pred_check
    _
  $region3: #{tile.8} parent=0 // pred_check_branch
    %3 = sbr.rel (0) target = $region5
  $region4: #{tile.8} parent=0 // pred_region
    _
  $region5: #{tile.8} parent=0 // pred_fallthru
    _
  %v4 = vld [vmem:[%s0] ss:$0 sm:$0xff]
  %5 = vst [vmem:[%s1] sm:$0x3] %v4
  %s6 = scalar_lea.vmem %s0, 1
  %v7 = vld [vmem:[%s6] ss:$0 sm:$0xff]
  %s8 = scalar_lea.vmem %s1, 2
  %9 = vst [vmem:[%s8] sm:$0x3] %v7
  %s10 = scalar_lea.vmem %s0, 2
  %v11 = vld [vmem:[%s10] ss:$0 sm:$0xff]
  %s12 = scalar_lea.vmem %s1, 4
  %13 = vst [vmem:[%s12] sm:$0x3] %v11

// kernel: efficientnet_forward.1
$region0: #{efficientnet_forward.1}
  #allocation0 [shape = 'u32[]', space=smem, size = 0x4, offset = 0x4, fixed_abs, tag = 'smem constant byte address 0x4 - core index']
  #allocation1 [shape = 'u32[72,128]{1,0:T(1,128)}', space=vmem, size = 0x9000, scoped, tag = 'internal scratch']
  #allocation2 [shape = 'f32[656,128]{1,0:T(8,128)}', space=vmem, size = 0x52000, scoped, tag = 'scratch operand']
  %s0 = inlined_call_operand.vmem [shape: f32[656,32], index: 0, kind: input, shape index: {}]
  %s1 = inlined_call_operand.vmem [shape: f32[656,128], index: 1, kind: input, shape index: {}]
  %s2 = inlined_call_operand.vmem [shape: f32[32,128], index: 2, kind: input, shape index: {}]
  %s3 = inlined_call_operand.vmem [shape: f32[1,128], index: 3, kind: input, shape index: {}]
  %s4 = inlined_call_operand.vmem [shape: f32[9,128,128], index: 4, kind: input, shape index: {}]
  %s5 = inlined_call_operand.vmem [shape: f32[1,128], index: 5, kind: input, shape index: {}]
  %s6 = inlined_call_operand.vmem [shape: f32[9,128,128], index: 6, kind: input, shape index: {}]
  %s7 = inlined_call_operand.vmem [shape: f32[1,128], index: 7, kind: input, shape index: {}]
  %s8 = inlined_call_operand.vmem [shape: f32[128,1152], index: 8, kind: input, shape index: {}]
  %s9 = inlined_call_operand.vmem [shape: f32[1,1152], index: 9, kind: input, shape index: {}]
  %s10 = inlined_call_operand.hbm [shape: f32[2,1152], index: 10, kind: output, shape index: {}]
  %s11 = sld [smem:[#allocation0]]
  $region50: #{efficientnet_forward.1} parent=0
    _
  %s13 = ssub.s32 1, %s11
  %s14 = scalar_select 0, %s13, %s11
  $region1: #{efficientnet_forward.1} parent=0
    #allocation3 [shape = 'u8[9216]{0}', space=vmem, size = 0x2400, scoped, tag = 'output window, operand 0, single buffered']
    #allocation4 [shape = 's32[1]{0}', space=sflag, size = 0x4, scoped, tag = 'scoped memory for efficientnet_forward.1']
    %15 = vsyncpa [#allocation4], 0
    // Predicated region
    $region2: #{efficientnet_forward.1} parent=1 // pred_check
      _
    $region3: #{efficientnet_forward.1} parent=1 // pred_check_branch
      %17 = sbr.rel (0) target = $region5
    $region4: #{efficientnet_forward.1} parent=1 // pred_region
      _
    $region5: #{efficientnet_forward.1} parent=1 // pred_fallthru
      _
    // Predicated region
    $region6: #{efficientnet_forward.1} parent=1 // pred_check
      _
    $region7: #{efficientnet_forward.1} parent=1 // pred_check_branch
      %19 = sbr.rel (0) target = $region9
    $region8: #{efficientnet_forward.1} parent=1 // pred_region
      _
    $region9: #{efficientnet_forward.1} parent=1 // pred_fallthru
      _
    // Predicated region
    $region10: #{efficientnet_forward.1} parent=1 // pred_check
      _
    $region11: #{efficientnet_forward.1} parent=1 // pred_check_branch
      %21 = sbr.rel (0) target = $region13
    $region12: #{efficientnet_forward.1} parent=1 // pred_region
      _
    $region13: #{efficientnet_forward.1} parent=1 // pred_fallthru
      _
    // Predicated region
    $region14: #{efficientnet_forward.1} parent=1 // pred_check
      _
    $region15: #{efficientnet_forward.1} parent=1 // pred_check_branch
      %23 = sbr.rel (0) target = $region17
    $region16: #{efficientnet_forward.1} parent=1 // pred_region
      _
    $region17: #{efficientnet_forward.1} parent=1 // pred_fallthru
      _
    // Predicated region
    $region18: #{efficientnet_forward.1} parent=1 // pred_check
      _
    $region19: #{efficientnet_forward.1} parent=1 // pred_check_branch
      %25 = sbr.rel (0) target = $region21
    $region20: #{efficientnet_forward.1} parent=1 // pred_region
      _
    $region21: #{efficientnet_forward.1} parent=1 // pred_fallthru
      _
    // Predicated region
    $region22: #{efficientnet_forward.1} parent=1 // pred_check
      _
    $region23: #{efficientnet_forward.1} parent=1 // pred_check_branch
      %27 = sbr.rel (0) target = $region25
    $region24: #{efficientnet_forward.1} parent=1 // pred_region
      _
    $region25: #{efficientnet_forward.1} parent=1 // pred_fallthru
      _
    // Predicated region
    $region26: #{efficientnet_forward.1} parent=1 // pred_check
      _
    $region27: #{efficientnet_forward.1} parent=1 // pred_check_branch
      %29 = sbr.rel (0) target = $region29
    $region28: #{efficientnet_forward.1} parent=1 // pred_region
      _
    $region29: #{efficientnet_forward.1} parent=1 // pred_fallthru
      _
    // Predicated region
    $region30: #{efficientnet_forward.1} parent=1 // pred_check
      _
    $region31: #{efficientnet_forward.1} parent=1 // pred_check_branch
      %31 = sbr.rel (0) target = $region33
    $region32: #{efficientnet_forward.1} parent=1 // pred_region
      _
    $region33: #{efficientnet_forward.1} parent=1 // pred_fallthru
      _
    // Predicated region
    $region34: #{efficientnet_forward.1} parent=1 // pred_check
      _
    $region35: #{efficientnet_forward.1} parent=1 // pred_check_branch
      %33 = sbr.rel (0) target = $region37
    $region36: #{efficientnet_forward.1} parent=1 // pred_region
      _
    $region37: #{efficientnet_forward.1} parent=1 // pred_fallthru
      _
    // Predicated region
    $region38: #{efficientnet_forward.1} parent=1 // pred_check
      _
    $region39: #{efficientnet_forward.1} parent=1 // pred_check_branch
      %35 = sbr.rel (0) target = $region41
    $region40: #{efficientnet_forward.1} parent=1 // pred_region
      _
    $region41: #{efficientnet_forward.1} parent=1 // pred_fallthru
      _
    %v36 = vld [vmem:[%s1] sm:$0xff]
    %v37 = vld [vmem:[%s1 + $0x8] sm:$0xff]
    %v38 = vld [vmem:[%s1 + $0x10] sm:$0xff]
    %v39 = vld [vmem:[%s1 + $0x18] sm:$0xff]
    %v40 = vld [vmem:[%s1 + $0x20] sm:$0xff]
    %v41 = vld [vmem:[%s1 + $0x28] sm:$0xff]
    %v42 = vld [vmem:[%s1 + $0x30] sm:$0xff]
    %v43 = vld [vmem:[%s1 + $0x38] sm:$0xff]
    %v44 = vld [vmem:[%s1 + $0x40] sm:$0xff]
    %v45 = vld [vmem:[%s1 + $0x48] sm:$0xff]
    %v46 = vld [vmem:[%s1 + $0x50] sm:$0xff]
    %v47 = vld [vmem:[%s1 + $0x58] sm:$0xff]
    %v48 = vld [vmem:[%s1 + $0x60] sm:$0xff]
    %v49 = vld [vmem:[%s1 + $0x68] sm:$0xff]
    %v50 = vld [vmem:[%s1 + $0x70] sm:$0xff]
    %v51 = vld [vmem:[%s1 + $0x78] sm:$0xff]
    %v52 = vld [vmem:[%s1 + $0x80] sm:$0xff]
    %v53 = vld [vmem:[%s1 + $0x88] sm:$0xff]
    %v54 = vld [vmem:[%s1 + $0x90] sm:$0xff]
    %v55 = vld [vmem:[%s1 + $0x98] sm:$0xff]
    %v56 = vld [vmem:[%s1 + $0xa0] sm:$0xff]
    %v57 = vld [vmem:[%s1 + $0xa8] sm:$0xff]
    %v58 = vld [vmem:[%s1 + $0xb0] sm:$0xff]
    %v59 = vld [vmem:[%s1 + $0xb8] sm:$0xff]
    %v60 = vld [vmem:[%s1 + $0xc0] sm:$0xff]
    %v61 = vld [vmem:[%s1 + $0xc8] sm:$0xff]
    %v62 = vld [vmem:[%s1 + $0xd0] sm:$0xff]
    %v63 = vld [vmem:[%s1 + $0xd8] sm:$0xff]
    %v64 = vld [vmem:[%s1 + $0xe0] sm:$0xff]
    %v65 = vld [vmem:[%s1 + $0xe8] sm:$0xff]
    %v66 = vld [vmem:[%s1 + $0xf0] sm:$0xff]
    %v67 = vld [vmem:[%s1 + $0xf8] sm:$0xff]
    %v68 = vld [vmem:[%s1 + $0x100] sm:$0xff]
    %v69 = vld [vmem:[%s1 + $0x108] sm:$0xff]
    %v70 = vld [vmem:[%s1 + $0x110] sm:$0xff]
    %v71 = vld [vmem:[%s1 + $0x118] sm:$0xff]
    %v72 = vld [vmem:[%s1 + $0x120] sm:$0xff]
    %v73 = vld [vmem:[%s1 + $0x128] sm:$0xff]
    %v74 = vld [vmem:[%s1 + $0x130] sm:$0xff]
    %v75 = vld [vmem:[%s1 + $0x138] sm:$0xff]
    %v76 = vld [vmem:[%s1 + $0x140] sm:$0xff]
    %v77 = vld [vmem:[%s1 + $0x148] sm:$0xff]
    %v78 = vld [vmem:[%s1 + $0x150] sm:$0xff]
    %v79 = vld [vmem:[%s1 + $0x158] sm:$0xff]
    %v80 = vld [vmem:[%s1 + $0x160] sm:$0xff]
    %v81 = vld [vmem:[%s1 + $0x168] sm:$0xff]
    %v82 = vld [vmem:[%s1 + $0x170] sm:$0xff]
    %v83 = vld [vmem:[%s1 + $0x178] sm:$0xff]
    %v84 = vld [vmem:[%s1 + $0x180] sm:$0xff]
    %v85 = vld [vmem:[%s1 + $0x188] sm:$0xff]
    %v86 = vld [vmem:[%s1 + $0x190] sm:$0xff]
    %v87 = vld [vmem:[%s1 + $0x198] sm:$0xff]
    %v88 = vld [vmem:[%s1 + $0x1a0] sm:$0xff]
    %v89 = vld [vmem:[%s1 + $0x1a8] sm:$0xff]
    %v90 = vld [vmem:[%s1 + $0x1b0] sm:$0xff]
    %v91 = vld [vmem:[%s1 + $0x1b8] sm:$0xff]
    %v92 = vld [vmem:[%s1 + $0x1c0] sm:$0xff]
    %v93 = vld [vmem:[%s1 + $0x1c8] sm:$0xff]
    %v94 = vld [vmem:[%s1 + $0x1d0] sm:$0xff]
    %v95 = vld [vmem:[%s1 + $0x1d8] sm:$0xff]
    %v96 = vld [vmem:[%s1 + $0x1e0] sm:$0xff]
    %v97 = vld [vmem:[%s1 + $0x1e8] sm:$0xff]
    %v98 = vld [vmem:[%s1 + $0x1f0] sm:$0xff]
    %v99 = vld [vmem:[%s1 + $0x1f8] sm:$0xff]
    %v100 = vld [vmem:[%s1 + $0x200] sm:$0xff]
    %v101 = vld [vmem:[%s1 + $0x208] sm:$0xff]
    %v102 = vld [vmem:[%s1 + $0x210] sm:$0xff]
    %v103 = vld [vmem:[%s1 + $0x218] sm:$0xff]
    %v104 = vld [vmem:[%s1 + $0x220] sm:$0xff]
    %v105 = vld [vmem:[%s1 + $0x228] sm:$0xff]
    %v106 = vld [vmem:[%s1 + $0x230] sm:$0xff]
    %v107 = vld [vmem:[%s1 + $0x238] sm:$0xff]
    %v108 = vld [vmem:[%s1 + $0x240] sm:$0xff]
    %v109 = vld [vmem:[%s1 + $0x248] sm:$0xff]
    %v110 = vld [vmem:[%s1 + $0x250] sm:$0xff]
    %v111 = vld [vmem:[%s1 + $0x258] sm:$0xff]
    %v112 = vld [vmem:[%s1 + $0x260] sm:$0xff]
    %v113 = vld [vmem:[%s1 + $0x268] sm:$0xff]
    %v114 = vld [vmem:[%s1 + $0x270] sm:$0xff]
    %v115 = vld [vmem:[%s1 + $0x278] sm:$0xff]
    %v116 = vld [vmem:[%s1 + $0x280] sm:$0xff]
    %v117 = vld [vmem:[%s1 + $0x288] sm:$0xff]
    %v118 = vld [vmem:[%s0] sm:$0xff]
    %v119 = vld [vmem:[%s0 + $0x8] sm:$0xff]
    %v120 = vld [vmem:[%s0 + $0x10] sm:$0xff]
    %v121 = vld [vmem:[%s0 + $0x18] sm:$0xff]
    %v122 = vld [vmem:[%s0 + $0x20] sm:$0xff]
    %v123 = vld [vmem:[%s0 + $0x28] sm:$0xff]
    %v124 = vld [vmem:[%s0 + $0x30] sm:$0xff]
    %v125 = vld [vmem:[%s0 + $0x38] sm:$0xff]
    %v126 = vld [vmem:[%s0 + $0x40] sm:$0xff]
    %v127 = vld [vmem:[%s0 + $0x48] sm:$0xff]
    %v128 = vld [vmem:[%s0 + $0x50] sm:$0xff]
    %v129 = vld [vmem:[%s0 + $0x58] sm:$0xff]
    %v130 = vld [vmem:[%s0 + $0x60] sm:$0xff]
    %v131 = vld [vmem:[%s0 + $0x68] sm:$0xff]
    %v132 = vld [vmem:[%s0 + $0x70] sm:$0xff]
    %v133 = vld [vmem:[%s0 + $0x78] sm:$0xff]
    %v134 = vld [vmem:[%s0 + $0x80] sm:$0xff]
    %v135 = vld [vmem:[%s0 + $0x88] sm:$0xff]
    %v136 = vld [vmem:[%s0 + $0x90] sm:$0xff]
    %v137 = vld [vmem:[%s0 + $0x98] sm:$0xff]
    %v138 = vld [vmem:[%s0 + $0xa0] sm:$0xff]
    %v139 = vld [vmem:[%s0 + $0xa8] sm:$0xff]
    %v140 = vld [vmem:[%s0 + $0xb0] sm:$0xff]
    %v141 = vld [vmem:[%s0 + $0xb8] sm:$0xff]
    %v142 = vld [vmem:[%s0 + $0xc0] sm:$0xff]
    %v143 = vld [vmem:[%s0 + $0xc8] sm:$0xff]
    %v144 = vld [vmem:[%s0 + $0xd0] sm:$0xff]
    %v145 = vld [vmem:[%s0 + $0xd8] sm:$0xff]
    %v146 = vld [vmem:[%s0 + $0xe0] sm:$0xff]
    %v147 = vld [vmem:[%s0 + $0xe8] sm:$0xff]
    %v148 = vld [vmem:[%s0 + $0xf0] sm:$0xff]
    %v149 = vld [vmem:[%s0 + $0xf8] sm:$0xff]
    %v150 = vld [vmem:[%s0 + $0x100] sm:$0xff]
    %v151 = vld [vmem:[%s0 + $0x108] sm:$0xff]
    %v152 = vld [vmem:[%s0 + $0x110] sm:$0xff]
    %v153 = vld [vmem:[%s0 + $0x118] sm:$0xff]
    %v154 = vld [vmem:[%s0 + $0x120] sm:$0xff]
    %v155 = vld [vmem:[%s0 + $0x128] sm:$0xff]
    %v156 = vld [vmem:[%s0 + $0x130] sm:$0xff]
    %v157 = vld [vmem:[%s0 + $0x138] sm:$0xff]
    %v158 = vld [vmem:[%s0 + $0x140] sm:$0xff]
    %v159 = vld [vmem:[%s0 + $0x148] sm:$0xff]
    %v160 = vld [vmem:[%s0 + $0x150] sm:$0xff]
    %v161 = vld [vmem:[%s0 + $0x158] sm:$0xff]
    %v162 = vld [vmem:[%s0 + $0x160] sm:$0xff]
    %v163 = vld [vmem:[%s0 + $0x168] sm:$0xff]
    %v164 = vld [vmem:[%s0 + $0x170] sm:$0xff]
    %v165 = vld [vmem:[%s0 + $0x178] sm:$0xff]
    %v166 = vld [vmem:[%s0 + $0x180] sm:$0xff]
    %v167 = vld [vmem:[%s0 + $0x188] sm:$0xff]
    %v168 = vld [vmem:[%s0 + $0x190] sm:$0xff]
    %v169 = vld [vmem:[%s0 + $0x198] sm:$0xff]
    %v170 = vld [vmem:[%s0 + $0x1a0] sm:$0xff]
    %v171 = vld [vmem:[%s0 + $0x1a8] sm:$0xff]
    %v172 = vld [vmem:[%s0 + $0x1b0] sm:$0xff]
    %v173 = vld [vmem:[%s0 + $0x1b8] sm:$0xff]
    %v174 = vld [vmem:[%s0 + $0x1c0] sm:$0xff]
    %v175 = vld [vmem:[%s0 + $0x1c8] sm:$0xff]
    %v176 = vld [vmem:[%s0 + $0x1d0] sm:$0xff]
    %v177 = vld [vmem:[%s0 + $0x1d8] sm:$0xff]
    %v178 = vld [vmem:[%s0 + $0x1e0] sm:$0xff]
    %v179 = vld [vmem:[%s0 + $0x1e8] sm:$0xff]
    %v180 = vld [vmem:[%s0 + $0x1f0] sm:$0xff]
    %v181 = vld [vmem:[%s0 + $0x1f8] sm:$0xff]
    %v182 = vld [vmem:[%s0 + $0x200] sm:$0xff]
    %v183 = vld [vmem:[%s0 + $0x208] sm:$0xff]
    %v184 = vld [vmem:[%s0 + $0x210] sm:$0xff]
    %v185 = vld [vmem:[%s0 + $0x218] sm:$0xff]
    %v186 = vld [vmem:[%s0 + $0x220] sm:$0xff]
    %v187 = vld [vmem:[%s0 + $0x228] sm:$0xff]
    %v188 = vld [vmem:[%s0 + $0x230] sm:$0xff]
    %v189 = vld [vmem:[%s0 + $0x238] sm:$0xff]
    %v190 = vld [vmem:[%s0 + $0x240] sm:$0xff]
    %v191 = vld [vmem:[%s0 + $0x248] sm:$0xff]
    %v192 = vld [vmem:[%s0 + $0x250] sm:$0xff]
    %v193 = vld [vmem:[%s0 + $0x258] sm:$0xff]
    %v194 = vld [vmem:[%s0 + $0x260] sm:$0xff]
    %v195 = vld [vmem:[%s0 + $0x268] sm:$0xff]
    %v196 = vld [vmem:[%s0 + $0x270] sm:$0xff]
    %v197 = vld [vmem:[%s0 + $0x278] sm:$0xff]
    %v198 = vld [vmem:[%s0 + $0x280] sm:$0xff]
    %v199 = vld [vmem:[%s0 + $0x288] sm:$0xff]
    %v200 = vld [vmem:[%s2] sm:$0xff]
    %v201 = vld [vmem:[%s2 + $0x8] sm:$0xff]
    %v202 = vld [vmem:[%s2 + $0x10] sm:$0xff]
    %v203 = vld [vmem:[%s2 + $0x18] sm:$0xff]
    %v204 = vld [vmem:[%s3] sm:$0x1]
    %v206 = vperm.slane %v204, 0
    %vm208 = vcmask 261120
    %v210 = vsel %vm208, %v118, 0
    %v213 = vsel %vm208, %v119, 0
    %v216 = vsel %vm208, %v120, 0
    %v219 = vsel %vm208, %v121, 0
    %v222 = vsel %vm208, %v122, 0
    %v225 = vsel %vm208, %v123, 0
    %v228 = vsel %vm208, %v124, 0
    %v231 = vsel %vm208, %v125, 0
    %v234 = vsel %vm208, %v126, 0
    %v237 = vsel %vm208, %v127, 0
    %v240 = vsel %vm208, %v128, 0
    %v243 = vsel %vm208, %v129, 0
    %v246 = vsel %vm208, %v130, 0
    %v249 = vsel %vm208, %v131, 0
    %v252 = vsel %vm208, %v132, 0
    %v255 = vsel %vm208, %v133, 0
    %v258 = vsel %vm208, %v134, 0
    %v261 = vsel %vm208, %v135, 0
    %v264 = vsel %vm208, %v136, 0
    %v267 = vsel %vm208, %v137, 0
    %v270 = vsel %vm208, %v138, 0
    %v273 = vsel %vm208, %v139, 0
    %v276 = vsel %vm208, %v140, 0
    %v279 = vsel %vm208, %v141, 0
    %v282 = vsel %vm208, %v142, 0
    %v285 = vsel %vm208, %v143, 0
    %v288 = vsel %vm208, %v144, 0
    %v291 = vsel %vm208, %v145, 0
    %v294 = vsel %vm208, %v146, 0
    %v297 = vsel %vm208, %v147, 0
    %v300 = vsel %vm208, %v148, 0
    %v303 = vsel %vm208, %v149, 0
    %v306 = vsel %vm208, %v150, 0
    %v309 = vsel %vm208, %v151, 0
    %v312 = vsel %vm208, %v152, 0
    %v315 = vsel %vm208, %v153, 0
    %v318 = vsel %vm208, %v154, 0
    %v321 = vsel %vm208, %v155, 0
    %v324 = vsel %vm208, %v156, 0
    %v327 = vsel %vm208, %v157, 0
    %v330 = vsel %vm208, %v158, 0
    %v333 = vsel %vm208, %v159, 0
    %v336 = vsel %vm208, %v160, 0
    %v339 = vsel %vm208, %v161, 0
    %v342 = vsel %vm208, %v162, 0
    %v345 = vsel %vm208, %v163, 0
    %v348 = vsel %vm208, %v164, 0
    %v351 = vsel %vm208, %v165, 0
    %v354 = vsel %vm208, %v166, 0
    %v357 = vsel %vm208, %v167, 0
    %v360 = vsel %vm208, %v168, 0
    %v363 = vsel %vm208, %v169, 0
    %v366 = vsel %vm208, %v170, 0
    %v369 = vsel %vm208, %v171, 0
    %v372 = vsel %vm208, %v172, 0
    %v375 = vsel %vm208, %v173, 0
    %v378 = vsel %vm208, %v174, 0
    %v381 = vsel %vm208, %v175, 0
    %v384 = vsel %vm208, %v176, 0
    %v387 = vsel %vm208, %v177, 0
    %v390 = vsel %vm208, %v178, 0
    %v393 = vsel %vm208, %v179, 0
    %v396 = vsel %vm208, %v180, 0
    %v399 = vsel %vm208, %v181, 0
    %v402 = vsel %vm208, %v182, 0
    %v405 = vsel %vm208, %v183, 0
    %v408 = vsel %vm208, %v184, 0
    %v411 = vsel %vm208, %v185, 0
    %v414 = vsel %vm208, %v186, 0
    %v417 = vsel %vm208, %v187, 0
    %v420 = vsel %vm208, %v188, 0
    %v423 = vsel %vm208, %v189, 0
    %v426 = vsel %vm208, %v190, 0
    %v429 = vsel %vm208, %v191, 0
    %v432 = vsel %vm208, %v192, 0
    %v435 = vsel %vm208, %v193, 0
    %v438 = vsel %vm208, %v194, 0
    %v441 = vsel %vm208, %v195, 0
    %v444 = vsel %vm208, %v196, 0
    %v447 = vsel %vm208, %v197, 0
    %v450 = vsel %vm208, %v198, 0
    %v453 = vsel %vm208, %v199, 0
    %455 = vmatpush.msra.mxu0 0.0
    %456 = vmatpush.msra.mxu0 0.0
    %457 = vmatpush.msra.mxu0 0.0
    %458 = vmatpush.msra.mxu0 0.0
    %459 = vmatpush.msra.mxu0 0.0
    %460 = vmatpush.msra.mxu0 0.0
    %461 = vmatpush.msra.mxu0 0.0
    %462 = vmatpush.msra.mxu0 0.0
    %463 = vmatpush.msra.mxu0 0.0
    %464 = vmatpush.msra.mxu0 0.0
    %465 = vmatpush.msra.mxu0 0.0
    %466 = vmatpush.msra.mxu0 0.0
    %467 = vmatpush.msra.mxu0 %v203
    %468 = vmatpush.msra.mxu0 %v202
    %469 = vmatpush.msra.mxu0 %v201
    %470 = vmatpush.msra.mxu0 %v200
    %471 = vmatmul.f32.gmra.mxu0 %v210
    %v472 = vpop.f32.mrf.mxu0
    %v473 = vadd.f32 %v206, %v472
    %474 = vmatmul.f32.gmra.mxu0 %v213
    %v475 = vpop.f32.mrf.mxu0
    %v476 = vadd.f32 %v206, %v475
    %477 = vmatmul.f32.gmra.mxu0 %v216
    %v478 = vpop.f32.mrf.mxu0
    %v479 = vadd.f32 %v206, %v478
    %480 = vmatmul.f32.gmra.mxu0 %v219
    %v481 = vpop.f32.mrf.mxu0
    %v482 = vadd.f32 %v206, %v481
    %483 = vmatmul.f32.gmra.mxu0 %v222
    %v484 = vpop.f32.mrf.mxu0
    %v485 = vadd.f32 %v206, %v484
    %486 = vmatmul.f32.gmra.mxu0 %v225
    %v487 = vpop.f32.mrf.mxu0
    %v488 = vadd.f32 %v206, %v487
    %489 = vmatmul.f32.gmra.mxu0 %v228
    %v490 = vpop.f32.mrf.mxu0
    %v491 = vadd.f32 %v206, %v490
    %492 = vmatmul.f32.gmra.mxu0 %v231
    %v493 = vpop.f32.mrf.mxu0
    %v494 = vadd.f32 %v206, %v493
    %495 = vmatmul.f32.gmra.mxu0 %v234
    %v496 = vpop.f32.mrf.mxu0
    %v497 = vadd.f32 %v206, %v496
    %498 = vmatmul.f32.gmra.mxu0 %v237
    %v499 = vpop.f32.mrf.mxu0
    %v500 = vadd.f32 %v206, %v499
    %501 = vmatmul.f32.gmra.mxu0 %v240
    %v502 = vpop.f32.mrf.mxu0
    %v503 = vadd.f32 %v206, %v502
    %504 = vmatmul.f32.gmra.mxu0 %v243
    %v505 = vpop.f32.mrf.mxu0
    %v506 = vadd.f32 %v206, %v505
    %507 = vmatmul.f32.gmra.mxu0 %v246
    %v508 = vpop.f32.mrf.mxu0
    %v509 = vadd.f32 %v206, %v508
    %510 = vmatmul.f32.gmra.mxu0 %v249
    %v511 = vpop.f32.mrf.mxu0
    %v512 = vadd.f32 %v206, %v511
    %513 = vmatmul.f32.gmra.mxu0 %v252
    %v514 = vpop.f32.mrf.mxu0
    %v515 = vadd.f32 %v206, %v514
    %516 = vmatmul.f32.gmra.mxu0 %v255
    %v517 = vpop.f32.mrf.mxu0
    %v518 = vadd.f32 %v206, %v517
    %519 = vmatmul.f32.gmra.mxu0 %v258
    %v520 = vpop.f32.mrf.mxu0
    %v521 = vadd.f32 %v206, %v520
    %522 = vmatmul.f32.gmra.mxu0 %v261
    %v523 = vpop.f32.mrf.mxu0
    %v524 = vadd.f32 %v206, %v523
    %525 = vmatmul.f32.gmra.mxu0 %v264
    %v526 = vpop.f32.mrf.mxu0
    %v527 = vadd.f32 %v206, %v526
    %528 = vmatmul.f32.gmra.mxu0 %v267
    %v529 = vpop.f32.mrf.mxu0
    %v530 = vadd.f32 %v206, %v529
    %531 = vmatmul.f32.gmra.mxu0 %v270
    %v532 = vpop.f32.mrf.mxu0
    %v533 = vadd.f32 %v206, %v532
    %534 = vmatmul.f32.gmra.mxu0 %v273
    %v535 = vpop.f32.mrf.mxu0
    %v536 = vadd.f32 %v206, %v535
    %537 = vmatmul.f32.gmra.mxu0 %v276
    %v538 = vpop.f32.mrf.mxu0
    %v539 = vadd.f32 %v206, %v538
    %540 = vmatmul.f32.gmra.mxu0 %v279
    %v541 = vpop.f32.mrf.mxu0
    %v542 = vadd.f32 %v206, %v541
    %543 = vmatmul.f32.gmra.mxu0 %v282
    %v544 = vpop.f32.mrf.mxu0
    %v545 = vadd.f32 %v206, %v544
    %546 = vmatmul.f32.gmra.mxu0 %v285
    %v547 = vpop.f32.mrf.mxu0
    %v548 = vadd.f32 %v206, %v547
    %549 = vmatmul.f32.gmra.mxu0 %v288
    %v550 = vpop.f32.mrf.mxu0
    %v551 = vadd.f32 %v206, %v550
    %552 = vmatmul.f32.gmra.mxu0 %v291
    %v553 = vpop.f32.mrf.mxu0
    %v554 = vadd.f32 %v206, %v553
    %555 = vmatmul.f32.gmra.mxu0 %v294
    %v556 = vpop.f32.mrf.mxu0
    %v557 = vadd.f32 %v206, %v556
    %558 = vmatmul.f32.gmra.mxu0 %v297
    %v559 = vpop.f32.mrf.mxu0
    %v560 = vadd.f32 %v206, %v559
    %561 = vmatmul.f32.gmra.mxu0 %v300
    %v562 = vpop.f32.mrf.mxu0
    %v563 = vadd.f32 %v206, %v562
    %564 = vmatmul.f32.gmra.mxu0 %v303
    %v565 = vpop.f32.mrf.mxu0
    %v566 = vadd.f32 %v206, %v565
    %567 = vmatmul.f32.gmra.mxu0 %v306
    %v568 = vpop.f32.mrf.mxu0
    %v569 = vadd.f32 %v206, %v568
    %570 = vmatmul.f32.gmra.mxu0 %v309
    %v571 = vpop.f32.mrf.mxu0
    %v572 = vadd.f32 %v206, %v571
    %573 = vmatmul.f32.gmra.mxu0 %v312
    %v574 = vpop.f32.mrf.mxu0
    %v575 = vadd.f32 %v206, %v574
    %576 = vmatmul.f32.gmra.mxu0 %v315
    %v577 = vpop.f32.mrf.mxu0
    %v578 = vadd.f32 %v206, %v577
    %579 = vmatmul.f32.gmra.mxu0 %v318
    %v580 = vpop.f32.mrf.mxu0
    %v581 = vadd.f32 %v206, %v580
    %582 = vmatmul.f32.gmra.mxu0 %v321
    %v583 = vpop.f32.mrf.mxu0
    %v584 = vadd.f32 %v206, %v583
    %585 = vmatmul.f32.gmra.mxu0 %v324
    %v586 = vpop.f32.mrf.mxu0
    %v587 = vadd.f32 %v206, %v586
    %588 = vmatmul.f32.gmra.mxu0 %v327
    %v589 = vpop.f32.mrf.mxu0
    %v590 = vadd.f32 %v206, %v589
    %591 = vmatmul.f32.gmra.mxu0 %v330
    %v592 = vpop.f32.mrf.mxu0
    %v593 = vadd.f32 %v206, %v592
    %594 = vmatmul.f32.gmra.mxu0 %v333
    %v595 = vpop.f32.mrf.mxu0
    %v596 = vadd.f32 %v206, %v595
    %597 = vmatmul.f32.gmra.mxu0 %v336
    %v598 = vpop.f32.mrf.mxu0
    %v599 = vadd.f32 %v206, %v598
    %600 = vmatmul.f32.gmra.mxu0 %v339
    %v601 = vpop.f32.mrf.mxu0
    %v602 = vadd.f32 %v206, %v601
    %603 = vmatmul.f32.gmra.mxu0 %v342
    %v604 = vpop.f32.mrf.mxu0
    %v605 = vadd.f32 %v206, %v604
    %606 = vmatmul.f32.gmra.mxu0 %v345
    %v607 = vpop.f32.mrf.mxu0
    %v608 = vadd.f32 %v206, %v607
    %609 = vmatmul.f32.gmra.mxu0 %v348
    %v610 = vpop.f32.mrf.mxu0
    %v611 = vadd.f32 %v206, %v610
    %612 = vmatmul.f32.gmra.mxu0 %v351
    %v613 = vpop.f32.mrf.mxu0
    %v614 = vadd.f32 %v206, %v613
    %615 = vmatmul.f32.gmra.mxu0 %v354
    %v616 = vpop.f32.mrf.mxu0
    %v617 = vadd.f32 %v206, %v616
    %618 = vmatmul.f32.gmra.mxu0 %v357
    %v619 = vpop.f32.mrf.mxu0
    %v620 = vadd.f32 %v206, %v619
    %621 = vmatmul.f32.gmra.mxu0 %v360
    %v622 = vpop.f32.mrf.mxu0
    %v623 = vadd.f32 %v206, %v622
    %624 = vmatmul.f32.gmra.mxu0 %v363
    %v625 = vpop.f32.mrf.mxu0
    %v626 = vadd.f32 %v206, %v625
    %627 = vmatmul.f32.gmra.mxu0 %v366
    %v628 = vpop.f32.mrf.mxu0
    %v629 = vadd.f32 %v206, %v628
    %630 = vmatmul.f32.gmra.mxu0 %v369
    %v631 = vpop.f32.mrf.mxu0
    %v632 = vadd.f32 %v206, %v631
    %633 = vmatmul.f32.gmra.mxu0 %v372
    %v634 = vpop.f32.mrf.mxu0
    %v635 = vadd.f32 %v206, %v634
    %636 = vmatmul.f32.gmra.mxu0 %v375
    %v637 = vpop.f32.mrf.mxu0
    %v638 = vadd.f32 %v206, %v637
    %639 = vmatmul.f32.gmra.mxu0 %v378
    %v640 = vpop.f32.mrf.mxu0
    %v641 = vadd.f32 %v206, %v640
    %642 = vmatmul.f32.gmra.mxu0 %v381
    %v643 = vpop.f32.mrf.mxu0
    %v644 = vadd.f32 %v206, %v643
    %645 = vmatmul.f32.gmra.mxu0 %v384
    %v646 = vpop.f32.mrf.mxu0
    %v647 = vadd.f32 %v206, %v646
    %648 = vmatmul.f32.gmra.mxu0 %v387
    %v649 = vpop.f32.mrf.mxu0
    %v650 = vadd.f32 %v206, %v649
    %651 = vmatmul.f32.gmra.mxu0 %v390
    %v652 = vpop.f32.mrf.mxu0
    %v653 = vadd.f32 %v206, %v652
    %654 = vmatmul.f32.gmra.mxu0 %v393
    %v655 = vpop.f32.mrf.mxu0
    %v656 = vadd.f32 %v206, %v655
    %657 = vmatmul.f32.gmra.mxu0 %v396
    %v658 = vpop.f32.mrf.mxu0
    %v659 = vadd.f32 %v206, %v658
    %660 = vmatmul.f32.gmra.mxu0 %v399
    %v661 = vpop.f32.mrf.mxu0
    %v662 = vadd.f32 %v206, %v661
    %663 = vmatmul.f32.gmra.mxu0 %v402
    %v664 = vpop.f32.mrf.mxu0
    %v665 = vadd.f32 %v206, %v664
    %666 = vmatmul.f32.gmra.mxu0 %v405
    %v667 = vpop.f32.mrf.mxu0
    %v668 = vadd.f32 %v206, %v667
    %669 = vmatmul.f32.gmra.mxu0 %v408
    %v670 = vpop.f32.mrf.mxu0
    %v671 = vadd.f32 %v206, %v670
    %672 = vmatmul.f32.gmra.mxu0 %v411
    %v673 = vpop.f32.mrf.mxu0
    %v674 = vadd.f32 %v206, %v673
    %675 = vmatmul.f32.gmra.mxu0 %v414
    %v676 = vpop.f32.mrf.mxu0
    %v677 = vadd.f32 %v206, %v676
    %678 = vmatmul.f32.gmra.mxu0 %v417
    %v679 = vpop.f32.mrf.mxu0
    %v680 = vadd.f32 %v206, %v679
    %681 = vmatmul.f32.gmra.mxu0 %v420
    %v682 = vpop.f32.mrf.mxu0
    %v683 = vadd.f32 %v206, %v682
    %684 = vmatmul.f32.gmra.mxu0 %v423
    %v685 = vpop.f32.mrf.mxu0
    %v686 = vadd.f32 %v206, %v685
    %687 = vmatmul.f32.gmra.mxu0 %v426
    %v688 = vpop.f32.mrf.mxu0
    %v689 = vadd.f32 %v206, %v688
    %690 = vmatmul.f32.gmra.mxu0 %v429
    %v691 = vpop.f32.mrf.mxu0
    %v692 = vadd.f32 %v206, %v691
    %693 = vmatmul.f32.gmra.mxu0 %v432
    %v694 = vpop.f32.mrf.mxu0
    %v695 = vadd.f32 %v206, %v694
    %696 = vmatmul.f32.gmra.mxu0 %v435
    %v697 = vpop.f32.mrf.mxu0
    %v698 = vadd.f32 %v206, %v697
    %699 = vmatmul.f32.gmra.mxu0 %v438
    %v700 = vpop.f32.mrf.mxu0
    %v701 = vadd.f32 %v206, %v700
    %702 = vmatmul.f32.gmra.mxu0 %v441
    %v703 = vpop.f32.mrf.mxu0
    %v704 = vadd.f32 %v206, %v703
    %705 = vmatmul.f32.gmra.mxu0 %v444
    %v706 = vpop.f32.mrf.mxu0
    %v707 = vadd.f32 %v206, %v706
    %708 = vmatmul.f32.gmra.mxu0 %v447
    %v709 = vpop.f32.mrf.mxu0
    %v710 = vadd.f32 %v206, %v709
    %711 = vmatmul.f32.gmra.mxu0 %v450
    %v712 = vpop.f32.mrf.mxu0
    %v713 = vadd.f32 %v206, %v712
    %714 = vmatmul.f32.gmra.mxu0 %v453
    %v715 = vpop.f32.mrf.mxu0
    %v716 = vadd.f32 %v206, %v715
    %717 = vdwg.mxu0
    %v718 = vmax.f32 %v473, 0.0
    %v719 = vmax.f32 %v476, 0.0
    %v720 = vmax.f32 %v479, 0.0
    %v721 = vmax.f32 %v482, 0.0
    %v722 = vmax.f32 %v485, 0.0
    %v723 = vmax.f32 %v488, 0.0
    %v724 = vmax.f32 %v491, 0.0
    %v725 = vmax.f32 %v494, 0.0
    %v726 = vmax.f32 %v497, 0.0
    %v727 = vmax.f32 %v500, 0.0
    %v728 = vmax.f32 %v503, 0.0
    %v729 = vmax.f32 %v506, 0.0
    %v730 = vmax.f32 %v509, 0.0
    %v731 = vmax.f32 %v512, 0.0
    %v732 = vmax.f32 %v515, 0.0
    %v733 = vmax.f32 %v518, 0.0
    %v734 = vmax.f32 %v521, 0.0
    %v735 = vmax.f32 %v524, 0.0
    %v736 = vmax.f32 %v527, 0.0
    %v737 = vmax.f32 %v530, 0.0
    %v738 = vmax.f32 %v533, 0.0
    %v739 = vmax.f32 %v536, 0.0
    %v740 = vmax.f32 %v539, 0.0
    %v741 = vmax.f32 %v542, 0.0
    %v742 = vmax.f32 %v545, 0.0
    %v743 = vmax.f32 %v548, 0.0
    %v744 = vmax.f32 %v551, 0.0
    %v745 = vmax.f32 %v554, 0.0
    %v746 = vmax.f32 %v557, 0.0
    %v747 = vmax.f32 %v560, 0.0
    %v748 = vmax.f32 %v563, 0.0
    %v749 = vmax.f32 %v566, 0.0
    %v750 = vmax.f32 %v569, 0.0
    %v751 = vmax.f32 %v572, 0.0
    %v752 = vmax.f32 %v575, 0.0
    %v753 = vmax.f32 %v578, 0.0
    %v754 = vmax.f32 %v581, 0.0
    %v755 = vmax.f32 %v584, 0.0
    %v756 = vmax.f32 %v587, 0.0
    %v757 = vmax.f32 %v590, 0.0
    %v758 = vmax.f32 %v593, 0.0
    %v759 = vmax.f32 %v596, 0.0
    %v760 = vmax.f32 %v599, 0.0
    %v761 = vmax.f32 %v602, 0.0
    %v762 = vmax.f32 %v605, 0.0
    %v763 = vmax.f32 %v608, 0.0
    %v764 = vmax.f32 %v611, 0.0
    %v765 = vmax.f32 %v614, 0.0
    %v766 = vmax.f32 %v617, 0.0
    %v767 = vmax.f32 %v620, 0.0
    %v768 = vmax.f32 %v623, 0.0
    %v769 = vmax.f32 %v626, 0.0
    %v770 = vmax.f32 %v629, 0.0
    %v771 = vmax.f32 %v632, 0.0
    %v772 = vmax.f32 %v635, 0.0
    %v773 = vmax.f32 %v638, 0.0
    %v774 = vmax.f32 %v641, 0.0
    %v775 = vmax.f32 %v644, 0.0
    %v776 = vmax.f32 %v647, 0.0
    %v777 = vmax.f32 %v650, 0.0
    %v778 = vmax.f32 %v653, 0.0
    %v779 = vmax.f32 %v656, 0.0
    %v780 = vmax.f32 %v659, 0.0
    %v781 = vmax.f32 %v662, 0.0
    %v782 = vmax.f32 %v665, 0.0
    %v783 = vmax.f32 %v668, 0.0
    %v784 = vmax.f32 %v671, 0.0
    %v785 = vmax.f32 %v674, 0.0
    %v786 = vmax.f32 %v677, 0.0
    %v787 = vmax.f32 %v680, 0.0
    %v788 = vmax.f32 %v683, 0.0
    %v789 = vmax.f32 %v686, 0.0
    %v790 = vmax.f32 %v689, 0.0
    %v791 = vmax.f32 %v692, 0.0
    %v792 = vmax.f32 %v695, 0.0
    %v793 = vmax.f32 %v698, 0.0
    %v794 = vmax.f32 %v701, 0.0
    %v795 = vmax.f32 %v704, 0.0
    %v796 = vmax.f32 %v707, 0.0
    %v797 = vmax.f32 %v710, 0.0
    %v798 = vmax.f32 %v713, 0.0
    %v799 = vmax.f32 %v716, 0.0
    %v800 = vmul.f32 %v718, %v36
    %v801 = vmul.f32 %v719, %v37
    %v802 = vmul.f32 %v720, %v38
    %v803 = vmul.f32 %v721, %v39
    %v804 = vmul.f32 %v722, %v40
    %v805 = vmul.f32 %v723, %v41
    %v806 = vmul.f32 %v724, %v42
    %v807 = vmul.f32 %v725, %v43
    %v808 = vmul.f32 %v726, %v44
    %v809 = vmul.f32 %v727, %v45
    %v810 = vmul.f32 %v728, %v46
    %v811 = vmul.f32 %v729, %v47
    %v812 = vmul.f32 %v730, %v48
    %v813 = vmul.f32 %v731, %v49
    %v814 = vmul.f32 %v732, %v50
    %v815 = vmul.f32 %v733, %v51
    %v816 = vmul.f32 %v734, %v52
    %v817 = vmul.f32 %v735, %v53
    %v818 = vmul.f32 %v736, %v54
    %v819 = vmul.f32 %v737, %v55
    %v820 = vmul.f32 %v738, %v56
    %v821 = vmul.f32 %v739, %v57
    %v822 = vmul.f32 %v740, %v58
    %v823 = vmul.f32 %v741, %v59
    %v824 = vmul.f32 %v742, %v60
    %v825 = vmul.f32 %v743, %v61
    %v826 = vmul.f32 %v744, %v62
    %v827 = vmul.f32 %v745, %v63
    %v828 = vmul.f32 %v746, %v64
    %v829 = vmul.f32 %v747, %v65
    %v830 = vmul.f32 %v748, %v66
    %v831 = vmul.f32 %v749, %v67
    %v832 = vmul.f32 %v750, %v68
    %v833 = vmul.f32 %v751, %v69
    %v834 = vmul.f32 %v752, %v70
    %v835 = vmul.f32 %v753, %v71
    %v836 = vmul.f32 %v754, %v72
    %v837 = vmul.f32 %v755, %v73
    %v838 = vmul.f32 %v756, %v74
    %v839 = vmul.f32 %v757, %v75
    %v840 = vmul.f32 %v758, %v76
    %v841 = vmul.f32 %v759, %v77
    %v842 = vmul.f32 %v760, %v78
    %v843 = vmul.f32 %v761, %v79
    %v844 = vmul.f32 %v762, %v80
    %v845 = vmul.f32 %v763, %v81
    %v846 = vmul.f32 %v764, %v82
    %v847 = vmul.f32 %v765, %v83
    %v848 = vmul.f32 %v766, %v84
    %v849 = vmul.f32 %v767, %v85
    %v850 = vmul.f32 %v768, %v86
    %v851 = vmul.f32 %v769, %v87
    %v852 = vmul.f32 %v770, %v88
    %v853 = vmul.f32 %v771, %v89
    %v854 = vmul.f32 %v772, %v90
    %v855 = vmul.f32 %v773, %v91
    %v856 = vmul.f32 %v774, %v92
    %v857 = vmul.f32 %v775, %v93
    %v858 = vmul.f32 %v776, %v94
    %v859 = vmul.f32 %v777, %v95
    %v860 = vmul.f32 %v778, %v96
    %v861 = vmul.f32 %v779, %v97
    %v862 = vmul.f32 %v780, %v98
    %v863 = vmul.f32 %v781, %v99
    %v864 = vmul.f32 %v782, %v100
    %v865 = vmul.f32 %v783, %v101
    %v866 = vmul.f32 %v784, %v102
    %v867 = vmul.f32 %v785, %v103
    %v868 = vmul.f32 %v786, %v104
    %v869 = vmul.f32 %v787, %v105
    %v870 = vmul.f32 %v788, %v106
    %v871 = vmul.f32 %v789, %v107
    %v872 = vmul.f32 %v790, %v108
    %v873 = vmul.f32 %v791, %v109
    %v874 = vmul.f32 %v792, %v110
    %v875 = vmul.f32 %v793, %v111
    %v876 = vmul.f32 %v794, %v112
    %v877 = vmul.f32 %v795, %v113
    %v878 = vmul.f32 %v796, %v114
    %v879 = vmul.f32 %v797, %v115
    %v880 = vmul.f32 %v798, %v116
    %v881 = vmul.f32 %v799, %v117
    %882 = vst [vmem:[#allocation2] sm:$0xff] %v800
    %883 = vst [vmem:[#allocation2 + $0x8] sm:$0xff] %v801
    %884 = vst [vmem:[#allocation2 + $0x10] sm:$0xff] %v802
    %885 = vst [vmem:[#allocation2 + $0x18] sm:$0xff] %v803
    %886 = vst [vmem:[#allocation2 + $0x20] sm:$0xff] %v804
    %887 = vst [vmem:[#allocation2 + $0x28] sm:$0xff] %v805
    %888 = vst [vmem:[#allocation2 + $0x30] sm:$0xff] %v806
    %889 = vst [vmem:[#allocation2 + $0x38] sm:$0xff] %v807
    %890 = vst [vmem:[#allocation2 + $0x40] sm:$0xff] %v808
    %891 = vst [vmem:[#allocation2 + $0x48] sm:$0xff] %v809
    %892 = vst [vmem:[#allocation2 + $0x50] sm:$0xff] %v810
    %893 = vst [vmem:[#allocation2 + $0x58] sm:$0xff] %v811
    %894 = vst [vmem:[#allocation2 + $0x60] sm:$0xff] %v812
    %895 = vst [vmem:[#allocation2 + $0x68] sm:$0xff] %v813
    %896 = vst [vmem:[#allocation2 + $0x70] sm:$0xff] %v814
    %897 = vst [vmem:[#allocation2 + $0x78] sm:$0xff] %v815
    %898 = vst [vmem:[#allocation2 + $0x80] sm:$0xff] %v816
    %899 = vst [vmem:[#allocation2 + $0x88] sm:$0xff] %v817
    %900 = vst [vmem:[#allocation2 + $0x90] sm:$0xff] %v818
    %901 = vst [vmem:[#allocation2 + $0x98] sm:$0xff] %v819
    %902 = vst [vmem:[#allocation2 + $0xa0] sm:$0xff] %v820
    %903 = vst [vmem:[#allocation2 + $0xa8] sm:$0xff] %v821
    %904 = vst [vmem:[#allocation2 + $0xb0] sm:$0xff] %v822
    %905 = vst [vmem:[#allocation2 + $0xb8] sm:$0xff] %v823
    %906 = vst [vmem:[#allocation2 + $0xc0] sm:$0xff] %v824
    %907 = vst [vmem:[#allocation2 + $0xc8] sm:$0xff] %v825
    %908 = vst [vmem:[#allocation2 + $0xd0] sm:$0xff] %v826
    %909 = vst [vmem:[#allocation2 + $0xd8] sm:$0xff] %v827
    %910 = vst [vmem:[#allocation2 + $0xe0] sm:$0xff] %v828
    %911 = vst [vmem:[#allocation2 + $0xe8] sm:$0xff] %v829
    %912 = vst [vmem:[#allocation2 + $0xf0] sm:$0xff] %v830
    %913 = vst [vmem:[#allocation2 + $0xf8] sm:$0xff] %v831
    %914 = vst [vmem:[#allocation2 + $0x100] sm:$0xff] %v832
    %915 = vst [vmem:[#allocation2 + $0x108] sm:$0xff] %v833
    %916 = vst [vmem:[#allocation2 + $0x110] sm:$0xff] %v834
    %917 = vst [vmem:[#allocation2 + $0x118] sm:$0xff] %v835
    %918 = vst [vmem:[#allocation2 + $0x120] sm:$0xff] %v836
    %919 = vst [vmem:[#allocation2 + $0x128] sm:$0xff] %v837
    %920 = vst [vmem:[#allocation2 + $0x130] sm:$0xff] %v838
    %921 = vst [vmem:[#allocation2 + $0x138] sm:$0xff] %v839
    %922 = vst [vmem:[#allocation2 + $0x140] sm:$0xff] %v840
    %923 = vst [vmem:[#allocation2 + $0x148] sm:$0xff] %v841
    %924 = vst [vmem:[#allocation2 + $0x150] sm:$0xff] %v842
    %925 = vst [vmem:[#allocation2 + $0x158] sm:$0xff] %v843
    %926 = vst [vmem:[#allocation2 + $0x160] sm:$0xff] %v844
    %927 = vst [vmem:[#allocation2 + $0x168] sm:$0xff] %v845
    %928 = vst [vmem:[#allocation2 + $0x170] sm:$0xff] %v846
    %929 = vst [vmem:[#allocation2 + $0x178] sm:$0xff] %v847
    %930 = vst [vmem:[#allocation2 + $0x180] sm:$0xff] %v848
    %931 = vst [vmem:[#allocation2 + $0x188] sm:$0xff] %v849
    %932 = vst [vmem:[#allocation2 + $0x190] sm:$0xff] %v850
    %933 = vst [vmem:[#allocation2 + $0x198] sm:$0xff] %v851
    %934 = vst [vmem:[#allocation2 + $0x1a0] sm:$0xff] %v852
    %935 = vst [vmem:[#allocation2 + $0x1a8] sm:$0xff] %v853
    %936 = vst [vmem:[#allocation2 + $0x1b0] sm:$0xff] %v854
    %937 = vst [vmem:[#allocation2 + $0x1b8] sm:$0xff] %v855
    %938 = vst [vmem:[#allocation2 + $0x1c0] sm:$0xff] %v856
    %939 = vst [vmem:[#allocation2 + $0x1c8] sm:$0xff] %v857
    %940 = vst [vmem:[#allocation2 + $0x1d0] sm:$0xff] %v858
    %941 = vst [vmem:[#allocation2 + $0x1d8] sm:$0xff] %v859
    %942 = vst [vmem:[#allocation2 + $0x1e0] sm:$0xff] %v860
    %943 = vst [vmem:[#allocation2 + $0x1e8] sm:$0xff] %v861
    %944 = vst [vmem:[#allocation2 + $0x1f0] sm:$0xff] %v862
    %945 = vst [vmem:[#allocation2 + $0x1f8] sm:$0xff] %v863
    %946 = vst [vmem:[#allocation2 + $0x200] sm:$0xff] %v864
    %947 = vst [vmem:[#allocation2 + $0x208] sm:$0xff] %v865
    %948 = vst [vmem:[#allocation2 + $0x210] sm:$0xff] %v866
    %949 = vst [vmem:[#allocation2 + $0x218] sm:$0xff] %v867
    %950 = vst [vmem:[#allocation2 + $0x220] sm:$0xff] %v868
    %951 = vst [vmem:[#allocation2 + $0x228] sm:$0xff] %v869
    %952 = vst [vmem:[#allocation2 + $0x230] sm:$0xff] %v870
    %953 = vst [vmem:[#allocation2 + $0x238] sm:$0xff] %v871
    %954 = vst [vmem:[#allocation2 + $0x240] sm:$0xff] %v872
    %955 = vst [vmem:[#allocation2 + $0x248] sm:$0xff] %v873
    %956 = vst [vmem:[#allocation2 + $0x250] sm:$0xff] %v874
    %957 = vst [vmem:[#allocation2 + $0x258] sm:$0xff] %v875
    %958 = vst [vmem:[#allocation2 + $0x260] sm:$0xff] %v876
    %959 = vst [vmem:[#allocation2 + $0x268] sm:$0xff] %v877
    %960 = vst [vmem:[#allocation2 + $0x270] sm:$0xff] %v878
    %961 = vst [vmem:[#allocation2 + $0x278] sm:$0xff] %v879
    %962 = vst [vmem:[#allocation2 + $0x280] sm:$0xff] %v880
    %963 = vst [vmem:[#allocation2 + $0x288] sm:$0xff] %v881
    %v964 = vld [vmem:[#allocation2] sm:$0xff]
    %v965 = vld [vmem:[#allocation2 + $0x8] sm:$0xff]
    %v966 = vld [vmem:[#allocation2 + $0x10] sm:$0xff]
    %v967 = vld [vmem:[#allocation2 + $0x18] sm:$0xff]
    %v968 = vld [vmem:[#allocation2 + $0x20] sm:$0xff]
    %v969 = vld [vmem:[#allocation2 + $0x28] sm:$0xff]
    %v970 = vld [vmem:[#allocation2 + $0x30] sm:$0xff]
    %v971 = vld [vmem:[#allocation2 + $0x38] sm:$0xff]
    %v972 = vld [vmem:[#allocation2 + $0x40] sm:$0xff]
    %v973 = vld [vmem:[#allocation2 + $0x48] sm:$0xff]
    %v974 = vld [vmem:[#allocation2 + $0x50] sm:$0xff]
    %v975 = vld [vmem:[#allocation2 + $0x58] sm:$0xff]
    %v976 = vld [vmem:[#allocation2 + $0x60] sm:$0xff]
    %v977 = vld [vmem:[#allocation2 + $0x68] sm:$0xff]
    %v978 = vld [vmem:[#allocation2 + $0x70] sm:$0xff]
    %v979 = vld [vmem:[#allocation2 + $0x78] sm:$0xff]
    %v980 = vld [vmem:[#allocation2 + $0x80] sm:$0xff]
    %v981 = vld [vmem:[#allocation2 + $0x88] sm:$0xff]
    %v982 = vld [vmem:[#allocation2 + $0x90] sm:$0xff]
    %v983 = vld [vmem:[#allocation2 + $0x98] sm:$0xff]
    %v984 = vld [vmem:[#allocation2 + $0xa0] sm:$0xff]
    %v985 = vld [vmem:[#allocation2 + $0xa8] sm:$0xff]
    %v986 = vld [vmem:[#allocation2 + $0xb0] sm:$0xff]
    %v987 = vld [vmem:[#allocation2 + $0xb8] sm:$0xff]
    %v988 = vld [vmem:[#allocation2 + $0xc0] sm:$0xff]
    %v989 = vld [vmem:[#allocation2 + $0xc8] sm:$0xff]
    %v990 = vld [vmem:[#allocation2 + $0xd0] sm:$0xff]
    %v991 = vld [vmem:[#allocation2 + $0xd8] sm:$0xff]
    %v992 = vld [vmem:[#allocation2 + $0xe0] sm:$0xff]
    %v993 = vld [vmem:[#allocation2 + $0xe8] sm:$0xff]
    %v994 = vld [vmem:[#allocation2 + $0xf0] sm:$0xff]
    %v995 = vld [vmem:[#allocation2 + $0xf8] sm:$0xff]
    %v996 = vld [vmem:[#allocation2 + $0x100] sm:$0xff]
    %v997 = vld [vmem:[#allocation2 + $0x108] sm:$0xff]
    %v998 = vld [vmem:[#allocation2 + $0x110] sm:$0xff]
    %v999 = vld [vmem:[#allocation2 + $0x118] sm:$0xff]
    %v1000 = vld [vmem:[#allocation2 + $0x120] sm:$0xff]
    %v1001 = vld [vmem:[#allocation2 + $0x128] sm:$0xff]
    %v1002 = vld [vmem:[#allocation2 + $0x130] sm:$0xff]
    %v1003 = vld [vmem:[#allocation2 + $0x138] sm:$0xff]
    %v1004 = vld [vmem:[#allocation2 + $0x140] sm:$0xff]
    %v1005 = vld [vmem:[#allocation2 + $0x148] sm:$0xff]
    %v1006 = vld [vmem:[#allocation2 + $0x150] sm:$0xff]
    %v1007 = vld [vmem:[#allocation2 + $0x158] sm:$0xff]
    %v1008 = vld [vmem:[#allocation2 + $0x160] sm:$0xff]
    %v1009 = vld [vmem:[#allocation2 + $0x168] sm:$0xff]
    %v1010 = vld [vmem:[#allocation2 + $0x170] sm:$0xff]
    %v1011 = vld [vmem:[#allocation2 + $0x178] sm:$0xff]
    %v1012 = vld [vmem:[#allocation2 + $0x180] sm:$0xff]
    %v1013 = vld [vmem:[#allocation2 + $0x188] sm:$0xff]
    %v1014 = vld [vmem:[#allocation2 + $0x190] sm:$0xff]
    %v1015 = vld [vmem:[#allocation2 + $0x198] sm:$0xff]
    %v1016 = vld [vmem:[#allocation2 + $0x1a0] sm:$0xff]
    %v1017 = vld [vmem:[#allocation2 + $0x1a8] sm:$0xff]
    %v1018 = vld [vmem:[#allocation2 + $0x1b0] sm:$0xff]
    %v1019 = vld [vmem:[#allocation2 + $0x1b8] sm:$0xff]
    %v1020 = vld [vmem:[#allocation2 + $0x1c0] sm:$0xff]
    %v1021 = vld [vmem:[#allocation2 + $0x1c8] sm:$0xff]
    %v1022 = vld [vmem:[#allocation2 + $0x1d0] sm:$0xff]
    %v1023 = vld [vmem:[#allocation2 + $0x1d8] sm:$0xff]
    %v1024 = vld [vmem:[#allocation2 + $0x1e0] sm:$0xff]
    %v1025 = vld [vmem:[#allocation2 + $0x1e8] sm:$0xff]
    %v1026 = vld [vmem:[#allocation2 + $0x1f0] sm:$0xff]
    %v1027 = vld [vmem:[#allocation2 + $0x1f8] sm:$0xff]
    %v1028 = vld [vmem:[#allocation2 + $0x200] sm:$0xff]
    %v1029 = vld [vmem:[#allocation2 + $0x208] sm:$0xff]
    %v1030 = vld [vmem:[#allocation2 + $0x210] sm:$0xff]
    %v1031 = vld [vmem:[#allocation2 + $0x218] sm:$0xff]
    %v1032 = vld [vmem:[#allocation2 + $0x220] sm:$0xff]
    %v1033 = vld [vmem:[#allocation2 + $0x228] sm:$0xff]
    %v1034 = vld [vmem:[#allocation2 + $0x230] sm:$0xff]
    %v1035 = vld [vmem:[#allocation2 + $0x238] sm:$0xff]
    %v1036 = vld [vmem:[#allocation2 + $0x240] sm:$0xff]
    %v1037 = vld [vmem:[#allocation2 + $0x248] sm:$0xff]
    %v1038 = vld [vmem:[#allocation2 + $0x250] sm:$0xff]
    %v1039 = vld [vmem:[#allocation2 + $0x258] sm:$0xff]
    %v1040 = vld [vmem:[#allocation2 + $0x260] sm:$0xff]
    %v1041 = vld [vmem:[#allocation2 + $0x268] sm:$0xff]
    %v1042 = vld [vmem:[#allocation2 + $0x270] sm:$0xff]
    %v1043 = vld [vmem:[#allocation2 + $0x278] sm:$0xff]
    %v1044 = vld [vmem:[#allocation2 + $0x280] sm:$0xff]
    %v1045 = vld [vmem:[#allocation2 + $0x288] sm:$0xff]
    %v1046 = vrot.slane %v964, 5
    %v1047 = vrot.slane %v965, 5
    %v1048 = vrot.slane %v966, 5
    %v1049 = vrot.slane %v967, 5
    %v1050 = vrot.slane %v968, 5
    %v1051 = vrot.slane %v969, 5
    %v1052 = vrot.slane %v970, 5
    %v1053 = vrot.slane %v971, 5
    %v1054 = vrot.slane %v972, 5
    %v1055 = vrot.slane %v973, 5
    %v1056 = vrot.slane %v974, 5
    %v1057 = vrot.slane %v975, 5
    %v1058 = vrot.slane %v976, 5
    %v1059 = vrot.slane %v977, 5
    %v1060 = vrot.slane %v978, 5
    %v1061 = vrot.slane %v979, 5
    %v1062 = vrot.slane %v980, 5
    %v1063 = vrot.slane %v981, 5
    %v1064 = vrot.slane %v982, 5
    %v1065 = vrot.slane %v983, 5
    %v1066 = vrot.slane %v984, 5
    %v1067 = vrot.slane %v985, 5
    %v1068 = vrot.slane %v986, 5
    %v1069 = vrot.slane %v987, 5
    %v1070 = vrot.slane %v988, 5
    %v1071 = vrot.slane %v989, 5
    %v1072 = vrot.slane %v990, 5
    %v1073 = vrot.slane %v991, 5
    %v1074 = vrot.slane %v992, 5
    %v1075 = vrot.slane %v993, 5
    %v1076 = vrot.slane %v994, 5
    %v1077 = vrot.slane %v995, 5
    %v1078 = vrot.slane %v996, 5
    %v1079 = vrot.slane %v997, 5
    %v1080 = vrot.slane %v998, 5
    %v1081 = vrot.slane %v999, 5
    %v1082 = vrot.slane %v1000, 5
    %v1083 = vrot.slane %v1001, 5
    %v1084 = vrot.slane %v1002, 5
    %v1085 = vrot.slane %v1003, 5
    %v1086 = vrot.slane %v1004, 5
    %v1087 = vrot.slane %v1005, 5
    %v1088 = vrot.slane %v1006, 5
    %v1089 = vrot.slane %v1007, 5
    %v1090 = vrot.slane %v1008, 5
    %v1091 = vrot.slane %v1009, 5
    %v1092 = vrot.slane %v1010, 5
    %v1093 = vrot.slane %v1011, 5
    %v1094 = vrot.slane %v1012, 5
    %v1095 = vrot.slane %v1013, 5
    %v1096 = vrot.slane %v1014, 5
    %v1097 = vrot.slane %v1015, 5
    %v1098 = vrot.slane %v1016, 5
    %v1099 = vrot.slane %v1017, 5
    %v1100 = vrot.slane %v1018, 5
    %v1101 = vrot.slane %v1019, 5
    %v1102 = vrot.slane %v1020, 5
    %v1103 = vrot.slane %v1021, 5
    %v1104 = vrot.slane %v1022, 5
    %v1105 = vrot.slane %v1023, 5
    %v1106 = vrot.slane %v1024, 5
    %v1107 = vrot.slane %v1025, 5
    %v1108 = vrot.slane %v1026, 5
    %v1109 = vrot.slane %v1027, 5
    %v1110 = vrot.slane %v1028, 5
    %v1111 = vrot.slane %v1029, 5
    %v1112 = vrot.slane %v1030, 5
    %v1113 = vrot.slane %v1031, 5
    %v1114 = vrot.slane %v1032, 5
    %v1115 = vrot.slane %v1033, 5
    %v1116 = vrot.slane %v1034, 5
    %v1117 = vrot.slane %v1035, 5
    %v1118 = vrot.slane %v1036, 5
    %v1119 = vrot.slane %v1037, 5
    %v1120 = vrot.slane %v1038, 5
    %v1121 = vrot.slane %v1039, 5
    %v1122 = vrot.slane %v1040, 5
    %v1123 = vrot.slane %v1041, 5
    %v1124 = vrot.slane %v1042, 5
    %v1125 = vrot.slane %v1043, 5
    %v1126 = vrot.slane %v1044, 5
    %v1127 = vrot.slane %v1045, 5
    %v1128 = vlaneseq
    %v1129 = vshrl.u32 %v1128, 7
    %vm1130 = vcmp.lt.s32.totalorder %v1129, 3
    %v1131 = vsel %vm1130, %v1126, %v1127
    %v1132 = vsel %vm1130, %v1125, %v1126
    %v1133 = vsel %vm1130, %v1124, %v1125
    %v1134 = vsel %vm1130, %v1123, %v1124
    %v1135 = vsel %vm1130, %v1122, %v1123
    %v1136 = vsel %vm1130, %v1121, %v1122
    %v1137 = vsel %vm1130, %v1120, %v1121
    %v1138 = vsel %vm1130, %v1119, %v1120
    %v1139 = vsel %vm1130, %v1118, %v1119
    %v1140 = vsel %vm1130, %v1117, %v1118
    %v1141 = vsel %vm1130, %v1116, %v1117
    %v1142 = vsel %vm1130, %v1115, %v1116
    %v1143 = vsel %vm1130, %v1114, %v1115
    %v1144 = vsel %vm1130, %v1113, %v1114
    %v1145 = vsel %vm1130, %v1112, %v1113
    %v1146 = vsel %vm1130, %v1111, %v1112
    %v1147 = vsel %vm1130, %v1110, %v1111
    %v1148 = vsel %vm1130, %v1109, %v1110
    %v1149 = vsel %vm1130, %v1108, %v1109
    %v1150 = vsel %vm1130, %v1107, %v1108
    %v1151 = vsel %vm1130, %v1106, %v1107
    %v1152 = vsel %vm1130, %v1105, %v1106
    %v1153 = vsel %vm1130, %v1104, %v1105
    %v1154 = vsel %vm1130, %v1103, %v1104
    %v1155 = vsel %vm1130, %v1102, %v1103
    %v1156 = vsel %vm1130, %v1101, %v1102
    %v1157 = vsel %vm1130, %v1100, %v1101
    %v1158 = vsel %vm1130, %v1099, %v1100
    %v1159 = vsel %vm1130, %v1098, %v1099
    %v1160 = vsel %vm1130, %v1097, %v1098
    %v1161 = vsel %vm1130, %v1096, %v1097
    %v1162 = vsel %vm1130, %v1095, %v1096
    %v1163 = vsel %vm1130, %v1094, %v1095
    %v1164 = vsel %vm1130, %v1093, %v1094
    %v1165 = vsel %vm1130, %v1092, %v1093
    %v1166 = vsel %vm1130, %v1091, %v1092
    %v1167 = vsel %vm1130, %v1090, %v1091
    %v1168 = vsel %vm1130, %v1089, %v1090
    %v1169 = vsel %vm1130, %v1088, %v1089
    %v1170 = vsel %vm1130, %v1087, %v1088
    %v1171 = vsel %vm1130, %v1086, %v1087
    %v1172 = vsel %vm1130, %v1085, %v1086
    %v1173 = vsel %vm1130, %v1084, %v1085
    %v1174 = vsel %vm1130, %v1083, %v1084
    %v1175 = vsel %vm1130, %v1082, %v1083
    %v1176 = vsel %vm1130, %v1081, %v1082
    %v1177 = vsel %vm1130, %v1080, %v1081
    %v1178 = vsel %vm1130, %v1079, %v1080
    %v1179 = vsel %vm1130, %v1078, %v1079
    %v1180 = vsel %vm1130, %v1077, %v1078
    %v1181 = vsel %vm1130, %v1076, %v1077
    %v1182 = vsel %vm1130, %v1075, %v1076
    %v1183 = vsel %vm1130, %v1074, %v1075
    %v1184 = vsel %vm1130, %v1073, %v1074
    %v1185 = vsel %vm1130, %v1072, %v1073
    %v1186 = vsel %vm1130, %v1071, %v1072
    %v1187 = vsel %vm1130, %v1070, %v1071
    %v1188 = vsel %vm1130, %v1069, %v1070
    %v1189 = vsel %vm1130, %v1068, %v1069
    %v1190 = vsel %vm1130, %v1067, %v1068
    %v1191 = vsel %vm1130, %v1066, %v1067
    %v1192 = vsel %vm1130, %v1065, %v1066
    %v1193 = vsel %vm1130, %v1064, %v1065
    %v1194 = vsel %vm1130, %v1063, %v1064
    %v1195 = vsel %vm1130, %v1062, %v1063
    %v1196 = vsel %vm1130, %v1061, %v1062
    %v1197 = vsel %vm1130, %v1060, %v1061
    %v1198 = vsel %vm1130, %v1059, %v1060
    %v1199 = vsel %vm1130, %v1058, %v1059
    %v1200 = vsel %vm1130, %v1057, %v1058
    %v1201 = vsel %vm1130, %v1056, %v1057
    %v1202 = vsel %vm1130, %v1055, %v1056
    %v1203 = vsel %vm1130, %v1054, %v1055
    %v1204 = vsel %vm1130, %v1053, %v1054
    %v1205 = vsel %vm1130, %v1052, %v1053
    %v1206 = vsel %vm1130, %v1051, %v1052
    %v1207 = vsel %vm1130, %v1050, %v1051
    %v1208 = vsel %vm1130, %v1049, %v1050
    %v1209 = vsel %vm1130, %v1048, %v1049
    %v1210 = vsel %vm1130, %v1047, %v1048
    %v1211 = vsel %vm1130, %v1046, %v1047
    %v1212 = vsel %vm1130, %v1127, %v1046
    %v1213 = vld [vmem:[%s4] sm:$0xff]
    %v1214 = vld [vmem:[%s4 + $0x8] sm:$0xff]
    %v1215 = vld [vmem:[%s4 + $0x10] sm:$0xff]
    %v1216 = vld [vmem:[%s4 + $0x18] sm:$0xff]
    %v1217 = vld [vmem:[%s4 + $0x20] sm:$0xff]
    %v1218 = vld [vmem:[%s4 + $0x28] sm:$0xff]
    %v1219 = vld [vmem:[%s4 + $0x30] sm:$0xff]
    %v1220 = vld [vmem:[%s4 + $0x38] sm:$0xff]
    %v1221 = vld [vmem:[%s4 + $0x40] sm:$0xff]
    %v1222 = vld [vmem:[%s4 + $0x48] sm:$0xff]
    %v1223 = vld [vmem:[%s4 + $0x50] sm:$0xff]
    %v1224 = vld [vmem:[%s4 + $0x58] sm:$0xff]
    %v1225 = vld [vmem:[%s4 + $0x60] sm:$0xff]
    %v1226 = vld [vmem:[%s4 + $0x68] sm:$0xff]
    %v1227 = vld [vmem:[%s4 + $0x70] sm:$0xff]
    %v1228 = vld [vmem:[%s4 + $0x78] sm:$0xff]
    %v1229 = vrot.slane %v964, 6
    %v1230 = vrot.slane %v965, 6
    %v1231 = vrot.slane %v966, 6
    %v1232 = vrot.slane %v967, 6
    %v1233 = vrot.slane %v968, 6
    %v1234 = vrot.slane %v969, 6
    %v1235 = vrot.slane %v970, 6
    %v1236 = vrot.slane %v971, 6
    %v1237 = vrot.slane %v972, 6
    %v1238 = vrot.slane %v973, 6
    %v1239 = vrot.slane %v974, 6
    %v1240 = vrot.slane %v975, 6
    %v1241 = vrot.slane %v976, 6
    %v1242 = vrot.slane %v977, 6
    %v1243 = vrot.slane %v978, 6
    %v1244 = vrot.slane %v979, 6
    %v1245 = vrot.slane %v980, 6
    %v1246 = vrot.slane %v981, 6
    %v1247 = vrot.slane %v982, 6
    %v1248 = vrot.slane %v983, 6
    %v1249 = vrot.slane %v984, 6
    %v1250 = vrot.slane %v985, 6
    %v1251 = vrot.slane %v986, 6
    %v1252 = vrot.slane %v987, 6
    %v1253 = vrot.slane %v988, 6
    %v1254 = vrot.slane %v989, 6
    %v1255 = vrot.slane %v990, 6
    %v1256 = vrot.slane %v991, 6
    %v1257 = vrot.slane %v992, 6
    %v1258 = vrot.slane %v993, 6
    %v1259 = vrot.slane %v994, 6
    %v1260 = vrot.slane %v995, 6
    %v1261 = vrot.slane %v996, 6
    %v1262 = vrot.slane %v997, 6
    %v1263 = vrot.slane %v998, 6
    %v1264 = vrot.slane %v999, 6
    %v1265 = vrot.slane %v1000, 6
    %v1266 = vrot.slane %v1001, 6
    %v1267 = vrot.slane %v1002, 6
    %v1268 = vrot.slane %v1003, 6
    %v1269 = vrot.slane %v1004, 6
    %v1270 = vrot.slane %v1005, 6
    %v1271 = vrot.slane %v1006, 6
    %v1272 = vrot.slane %v1007, 6
    %v1273 = vrot.slane %v1008, 6
    %v1274 = vrot.slane %v1009, 6
    %v1275 = vrot.slane %v1010, 6
    %v1276 = vrot.slane %v1011, 6
    %v1277 = vrot.slane %v1012, 6
    %v1278 = vrot.slane %v1013, 6
    %v1279 = vrot.slane %v1014, 6
    %v1280 = vrot.slane %v1015, 6
    %v1281 = vrot.slane %v1016, 6
    %v1282 = vrot.slane %v1017, 6
    %v1283 = vrot.slane %v1018, 6
    %v1284 = vrot.slane %v1019, 6
    %v1285 = vrot.slane %v1020, 6
    %v1286 = vrot.slane %v1021, 6
    %v1287 = vrot.slane %v1022, 6
    %v1288 = vrot.slane %v1023, 6
    %v1289 = vrot.slane %v1024, 6
    %v1290 = vrot.slane %v1025, 6
    %v1291 = vrot.slane %v1026, 6
    %v1292 = vrot.slane %v1027, 6
    %v1293 = vrot.slane %v1028, 6
    %v1294 = vrot.slane %v1029, 6
    %v1295 = vrot.slane %v1030, 6
    %v1296 = vrot.slane %v1031, 6
    %v1297 = vrot.slane %v1032, 6
    %v1298 = vrot.slane %v1033, 6
    %v1299 = vrot.slane %v1034, 6
    %v1300 = vrot.slane %v1035, 6
    %v1301 = vrot.slane %v1036, 6
    %v1302 = vrot.slane %v1037, 6
    %v1303 = vrot.slane %v1038, 6
    %v1304 = vrot.slane %v1039, 6
    %v1305 = vrot.slane %v1040, 6
    %v1306 = vrot.slane %v1041, 6
    %v1307 = vrot.slane %v1042, 6
    %v1308 = vrot.slane %v1043, 6
    %v1309 = vrot.slane %v1044, 6
    %v1310 = vrot.slane %v1045, 6
    %vm1311 = vcmp.lt.s32.totalorder %v1129, 2
    %v1312 = vsel %vm1311, %v1309, %v1310
    %v1313 = vsel %vm1311, %v1308, %v1309
    %v1314 = vsel %vm1311, %v1307, %v1308
    %v1315 = vsel %vm1311, %v1306, %v1307
    %v1316 = vsel %vm1311, %v1305, %v1306
    %v1317 = vsel %vm1311, %v1304, %v1305
    %v1318 = vsel %vm1311, %v1303, %v1304
    %v1319 = vsel %vm1311, %v1302, %v1303
    %v1320 = vsel %vm1311, %v1301, %v1302
    %v1321 = vsel %vm1311, %v1300, %v1301
    %v1322 = vsel %vm1311, %v1299, %v1300
    %v1323 = vsel %vm1311, %v1298, %v1299
    %v1324 = vsel %vm1311, %v1297, %v1298
    %v1325 = vsel %vm1311, %v1296, %v1297
    %v1326 = vsel %vm1311, %v1295, %v1296
    %v1327 = vsel %vm1311, %v1294, %v1295
    %v1328 = vsel %vm1311, %v1293, %v1294
    %v1329 = vsel %vm1311, %v1292, %v1293
    %v1330 = vsel %vm1311, %v1291, %v1292
    %v1331 = vsel %vm1311, %v1290, %v1291
    %v1332 = vsel %vm1311, %v1289, %v1290
    %v1333 = vsel %vm1311, %v1288, %v1289
    %v1334 = vsel %vm1311, %v1287, %v1288
    %v1335 = vsel %vm1311, %v1286, %v1287
    %v1336 = vsel %vm1311, %v1285, %v1286
    %v1337 = vsel %vm1311, %v1284, %v1285
    %v1338 = vsel %vm1311, %v1283, %v1284
    %v1339 = vsel %vm1311, %v1282, %v1283
    %v1340 = vsel %vm1311, %v1281, %v1282
    %v1341 = vsel %vm1311, %v1280, %v1281
    %v1342 = vsel %vm1311, %v1279, %v1280
    %v1343 = vsel %vm1311, %v1278, %v1279
    %v1344 = vsel %vm1311, %v1277, %v1278
    %v1345 = vsel %vm1311, %v1276, %v1277
    %v1346 = vsel %vm1311, %v1275, %v1276
    %v1347 = vsel %vm1311, %v1274, %v1275
    %v1348 = vsel %vm1311, %v1273, %v1274
    %v1349 = vsel %vm1311, %v1272, %v1273
    %v1350 = vsel %vm1311, %v1271, %v1272
    %v1351 = vsel %vm1311, %v1270, %v1271
    %v1352 = vsel %vm1311, %v1269, %v1270
    %v1353 = vsel %vm1311, %v1268, %v1269
    %v1354 = vsel %vm1311, %v1267, %v1268
    %v1355 = vsel %vm1311, %v1266, %v1267
    %v1356 = vsel %vm1311, %v1265, %v1266
    %v1357 = vsel %vm1311, %v1264, %v1265
    %v1358 = vsel %vm1311, %v1263, %v1264
    %v1359 = vsel %vm1311, %v1262, %v1263
    %v1360 = vsel %vm1311, %v1261, %v1262
    %v1361 = vsel %vm1311, %v1260, %v1261
    %v1362 = vsel %vm1311, %v1259, %v1260
    %v1363 = vsel %vm1311, %v1258, %v1259
    %v1364 = vsel %vm1311, %v1257, %v1258
    %v1365 = vsel %vm1311, %v1256, %v1257
    %v1366 = vsel %vm1311, %v1255, %v1256
    %v1367 = vsel %vm1311, %v1254, %v1255
    %v1368 = vsel %vm1311, %v1253, %v1254
    %v1369 = vsel %vm1311, %v1252, %v1253
    %v1370 = vsel %vm1311, %v1251, %v1252
    %v1371 = vsel %vm1311, %v1250, %v1251
    %v1372 = vsel %vm1311, %v1249, %v1250
    %v1373 = vsel %vm1311, %v1248, %v1249
    %v1374 = vsel %vm1311, %v1247, %v1248
    %v1375 = vsel %vm1311, %v1246, %v1247
    %v1376 = vsel %vm1311, %v1245, %v1246
    %v1377 = vsel %vm1311, %v1244, %v1245
    %v1378 = vsel %vm1311, %v1243, %v1244
    %v1379 = vsel %vm1311, %v1242, %v1243
    %v1380 = vsel %vm1311, %v1241, %v1242
    %v1381 = vsel %vm1311, %v1240, %v1241
    %v1382 = vsel %vm1311, %v1239, %v1240
    %v1383 = vsel %vm1311, %v1238, %v1239
    %v1384 = vsel %vm1311, %v1237, %v1238
    %v1385 = vsel %vm1311, %v1236, %v1237
    %v1386 = vsel %vm1311, %v1235, %v1236
    %v1387 = vsel %vm1311, %v1234, %v1235
    %v1388 = vsel %vm1311, %v1233, %v1234
    %v1389 = vsel %vm1311, %v1232, %v1233
    %v1390 = vsel %vm1311, %v1231, %v1232
    %v1391 = vsel %vm1311, %v1230, %v1231
    %v1392 = vsel %vm1311, %v1229, %v1230
    %v1393 = vsel %vm1311, %v1310, %v1229
    %s1394 = scalar_lea.vmem %s4, 128
    %v1395 = vld [vmem:[%s1394] sm:$0xff]
    %v1396 = vld [vmem:[%s1394 + $0x8] sm:$0xff]
    %v1397 = vld [vmem:[%s1394 + $0x10] sm:$0xff]
    %v1398 = vld [vmem:[%s1394 + $0x18] sm:$0xff]
    %v1399 = vld [vmem:[%s1394 + $0x20] sm:$0xff]
    %v1400 = vld [vmem:[%s1394 + $0x28] sm:$0xff]
    %v1401 = vld [vmem:[%s1394 + $0x30] sm:$0xff]
    %v1402 = vld [vmem:[%s1394 + $0x38] sm:$0xff]
    %v1403 = vld [vmem:[%s1394 + $0x40] sm:$0xff]
    %v1404 = vld [vmem:[%s1394 + $0x48] sm:$0xff]
    %v1405 = vld [vmem:[%s1394 + $0x50] sm:$0xff]
    %v1406 = vld [vmem:[%s1394 + $0x58] sm:$0xff]
    %v1407 = vld [vmem:[%s1394 + $0x60] sm:$0xff]
    %v1408 = vld [vmem:[%s1394 + $0x68] sm:$0xff]
    %v1409 = vld [vmem:[%s1394 + $0x70] sm:$0xff]
    %v1410 = vld [vmem:[%s1394 + $0x78] sm:$0xff]
    %1411 = vmatpush.msra.mxu0 %v1410
    %1412 = vmatpush.msra.mxu0 %v1409
    %1413 = vmatpush.msra.mxu0 %v1408
    %1414 = vmatpush.msra.mxu0 %v1407
    %1415 = vmatpush.msra.mxu0 %v1406
    %1416 = vmatpush.msra.mxu0 %v1405
    %1417 = vmatpush.msra.mxu0 %v1404
    %1418 = vmatpush.msra.mxu0 %v1403
    %1419 = vmatpush.msra.mxu0 %v1402
    %1420 = vmatpush.msra.mxu0 %v1401
    %1421 = vmatpush.msra.mxu0 %v1400
    %1422 = vmatpush.msra.mxu0 %v1399
    %1423 = vmatpush.msra.mxu0 %v1398
    %1424 = vmatpush.msra.mxu0 %v1397
    %1425 = vmatpush.msra.mxu0 %v1396
    %1426 = vmatpush.msra.mxu0 %v1395
    %1427 = vmatmul.f32.gmra.mxu0 %v1313
    %v1428 = vpop.f32.mrf.mxu0
    %v1429 = vadd.f32 0.0, %v1428
    %1430 = vmatmul.f32.gmra.mxu0 %v1312
    %v1431 = vpop.f32.mrf.mxu0
    %v1432 = vadd.f32 0.0, %v1431
    %1433 = vmatmul.f32.gmra.mxu0 %v1393
    %v1434 = vpop.f32.mrf.mxu0
    %v1435 = vadd.f32 0.0, %v1434
    %1436 = vmatmul.f32.gmra.mxu0 %v1392
    %v1437 = vpop.f32.mrf.mxu0
    %v1438 = vadd.f32 0.0, %v1437
    %1439 = vmatmul.f32.gmra.mxu0 %v1391
    %v1440 = vpop.f32.mrf.mxu0
    %v1441 = vadd.f32 0.0, %v1440
    %1442 = vmatmul.f32.gmra.mxu0 %v1390
    %v1443 = vpop.f32.mrf.mxu0
    %v1444 = vadd.f32 0.0, %v1443
    %1445 = vmatmul.f32.gmra.mxu0 %v1389
    %v1446 = vpop.f32.mrf.mxu0
    %v1447 = vadd.f32 0.0, %v1446
    %1448 = vmatmul.f32.gmra.mxu0 %v1388
    %v1449 = vpop.f32.mrf.mxu0
    %v1450 = vadd.f32 0.0, %v1449
    %1451 = vmatmul.f32.gmra.mxu0 %v1387
    %v1452 = vpop.f32.mrf.mxu0
    %v1453 = vadd.f32 0.0, %v1452
    %1454 = vmatmul.f32.gmra.mxu0 %v1386
    %v1455 = vpop.f32.mrf.mxu0
    %v1456 = vadd.f32 0.0, %v1455
    %1457 = vmatmul.f32.gmra.mxu0 %v1385
    %v1458 = vpop.f32.mrf.mxu0
    %v1459 = vadd.f32 0.0, %v1458
    %1460 = vmatmul.f32.gmra.mxu0 %v1384
    %v1461 = vpop.f32.mrf.mxu0
    %v1462 = vadd.f32 0.0, %v1461
    %1463 = vmatmul.f32.gmra.mxu0 %v1383
    %v1464 = vpop.f32.mrf.mxu0
    %v1465 = vadd.f32 0.0, %v1464
    %1466 = vmatmul.f32.gmra.mxu0 %v1382
    %v1467 = vpop.f32.mrf.mxu0
    %v1468 = vadd.f32 0.0, %v1467
    %1469 = vmatmul.f32.gmra.mxu0 %v1381
    %v1470 = vpop.f32.mrf.mxu0
    %v1471 = vadd.f32 0.0, %v1470
    %1472 = vmatmul.f32.gmra.mxu0 %v1380
    %v1473 = vpop.f32.mrf.mxu0
    %v1474 = vadd.f32 0.0, %v1473
    %1475 = vmatmul.f32.gmra.mxu0 %v1379
    %v1476 = vpop.f32.mrf.mxu0
    %v1477 = vadd.f32 0.0, %v1476
    %1478 = vmatmul.f32.gmra.mxu0 %v1378
    %v1479 = vpop.f32.mrf.mxu0
    %v1480 = vadd.f32 0.0, %v1479
    %1481 = vmatmul.f32.gmra.mxu0 %v1377
    %v1482 = vpop.f32.mrf.mxu0
    %v1483 = vadd.f32 0.0, %v1482
    %1484 = vmatmul.f32.gmra.mxu0 %v1376
    %v1485 = vpop.f32.mrf.mxu0
    %v1486 = vadd.f32 0.0, %v1485
    %1487 = vmatmul.f32.gmra.mxu0 %v1375
    %v1488 = vpop.f32.mrf.mxu0
    %v1489 = vadd.f32 0.0, %v1488
    %1490 = vmatmul.f32.gmra.mxu0 %v1374
    %v1491 = vpop.f32.mrf.mxu0
    %v1492 = vadd.f32 0.0, %v1491
    %1493 = vmatmul.f32.gmra.mxu0 %v1373
    %v1494 = vpop.f32.mrf.mxu0
    %v1495 = vadd.f32 0.0, %v1494
    %1496 = vmatmul.f32.gmra.mxu0 %v1372
    %v1497 = vpop.f32.mrf.mxu0
    %v1498 = vadd.f32 0.0, %v1497
    %1499 = vmatmul.f32.gmra.mxu0 %v1371
    %v1500 = vpop.f32.mrf.mxu0
    %v1501 = vadd.f32 0.0, %v1500
    %1502 = vmatmul.f32.gmra.mxu0 %v1370
    %v1503 = vpop.f32.mrf.mxu0
    %v1504 = vadd.f32 0.0, %v1503
    %1505 = vmatmul.f32.gmra.mxu0 %v1369
    %v1506 = vpop.f32.mrf.mxu0
    %v1507 = vadd.f32 0.0, %v1506
    %1508 = vmatmul.f32.gmra.mxu0 %v1368
    %v1509 = vpop.f32.mrf.mxu0
    %v1510 = vadd.f32 0.0, %v1509
    %1511 = vmatmul.f32.gmra.mxu0 %v1367
    %v1512 = vpop.f32.mrf.mxu0
    %v1513 = vadd.f32 0.0, %v1512
    %1514 = vmatmul.f32.gmra.mxu0 %v1366
    %v1515 = vpop.f32.mrf.mxu0
    %v1516 = vadd.f32 0.0, %v1515
    %1517 = vmatmul.f32.gmra.mxu0 %v1365
    %v1518 = vpop.f32.mrf.mxu0
    %v1519 = vadd.f32 0.0, %v1518
    %1520 = vmatmul.f32.gmra.mxu0 %v1364
    %v1521 = vpop.f32.mrf.mxu0
    %v1522 = vadd.f32 0.0, %v1521
    %1523 = vmatmul.f32.gmra.mxu0 %v1363
    %v1524 = vpop.f32.mrf.mxu0
    %v1525 = vadd.f32 0.0, %v1524
    %1526 = vmatmul.f32.gmra.mxu0 %v1362
    %v1527 = vpop.f32.mrf.mxu0
    %v1528 = vadd.f32 0.0, %v1527
    %1529 = vmatmul.f32.gmra.mxu0 %v1361
    %v1530 = vpop.f32.mrf.mxu0
    %v1531 = vadd.f32 0.0, %v1530
    %1532 = vmatmul.f32.gmra.mxu0 %v1360
    %v1533 = vpop.f32.mrf.mxu0
    %v1534 = vadd.f32 0.0, %v1533
    %1535 = vmatmul.f32.gmra.mxu0 %v1359
    %v1536 = vpop.f32.mrf.mxu0
    %v1537 = vadd.f32 0.0, %v1536
    %1538 = vmatmul.f32.gmra.mxu0 %v1358
    %v1539 = vpop.f32.mrf.mxu0
    %v1540 = vadd.f32 0.0, %v1539
    %1541 = vmatmul.f32.gmra.mxu0 %v1357
    %v1542 = vpop.f32.mrf.mxu0
    %v1543 = vadd.f32 0.0, %v1542
    %1544 = vmatmul.f32.gmra.mxu0 %v1356
    %v1545 = vpop.f32.mrf.mxu0
    %v1546 = vadd.f32 0.0, %v1545
    %1547 = vmatmul.f32.gmra.mxu0 %v1355
    %v1548 = vpop.f32.mrf.mxu0
    %v1549 = vadd.f32 0.0, %v1548
    %1550 = vmatmul.f32.gmra.mxu0 %v1354
    %v1551 = vpop.f32.mrf.mxu0
    %v1552 = vadd.f32 0.0, %v1551
    %1553 = vmatmul.f32.gmra.mxu0 %v1353
    %v1554 = vpop.f32.mrf.mxu0
    %v1555 = vadd.f32 0.0, %v1554
    %1556 = vmatmul.f32.gmra.mxu0 %v1352
    %v1557 = vpop.f32.mrf.mxu0
    %v1558 = vadd.f32 0.0, %v1557
    %1559 = vmatmul.f32.gmra.mxu0 %v1351
    %v1560 = vpop.f32.mrf.mxu0
    %v1561 = vadd.f32 0.0, %v1560
    %1562 = vmatmul.f32.gmra.mxu0 %v1350
    %v1563 = vpop.f32.mrf.mxu0
    %v1564 = vadd.f32 0.0, %v1563
    %1565 = vmatmul.f32.gmra.mxu0 %v1349
    %v1566 = vpop.f32.mrf.mxu0
    %v1567 = vadd.f32 0.0, %v1566
    %1568 = vmatmul.f32.gmra.mxu0 %v1348
    %v1569 = vpop.f32.mrf.mxu0
    %v1570 = vadd.f32 0.0, %v1569
    %1571 = vmatmul.f32.gmra.mxu0 %v1347
    %v1572 = vpop.f32.mrf.mxu0
    %v1573 = vadd.f32 0.0, %v1572
    %1574 = vmatmul.f32.gmra.mxu0 %v1346
    %v1575 = vpop.f32.mrf.mxu0
    %v1576 = vadd.f32 0.0, %v1575
    %1577 = vmatmul.f32.gmra.mxu0 %v1345
    %v1578 = vpop.f32.mrf.mxu0
    %v1579 = vadd.f32 0.0, %v1578
    %1580 = vmatmul.f32.gmra.mxu0 %v1344
    %v1581 = vpop.f32.mrf.mxu0
    %v1582 = vadd.f32 0.0, %v1581
    %1583 = vmatmul.f32.gmra.mxu0 %v1343
    %v1584 = vpop.f32.mrf.mxu0
    %v1585 = vadd.f32 0.0, %v1584
    %1586 = vmatmul.f32.gmra.mxu0 %v1342
    %v1587 = vpop.f32.mrf.mxu0
    %v1588 = vadd.f32 0.0, %v1587
    %1589 = vmatmul.f32.gmra.mxu0 %v1341
    %v1590 = vpop.f32.mrf.mxu0
    %v1591 = vadd.f32 0.0, %v1590
    %1592 = vmatmul.f32.gmra.mxu0 %v1340
    %v1593 = vpop.f32.mrf.mxu0
    %v1594 = vadd.f32 0.0, %v1593
    %1595 = vmatmul.f32.gmra.mxu0 %v1339
    %v1596 = vpop.f32.mrf.mxu0
    %v1597 = vadd.f32 0.0, %v1596
    %1598 = vmatmul.f32.gmra.mxu0 %v1338
    %v1599 = vpop.f32.mrf.mxu0
    %v1600 = vadd.f32 0.0, %v1599
    %1601 = vmatmul.f32.gmra.mxu0 %v1337
    %v1602 = vpop.f32.mrf.mxu0
    %v1603 = vadd.f32 0.0, %v1602
    %1604 = vmatmul.f32.gmra.mxu0 %v1336
    %v1605 = vpop.f32.mrf.mxu0
    %v1606 = vadd.f32 0.0, %v1605
    %1607 = vmatmul.f32.gmra.mxu0 %v1335
    %v1608 = vpop.f32.mrf.mxu0
    %v1609 = vadd.f32 0.0, %v1608
    %1610 = vmatmul.f32.gmra.mxu0 %v1334
    %v1611 = vpop.f32.mrf.mxu0
    %v1612 = vadd.f32 0.0, %v1611
    %1613 = vmatmul.f32.gmra.mxu0 %v1333
    %v1614 = vpop.f32.mrf.mxu0
    %v1615 = vadd.f32 0.0, %v1614
    %1616 = vmatmul.f32.gmra.mxu0 %v1332
    %v1617 = vpop.f32.mrf.mxu0
    %v1618 = vadd.f32 0.0, %v1617
    %1619 = vmatmul.f32.gmra.mxu0 %v1331
    %v1620 = vpop.f32.mrf.mxu0
    %v1621 = vadd.f32 0.0, %v1620
    %1622 = vmatmul.f32.gmra.mxu0 %v1330
    %v1623 = vpop.f32.mrf.mxu0
    %v1624 = vadd.f32 0.0, %v1623
    %1625 = vmatmul.f32.gmra.mxu0 %v1329
    %v1626 = vpop.f32.mrf.mxu0
    %v1627 = vadd.f32 0.0, %v1626
    %1628 = vmatmul.f32.gmra.mxu0 %v1328
    %v1629 = vpop.f32.mrf.mxu0
    %v1630 = vadd.f32 0.0, %v1629
    %1631 = vmatmul.f32.gmra.mxu0 %v1327
    %v1632 = vpop.f32.mrf.mxu0
    %v1633 = vadd.f32 0.0, %v1632
    %1634 = vmatmul.f32.gmra.mxu0 %v1326
    %v1635 = vpop.f32.mrf.mxu0
    %v1636 = vadd.f32 0.0, %v1635
    %1637 = vmatmul.f32.gmra.mxu0 %v1325
    %v1638 = vpop.f32.mrf.mxu0
    %v1639 = vadd.f32 0.0, %v1638
    %1640 = vmatmul.f32.gmra.mxu0 %v1324
    %v1641 = vpop.f32.mrf.mxu0
    %v1642 = vadd.f32 0.0, %v1641
    %1643 = vmatmul.f32.gmra.mxu0 %v1323
    %v1644 = vpop.f32.mrf.mxu0
    %v1645 = vadd.f32 0.0, %v1644
    %1646 = vmatmul.f32.gmra.mxu0 %v1322
    %v1647 = vpop.f32.mrf.mxu0
    %v1648 = vadd.f32 0.0, %v1647
    %1649 = vmatmul.f32.gmra.mxu0 %v1321
    %v1650 = vpop.f32.mrf.mxu0
    %v1651 = vadd.f32 0.0, %v1650
    %1652 = vmatmul.f32.gmra.mxu0 %v1320
    %v1653 = vpop.f32.mrf.mxu0
    %v1654 = vadd.f32 0.0, %v1653
    %1655 = vmatmul.f32.gmra.mxu0 %v1319
    %v1656 = vpop.f32.mrf.mxu0
    %v1657 = vadd.f32 0.0, %v1656
    %1658 = vmatmul.f32.gmra.mxu0 %v1318
    %v1659 = vpop.f32.mrf.mxu0
    %v1660 = vadd.f32 0.0, %v1659
    %1661 = vmatmul.f32.gmra.mxu0 %v1317
    %v1662 = vpop.f32.mrf.mxu0
    %v1663 = vadd.f32 0.0, %v1662
    %1664 = vmatmul.f32.gmra.mxu0 %v1316
    %v1665 = vpop.f32.mrf.mxu0
    %v1666 = vadd.f32 0.0, %v1665
    %1667 = vmatmul.f32.gmra.mxu0 %v1315
    %v1668 = vpop.f32.mrf.mxu0
    %v1669 = vadd.f32 0.0, %v1668
    %1670 = vmatmul.f32.gmra.mxu0 %v1314
    %v1671 = vpop.f32.mrf.mxu0
    %v1672 = vadd.f32 0.0, %v1671
    %1673 = vdwg.mxu0
    %1674 = vmatpush.msra.mxu0 %v1228
    %1675 = vmatpush.msra.mxu0 %v1227
    %1676 = vmatpush.msra.mxu0 %v1226
    %1677 = vmatpush.msra.mxu0 %v1225
    %1678 = vmatpush.msra.mxu0 %v1224
    %1679 = vmatpush.msra.mxu0 %v1223
    %1680 = vmatpush.msra.mxu0 %v1222
    %1681 = vmatpush.msra.mxu0 %v1221
    %1682 = vmatpush.msra.mxu0 %v1220
    %1683 = vmatpush.msra.mxu0 %v1219
    %1684 = vmatpush.msra.mxu0 %v1218
    %1685 = vmatpush.msra.mxu0 %v1217
    %1686 = vmatpush.msra.mxu0 %v1216
    %1687 = vmatpush.msra.mxu0 %v1215
    %1688 = vmatpush.msra.mxu0 %v1214
    %1689 = vmatpush.msra.mxu0 %v1213
    %1690 = vmatmul.f32.gmra.mxu0 %v1132
    %v1691 = vpop.f32.mrf.mxu0
    %v1692 = vadd.f32 %v1429, %v1691
    %1693 = vmatmul.f32.gmra.mxu0 %v1131
    %v1694 = vpop.f32.mrf.mxu0
    %v1695 = vadd.f32 %v1432, %v1694
    %1696 = vmatmul.f32.gmra.mxu0 %v1212
    %v1697 = vpop.f32.mrf.mxu0
    %v1698 = vadd.f32 %v1435, %v1697
    %1699 = vmatmul.f32.gmra.mxu0 %v1211
    %v1700 = vpop.f32.mrf.mxu0
    %v1701 = vadd.f32 %v1438, %v1700
    %1702 = vmatmul.f32.gmra.mxu0 %v1210
    %v1703 = vpop.f32.mrf.mxu0
    %v1704 = vadd.f32 %v1441, %v1703
    %1705 = vmatmul.f32.gmra.mxu0 %v1209
    %v1706 = vpop.f32.mrf.mxu0
    %v1707 = vadd.f32 %v1444, %v1706
    %1708 = vmatmul.f32.gmra.mxu0 %v1208
    %v1709 = vpop.f32.mrf.mxu0
    %v1710 = vadd.f32 %v1447, %v1709
    %1711 = vmatmul.f32.gmra.mxu0 %v1207
    %v1712 = vpop.f32.mrf.mxu0
    %v1713 = vadd.f32 %v1450, %v1712
    %1714 = vmatmul.f32.gmra.mxu0 %v1206
    %v1715 = vpop.f32.mrf.mxu0
    %v1716 = vadd.f32 %v1453, %v1715
    %1717 = vmatmul.f32.gmra.mxu0 %v1205
    %v1718 = vpop.f32.mrf.mxu0
    %v1719 = vadd.f32 %v1456, %v1718
    %1720 = vmatmul.f32.gmra.mxu0 %v1204
    %v1721 = vpop.f32.mrf.mxu0
    %v1722 = vadd.f32 %v1459, %v1721
    %1723 = vmatmul.f32.gmra.mxu0 %v1203
    %v1724 = vpop.f32.mrf.mxu0
    %v1725 = vadd.f32 %v1462, %v1724
    %1726 = vmatmul.f32.gmra.mxu0 %v1202
    %v1727 = vpop.f32.mrf.mxu0
    %v1728 = vadd.f32 %v1465, %v1727
    %1729 = vmatmul.f32.gmra.mxu0 %v1201
    %v1730 = vpop.f32.mrf.mxu0
    %v1731 = vadd.f32 %v1468, %v1730
    %1732 = vmatmul.f32.gmra.mxu0 %v1200
    %v1733 = vpop.f32.mrf.mxu0
    %v1734 = vadd.f32 %v1471, %v1733
    %1735 = vmatmul.f32.gmra.mxu0 %v1199
    %v1736 = vpop.f32.mrf.mxu0
    %v1737 = vadd.f32 %v1474, %v1736
    %1738 = vmatmul.f32.gmra.mxu0 %v1198
    %v1739 = vpop.f32.mrf.mxu0
    %v1740 = vadd.f32 %v1477, %v1739
    %1741 = vmatmul.f32.gmra.mxu0 %v1197
    %v1742 = vpop.f32.mrf.mxu0
    %v1743 = vadd.f32 %v1480, %v1742
    %1744 = vmatmul.f32.gmra.mxu0 %v1196
    %v1745 = vpop.f32.mrf.mxu0
    %v1746 = vadd.f32 %v1483, %v1745
    %1747 = vmatmul.f32.gmra.mxu0 %v1195
    %v1748 = vpop.f32.mrf.mxu0
    %v1749 = vadd.f32 %v1486, %v1748
    %1750 = vmatmul.f32.gmra.mxu0 %v1194
    %v1751 = vpop.f32.mrf.mxu0
    %v1752 = vadd.f32 %v1489, %v1751
    %1753 = vmatmul.f32.gmra.mxu0 %v1193
    %v1754 = vpop.f32.mrf.mxu0
    %v1755 = vadd.f32 %v1492, %v1754
    %1756 = vmatmul.f32.gmra.mxu0 %v1192
    %v1757 = vpop.f32.mrf.mxu0
    %v1758 = vadd.f32 %v1495, %v1757
    %1759 = vmatmul.f32.gmra.mxu0 %v1191
    %v1760 = vpop.f32.mrf.mxu0
    %v1761 = vadd.f32 %v1498, %v1760
    %1762 = vmatmul.f32.gmra.mxu0 %v1190
    %v1763 = vpop.f32.mrf.mxu0
    %v1764 = vadd.f32 %v1501, %v1763
    %1765 = vmatmul.f32.gmra.mxu0 %v1189
    %v1766 = vpop.f32.mrf.mxu0
    %v1767 = vadd.f32 %v1504, %v1766
    %1768 = vmatmul.f32.gmra.mxu0 %v1188
    %v1769 = vpop.f32.mrf.mxu0
    %v1770 = vadd.f32 %v1507, %v1769
    %1771 = vmatmul.f32.gmra.mxu0 %v1187
    %v1772 = vpop.f32.mrf.mxu0
    %v1773 = vadd.f32 %v1510, %v1772
    %1774 = vmatmul.f32.gmra.mxu0 %v1186
    %v1775 = vpop.f32.mrf.mxu0
    %v1776 = vadd.f32 %v1513, %v1775
    %1777 = vmatmul.f32.gmra.mxu0 %v1185
    %v1778 = vpop.f32.mrf.mxu0
    %v1779 = vadd.f32 %v1516, %v1778
    %1780 = vmatmul.f32.gmra.mxu0 %v1184
    %v1781 = vpop.f32.mrf.mxu0
    %v1782 = vadd.f32 %v1519, %v1781
    %1783 = vmatmul.f32.gmra.mxu0 %v1183
    %v1784 = vpop.f32.mrf.mxu0
    %v1785 = vadd.f32 %v1522, %v1784
    %1786 = vmatmul.f32.gmra.mxu0 %v1182
    %v1787 = vpop.f32.mrf.mxu0
    %v1788 = vadd.f32 %v1525, %v1787
    %1789 = vmatmul.f32.gmra.mxu0 %v1181
    %v1790 = vpop.f32.mrf.mxu0
    %v1791 = vadd.f32 %v1528, %v1790
    %1792 = vmatmul.f32.gmra.mxu0 %v1180
    %v1793 = vpop.f32.mrf.mxu0
    %v1794 = vadd.f32 %v1531, %v1793
    %1795 = vmatmul.f32.gmra.mxu0 %v1179
    %v1796 = vpop.f32.mrf.mxu0
    %v1797 = vadd.f32 %v1534, %v1796
    %1798 = vmatmul.f32.gmra.mxu0 %v1178
    %v1799 = vpop.f32.mrf.mxu0
    %v1800 = vadd.f32 %v1537, %v1799
    %1801 = vmatmul.f32.gmra.mxu0 %v1177
    %v1802 = vpop.f32.mrf.mxu0
    %v1803 = vadd.f32 %v1540, %v1802
    %1804 = vmatmul.f32.gmra.mxu0 %v1176
    %v1805 = vpop.f32.mrf.mxu0
    %v1806 = vadd.f32 %v1543, %v1805
    %1807 = vmatmul.f32.gmra.mxu0 %v1175
    %v1808 = vpop.f32.mrf.mxu0
    %v1809 = vadd.f32 %v1546, %v1808
    %1810 = vmatmul.f32.gmra.mxu0 %v1174
    %v1811 = vpop.f32.mrf.mxu0
    %v1812 = vadd.f32 %v1549, %v1811
    %1813 = vmatmul.f32.gmra.mxu0 %v1173
    %v1814 = vpop.f32.mrf.mxu0
    %v1815 = vadd.f32 %v1552, %v1814
    %1816 = vmatmul.f32.gmra.mxu0 %v1172
    %v1817 = vpop.f32.mrf.mxu0
    %v1818 = vadd.f32 %v1555, %v1817
    %1819 = vmatmul.f32.gmra.mxu0 %v1171
    %v1820 = vpop.f32.mrf.mxu0
    %v1821 = vadd.f32 %v1558, %v1820
    %1822 = vmatmul.f32.gmra.mxu0 %v1170
    %v1823 = vpop.f32.mrf.mxu0
    %v1824 = vadd.f32 %v1561, %v1823
    %1825 = vmatmul.f32.gmra.mxu0 %v1169
    %v1826 = vpop.f32.mrf.mxu0
    %v1827 = vadd.f32 %v1564, %v1826
    %1828 = vmatmul.f32.gmra.mxu0 %v1168
    %v1829 = vpop.f32.mrf.mxu0
    %v1830 = vadd.f32 %v1567, %v1829
    %1831 = vmatmul.f32.gmra.mxu0 %v1167
    %v1832 = vpop.f32.mrf.mxu0
    %v1833 = vadd.f32 %v1570, %v1832
    %1834 = vmatmul.f32.gmra.mxu0 %v1166
    %v1835 = vpop.f32.mrf.mxu0
    %v1836 = vadd.f32 %v1573, %v1835
    %1837 = vmatmul.f32.gmra.mxu0 %v1165
    %v1838 = vpop.f32.mrf.mxu0
    %v1839 = vadd.f32 %v1576, %v1838
    %1840 = vmatmul.f32.gmra.mxu0 %v1164
    %v1841 = vpop.f32.mrf.mxu0
    %v1842 = vadd.f32 %v1579, %v1841
    %1843 = vmatmul.f32.gmra.mxu0 %v1163
    %v1844 = vpop.f32.mrf.mxu0
    %v1845 = vadd.f32 %v1582, %v1844
    %1846 = vmatmul.f32.gmra.mxu0 %v1162
    %v1847 = vpop.f32.mrf.mxu0
    %v1848 = vadd.f32 %v1585, %v1847
    %1849 = vmatmul.f32.gmra.mxu0 %v1161
    %v1850 = vpop.f32.mrf.mxu0
    %v1851 = vadd.f32 %v1588, %v1850
    %1852 = vmatmul.f32.gmra.mxu0 %v1160
    %v1853 = vpop.f32.mrf.mxu0
    %v1854 = vadd.f32 %v1591, %v1853
    %1855 = vmatmul.f32.gmra.mxu0 %v1159
    %v1856 = vpop.f32.mrf.mxu0
    %v1857 = vadd.f32 %v1594, %v1856
    %1858 = vmatmul.f32.gmra.mxu0 %v1158
    %v1859 = vpop.f32.mrf.mxu0
    %v1860 = vadd.f32 %v1597, %v1859
    %1861 = vmatmul.f32.gmra.mxu0 %v1157
    %v1862 = vpop.f32.mrf.mxu0
    %v1863 = vadd.f32 %v1600, %v1862
    %1864 = vmatmul.f32.gmra.mxu0 %v1156
    %v1865 = vpop.f32.mrf.mxu0
    %v1866 = vadd.f32 %v1603, %v1865
    %1867 = vmatmul.f32.gmra.mxu0 %v1155
    %v1868 = vpop.f32.mrf.mxu0
    %v1869 = vadd.f32 %v1606, %v1868
    %1870 = vmatmul.f32.gmra.mxu0 %v1154
    %v1871 = vpop.f32.mrf.mxu0
    %v1872 = vadd.f32 %v1609, %v1871
    %1873 = vmatmul.f32.gmra.mxu0 %v1153
    %v1874 = vpop.f32.mrf.mxu0
    %v1875 = vadd.f32 %v1612, %v1874
    %1876 = vmatmul.f32.gmra.mxu0 %v1152
    %v1877 = vpop.f32.mrf.mxu0
    %v1878 = vadd.f32 %v1615, %v1877
    %1879 = vmatmul.f32.gmra.mxu0 %v1151
    %v1880 = vpop.f32.mrf.mxu0
    %v1881 = vadd.f32 %v1618, %v1880
    %1882 = vmatmul.f32.gmra.mxu0 %v1150
    %v1883 = vpop.f32.mrf.mxu0
    %v1884 = vadd.f32 %v1621, %v1883
    %1885 = vmatmul.f32.gmra.mxu0 %v1149
    %v1886 = vpop.f32.mrf.mxu0
    %v1887 = vadd.f32 %v1624, %v1886
    %1888 = vmatmul.f32.gmra.mxu0 %v1148
    %v1889 = vpop.f32.mrf.mxu0
    %v1890 = vadd.f32 %v1627, %v1889
    %1891 = vmatmul.f32.gmra.mxu0 %v1147
    %v1892 = vpop.f32.mrf.mxu0
    %v1893 = vadd.f32 %v1630, %v1892
    %1894 = vmatmul.f32.gmra.mxu0 %v1146
    %v1895 = vpop.f32.mrf.mxu0
    %v1896 = vadd.f32 %v1633, %v1895
    %1897 = vmatmul.f32.gmra.mxu0 %v1145
    %v1898 = vpop.f32.mrf.mxu0
    %v1899 = vadd.f32 %v1636, %v1898
    %1900 = vmatmul.f32.gmra.mxu0 %v1144
    %v1901 = vpop.f32.mrf.mxu0
    %v1902 = vadd.f32 %v1639, %v1901
    %1903 = vmatmul.f32.gmra.mxu0 %v1143
    %v1904 = vpop.f32.mrf.mxu0
    %v1905 = vadd.f32 %v1642, %v1904
    %1906 = vmatmul.f32.gmra.mxu0 %v1142
    %v1907 = vpop.f32.mrf.mxu0
    %v1908 = vadd.f32 %v1645, %v1907
    %1909 = vmatmul.f32.gmra.mxu0 %v1141
    %v1910 = vpop.f32.mrf.mxu0
    %v1911 = vadd.f32 %v1648, %v1910
    %1912 = vmatmul.f32.gmra.mxu0 %v1140
    %v1913 = vpop.f32.mrf.mxu0
    %v1914 = vadd.f32 %v1651, %v1913
    %1915 = vmatmul.f32.gmra.mxu0 %v1139
    %v1916 = vpop.f32.mrf.mxu0
    %v1917 = vadd.f32 %v1654, %v1916
    %1918 = vmatmul.f32.gmra.mxu0 %v1138
    %v1919 = vpop.f32.mrf.mxu0
    %v1920 = vadd.f32 %v1657, %v1919
    %1921 = vmatmul.f32.gmra.mxu0 %v1137
    %v1922 = vpop.f32.mrf.mxu0
    %v1923 = vadd.f32 %v1660, %v1922
    %1924 = vmatmul.f32.gmra.mxu0 %v1136
    %v1925 = vpop.f32.mrf.mxu0
    %v1926 = vadd.f32 %v1663, %v1925
    %1927 = vmatmul.f32.gmra.mxu0 %v1135
    %v1928 = vpop.f32.mrf.mxu0
    %v1929 = vadd.f32 %v1666, %v1928
    %1930 = vmatmul.f32.gmra.mxu0 %v1134
    %v1931 = vpop.f32.mrf.mxu0
    %v1932 = vadd.f32 %v1669, %v1931
    %1933 = vmatmul.f32.gmra.mxu0 %v1133
    %v1934 = vpop.f32.mrf.mxu0
    %v1935 = vadd.f32 %v1672, %v1934
    %1936 = vdwg.mxu0
    %v1937 = vrot.slane %v964, 7
    %v1938 = vrot.slane %v965, 7
    %v1939 = vrot.slane %v966, 7
    %v1940 = vrot.slane %v967, 7
    %v1941 = vrot.slane %v968, 7
    %v1942 = vrot.slane %v969, 7
    %v1943 = vrot.slane %v970, 7
    %v1944 = vrot.slane %v971, 7
    %v1945 = vrot.slane %v972, 7
    %v1946 = vrot.slane %v973, 7
    %v1947 = vrot.slane %v974, 7
    %v1948 = vrot.slane %v975, 7
    %v1949 = vrot.slane %v976, 7
    %v1950 = vrot.slane %v977, 7
    %v1951 = vrot.slane %v978, 7
    %v1952 = vrot.slane %v979, 7
    %v1953 = vrot.slane %v980, 7
    %v1954 = vrot.slane %v981, 7
    %v1955 = vrot.slane %v982, 7
    %v1956 = vrot.slane %v983, 7
    %v1957 = vrot.slane %v984, 7
    %v1958 = vrot.slane %v985, 7
    %v1959 = vrot.slane %v986, 7
    %v1960 = vrot.slane %v987, 7
    %v1961 = vrot.slane %v988, 7
    %v1962 = vrot.slane %v989, 7
    %v1963 = vrot.slane %v990, 7
    %v1964 = vrot.slane %v991, 7
    %v1965 = vrot.slane %v992, 7
    %v1966 = vrot.slane %v993, 7
    %v1967 = vrot.slane %v994, 7
    %v1968 = vrot.slane %v995, 7
    %v1969 = vrot.slane %v996, 7
    %v1970 = vrot.slane %v997, 7
    %v1971 = vrot.slane %v998, 7
    %v1972 = vrot.slane %v999, 7
    %v1973 = vrot.slane %v1000, 7
    %v1974 = vrot.slane %v1001, 7
    %v1975 = vrot.slane %v1002, 7
    %v1976 = vrot.slane %v1003, 7
    %v1977 = vrot.slane %v1004, 7
    %v1978 = vrot.slane %v1005, 7
    %v1979 = vrot.slane %v1006, 7
    %v1980 = vrot.slane %v1007, 7
    %v1981 = vrot.slane %v1008, 7
    %v1982 = vrot.slane %v1009, 7
    %v1983 = vrot.slane %v1010, 7
    %v1984 = vrot.slane %v1011, 7
    %v1985 = vrot.slane %v1012, 7
    %v1986 = vrot.slane %v1013, 7
    %v1987 = vrot.slane %v1014, 7
    %v1988 = vrot.slane %v1015, 7
    %v1989 = vrot.slane %v1016, 7
    %v1990 = vrot.slane %v1017, 7
    %v1991 = vrot.slane %v1018, 7
    %v1992 = vrot.slane %v1019, 7
    %v1993 = vrot.slane %v1020, 7
    %v1994 = vrot.slane %v1021, 7
    %v1995 = vrot.slane %v1022, 7
    %v1996 = vrot.slane %v1023, 7
    %v1997 = vrot.slane %v1024, 7
    %v1998 = vrot.slane %v1025, 7
    %v1999 = vrot.slane %v1026, 7
    %v2000 = vrot.slane %v1027, 7
    %v2001 = vrot.slane %v1028, 7
    %v2002 = vrot.slane %v1029, 7
    %v2003 = vrot.slane %v1030, 7
    %v2004 = vrot.slane %v1031, 7
    %v2005 = vrot.slane %v1032, 7
    %v2006 = vrot.slane %v1033, 7
    %v2007 = vrot.slane %v1034, 7
    %v2008 = vrot.slane %v1035, 7
    %v2009 = vrot.slane %v1036, 7
    %v2010 = vrot.slane %v1037, 7
    %v2011 = vrot.slane %v1038, 7
    %v2012 = vrot.slane %v1039, 7
    %v2013 = vrot.slane %v1040, 7
    %v2014 = vrot.slane %v1041, 7
    %v2015 = vrot.slane %v1042, 7
    %v2016 = vrot.slane %v1043, 7
    %v2017 = vrot.slane %v1044, 7
    %v2018 = vrot.slane %v1045, 7
    %vm2019 = vcmp.lt.s32.totalorder %v1129, 1
    %v2020 = vsel %vm2019, %v2017, %v2018
    %v2021 = vsel %vm2019, %v2016, %v2017
    %v2022 = vsel %vm2019, %v2015, %v2016
    %v2023 = vsel %vm2019, %v2014, %v2015
    %v2024 = vsel %vm2019, %v2013, %v2014
    %v2025 = vsel %vm2019, %v2012, %v2013
    %v2026 = vsel %vm2019, %v2011, %v2012
    %v2027 = vsel %vm2019, %v2010, %v2011
    %v2028 = vsel %vm2019, %v2009, %v2010
    %v2029 = vsel %vm2019, %v2008, %v2009
    %v2030 = vsel %vm2019, %v2007, %v2008
    %v2031 = vsel %vm2019, %v2006, %v2007
    %v2032 = vsel %vm2019, %v2005, %v2006
    %v2033 = vsel %vm2019, %v2004, %v2005
    %v2034 = vsel %vm2019, %v2003, %v2004
    %v2035 = vsel %vm2019, %v2002, %v2003
    %v2036 = vsel %vm2019, %v2001, %v2002
    %v2037 = vsel %vm2019, %v2000, %v2001
    %v2038 = vsel %vm2019, %v1999, %v2000
    %v2039 = vsel %vm2019, %v1998, %v1999
    %v2040 = vsel %vm2019, %v1997, %v1998
    %v2041 = vsel %vm2019, %v1996, %v1997
    %v2042 = vsel %vm2019, %v1995, %v1996
    %v2043 = vsel %vm2019, %v1994, %v1995
    %v2044 = vsel %vm2019, %v1993, %v1994
    %v2045 = vsel %vm2019, %v1992, %v1993
    %v2046 = vsel %vm2019, %v1991, %v1992
    %v2047 = vsel %vm2019, %v1990, %v1991
    %v2048 = vsel %vm2019, %v1989, %v1990
    %v2049 = vsel %vm2019, %v1988, %v1989
    %v2050 = vsel %vm2019, %v1987, %v1988
    %v2051 = vsel %vm2019, %v1986, %v1987
    %v2052 = vsel %vm2019, %v1985, %v1986
    %v2053 = vsel %vm2019, %v1984, %v1985
    %v2054 = vsel %vm2019, %v1983, %v1984
    %v2055 = vsel %vm2019, %v1982, %v1983
    %v2056 = vsel %vm2019, %v1981, %v1982
    %v2057 = vsel %vm2019, %v1980, %v1981
    %v2058 = vsel %vm2019, %v1979, %v1980
    %v2059 = vsel %vm2019, %v1978, %v1979
    %v2060 = vsel %vm2019, %v1977, %v1978
    %v2061 = vsel %vm2019, %v1976, %v1977
    %v2062 = vsel %vm2019, %v1975, %v1976
    %v2063 = vsel %vm2019, %v1974, %v1975
    %v2064 = vsel %vm2019, %v1973, %v1974
    %v2065 = vsel %vm2019, %v1972, %v1973
    %v2066 = vsel %vm2019, %v1971, %v1972
    %v2067 = vsel %vm2019, %v1970, %v1971
    %v2068 = vsel %vm2019, %v1969, %v1970
    %v2069 = vsel %vm2019, %v1968, %v1969
    %v2070 = vsel %vm2019, %v1967, %v1968
    %v2071 = vsel %vm2019, %v1966, %v1967
    %v2072 = vsel %vm2019, %v1965, %v1966
    %v2073 = vsel %vm2019, %v1964, %v1965
    %v2074 = vsel %vm2019, %v1963, %v1964
    %v2075 = vsel %vm2019, %v1962, %v1963
    %v2076 = vsel %vm2019, %v1961, %v1962
    %v2077 = vsel %vm2019, %v1960, %v1961
    %v2078 = vsel %vm2019, %v1959, %v1960
    %v2079 = vsel %vm2019, %v1958, %v1959
    %v2080 = vsel %vm2019, %v1957, %v1958
    %v2081 = vsel %vm2019, %v1956, %v1957
    %v2082 = vsel %vm2019, %v1955, %v1956
    %v2083 = vsel %vm2019, %v1954, %v1955
    %v2084 = vsel %vm2019, %v1953, %v1954
    %v2085 = vsel %vm2019, %v1952, %v1953
    %v2086 = vsel %vm2019, %v1951, %v1952
    %v2087 = vsel %vm2019, %v1950, %v1951
    %v2088 = vsel %vm2019, %v1949, %v1950
    %v2089 = vsel %vm2019, %v1948, %v1949
    %v2090 = vsel %vm2019, %v1947, %v1948
    %v2091 = vsel %vm2019, %v1946, %v1947
    %v2092 = vsel %vm2019, %v1945, %v1946
    %v2093 = vsel %vm2019, %v1944, %v1945
    %v2094 = vsel %vm2019, %v1943, %v1944
    %v2095 = vsel %vm2019, %v1942, %v1943
    %v2096 = vsel %vm2019, %v1941, %v1942
    %v2097 = vsel %vm2019, %v1940, %v1941
    %v2098 = vsel %vm2019, %v1939, %v1940
    %v2099 = vsel %vm2019, %v1938, %v1939
    %v2100 = vsel %vm2019, %v1937, %v1938
    %v2101 = vsel %vm2019, %v2018, %v1937
    %s2102 = scalar_lea.vmem %s4, 256
    %v2103 = vld [vmem:[%s2102] sm:$0xff]
    %v2104 = vld [vmem:[%s2102 + $0x8] sm:$0xff]
    %v2105 = vld [vmem:[%s2102 + $0x10] sm:$0xff]
    %v2106 = vld [vmem:[%s2102 + $0x18] sm:$0xff]
    %v2107 = vld [vmem:[%s2102 + $0x20] sm:$0xff]
    %v2108 = vld [vmem:[%s2102 + $0x28] sm:$0xff]
    %v2109 = vld [vmem:[%s2102 + $0x30] sm:$0xff]
    %v2110 = vld [vmem:[%s2102 + $0x38] sm:$0xff]
    %v2111 = vld [vmem:[%s2102 + $0x40] sm:$0xff]
    %v2112 = vld [vmem:[%s2102 + $0x48] sm:$0xff]
    %v2113 = vld [vmem:[%s2102 + $0x50] sm:$0xff]
    %v2114 = vld [vmem:[%s2102 + $0x58] sm:$0xff]
    %v2115 = vld [vmem:[%s2102 + $0x60] sm:$0xff]
    %v2116 = vld [vmem:[%s2102 + $0x68] sm:$0xff]
    %v2117 = vld [vmem:[%s2102 + $0x70] sm:$0xff]
    %v2118 = vld [vmem:[%s2102 + $0x78] sm:$0xff]
    %2119 = vmatpush.msra.mxu0 %v2118
    %2120 = vmatpush.msra.mxu0 %v2117
    %2121 = vmatpush.msra.mxu0 %v2116
    %2122 = vmatpush.msra.mxu0 %v2115
    %2123 = vmatpush.msra.mxu0 %v2114
    %2124 = vmatpush.msra.mxu0 %v2113
    %2125 = vmatpush.msra.mxu0 %v2112
    %2126 = vmatpush.msra.mxu0 %v2111
    %2127 = vmatpush.msra.mxu0 %v2110
    %2128 = vmatpush.msra.mxu0 %v2109
    %2129 = vmatpush.msra.mxu0 %v2108
    %2130 = vmatpush.msra.mxu0 %v2107
    %2131 = vmatpush.msra.mxu0 %v2106
    %2132 = vmatpush.msra.mxu0 %v2105
    %2133 = vmatpush.msra.mxu0 %v2104
    %2134 = vmatpush.msra.mxu0 %v2103
    %2135 = vmatmul.f32.gmra.mxu0 %v2021
    %v2136 = vpop.f32.mrf.mxu0
    %v2137 = vadd.f32 0.0, %v2136
    %2138 = vmatmul.f32.gmra.mxu0 %v2020
    %v2139 = vpop.f32.mrf.mxu0
    %v2140 = vadd.f32 0.0, %v2139
    %2141 = vmatmul.f32.gmra.mxu0 %v2101
    %v2142 = vpop.f32.mrf.mxu0
    %v2143 = vadd.f32 0.0, %v2142
    %2144 = vmatmul.f32.gmra.mxu0 %v2100
    %v2145 = vpop.f32.mrf.mxu0
    %v2146 = vadd.f32 0.0, %v2145
    %2147 = vmatmul.f32.gmra.mxu0 %v2099
    %v2148 = vpop.f32.mrf.mxu0
    %v2149 = vadd.f32 0.0, %v2148
    %2150 = vmatmul.f32.gmra.mxu0 %v2098
    %v2151 = vpop.f32.mrf.mxu0
    %v2152 = vadd.f32 0.0, %v2151
    %2153 = vmatmul.f32.gmra.mxu0 %v2097
    %v2154 = vpop.f32.mrf.mxu0
    %v2155 = vadd.f32 0.0, %v2154
    %2156 = vmatmul.f32.gmra.mxu0 %v2096
    %v2157 = vpop.f32.mrf.mxu0
    %v2158 = vadd.f32 0.0, %v2157
    %2159 = vmatmul.f32.gmra.mxu0 %v2095
    %v2160 = vpop.f32.mrf.mxu0
    %v2161 = vadd.f32 0.0, %v2160
    %2162 = vmatmul.f32.gmra.mxu0 %v2094
    %v2163 = vpop.f32.mrf.mxu0
    %v2164 = vadd.f32 0.0, %v2163
    %2165 = vmatmul.f32.gmra.mxu0 %v2093
    %v2166 = vpop.f32.mrf.mxu0
    %v2167 = vadd.f32 0.0, %v2166
    %2168 = vmatmul.f32.gmra.mxu0 %v2092
    %v2169 = vpop.f32.mrf.mxu0
    %v2170 = vadd.f32 0.0, %v2169
    %2171 = vmatmul.f32.gmra.mxu0 %v2091
    %v2172 = vpop.f32.mrf.mxu0
    %v2173 = vadd.f32 0.0, %v2172
    %2174 = vmatmul.f32.gmra.mxu0 %v2090
    %v2175 = vpop.f32.mrf.mxu0
    %v2176 = vadd.f32 0.0, %v2175
    %2177 = vmatmul.f32.gmra.mxu0 %v2089
    %v2178 = vpop.f32.mrf.mxu0
    %v2179 = vadd.f32 0.0, %v2178
    %2180 = vmatmul.f32.gmra.mxu0 %v2088
    %v2181 = vpop.f32.mrf.mxu0
    %v2182 = vadd.f32 0.0, %v2181
    %2183 = vmatmul.f32.gmra.mxu0 %v2087
    %v2184 = vpop.f32.mrf.mxu0
    %v2185 = vadd.f32 0.0, %v2184
    %2186 = vmatmul.f32.gmra.mxu0 %v2086
    %v2187 = vpop.f32.mrf.mxu0
    %v2188 = vadd.f32 0.0, %v2187
    %2189 = vmatmul.f32.gmra.mxu0 %v2085
    %v2190 = vpop.f32.mrf.mxu0
    %v2191 = vadd.f32 0.0, %v2190
    %2192 = vmatmul.f32.gmra.mxu0 %v2084
    %v2193 = vpop.f32.mrf.mxu0
    %v2194 = vadd.f32 0.0, %v2193
    %2195 = vmatmul.f32.gmra.mxu0 %v2083
    %v2196 = vpop.f32.mrf.mxu0
    %v2197 = vadd.f32 0.0, %v2196
    %2198 = vmatmul.f32.gmra.mxu0 %v2082
    %v2199 = vpop.f32.mrf.mxu0
    %v2200 = vadd.f32 0.0, %v2199
    %2201 = vmatmul.f32.gmra.mxu0 %v2081
    %v2202 = vpop.f32.mrf.mxu0
    %v2203 = vadd.f32 0.0, %v2202
    %2204 = vmatmul.f32.gmra.mxu0 %v2080
    %v2205 = vpop.f32.mrf.mxu0
    %v2206 = vadd.f32 0.0, %v2205
    %2207 = vmatmul.f32.gmra.mxu0 %v2079
    %v2208 = vpop.f32.mrf.mxu0
    %v2209 = vadd.f32 0.0, %v2208
    %2210 = vmatmul.f32.gmra.mxu0 %v2078
    %v2211 = vpop.f32.mrf.mxu0
    %v2212 = vadd.f32 0.0, %v2211
    %2213 = vmatmul.f32.gmra.mxu0 %v2077
    %v2214 = vpop.f32.mrf.mxu0
    %v2215 = vadd.f32 0.0, %v2214
    %2216 = vmatmul.f32.gmra.mxu0 %v2076
    %v2217 = vpop.f32.mrf.mxu0
    %v2218 = vadd.f32 0.0, %v2217
    %2219 = vmatmul.f32.gmra.mxu0 %v2075
    %v2220 = vpop.f32.mrf.mxu0
    %v2221 = vadd.f32 0.0, %v2220
    %2222 = vmatmul.f32.gmra.mxu0 %v2074
    %v2223 = vpop.f32.mrf.mxu0
    %v2224 = vadd.f32 0.0, %v2223
    %2225 = vmatmul.f32.gmra.mxu0 %v2073
    %v2226 = vpop.f32.mrf.mxu0
    %v2227 = vadd.f32 0.0, %v2226
    %2228 = vmatmul.f32.gmra.mxu0 %v2072
    %v2229 = vpop.f32.mrf.mxu0
    %v2230 = vadd.f32 0.0, %v2229
    %2231 = vmatmul.f32.gmra.mxu0 %v2071
    %v2232 = vpop.f32.mrf.mxu0
    %v2233 = vadd.f32 0.0, %v2232
    %2234 = vmatmul.f32.gmra.mxu0 %v2070
    %v2235 = vpop.f32.mrf.mxu0
    %v2236 = vadd.f32 0.0, %v2235
    %2237 = vmatmul.f32.gmra.mxu0 %v2069
    %v2238 = vpop.f32.mrf.mxu0
    %v2239 = vadd.f32 0.0, %v2238
    %2240 = vmatmul.f32.gmra.mxu0 %v2068
    %v2241 = vpop.f32.mrf.mxu0
    %v2242 = vadd.f32 0.0, %v2241
    %2243 = vmatmul.f32.gmra.mxu0 %v2067
    %v2244 = vpop.f32.mrf.mxu0
    %v2245 = vadd.f32 0.0, %v2244
    %2246 = vmatmul.f32.gmra.mxu0 %v2066
    %v2247 = vpop.f32.mrf.mxu0
    %v2248 = vadd.f32 0.0, %v2247
    %2249 = vmatmul.f32.gmra.mxu0 %v2065
    %v2250 = vpop.f32.mrf.mxu0
    %v2251 = vadd.f32 0.0, %v2250
    %2252 = vmatmul.f32.gmra.mxu0 %v2064
    %v2253 = vpop.f32.mrf.mxu0
    %v2254 = vadd.f32 0.0, %v2253
    %2255 = vmatmul.f32.gmra.mxu0 %v2063
    %v2256 = vpop.f32.mrf.mxu0
    %v2257 = vadd.f32 0.0, %v2256
    %2258 = vmatmul.f32.gmra.mxu0 %v2062
    %v2259 = vpop.f32.mrf.mxu0
    %v2260 = vadd.f32 0.0, %v2259
    %2261 = vmatmul.f32.gmra.mxu0 %v2061
    %v2262 = vpop.f32.mrf.mxu0
    %v2263 = vadd.f32 0.0, %v2262
    %2264 = vmatmul.f32.gmra.mxu0 %v2060
    %v2265 = vpop.f32.mrf.mxu0
    %v2266 = vadd.f32 0.0, %v2265
    %2267 = vmatmul.f32.gmra.mxu0 %v2059
    %v2268 = vpop.f32.mrf.mxu0
    %v2269 = vadd.f32 0.0, %v2268
    %2270 = vmatmul.f32.gmra.mxu0 %v2058
    %v2271 = vpop.f32.mrf.mxu0
    %v2272 = vadd.f32 0.0, %v2271
    %2273 = vmatmul.f32.gmra.mxu0 %v2057
    %v2274 = vpop.f32.mrf.mxu0
    %v2275 = vadd.f32 0.0, %v2274
    %2276 = vmatmul.f32.gmra.mxu0 %v2056
    %v2277 = vpop.f32.mrf.mxu0
    %v2278 = vadd.f32 0.0, %v2277
    %2279 = vmatmul.f32.gmra.mxu0 %v2055
    %v2280 = vpop.f32.mrf.mxu0
    %v2281 = vadd.f32 0.0, %v2280
    %2282 = vmatmul.f32.gmra.mxu0 %v2054
    %v2283 = vpop.f32.mrf.mxu0
    %v2284 = vadd.f32 0.0, %v2283
    %2285 = vmatmul.f32.gmra.mxu0 %v2053
    %v2286 = vpop.f32.mrf.mxu0
    %v2287 = vadd.f32 0.0, %v2286
    %2288 = vmatmul.f32.gmra.mxu0 %v2052
    %v2289 = vpop.f32.mrf.mxu0
    %v2290 = vadd.f32 0.0, %v2289
    %2291 = vmatmul.f32.gmra.mxu0 %v2051
    %v2292 = vpop.f32.mrf.mxu0
    %v2293 = vadd.f32 0.0, %v2292
    %2294 = vmatmul.f32.gmra.mxu0 %v2050
    %v2295 = vpop.f32.mrf.mxu0
    %v2296 = vadd.f32 0.0, %v2295
    %2297 = vmatmul.f32.gmra.mxu0 %v2049
    %v2298 = vpop.f32.mrf.mxu0
    %v2299 = vadd.f32 0.0, %v2298
    %2300 = vmatmul.f32.gmra.mxu0 %v2048
    %v2301 = vpop.f32.mrf.mxu0
    %v2302 = vadd.f32 0.0, %v2301
    %2303 = vmatmul.f32.gmra.mxu0 %v2047
    %v2304 = vpop.f32.mrf.mxu0
    %v2305 = vadd.f32 0.0, %v2304
    %2306 = vmatmul.f32.gmra.mxu0 %v2046
    %v2307 = vpop.f32.mrf.mxu0
    %v2308 = vadd.f32 0.0, %v2307
    %2309 = vmatmul.f32.gmra.mxu0 %v2045
    %v2310 = vpop.f32.mrf.mxu0
    %v2311 = vadd.f32 0.0, %v2310
    %2312 = vmatmul.f32.gmra.mxu0 %v2044
    %v2313 = vpop.f32.mrf.mxu0
    %v2314 = vadd.f32 0.0, %v2313
    %2315 = vmatmul.f32.gmra.mxu0 %v2043
    %v2316 = vpop.f32.mrf.mxu0
    %v2317 = vadd.f32 0.0, %v2316
    %2318 = vmatmul.f32.gmra.mxu0 %v2042
    %v2319 = vpop.f32.mrf.mxu0
    %v2320 = vadd.f32 0.0, %v2319
    %2321 = vmatmul.f32.gmra.mxu0 %v2041
    %v2322 = vpop.f32.mrf.mxu0
    %v2323 = vadd.f32 0.0, %v2322
    %2324 = vmatmul.f32.gmra.mxu0 %v2040
    %v2325 = vpop.f32.mrf.mxu0
    %v2326 = vadd.f32 0.0, %v2325
    %2327 = vmatmul.f32.gmra.mxu0 %v2039
    %v2328 = vpop.f32.mrf.mxu0
    %v2329 = vadd.f32 0.0, %v2328
    %2330 = vmatmul.f32.gmra.mxu0 %v2038
    %v2331 = vpop.f32.mrf.mxu0
    %v2332 = vadd.f32 0.0, %v2331
    %2333 = vmatmul.f32.gmra.mxu0 %v2037
    %v2334 = vpop.f32.mrf.mxu0
    %v2335 = vadd.f32 0.0, %v2334
    %2336 = vmatmul.f32.gmra.mxu0 %v2036
    %v2337 = vpop.f32.mrf.mxu0
    %v2338 = vadd.f32 0.0, %v2337
    %2339 = vmatmul.f32.gmra.mxu0 %v2035
    %v2340 = vpop.f32.mrf.mxu0
    %v2341 = vadd.f32 0.0, %v2340
    %2342 = vmatmul.f32.gmra.mxu0 %v2034
    %v2343 = vpop.f32.mrf.mxu0
    %v2344 = vadd.f32 0.0, %v2343
    %2345 = vmatmul.f32.gmra.mxu0 %v2033
    %v2346 = vpop.f32.mrf.mxu0
    %v2347 = vadd.f32 0.0, %v2346
    %2348 = vmatmul.f32.gmra.mxu0 %v2032
    %v2349 = vpop.f32.mrf.mxu0
    %v2350 = vadd.f32 0.0, %v2349
    %2351 = vmatmul.f32.gmra.mxu0 %v2031
    %v2352 = vpop.f32.mrf.mxu0
    %v2353 = vadd.f32 0.0, %v2352
    %2354 = vmatmul.f32.gmra.mxu0 %v2030
    %v2355 = vpop.f32.mrf.mxu0
    %v2356 = vadd.f32 0.0, %v2355
    %2357 = vmatmul.f32.gmra.mxu0 %v2029
    %v2358 = vpop.f32.mrf.mxu0
    %v2359 = vadd.f32 0.0, %v2358
    %2360 = vmatmul.f32.gmra.mxu0 %v2028
    %v2361 = vpop.f32.mrf.mxu0
    %v2362 = vadd.f32 0.0, %v2361
    %2363 = vmatmul.f32.gmra.mxu0 %v2027
    %v2364 = vpop.f32.mrf.mxu0
    %v2365 = vadd.f32 0.0, %v2364
    %2366 = vmatmul.f32.gmra.mxu0 %v2026
    %v2367 = vpop.f32.mrf.mxu0
    %v2368 = vadd.f32 0.0, %v2367
    %2369 = vmatmul.f32.gmra.mxu0 %v2025
    %v2370 = vpop.f32.mrf.mxu0
    %v2371 = vadd.f32 0.0, %v2370
    %2372 = vmatmul.f32.gmra.mxu0 %v2024
    %v2373 = vpop.f32.mrf.mxu0
    %v2374 = vadd.f32 0.0, %v2373
    %2375 = vmatmul.f32.gmra.mxu0 %v2023
    %v2376 = vpop.f32.mrf.mxu0
    %v2377 = vadd.f32 0.0, %v2376
    %2378 = vmatmul.f32.gmra.mxu0 %v2022
    %v2379 = vpop.f32.mrf.mxu0
    %v2380 = vadd.f32 0.0, %v2379
    %2381 = vdwg.mxu0
    %v2382 = vadd.f32 %v1692, %v2137
    %v2383 = vadd.f32 %v1695, %v2140
    %v2384 = vadd.f32 %v1698, %v2143
    %v2385 = vadd.f32 %v1701, %v2146
    %v2386 = vadd.f32 %v1704, %v2149
    %v2387 = vadd.f32 %v1707, %v2152
    %v2388 = vadd.f32 %v1710, %v2155
    %v2389 = vadd.f32 %v1713, %v2158
    %v2390 = vadd.f32 %v1716, %v2161
    %v2391 = vadd.f32 %v1719, %v2164
    %v2392 = vadd.f32 %v1722, %v2167
    %v2393 = vadd.f32 %v1725, %v2170
    %v2394 = vadd.f32 %v1728, %v2173
    %v2395 = vadd.f32 %v1731, %v2176
    %v2396 = vadd.f32 %v1734, %v2179
    %v2397 = vadd.f32 %v1737, %v2182
    %v2398 = vadd.f32 %v1740, %v2185
    %v2399 = vadd.f32 %v1743, %v2188
    %v2400 = vadd.f32 %v1746, %v2191
    %v2401 = vadd.f32 %v1749, %v2194
    %v2402 = vadd.f32 %v1752, %v2197
    %v2403 = vadd.f32 %v1755, %v2200
    %v2404 = vadd.f32 %v1758, %v2203
    %v2405 = vadd.f32 %v1761, %v2206
    %v2406 = vadd.f32 %v1764, %v2209
    %v2407 = vadd.f32 %v1767, %v2212
    %v2408 = vadd.f32 %v1770, %v2215
    %v2409 = vadd.f32 %v1773, %v2218
    %v2410 = vadd.f32 %v1776, %v2221
    %v2411 = vadd.f32 %v1779, %v2224
    %v2412 = vadd.f32 %v1782, %v2227
    %v2413 = vadd.f32 %v1785, %v2230
    %v2414 = vadd.f32 %v1788, %v2233
    %v2415 = vadd.f32 %v1791, %v2236
    %v2416 = vadd.f32 %v1794, %v2239
    %v2417 = vadd.f32 %v1797, %v2242
    %v2418 = vadd.f32 %v1800, %v2245
    %v2419 = vadd.f32 %v1803, %v2248
    %v2420 = vadd.f32 %v1806, %v2251
    %v2421 = vadd.f32 %v1809, %v2254
    %v2422 = vadd.f32 %v1812, %v2257
    %v2423 = vadd.f32 %v1815, %v2260
    %v2424 = vadd.f32 %v1818, %v2263
    %v2425 = vadd.f32 %v1821, %v2266
    %v2426 = vadd.f32 %v1824, %v2269
    %v2427 = vadd.f32 %v1827, %v2272
    %v2428 = vadd.f32 %v1830, %v2275
    %v2429 = vadd.f32 %v1833, %v2278
    %v2430 = vadd.f32 %v1836, %v2281
    %v2431 = vadd.f32 %v1839, %v2284
    %v2432 = vadd.f32 %v1842, %v2287
    %v2433 = vadd.f32 %v1845, %v2290
    %v2434 = vadd.f32 %v1848, %v2293
    %v2435 = vadd.f32 %v1851, %v2296
    %v2436 = vadd.f32 %v1854, %v2299
    %v2437 = vadd.f32 %v1857, %v2302
    %v2438 = vadd.f32 %v1860, %v2305
    %v2439 = vadd.f32 %v1863, %v2308
    %v2440 = vadd.f32 %v1866, %v2311
    %v2441 = vadd.f32 %v1869, %v2314
    %v2442 = vadd.f32 %v1872, %v2317
    %v2443 = vadd.f32 %v1875, %v2320
    %v2444 = vadd.f32 %v1878, %v2323
    %v2445 = vadd.f32 %v1881, %v2326
    %v2446 = vadd.f32 %v1884, %v2329
    %v2447 = vadd.f32 %v1887, %v2332
    %v2448 = vadd.f32 %v1890, %v2335
    %v2449 = vadd.f32 %v1893, %v2338
    %v2450 = vadd.f32 %v1896, %v2341
    %v2451 = vadd.f32 %v1899, %v2344
    %v2452 = vadd.f32 %v1902, %v2347
    %v2453 = vadd.f32 %v1905, %v2350
    %v2454 = vadd.f32 %v1908, %v2353
    %v2455 = vadd.f32 %v1911, %v2356
    %v2456 = vadd.f32 %v1914, %v2359
    %v2457 = vadd.f32 %v1917, %v2362
    %v2458 = vadd.f32 %v1920, %v2365
    %v2459 = vadd.f32 %v1923, %v2368
    %v2460 = vadd.f32 %v1926, %v2371
    %v2461 = vadd.f32 %v1929, %v2374
    %v2462 = vadd.f32 %v1932, %v2377
    %v2463 = vadd.f32 %v1935, %v2380
    %s2464 = scalar_lea.vmem %s4, 384
    %v2465 = vld [vmem:[%s2464] sm:$0xff]
    %v2466 = vld [vmem:[%s2464 + $0x8] sm:$0xff]
    %v2467 = vld [vmem:[%s2464 + $0x10] sm:$0xff]
    %v2468 = vld [vmem:[%s2464 + $0x18] sm:$0xff]
    %v2469 = vld [vmem:[%s2464 + $0x20] sm:$0xff]
    %v2470 = vld [vmem:[%s2464 + $0x28] sm:$0xff]
    %v2471 = vld [vmem:[%s2464 + $0x30] sm:$0xff]
    %v2472 = vld [vmem:[%s2464 + $0x38] sm:$0xff]
    %v2473 = vld [vmem:[%s2464 + $0x40] sm:$0xff]
    %v2474 = vld [vmem:[%s2464 + $0x48] sm:$0xff]
    %v2475 = vld [vmem:[%s2464 + $0x50] sm:$0xff]
    %v2476 = vld [vmem:[%s2464 + $0x58] sm:$0xff]
    %v2477 = vld [vmem:[%s2464 + $0x60] sm:$0xff]
    %v2478 = vld [vmem:[%s2464 + $0x68] sm:$0xff]
    %v2479 = vld [vmem:[%s2464 + $0x70] sm:$0xff]
    %v2480 = vld [vmem:[%s2464 + $0x78] sm:$0xff]
    %2481 = vmatpush.msra.mxu0 %v2480
    %2482 = vmatpush.msra.mxu0 %v2479
    %2483 = vmatpush.msra.mxu0 %v2478
    %2484 = vmatpush.msra.mxu0 %v2477
    %2485 = vmatpush.msra.mxu0 %v2476
    %2486 = vmatpush.msra.mxu0 %v2475
    %2487 = vmatpush.msra.mxu0 %v2474
    %2488 = vmatpush.msra.mxu0 %v2473
    %2489 = vmatpush.msra.mxu0 %v2472
    %2490 = vmatpush.msra.mxu0 %v2471
    %2491 = vmatpush.msra.mxu0 %v2470
    %2492 = vmatpush.msra.mxu0 %v2469
    %2493 = vmatpush.msra.mxu0 %v2468
    %2494 = vmatpush.msra.mxu0 %v2467
    %2495 = vmatpush.msra.mxu0 %v2466
    %2496 = vmatpush.msra.mxu0 %v2465
    %2497 = vmatmul.f32.gmra.mxu0 %v2101
    %v2498 = vpop.f32.mrf.mxu0
    %v2499 = vadd.f32 0.0, %v2498
    %2500 = vmatmul.f32.gmra.mxu0 %v2100
    %v2501 = vpop.f32.mrf.mxu0
    %v2502 = vadd.f32 0.0, %v2501
    %2503 = vmatmul.f32.gmra.mxu0 %v2099
    %v2504 = vpop.f32.mrf.mxu0
    %v2505 = vadd.f32 0.0, %v2504
    %2506 = vmatmul.f32.gmra.mxu0 %v2098
    %v2507 = vpop.f32.mrf.mxu0
    %v2508 = vadd.f32 0.0, %v2507
    %2509 = vmatmul.f32.gmra.mxu0 %v2097
    %v2510 = vpop.f32.mrf.mxu0
    %v2511 = vadd.f32 0.0, %v2510
    %2512 = vmatmul.f32.gmra.mxu0 %v2096
    %v2513 = vpop.f32.mrf.mxu0
    %v2514 = vadd.f32 0.0, %v2513
    %2515 = vmatmul.f32.gmra.mxu0 %v2095
    %v2516 = vpop.f32.mrf.mxu0
    %v2517 = vadd.f32 0.0, %v2516
    %2518 = vmatmul.f32.gmra.mxu0 %v2094
    %v2519 = vpop.f32.mrf.mxu0
    %v2520 = vadd.f32 0.0, %v2519
    %2521 = vmatmul.f32.gmra.mxu0 %v2093
    %v2522 = vpop.f32.mrf.mxu0
    %v2523 = vadd.f32 0.0, %v2522
    %2524 = vmatmul.f32.gmra.mxu0 %v2092
    %v2525 = vpop.f32.mrf.mxu0
    %v2526 = vadd.f32 0.0, %v2525
    %2527 = vmatmul.f32.gmra.mxu0 %v2091
    %v2528 = vpop.f32.mrf.mxu0
    %v2529 = vadd.f32 0.0, %v2528
    %2530 = vmatmul.f32.gmra.mxu0 %v2090
    %v2531 = vpop.f32.mrf.mxu0
    %v2532 = vadd.f32 0.0, %v2531
    %2533 = vmatmul.f32.gmra.mxu0 %v2089
    %v2534 = vpop.f32.mrf.mxu0
    %v2535 = vadd.f32 0.0, %v2534
    %2536 = vmatmul.f32.gmra.mxu0 %v2088
    %v2537 = vpop.f32.mrf.mxu0
    %v2538 = vadd.f32 0.0, %v2537
    %2539 = vmatmul.f32.gmra.mxu0 %v2087
    %v2540 = vpop.f32.mrf.mxu0
    %v2541 = vadd.f32 0.0, %v2540
    %2542 = vmatmul.f32.gmra.mxu0 %v2086
    %v2543 = vpop.f32.mrf.mxu0
    %v2544 = vadd.f32 0.0, %v2543
    %2545 = vmatmul.f32.gmra.mxu0 %v2085
    %v2546 = vpop.f32.mrf.mxu0
    %v2547 = vadd.f32 0.0, %v2546
    %2548 = vmatmul.f32.gmra.mxu0 %v2084
    %v2549 = vpop.f32.mrf.mxu0
    %v2550 = vadd.f32 0.0, %v2549
    %2551 = vmatmul.f32.gmra.mxu0 %v2083
    %v2552 = vpop.f32.mrf.mxu0
    %v2553 = vadd.f32 0.0, %v2552
    %2554 = vmatmul.f32.gmra.mxu0 %v2082
    %v2555 = vpop.f32.mrf.mxu0
    %v2556 = vadd.f32 0.0, %v2555
    %2557 = vmatmul.f32.gmra.mxu0 %v2081
    %v2558 = vpop.f32.mrf.mxu0
    %v2559 = vadd.f32 0.0, %v2558
    %2560 = vmatmul.f32.gmra.mxu0 %v2080
    %v2561 = vpop.f32.mrf.mxu0
    %v2562 = vadd.f32 0.0, %v2561
    %2563 = vmatmul.f32.gmra.mxu0 %v2079
    %v2564 = vpop.f32.mrf.mxu0
    %v2565 = vadd.f32 0.0, %v2564
    %2566 = vmatmul.f32.gmra.mxu0 %v2078
    %v2567 = vpop.f32.mrf.mxu0
    %v2568 = vadd.f32 0.0, %v2567
    %2569 = vmatmul.f32.gmra.mxu0 %v2077
    %v2570 = vpop.f32.mrf.mxu0
    %v2571 = vadd.f32 0.0, %v2570
    %2572 = vmatmul.f32.gmra.mxu0 %v2076
    %v2573 = vpop.f32.mrf.mxu0
    %v2574 = vadd.f32 0.0, %v2573
    %2575 = vmatmul.f32.gmra.mxu0 %v2075
    %v2576 = vpop.f32.mrf.mxu0
    %v2577 = vadd.f32 0.0, %v2576
    %2578 = vmatmul.f32.gmra.mxu0 %v2074
    %v2579 = vpop.f32.mrf.mxu0
    %v2580 = vadd.f32 0.0, %v2579
    %2581 = vmatmul.f32.gmra.mxu0 %v2073
    %v2582 = vpop.f32.mrf.mxu0
    %v2583 = vadd.f32 0.0, %v2582
    %2584 = vmatmul.f32.gmra.mxu0 %v2072
    %v2585 = vpop.f32.mrf.mxu0
    %v2586 = vadd.f32 0.0, %v2585
    %2587 = vmatmul.f32.gmra.mxu0 %v2071
    %v2588 = vpop.f32.mrf.mxu0
    %v2589 = vadd.f32 0.0, %v2588
    %2590 = vmatmul.f32.gmra.mxu0 %v2070
    %v2591 = vpop.f32.mrf.mxu0
    %v2592 = vadd.f32 0.0, %v2591
    %2593 = vmatmul.f32.gmra.mxu0 %v2069
    %v2594 = vpop.f32.mrf.mxu0
    %v2595 = vadd.f32 0.0, %v2594
    %2596 = vmatmul.f32.gmra.mxu0 %v2068
    %v2597 = vpop.f32.mrf.mxu0
    %v2598 = vadd.f32 0.0, %v2597
    %2599 = vmatmul.f32.gmra.mxu0 %v2067
    %v2600 = vpop.f32.mrf.mxu0
    %v2601 = vadd.f32 0.0, %v2600
    %2602 = vmatmul.f32.gmra.mxu0 %v2066
    %v2603 = vpop.f32.mrf.mxu0
    %v2604 = vadd.f32 0.0, %v2603
    %2605 = vmatmul.f32.gmra.mxu0 %v2065
    %v2606 = vpop.f32.mrf.mxu0
    %v2607 = vadd.f32 0.0, %v2606
    %2608 = vmatmul.f32.gmra.mxu0 %v2064
    %v2609 = vpop.f32.mrf.mxu0
    %v2610 = vadd.f32 0.0, %v2609
    %2611 = vmatmul.f32.gmra.mxu0 %v2063
    %v2612 = vpop.f32.mrf.mxu0
    %v2613 = vadd.f32 0.0, %v2612
    %2614 = vmatmul.f32.gmra.mxu0 %v2062
    %v2615 = vpop.f32.mrf.mxu0
    %v2616 = vadd.f32 0.0, %v2615
    %2617 = vmatmul.f32.gmra.mxu0 %v2061
    %v2618 = vpop.f32.mrf.mxu0
    %v2619 = vadd.f32 0.0, %v2618
    %2620 = vmatmul.f32.gmra.mxu0 %v2060
    %v2621 = vpop.f32.mrf.mxu0
    %v2622 = vadd.f32 0.0, %v2621
    %2623 = vmatmul.f32.gmra.mxu0 %v2059
    %v2624 = vpop.f32.mrf.mxu0
    %v2625 = vadd.f32 0.0, %v2624
    %2626 = vmatmul.f32.gmra.mxu0 %v2058
    %v2627 = vpop.f32.mrf.mxu0
    %v2628 = vadd.f32 0.0, %v2627
    %2629 = vmatmul.f32.gmra.mxu0 %v2057
    %v2630 = vpop.f32.mrf.mxu0
    %v2631 = vadd.f32 0.0, %v2630
    %2632 = vmatmul.f32.gmra.mxu0 %v2056
    %v2633 = vpop.f32.mrf.mxu0
    %v2634 = vadd.f32 0.0, %v2633
    %2635 = vmatmul.f32.gmra.mxu0 %v2055
    %v2636 = vpop.f32.mrf.mxu0
    %v2637 = vadd.f32 0.0, %v2636
    %2638 = vmatmul.f32.gmra.mxu0 %v2054
    %v2639 = vpop.f32.mrf.mxu0
    %v2640 = vadd.f32 0.0, %v2639
    %2641 = vmatmul.f32.gmra.mxu0 %v2053
    %v2642 = vpop.f32.mrf.mxu0
    %v2643 = vadd.f32 0.0, %v2642
    %2644 = vmatmul.f32.gmra.mxu0 %v2052
    %v2645 = vpop.f32.mrf.mxu0
    %v2646 = vadd.f32 0.0, %v2645
    %2647 = vmatmul.f32.gmra.mxu0 %v2051
    %v2648 = vpop.f32.mrf.mxu0
    %v2649 = vadd.f32 0.0, %v2648
    %2650 = vmatmul.f32.gmra.mxu0 %v2050
    %v2651 = vpop.f32.mrf.mxu0
    %v2652 = vadd.f32 0.0, %v2651
    %2653 = vmatmul.f32.gmra.mxu0 %v2049
    %v2654 = vpop.f32.mrf.mxu0
    %v2655 = vadd.f32 0.0, %v2654
    %2656 = vmatmul.f32.gmra.mxu0 %v2048
    %v2657 = vpop.f32.mrf.mxu0
    %v2658 = vadd.f32 0.0, %v2657
    %2659 = vmatmul.f32.gmra.mxu0 %v2047
    %v2660 = vpop.f32.mrf.mxu0
    %v2661 = vadd.f32 0.0, %v2660
    %2662 = vmatmul.f32.gmra.mxu0 %v2046
    %v2663 = vpop.f32.mrf.mxu0
    %v2664 = vadd.f32 0.0, %v2663
    %2665 = vmatmul.f32.gmra.mxu0 %v2045
    %v2666 = vpop.f32.mrf.mxu0
    %v2667 = vadd.f32 0.0, %v2666
    %2668 = vmatmul.f32.gmra.mxu0 %v2044
    %v2669 = vpop.f32.mrf.mxu0
    %v2670 = vadd.f32 0.0, %v2669
    %2671 = vmatmul.f32.gmra.mxu0 %v2043
    %v2672 = vpop.f32.mrf.mxu0
    %v2673 = vadd.f32 0.0, %v2672
    %2674 = vmatmul.f32.gmra.mxu0 %v2042
    %v2675 = vpop.f32.mrf.mxu0
    %v2676 = vadd.f32 0.0, %v2675
    %2677 = vmatmul.f32.gmra.mxu0 %v2041
    %v2678 = vpop.f32.mrf.mxu0
    %v2679 = vadd.f32 0.0, %v2678
    %2680 = vmatmul.f32.gmra.mxu0 %v2040
    %v2681 = vpop.f32.mrf.mxu0
    %v2682 = vadd.f32 0.0, %v2681
    %2683 = vmatmul.f32.gmra.mxu0 %v2039
    %v2684 = vpop.f32.mrf.mxu0
    %v2685 = vadd.f32 0.0, %v2684
    %2686 = vmatmul.f32.gmra.mxu0 %v2038
    %v2687 = vpop.f32.mrf.mxu0
    %v2688 = vadd.f32 0.0, %v2687
    %2689 = vmatmul.f32.gmra.mxu0 %v2037
    %v2690 = vpop.f32.mrf.mxu0
    %v2691 = vadd.f32 0.0, %v2690
    %2692 = vmatmul.f32.gmra.mxu0 %v2036
    %v2693 = vpop.f32.mrf.mxu0
    %v2694 = vadd.f32 0.0, %v2693
    %2695 = vmatmul.f32.gmra.mxu0 %v2035
    %v2696 = vpop.f32.mrf.mxu0
    %v2697 = vadd.f32 0.0, %v2696
    %2698 = vmatmul.f32.gmra.mxu0 %v2034
    %v2699 = vpop.f32.mrf.mxu0
    %v2700 = vadd.f32 0.0, %v2699
    %2701 = vmatmul.f32.gmra.mxu0 %v2033
    %v2702 = vpop.f32.mrf.mxu0
    %v2703 = vadd.f32 0.0, %v2702
    %2704 = vmatmul.f32.gmra.mxu0 %v2032
    %v2705 = vpop.f32.mrf.mxu0
    %v2706 = vadd.f32 0.0, %v2705
    %2707 = vmatmul.f32.gmra.mxu0 %v2031
    %v2708 = vpop.f32.mrf.mxu0
    %v2709 = vadd.f32 0.0, %v2708
    %2710 = vmatmul.f32.gmra.mxu0 %v2030
    %v2711 = vpop.f32.mrf.mxu0
    %v2712 = vadd.f32 0.0, %v2711
    %2713 = vmatmul.f32.gmra.mxu0 %v2029
    %v2714 = vpop.f32.mrf.mxu0
    %v2715 = vadd.f32 0.0, %v2714
    %2716 = vmatmul.f32.gmra.mxu0 %v2028
    %v2717 = vpop.f32.mrf.mxu0
    %v2718 = vadd.f32 0.0, %v2717
    %2719 = vmatmul.f32.gmra.mxu0 %v2027
    %v2720 = vpop.f32.mrf.mxu0
    %v2721 = vadd.f32 0.0, %v2720
    %2722 = vmatmul.f32.gmra.mxu0 %v2026
    %v2723 = vpop.f32.mrf.mxu0
    %v2724 = vadd.f32 0.0, %v2723
    %2725 = vmatmul.f32.gmra.mxu0 %v2025
    %v2726 = vpop.f32.mrf.mxu0
    %v2727 = vadd.f32 0.0, %v2726
    %2728 = vmatmul.f32.gmra.mxu0 %v2024
    %v2729 = vpop.f32.mrf.mxu0
    %v2730 = vadd.f32 0.0, %v2729
    %2731 = vmatmul.f32.gmra.mxu0 %v2023
    %v2732 = vpop.f32.mrf.mxu0
    %v2733 = vadd.f32 0.0, %v2732
    %2734 = vmatmul.f32.gmra.mxu0 %v2022
    %v2735 = vpop.f32.mrf.mxu0
    %v2736 = vadd.f32 0.0, %v2735
    %2737 = vmatmul.f32.gmra.mxu0 %v2021
    %v2738 = vpop.f32.mrf.mxu0
    %v2739 = vadd.f32 0.0, %v2738
    %2740 = vmatmul.f32.gmra.mxu0 %v2020
    %v2741 = vpop.f32.mrf.mxu0
    %v2742 = vadd.f32 0.0, %v2741
    %2743 = vdwg.mxu0
    %v2744 = vadd.f32 %v2382, %v2499
    %v2745 = vadd.f32 %v2383, %v2502
    %v2746 = vadd.f32 %v2384, %v2505
    %v2747 = vadd.f32 %v2385, %v2508
    %v2748 = vadd.f32 %v2386, %v2511
    %v2749 = vadd.f32 %v2387, %v2514
    %v2750 = vadd.f32 %v2388, %v2517
    %v2751 = vadd.f32 %v2389, %v2520
    %v2752 = vadd.f32 %v2390, %v2523
    %v2753 = vadd.f32 %v2391, %v2526
    %v2754 = vadd.f32 %v2392, %v2529
    %v2755 = vadd.f32 %v2393, %v2532
    %v2756 = vadd.f32 %v2394, %v2535
    %v2757 = vadd.f32 %v2395, %v2538
    %v2758 = vadd.f32 %v2396, %v2541
    %v2759 = vadd.f32 %v2397, %v2544
    %v2760 = vadd.f32 %v2398, %v2547
    %v2761 = vadd.f32 %v2399, %v2550
    %v2762 = vadd.f32 %v2400, %v2553
    %v2763 = vadd.f32 %v2401, %v2556
    %v2764 = vadd.f32 %v2402, %v2559
    %v2765 = vadd.f32 %v2403, %v2562
    %v2766 = vadd.f32 %v2404, %v2565
    %v2767 = vadd.f32 %v2405, %v2568
    %v2768 = vadd.f32 %v2406, %v2571
    %v2769 = vadd.f32 %v2407, %v2574
    %v2770 = vadd.f32 %v2408, %v2577
    %v2771 = vadd.f32 %v2409, %v2580
    %v2772 = vadd.f32 %v2410, %v2583
    %v2773 = vadd.f32 %v2411, %v2586
    %v2774 = vadd.f32 %v2412, %v2589
    %v2775 = vadd.f32 %v2413, %v2592
    %v2776 = vadd.f32 %v2414, %v2595
    %v2777 = vadd.f32 %v2415, %v2598
    %v2778 = vadd.f32 %v2416, %v2601
    %v2779 = vadd.f32 %v2417, %v2604
    %v2780 = vadd.f32 %v2418, %v2607
    %v2781 = vadd.f32 %v2419, %v2610
    %v2782 = vadd.f32 %v2420, %v2613
    %v2783 = vadd.f32 %v2421, %v2616
    %v2784 = vadd.f32 %v2422, %v2619
    %v2785 = vadd.f32 %v2423, %v2622
    %v2786 = vadd.f32 %v2424, %v2625
    %v2787 = vadd.f32 %v2425, %v2628
    %v2788 = vadd.f32 %v2426, %v2631
    %v2789 = vadd.f32 %v2427, %v2634
    %v2790 = vadd.f32 %v2428, %v2637
    %v2791 = vadd.f32 %v2429, %v2640
    %v2792 = vadd.f32 %v2430, %v2643
    %v2793 = vadd.f32 %v2431, %v2646
    %v2794 = vadd.f32 %v2432, %v2649
    %v2795 = vadd.f32 %v2433, %v2652
    %v2796 = vadd.f32 %v2434, %v2655
    %v2797 = vadd.f32 %v2435, %v2658
    %v2798 = vadd.f32 %v2436, %v2661
    %v2799 = vadd.f32 %v2437, %v2664
    %v2800 = vadd.f32 %v2438, %v2667
    %v2801 = vadd.f32 %v2439, %v2670
    %v2802 = vadd.f32 %v2440, %v2673
    %v2803 = vadd.f32 %v2441, %v2676
    %v2804 = vadd.f32 %v2442, %v2679
    %v2805 = vadd.f32 %v2443, %v2682
    %v2806 = vadd.f32 %v2444, %v2685
    %v2807 = vadd.f32 %v2445, %v2688
    %v2808 = vadd.f32 %v2446, %v2691
    %v2809 = vadd.f32 %v2447, %v2694
    %v2810 = vadd.f32 %v2448, %v2697
    %v2811 = vadd.f32 %v2449, %v2700
    %v2812 = vadd.f32 %v2450, %v2703
    %v2813 = vadd.f32 %v2451, %v2706
    %v2814 = vadd.f32 %v2452, %v2709
    %v2815 = vadd.f32 %v2453, %v2712
    %v2816 = vadd.f32 %v2454, %v2715
    %v2817 = vadd.f32 %v2455, %v2718
    %v2818 = vadd.f32 %v2456, %v2721
    %v2819 = vadd.f32 %v2457, %v2724
    %v2820 = vadd.f32 %v2458, %v2727
    %v2821 = vadd.f32 %v2459, %v2730
    %v2822 = vadd.f32 %v2460, %v2733
    %v2823 = vadd.f32 %v2461, %v2736
    %v2824 = vadd.f32 %v2462, %v2739
    %v2825 = vadd.f32 %v2463, %v2742
    %s2826 = scalar_lea.vmem %s4, 512
    %v2827 = vld [vmem:[%s2826] sm:$0xff]
    %v2828 = vld [vmem:[%s2826 + $0x8] sm:$0xff]
    %v2829 = vld [vmem:[%s2826 + $0x10] sm:$0xff]
    %v2830 = vld [vmem:[%s2826 + $0x18] sm:$0xff]
    %v2831 = vld [vmem:[%s2826 + $0x20] sm:$0xff]
    %v2832 = vld [vmem:[%s2826 + $0x28] sm:$0xff]
    %v2833 = vld [vmem:[%s2826 + $0x30] sm:$0xff]
    %v2834 = vld [vmem:[%s2826 + $0x38] sm:$0xff]
    %v2835 = vld [vmem:[%s2826 + $0x40] sm:$0xff]
    %v2836 = vld [vmem:[%s2826 + $0x48] sm:$0xff]
    %v2837 = vld [vmem:[%s2826 + $0x50] sm:$0xff]
    %v2838 = vld [vmem:[%s2826 + $0x58] sm:$0xff]
    %v2839 = vld [vmem:[%s2826 + $0x60] sm:$0xff]
    %v2840 = vld [vmem:[%s2826 + $0x68] sm:$0xff]
    %v2841 = vld [vmem:[%s2826 + $0x70] sm:$0xff]
    %v2842 = vld [vmem:[%s2826 + $0x78] sm:$0xff]
    %2843 = vmatpush.msra.mxu0 %v2842
    %2844 = vmatpush.msra.mxu0 %v2841
    %2845 = vmatpush.msra.mxu0 %v2840
    %2846 = vmatpush.msra.mxu0 %v2839
    %2847 = vmatpush.msra.mxu0 %v2838
    %2848 = vmatpush.msra.mxu0 %v2837
    %2849 = vmatpush.msra.mxu0 %v2836
    %2850 = vmatpush.msra.mxu0 %v2835
    %2851 = vmatpush.msra.mxu0 %v2834
    %2852 = vmatpush.msra.mxu0 %v2833
    %2853 = vmatpush.msra.mxu0 %v2832
    %2854 = vmatpush.msra.mxu0 %v2831
    %2855 = vmatpush.msra.mxu0 %v2830
    %2856 = vmatpush.msra.mxu0 %v2829
    %2857 = vmatpush.msra.mxu0 %v2828
    %2858 = vmatpush.msra.mxu0 %v2827
    %2859 = vmatmul.f32.gmra.mxu0 %v964
    %v2860 = vpop.f32.mrf.mxu0
    %v2861 = vadd.f32 0.0, %v2860
    %2862 = vmatmul.f32.gmra.mxu0 %v965
    %v2863 = vpop.f32.mrf.mxu0
    %v2864 = vadd.f32 0.0, %v2863
    %2865 = vmatmul.f32.gmra.mxu0 %v966
    %v2866 = vpop.f32.mrf.mxu0
    %v2867 = vadd.f32 0.0, %v2866
    %2868 = vmatmul.f32.gmra.mxu0 %v967
    %v2869 = vpop.f32.mrf.mxu0
    %v2870 = vadd.f32 0.0, %v2869
    %2871 = vmatmul.f32.gmra.mxu0 %v968
    %v2872 = vpop.f32.mrf.mxu0
    %v2873 = vadd.f32 0.0, %v2872
    %2874 = vmatmul.f32.gmra.mxu0 %v969
    %v2875 = vpop.f32.mrf.mxu0
    %v2876 = vadd.f32 0.0, %v2875
    %2877 = vmatmul.f32.gmra.mxu0 %v970
    %v2878 = vpop.f32.mrf.mxu0
    %v2879 = vadd.f32 0.0, %v2878
    %2880 = vmatmul.f32.gmra.mxu0 %v971
    %v2881 = vpop.f32.mrf.mxu0
    %v2882 = vadd.f32 0.0, %v2881
    %2883 = vmatmul.f32.gmra.mxu0 %v972
    %v2884 = vpop.f32.mrf.mxu0
    %v2885 = vadd.f32 0.0, %v2884
    %2886 = vmatmul.f32.gmra.mxu0 %v973
    %v2887 = vpop.f32.mrf.mxu0
    %v2888 = vadd.f32 0.0, %v2887
    %2889 = vmatmul.f32.gmra.mxu0 %v974
    %v2890 = vpop.f32.mrf.mxu0
    %v2891 = vadd.f32 0.0, %v2890
    %2892 = vmatmul.f32.gmra.mxu0 %v975
    %v2893 = vpop.f32.mrf.mxu0
    %v2894 = vadd.f32 0.0, %v2893
    %2895 = vmatmul.f32.gmra.mxu0 %v976
    %v2896 = vpop.f32.mrf.mxu0
    %v2897 = vadd.f32 0.0, %v2896
    %2898 = vmatmul.f32.gmra.mxu0 %v977
    %v2899 = vpop.f32.mrf.mxu0
    %v2900 = vadd.f32 0.0, %v2899
    %2901 = vmatmul.f32.gmra.mxu0 %v978
    %v2902 = vpop.f32.mrf.mxu0
    %v2903 = vadd.f32 0.0, %v2902
    %2904 = vmatmul.f32.gmra.mxu0 %v979
    %v2905 = vpop.f32.mrf.mxu0
    %v2906 = vadd.f32 0.0, %v2905
    %2907 = vmatmul.f32.gmra.mxu0 %v980
    %v2908 = vpop.f32.mrf.mxu0
    %v2909 = vadd.f32 0.0, %v2908
    %2910 = vmatmul.f32.gmra.mxu0 %v981
    %v2911 = vpop.f32.mrf.mxu0
    %v2912 = vadd.f32 0.0, %v2911
    %2913 = vmatmul.f32.gmra.mxu0 %v982
    %v2914 = vpop.f32.mrf.mxu0
    %v2915 = vadd.f32 0.0, %v2914
    %2916 = vmatmul.f32.gmra.mxu0 %v983
    %v2917 = vpop.f32.mrf.mxu0
    %v2918 = vadd.f32 0.0, %v2917
    %2919 = vmatmul.f32.gmra.mxu0 %v984
    %v2920 = vpop.f32.mrf.mxu0
    %v2921 = vadd.f32 0.0, %v2920
    %2922 = vmatmul.f32.gmra.mxu0 %v985
    %v2923 = vpop.f32.mrf.mxu0
    %v2924 = vadd.f32 0.0, %v2923
    %2925 = vmatmul.f32.gmra.mxu0 %v986
    %v2926 = vpop.f32.mrf.mxu0
    %v2927 = vadd.f32 0.0, %v2926
    %2928 = vmatmul.f32.gmra.mxu0 %v987
    %v2929 = vpop.f32.mrf.mxu0
    %v2930 = vadd.f32 0.0, %v2929
    %2931 = vmatmul.f32.gmra.mxu0 %v988
    %v2932 = vpop.f32.mrf.mxu0
    %v2933 = vadd.f32 0.0, %v2932
    %2934 = vmatmul.f32.gmra.mxu0 %v989
    %v2935 = vpop.f32.mrf.mxu0
    %v2936 = vadd.f32 0.0, %v2935
    %2937 = vmatmul.f32.gmra.mxu0 %v990
    %v2938 = vpop.f32.mrf.mxu0
    %v2939 = vadd.f32 0.0, %v2938
    %2940 = vmatmul.f32.gmra.mxu0 %v991
    %v2941 = vpop.f32.mrf.mxu0
    %v2942 = vadd.f32 0.0, %v2941
    %2943 = vmatmul.f32.gmra.mxu0 %v992
    %v2944 = vpop.f32.mrf.mxu0
    %v2945 = vadd.f32 0.0, %v2944
    %2946 = vmatmul.f32.gmra.mxu0 %v993
    %v2947 = vpop.f32.mrf.mxu0
    %v2948 = vadd.f32 0.0, %v2947
    %2949 = vmatmul.f32.gmra.mxu0 %v994
    %v2950 = vpop.f32.mrf.mxu0
    %v2951 = vadd.f32 0.0, %v2950
    %2952 = vmatmul.f32.gmra.mxu0 %v995
    %v2953 = vpop.f32.mrf.mxu0
    %v2954 = vadd.f32 0.0, %v2953
    %2955 = vmatmul.f32.gmra.mxu0 %v996
    %v2956 = vpop.f32.mrf.mxu0
    %v2957 = vadd.f32 0.0, %v2956
    %2958 = vmatmul.f32.gmra.mxu0 %v997
    %v2959 = vpop.f32.mrf.mxu0
    %v2960 = vadd.f32 0.0, %v2959
    %2961 = vmatmul.f32.gmra.mxu0 %v998
    %v2962 = vpop.f32.mrf.mxu0
    %v2963 = vadd.f32 0.0, %v2962
    %2964 = vmatmul.f32.gmra.mxu0 %v999
    %v2965 = vpop.f32.mrf.mxu0
    %v2966 = vadd.f32 0.0, %v2965
    %2967 = vmatmul.f32.gmra.mxu0 %v1000
    %v2968 = vpop.f32.mrf.mxu0
    %v2969 = vadd.f32 0.0, %v2968
    %2970 = vmatmul.f32.gmra.mxu0 %v1001
    %v2971 = vpop.f32.mrf.mxu0
    %v2972 = vadd.f32 0.0, %v2971
    %2973 = vmatmul.f32.gmra.mxu0 %v1002
    %v2974 = vpop.f32.mrf.mxu0
    %v2975 = vadd.f32 0.0, %v2974
    %2976 = vmatmul.f32.gmra.mxu0 %v1003
    %v2977 = vpop.f32.mrf.mxu0
    %v2978 = vadd.f32 0.0, %v2977
    %2979 = vmatmul.f32.gmra.mxu0 %v1004
    %v2980 = vpop.f32.mrf.mxu0
    %v2981 = vadd.f32 0.0, %v2980
    %2982 = vmatmul.f32.gmra.mxu0 %v1005
    %v2983 = vpop.f32.mrf.mxu0
    %v2984 = vadd.f32 0.0, %v2983
    %2985 = vmatmul.f32.gmra.mxu0 %v1006
    %v2986 = vpop.f32.mrf.mxu0
    %v2987 = vadd.f32 0.0, %v2986
    %2988 = vmatmul.f32.gmra.mxu0 %v1007
    %v2989 = vpop.f32.mrf.mxu0
    %v2990 = vadd.f32 0.0, %v2989
    %2991 = vmatmul.f32.gmra.mxu0 %v1008
    %v2992 = vpop.f32.mrf.mxu0
    %v2993 = vadd.f32 0.0, %v2992
    %2994 = vmatmul.f32.gmra.mxu0 %v1009
    %v2995 = vpop.f32.mrf.mxu0
    %v2996 = vadd.f32 0.0, %v2995
    %2997 = vmatmul.f32.gmra.mxu0 %v1010
    %v2998 = vpop.f32.mrf.mxu0
    %v2999 = vadd.f32 0.0, %v2998
    %3000 = vmatmul.f32.gmra.mxu0 %v1011
    %v3001 = vpop.f32.mrf.mxu0
    %v3002 = vadd.f32 0.0, %v3001
    %3003 = vmatmul.f32.gmra.mxu0 %v1012
    %v3004 = vpop.f32.mrf.mxu0
    %v3005 = vadd.f32 0.0, %v3004
    %3006 = vmatmul.f32.gmra.mxu0 %v1013
    %v3007 = vpop.f32.mrf.mxu0
    %v3008 = vadd.f32 0.0, %v3007
    %3009 = vmatmul.f32.gmra.mxu0 %v1014
    %v3010 = vpop.f32.mrf.mxu0
    %v3011 = vadd.f32 0.0, %v3010
    %3012 = vmatmul.f32.gmra.mxu0 %v1015
    %v3013 = vpop.f32.mrf.mxu0
    %v3014 = vadd.f32 0.0, %v3013
    %3015 = vmatmul.f32.gmra.mxu0 %v1016
    %v3016 = vpop.f32.mrf.mxu0
    %v3017 = vadd.f32 0.0, %v3016
    %3018 = vmatmul.f32.gmra.mxu0 %v1017
    %v3019 = vpop.f32.mrf.mxu0
    %v3020 = vadd.f32 0.0, %v3019
    %3021 = vmatmul.f32.gmra.mxu0 %v1018
    %v3022 = vpop.f32.mrf.mxu0
    %v3023 = vadd.f32 0.0, %v3022
    %3024 = vmatmul.f32.gmra.mxu0 %v1019
    %v3025 = vpop.f32.mrf.mxu0
    %v3026 = vadd.f32 0.0, %v3025
    %3027 = vmatmul.f32.gmra.mxu0 %v1020
    %v3028 = vpop.f32.mrf.mxu0
    %v3029 = vadd.f32 0.0, %v3028
    %3030 = vmatmul.f32.gmra.mxu0 %v1021
    %v3031 = vpop.f32.mrf.mxu0
    %v3032 = vadd.f32 0.0, %v3031
    %3033 = vmatmul.f32.gmra.mxu0 %v1022
    %v3034 = vpop.f32.mrf.mxu0
    %v3035 = vadd.f32 0.0, %v3034
    %3036 = vmatmul.f32.gmra.mxu0 %v1023
    %v3037 = vpop.f32.mrf.mxu0
    %v3038 = vadd.f32 0.0, %v3037
    %3039 = vmatmul.f32.gmra.mxu0 %v1024
    %v3040 = vpop.f32.mrf.mxu0
    %v3041 = vadd.f32 0.0, %v3040
    %3042 = vmatmul.f32.gmra.mxu0 %v1025
    %v3043 = vpop.f32.mrf.mxu0
    %v3044 = vadd.f32 0.0, %v3043
    %3045 = vmatmul.f32.gmra.mxu0 %v1026
    %v3046 = vpop.f32.mrf.mxu0
    %v3047 = vadd.f32 0.0, %v3046
    %3048 = vmatmul.f32.gmra.mxu0 %v1027
    %v3049 = vpop.f32.mrf.mxu0
    %v3050 = vadd.f32 0.0, %v3049
    %3051 = vmatmul.f32.gmra.mxu0 %v1028
    %v3052 = vpop.f32.mrf.mxu0
    %v3053 = vadd.f32 0.0, %v3052
    %3054 = vmatmul.f32.gmra.mxu0 %v1029
    %v3055 = vpop.f32.mrf.mxu0
    %v3056 = vadd.f32 0.0, %v3055
    %3057 = vmatmul.f32.gmra.mxu0 %v1030
    %v3058 = vpop.f32.mrf.mxu0
    %v3059 = vadd.f32 0.0, %v3058
    %3060 = vmatmul.f32.gmra.mxu0 %v1031
    %v3061 = vpop.f32.mrf.mxu0
    %v3062 = vadd.f32 0.0, %v3061
    %3063 = vmatmul.f32.gmra.mxu0 %v1032
    %v3064 = vpop.f32.mrf.mxu0
    %v3065 = vadd.f32 0.0, %v3064
    %3066 = vmatmul.f32.gmra.mxu0 %v1033
    %v3067 = vpop.f32.mrf.mxu0
    %v3068 = vadd.f32 0.0, %v3067
    %3069 = vmatmul.f32.gmra.mxu0 %v1034
    %v3070 = vpop.f32.mrf.mxu0
    %v3071 = vadd.f32 0.0, %v3070
    %3072 = vmatmul.f32.gmra.mxu0 %v1035
    %v3073 = vpop.f32.mrf.mxu0
    %v3074 = vadd.f32 0.0, %v3073
    %3075 = vmatmul.f32.gmra.mxu0 %v1036
    %v3076 = vpop.f32.mrf.mxu0
    %v3077 = vadd.f32 0.0, %v3076
    %3078 = vmatmul.f32.gmra.mxu0 %v1037
    %v3079 = vpop.f32.mrf.mxu0
    %v3080 = vadd.f32 0.0, %v3079
    %3081 = vmatmul.f32.gmra.mxu0 %v1038
    %v3082 = vpop.f32.mrf.mxu0
    %v3083 = vadd.f32 0.0, %v3082
    %3084 = vmatmul.f32.gmra.mxu0 %v1039
    %v3085 = vpop.f32.mrf.mxu0
    %v3086 = vadd.f32 0.0, %v3085
    %3087 = vmatmul.f32.gmra.mxu0 %v1040
    %v3088 = vpop.f32.mrf.mxu0
    %v3089 = vadd.f32 0.0, %v3088
    %3090 = vmatmul.f32.gmra.mxu0 %v1041
    %v3091 = vpop.f32.mrf.mxu0
    %v3092 = vadd.f32 0.0, %v3091
    %3093 = vmatmul.f32.gmra.mxu0 %v1042
    %v3094 = vpop.f32.mrf.mxu0
    %v3095 = vadd.f32 0.0, %v3094
    %3096 = vmatmul.f32.gmra.mxu0 %v1043
    %v3097 = vpop.f32.mrf.mxu0
    %v3098 = vadd.f32 0.0, %v3097
    %3099 = vmatmul.f32.gmra.mxu0 %v1044
    %v3100 = vpop.f32.mrf.mxu0
    %v3101 = vadd.f32 0.0, %v3100
    %3102 = vmatmul.f32.gmra.mxu0 %v1045
    %v3103 = vpop.f32.mrf.mxu0
    %v3104 = vadd.f32 0.0, %v3103
    %3105 = vdwg.mxu0
    %v3106 = vadd.f32 %v2744, %v2861
    %v3107 = vadd.f32 %v2745, %v2864
    %v3108 = vadd.f32 %v2746, %v2867
    %v3109 = vadd.f32 %v2747, %v2870
    %v3110 = vadd.f32 %v2748, %v2873
    %v3111 = vadd.f32 %v2749, %v2876
    %v3112 = vadd.f32 %v2750, %v2879
    %v3113 = vadd.f32 %v2751, %v2882
    %v3114 = vadd.f32 %v2752, %v2885
    %v3115 = vadd.f32 %v2753, %v2888
    %v3116 = vadd.f32 %v2754, %v2891
    %v3117 = vadd.f32 %v2755, %v2894
    %v3118 = vadd.f32 %v2756, %v2897
    %v3119 = vadd.f32 %v2757, %v2900
    %v3120 = vadd.f32 %v2758, %v2903
    %v3121 = vadd.f32 %v2759, %v2906
    %v3122 = vadd.f32 %v2760, %v2909
    %v3123 = vadd.f32 %v2761, %v2912
    %v3124 = vadd.f32 %v2762, %v2915
    %v3125 = vadd.f32 %v2763, %v2918
    %v3126 = vadd.f32 %v2764, %v2921
    %v3127 = vadd.f32 %v2765, %v2924
    %v3128 = vadd.f32 %v2766, %v2927
    %v3129 = vadd.f32 %v2767, %v2930
    %v3130 = vadd.f32 %v2768, %v2933
    %v3131 = vadd.f32 %v2769, %v2936
    %v3132 = vadd.f32 %v2770, %v2939
    %v3133 = vadd.f32 %v2771, %v2942
    %v3134 = vadd.f32 %v2772, %v2945
    %v3135 = vadd.f32 %v2773, %v2948
    %v3136 = vadd.f32 %v2774, %v2951
    %v3137 = vadd.f32 %v2775, %v2954
    %v3138 = vadd.f32 %v2776, %v2957
    %v3139 = vadd.f32 %v2777, %v2960
    %v3140 = vadd.f32 %v2778, %v2963
    %v3141 = vadd.f32 %v2779, %v2966
    %v3142 = vadd.f32 %v2780, %v2969
    %v3143 = vadd.f32 %v2781, %v2972
    %v3144 = vadd.f32 %v2782, %v2975
    %v3145 = vadd.f32 %v2783, %v2978
    %v3146 = vadd.f32 %v2784, %v2981
    %v3147 = vadd.f32 %v2785, %v2984
    %v3148 = vadd.f32 %v2786, %v2987
    %v3149 = vadd.f32 %v2787, %v2990
    %v3150 = vadd.f32 %v2788, %v2993
    %v3151 = vadd.f32 %v2789, %v2996
    %v3152 = vadd.f32 %v2790, %v2999
    %v3153 = vadd.f32 %v2791, %v3002
    %v3154 = vadd.f32 %v2792, %v3005
    %v3155 = vadd.f32 %v2793, %v3008
    %v3156 = vadd.f32 %v2794, %v3011
    %v3157 = vadd.f32 %v2795, %v3014
    %v3158 = vadd.f32 %v2796, %v3017
    %v3159 = vadd.f32 %v2797, %v3020
    %v3160 = vadd.f32 %v2798, %v3023
    %v3161 = vadd.f32 %v2799, %v3026
    %v3162 = vadd.f32 %v2800, %v3029
    %v3163 = vadd.f32 %v2801, %v3032
    %v3164 = vadd.f32 %v2802, %v3035
    %v3165 = vadd.f32 %v2803, %v3038
    %v3166 = vadd.f32 %v2804, %v3041
    %v3167 = vadd.f32 %v2805, %v3044
    %v3168 = vadd.f32 %v2806, %v3047
    %v3169 = vadd.f32 %v2807, %v3050
    %v3170 = vadd.f32 %v2808, %v3053
    %v3171 = vadd.f32 %v2809, %v3056
    %v3172 = vadd.f32 %v2810, %v3059
    %v3173 = vadd.f32 %v2811, %v3062
    %v3174 = vadd.f32 %v2812, %v3065
    %v3175 = vadd.f32 %v2813, %v3068
    %v3176 = vadd.f32 %v2814, %v3071
    %v3177 = vadd.f32 %v2815, %v3074
    %v3178 = vadd.f32 %v2816, %v3077
    %v3179 = vadd.f32 %v2817, %v3080
    %v3180 = vadd.f32 %v2818, %v3083
    %v3181 = vadd.f32 %v2819, %v3086
    %v3182 = vadd.f32 %v2820, %v3089
    %v3183 = vadd.f32 %v2821, %v3092
    %v3184 = vadd.f32 %v2822, %v3095
    %v3185 = vadd.f32 %v2823, %v3098
    %v3186 = vadd.f32 %v2824, %v3101
    %v3187 = vadd.f32 %v2825, %v3104
    %v3188 = vrot.slane %v964, 1
    %v3189 = vrot.slane %v965, 1
    %v3190 = vrot.slane %v966, 1
    %v3191 = vrot.slane %v967, 1
    %v3192 = vrot.slane %v968, 1
    %v3193 = vrot.slane %v969, 1
    %v3194 = vrot.slane %v970, 1
    %v3195 = vrot.slane %v971, 1
    %v3196 = vrot.slane %v972, 1
    %v3197 = vrot.slane %v973, 1
    %v3198 = vrot.slane %v974, 1
    %v3199 = vrot.slane %v975, 1
    %v3200 = vrot.slane %v976, 1
    %v3201 = vrot.slane %v977, 1
    %v3202 = vrot.slane %v978, 1
    %v3203 = vrot.slane %v979, 1
    %v3204 = vrot.slane %v980, 1
    %v3205 = vrot.slane %v981, 1
    %v3206 = vrot.slane %v982, 1
    %v3207 = vrot.slane %v983, 1
    %v3208 = vrot.slane %v984, 1
    %v3209 = vrot.slane %v985, 1
    %v3210 = vrot.slane %v986, 1
    %v3211 = vrot.slane %v987, 1
    %v3212 = vrot.slane %v988, 1
    %v3213 = vrot.slane %v989, 1
    %v3214 = vrot.slane %v990, 1
    %v3215 = vrot.slane %v991, 1
    %v3216 = vrot.slane %v992, 1
    %v3217 = vrot.slane %v993, 1
    %v3218 = vrot.slane %v994, 1
    %v3219 = vrot.slane %v995, 1
    %v3220 = vrot.slane %v996, 1
    %v3221 = vrot.slane %v997, 1
    %v3222 = vrot.slane %v998, 1
    %v3223 = vrot.slane %v999, 1
    %v3224 = vrot.slane %v1000, 1
    %v3225 = vrot.slane %v1001, 1
    %v3226 = vrot.slane %v1002, 1
    %v3227 = vrot.slane %v1003, 1
    %v3228 = vrot.slane %v1004, 1
    %v3229 = vrot.slane %v1005, 1
    %v3230 = vrot.slane %v1006, 1
    %v3231 = vrot.slane %v1007, 1
    %v3232 = vrot.slane %v1008, 1
    %v3233 = vrot.slane %v1009, 1
    %v3234 = vrot.slane %v1010, 1
    %v3235 = vrot.slane %v1011, 1
    %v3236 = vrot.slane %v1012, 1
    %v3237 = vrot.slane %v1013, 1
    %v3238 = vrot.slane %v1014, 1
    %v3239 = vrot.slane %v1015, 1
    %v3240 = vrot.slane %v1016, 1
    %v3241 = vrot.slane %v1017, 1
    %v3242 = vrot.slane %v1018, 1
    %v3243 = vrot.slane %v1019, 1
    %v3244 = vrot.slane %v1020, 1
    %v3245 = vrot.slane %v1021, 1
    %v3246 = vrot.slane %v1022, 1
    %v3247 = vrot.slane %v1023, 1
    %v3248 = vrot.slane %v1024, 1
    %v3249 = vrot.slane %v1025, 1
    %v3250 = vrot.slane %v1026, 1
    %v3251 = vrot.slane %v1027, 1
    %v3252 = vrot.slane %v1028, 1
    %v3253 = vrot.slane %v1029, 1
    %v3254 = vrot.slane %v1030, 1
    %v3255 = vrot.slane %v1031, 1
    %v3256 = vrot.slane %v1032, 1
    %v3257 = vrot.slane %v1033, 1
    %v3258 = vrot.slane %v1034, 1
    %v3259 = vrot.slane %v1035, 1
    %v3260 = vrot.slane %v1036, 1
    %v3261 = vrot.slane %v1037, 1
    %v3262 = vrot.slane %v1038, 1
    %v3263 = vrot.slane %v1039, 1
    %v3264 = vrot.slane %v1040, 1
    %v3265 = vrot.slane %v1041, 1
    %v3266 = vrot.slane %v1042, 1
    %v3267 = vrot.slane %v1043, 1
    %v3268 = vrot.slane %v1044, 1
    %v3269 = vrot.slane %v1045, 1
    %vm3270 = vcmp.lt.s32.totalorder %v1129, 7
    %v3271 = vsel %vm3270, %v3268, %v3269
    %v3272 = vsel %vm3270, %v3267, %v3268
    %v3273 = vsel %vm3270, %v3266, %v3267
    %v3274 = vsel %vm3270, %v3265, %v3266
    %v3275 = vsel %vm3270, %v3264, %v3265
    %v3276 = vsel %vm3270, %v3263, %v3264
    %v3277 = vsel %vm3270, %v3262, %v3263
    %v3278 = vsel %vm3270, %v3261, %v3262
    %v3279 = vsel %vm3270, %v3260, %v3261
    %v3280 = vsel %vm3270, %v3259, %v3260
    %v3281 = vsel %vm3270, %v3258, %v3259
    %v3282 = vsel %vm3270, %v3257, %v3258
    %v3283 = vsel %vm3270, %v3256, %v3257
    %v3284 = vsel %vm3270, %v3255, %v3256
    %v3285 = vsel %vm3270, %v3254, %v3255
    %v3286 = vsel %vm3270, %v3253, %v3254
    %v3287 = vsel %vm3270, %v3252, %v3253
    %v3288 = vsel %vm3270, %v3251, %v3252
    %v3289 = vsel %vm3270, %v3250, %v3251
    %v3290 = vsel %vm3270, %v3249, %v3250
    %v3291 = vsel %vm3270, %v3248, %v3249
    %v3292 = vsel %vm3270, %v3247, %v3248
    %v3293 = vsel %vm3270, %v3246, %v3247
    %v3294 = vsel %vm3270, %v3245, %v3246
    %v3295 = vsel %vm3270, %v3244, %v3245
    %v3296 = vsel %vm3270, %v3243, %v3244
    %v3297 = vsel %vm3270, %v3242, %v3243
    %v3298 = vsel %vm3270, %v3241, %v3242
    %v3299 = vsel %vm3270, %v3240, %v3241
    %v3300 = vsel %vm3270, %v3239, %v3240
    %v3301 = vsel %vm3270, %v3238, %v3239
    %v3302 = vsel %vm3270, %v3237, %v3238
    %v3303 = vsel %vm3270, %v3236, %v3237
    %v3304 = vsel %vm3270, %v3235, %v3236
    %v3305 = vsel %vm3270, %v3234, %v3235
    %v3306 = vsel %vm3270, %v3233, %v3234
    %v3307 = vsel %vm3270, %v3232, %v3233
    %v3308 = vsel %vm3270, %v3231, %v3232
    %v3309 = vsel %vm3270, %v3230, %v3231
    %v3310 = vsel %vm3270, %v3229, %v3230
    %v3311 = vsel %vm3270, %v3228, %v3229
    %v3312 = vsel %vm3270, %v3227, %v3228
    %v3313 = vsel %vm3270, %v3226, %v3227
    %v3314 = vsel %vm3270, %v3225, %v3226
    %v3315 = vsel %vm3270, %v3224, %v3225
    %v3316 = vsel %vm3270, %v3223, %v3224
    %v3317 = vsel %vm3270, %v3222, %v3223
    %v3318 = vsel %vm3270, %v3221, %v3222
    %v3319 = vsel %vm3270, %v3220, %v3221
    %v3320 = vsel %vm3270, %v3219, %v3220
    %v3321 = vsel %vm3270, %v3218, %v3219
    %v3322 = vsel %vm3270, %v3217, %v3218
    %v3323 = vsel %vm3270, %v3216, %v3217
    %v3324 = vsel %vm3270, %v3215, %v3216
    %v3325 = vsel %vm3270, %v3214, %v3215
    %v3326 = vsel %vm3270, %v3213, %v3214
    %v3327 = vsel %vm3270, %v3212, %v3213
    %v3328 = vsel %vm3270, %v3211, %v3212
    %v3329 = vsel %vm3270, %v3210, %v3211
    %v3330 = vsel %vm3270, %v3209, %v3210
    %v3331 = vsel %vm3270, %v3208, %v3209
    %v3332 = vsel %vm3270, %v3207, %v3208
    %v3333 = vsel %vm3270, %v3206, %v3207
    %v3334 = vsel %vm3270, %v3205, %v3206
    %v3335 = vsel %vm3270, %v3204, %v3205
    %v3336 = vsel %vm3270, %v3203, %v3204
    %v3337 = vsel %vm3270, %v3202, %v3203
    %v3338 = vsel %vm3270, %v3201, %v3202
    %v3339 = vsel %vm3270, %v3200, %v3201
    %v3340 = vsel %vm3270, %v3199, %v3200
    %v3341 = vsel %vm3270, %v3198, %v3199
    %v3342 = vsel %vm3270, %v3197, %v3198
    %v3343 = vsel %vm3270, %v3196, %v3197
    %v3344 = vsel %vm3270, %v3195, %v3196
    %v3345 = vsel %vm3270, %v3194, %v3195
    %v3346 = vsel %vm3270, %v3193, %v3194
    %v3347 = vsel %vm3270, %v3192, %v3193
    %v3348 = vsel %vm3270, %v3191, %v3192
    %v3349 = vsel %vm3270, %v3190, %v3191
    %v3350 = vsel %vm3270, %v3189, %v3190
    %v3351 = vsel %vm3270, %v3188, %v3189
    %v3352 = vsel %vm3270, %v3269, %v3188
    %s3353 = scalar_lea.vmem %s4, 640
    %v3354 = vld [vmem:[%s3353] sm:$0xff]
    %v3355 = vld [vmem:[%s3353 + $0x8] sm:$0xff]
    %v3356 = vld [vmem:[%s3353 + $0x10] sm:$0xff]
    %v3357 = vld [vmem:[%s3353 + $0x18] sm:$0xff]
    %v3358 = vld [vmem:[%s3353 + $0x20] sm:$0xff]
    %v3359 = vld [vmem:[%s3353 + $0x28] sm:$0xff]
    %v3360 = vld [vmem:[%s3353 + $0x30] sm:$0xff]
    %v3361 = vld [vmem:[%s3353 + $0x38] sm:$0xff]
    %v3362 = vld [vmem:[%s3353 + $0x40] sm:$0xff]
    %v3363 = vld [vmem:[%s3353 + $0x48] sm:$0xff]
    %v3364 = vld [vmem:[%s3353 + $0x50] sm:$0xff]
    %v3365 = vld [vmem:[%s3353 + $0x58] sm:$0xff]
    %v3366 = vld [vmem:[%s3353 + $0x60] sm:$0xff]
    %v3367 = vld [vmem:[%s3353 + $0x68] sm:$0xff]
    %v3368 = vld [vmem:[%s3353 + $0x70] sm:$0xff]
    %v3369 = vld [vmem:[%s3353 + $0x78] sm:$0xff]
    %3370 = vmatpush.msra.mxu0 %v3369
    %3371 = vmatpush.msra.mxu0 %v3368
    %3372 = vmatpush.msra.mxu0 %v3367
    %3373 = vmatpush.msra.mxu0 %v3366
    %3374 = vmatpush.msra.mxu0 %v3365
    %3375 = vmatpush.msra.mxu0 %v3364
    %3376 = vmatpush.msra.mxu0 %v3363
    %3377 = vmatpush.msra.mxu0 %v3362
    %3378 = vmatpush.msra.mxu0 %v3361
    %3379 = vmatpush.msra.mxu0 %v3360
    %3380 = vmatpush.msra.mxu0 %v3359
    %3381 = vmatpush.msra.mxu0 %v3358
    %3382 = vmatpush.msra.mxu0 %v3357
    %3383 = vmatpush.msra.mxu0 %v3356
    %3384 = vmatpush.msra.mxu0 %v3355
    %3385 = vmatpush.msra.mxu0 %v3354
    %3386 = vmatmul.f32.gmra.mxu0 %v3351
    %v3387 = vpop.f32.mrf.mxu0
    %v3388 = vadd.f32 0.0, %v3387
    %3389 = vmatmul.f32.gmra.mxu0 %v3350
    %v3390 = vpop.f32.mrf.mxu0
    %v3391 = vadd.f32 0.0, %v3390
    %3392 = vmatmul.f32.gmra.mxu0 %v3349
    %v3393 = vpop.f32.mrf.mxu0
    %v3394 = vadd.f32 0.0, %v3393
    %3395 = vmatmul.f32.gmra.mxu0 %v3348
    %v3396 = vpop.f32.mrf.mxu0
    %v3397 = vadd.f32 0.0, %v3396
    %3398 = vmatmul.f32.gmra.mxu0 %v3347
    %v3399 = vpop.f32.mrf.mxu0
    %v3400 = vadd.f32 0.0, %v3399
    %3401 = vmatmul.f32.gmra.mxu0 %v3346
    %v3402 = vpop.f32.mrf.mxu0
    %v3403 = vadd.f32 0.0, %v3402
    %3404 = vmatmul.f32.gmra.mxu0 %v3345
    %v3405 = vpop.f32.mrf.mxu0
    %v3406 = vadd.f32 0.0, %v3405
    %3407 = vmatmul.f32.gmra.mxu0 %v3344
    %v3408 = vpop.f32.mrf.mxu0
    %v3409 = vadd.f32 0.0, %v3408
    %3410 = vmatmul.f32.gmra.mxu0 %v3343
    %v3411 = vpop.f32.mrf.mxu0
    %v3412 = vadd.f32 0.0, %v3411
    %3413 = vmatmul.f32.gmra.mxu0 %v3342
    %v3414 = vpop.f32.mrf.mxu0
    %v3415 = vadd.f32 0.0, %v3414
    %3416 = vmatmul.f32.gmra.mxu0 %v3341
    %v3417 = vpop.f32.mrf.mxu0
    %v3418 = vadd.f32 0.0, %v3417
    %3419 = vmatmul.f32.gmra.mxu0 %v3340
    %v3420 = vpop.f32.mrf.mxu0
    %v3421 = vadd.f32 0.0, %v3420
    %3422 = vmatmul.f32.gmra.mxu0 %v3339
    %v3423 = vpop.f32.mrf.mxu0
    %v3424 = vadd.f32 0.0, %v3423
    %3425 = vmatmul.f32.gmra.mxu0 %v3338
    %v3426 = vpop.f32.mrf.mxu0
    %v3427 = vadd.f32 0.0, %v3426
    %3428 = vmatmul.f32.gmra.mxu0 %v3337
    %v3429 = vpop.f32.mrf.mxu0
    %v3430 = vadd.f32 0.0, %v3429
    %3431 = vmatmul.f32.gmra.mxu0 %v3336
    %v3432 = vpop.f32.mrf.mxu0
    %v3433 = vadd.f32 0.0, %v3432
    %3434 = vmatmul.f32.gmra.mxu0 %v3335
    %v3435 = vpop.f32.mrf.mxu0
    %v3436 = vadd.f32 0.0, %v3435
    %3437 = vmatmul.f32.gmra.mxu0 %v3334
    %v3438 = vpop.f32.mrf.mxu0
    %v3439 = vadd.f32 0.0, %v3438
    %3440 = vmatmul.f32.gmra.mxu0 %v3333
    %v3441 = vpop.f32.mrf.mxu0
    %v3442 = vadd.f32 0.0, %v3441
    %3443 = vmatmul.f32.gmra.mxu0 %v3332
    %v3444 = vpop.f32.mrf.mxu0
    %v3445 = vadd.f32 0.0, %v3444
    %3446 = vmatmul.f32.gmra.mxu0 %v3331
    %v3447 = vpop.f32.mrf.mxu0
    %v3448 = vadd.f32 0.0, %v3447
    %3449 = vmatmul.f32.gmra.mxu0 %v3330
    %v3450 = vpop.f32.mrf.mxu0
    %v3451 = vadd.f32 0.0, %v3450
    %3452 = vmatmul.f32.gmra.mxu0 %v3329
    %v3453 = vpop.f32.mrf.mxu0
    %v3454 = vadd.f32 0.0, %v3453
    %3455 = vmatmul.f32.gmra.mxu0 %v3328
    %v3456 = vpop.f32.mrf.mxu0
    %v3457 = vadd.f32 0.0, %v3456
    %3458 = vmatmul.f32.gmra.mxu0 %v3327
    %v3459 = vpop.f32.mrf.mxu0
    %v3460 = vadd.f32 0.0, %v3459
    %3461 = vmatmul.f32.gmra.mxu0 %v3326
    %v3462 = vpop.f32.mrf.mxu0
    %v3463 = vadd.f32 0.0, %v3462
    %3464 = vmatmul.f32.gmra.mxu0 %v3325
    %v3465 = vpop.f32.mrf.mxu0
    %v3466 = vadd.f32 0.0, %v3465
    %3467 = vmatmul.f32.gmra.mxu0 %v3324
    %v3468 = vpop.f32.mrf.mxu0
    %v3469 = vadd.f32 0.0, %v3468
    %3470 = vmatmul.f32.gmra.mxu0 %v3323
    %v3471 = vpop.f32.mrf.mxu0
    %v3472 = vadd.f32 0.0, %v3471
    %3473 = vmatmul.f32.gmra.mxu0 %v3322
    %v3474 = vpop.f32.mrf.mxu0
    %v3475 = vadd.f32 0.0, %v3474
    %3476 = vmatmul.f32.gmra.mxu0 %v3321
    %v3477 = vpop.f32.mrf.mxu0
    %v3478 = vadd.f32 0.0, %v3477
    %3479 = vmatmul.f32.gmra.mxu0 %v3320
    %v3480 = vpop.f32.mrf.mxu0
    %v3481 = vadd.f32 0.0, %v3480
    %3482 = vmatmul.f32.gmra.mxu0 %v3319
    %v3483 = vpop.f32.mrf.mxu0
    %v3484 = vadd.f32 0.0, %v3483
    %3485 = vmatmul.f32.gmra.mxu0 %v3318
    %v3486 = vpop.f32.mrf.mxu0
    %v3487 = vadd.f32 0.0, %v3486
    %3488 = vmatmul.f32.gmra.mxu0 %v3317
    %v3489 = vpop.f32.mrf.mxu0
    %v3490 = vadd.f32 0.0, %v3489
    %3491 = vmatmul.f32.gmra.mxu0 %v3316
    %v3492 = vpop.f32.mrf.mxu0
    %v3493 = vadd.f32 0.0, %v3492
    %3494 = vmatmul.f32.gmra.mxu0 %v3315
    %v3495 = vpop.f32.mrf.mxu0
    %v3496 = vadd.f32 0.0, %v3495
    %3497 = vmatmul.f32.gmra.mxu0 %v3314
    %v3498 = vpop.f32.mrf.mxu0
    %v3499 = vadd.f32 0.0, %v3498
    %3500 = vmatmul.f32.gmra.mxu0 %v3313
    %v3501 = vpop.f32.mrf.mxu0
    %v3502 = vadd.f32 0.0, %v3501
    %3503 = vmatmul.f32.gmra.mxu0 %v3312
    %v3504 = vpop.f32.mrf.mxu0
    %v3505 = vadd.f32 0.0, %v3504
    %3506 = vmatmul.f32.gmra.mxu0 %v3311
    %v3507 = vpop.f32.mrf.mxu0
    %v3508 = vadd.f32 0.0, %v3507
    %3509 = vmatmul.f32.gmra.mxu0 %v3310
    %v3510 = vpop.f32.mrf.mxu0
    %v3511 = vadd.f32 0.0, %v3510
    %3512 = vmatmul.f32.gmra.mxu0 %v3309
    %v3513 = vpop.f32.mrf.mxu0
    %v3514 = vadd.f32 0.0, %v3513
    %3515 = vmatmul.f32.gmra.mxu0 %v3308
    %v3516 = vpop.f32.mrf.mxu0
    %v3517 = vadd.f32 0.0, %v3516
    %3518 = vmatmul.f32.gmra.mxu0 %v3307
    %v3519 = vpop.f32.mrf.mxu0
    %v3520 = vadd.f32 0.0, %v3519
    %3521 = vmatmul.f32.gmra.mxu0 %v3306
    %v3522 = vpop.f32.mrf.mxu0
    %v3523 = vadd.f32 0.0, %v3522
    %3524 = vmatmul.f32.gmra.mxu0 %v3305
    %v3525 = vpop.f32.mrf.mxu0
    %v3526 = vadd.f32 0.0, %v3525
    %3527 = vmatmul.f32.gmra.mxu0 %v3304
    %v3528 = vpop.f32.mrf.mxu0
    %v3529 = vadd.f32 0.0, %v3528
    %3530 = vmatmul.f32.gmra.mxu0 %v3303
    %v3531 = vpop.f32.mrf.mxu0
    %v3532 = vadd.f32 0.0, %v3531
    %3533 = vmatmul.f32.gmra.mxu0 %v3302
    %v3534 = vpop.f32.mrf.mxu0
    %v3535 = vadd.f32 0.0, %v3534
    %3536 = vmatmul.f32.gmra.mxu0 %v3301
    %v3537 = vpop.f32.mrf.mxu0
    %v3538 = vadd.f32 0.0, %v3537
    %3539 = vmatmul.f32.gmra.mxu0 %v3300
    %v3540 = vpop.f32.mrf.mxu0
    %v3541 = vadd.f32 0.0, %v3540
    %3542 = vmatmul.f32.gmra.mxu0 %v3299
    %v3543 = vpop.f32.mrf.mxu0
    %v3544 = vadd.f32 0.0, %v3543
    %3545 = vmatmul.f32.gmra.mxu0 %v3298
    %v3546 = vpop.f32.mrf.mxu0
    %v3547 = vadd.f32 0.0, %v3546
    %3548 = vmatmul.f32.gmra.mxu0 %v3297
    %v3549 = vpop.f32.mrf.mxu0
    %v3550 = vadd.f32 0.0, %v3549
    %3551 = vmatmul.f32.gmra.mxu0 %v3296
    %v3552 = vpop.f32.mrf.mxu0
    %v3553 = vadd.f32 0.0, %v3552
    %3554 = vmatmul.f32.gmra.mxu0 %v3295
    %v3555 = vpop.f32.mrf.mxu0
    %v3556 = vadd.f32 0.0, %v3555
    %3557 = vmatmul.f32.gmra.mxu0 %v3294
    %v3558 = vpop.f32.mrf.mxu0
    %v3559 = vadd.f32 0.0, %v3558
    %3560 = vmatmul.f32.gmra.mxu0 %v3293
    %v3561 = vpop.f32.mrf.mxu0
    %v3562 = vadd.f32 0.0, %v3561
    %3563 = vmatmul.f32.gmra.mxu0 %v3292
    %v3564 = vpop.f32.mrf.mxu0
    %v3565 = vadd.f32 0.0, %v3564
    %3566 = vmatmul.f32.gmra.mxu0 %v3291
    %v3567 = vpop.f32.mrf.mxu0
    %v3568 = vadd.f32 0.0, %v3567
    %3569 = vmatmul.f32.gmra.mxu0 %v3290
    %v3570 = vpop.f32.mrf.mxu0
    %v3571 = vadd.f32 0.0, %v3570
    %3572 = vmatmul.f32.gmra.mxu0 %v3289
    %v3573 = vpop.f32.mrf.mxu0
    %v3574 = vadd.f32 0.0, %v3573
    %3575 = vmatmul.f32.gmra.mxu0 %v3288
    %v3576 = vpop.f32.mrf.mxu0
    %v3577 = vadd.f32 0.0, %v3576
    %3578 = vmatmul.f32.gmra.mxu0 %v3287
    %v3579 = vpop.f32.mrf.mxu0
    %v3580 = vadd.f32 0.0, %v3579
    %3581 = vmatmul.f32.gmra.mxu0 %v3286
    %v3582 = vpop.f32.mrf.mxu0
    %v3583 = vadd.f32 0.0, %v3582
    %3584 = vmatmul.f32.gmra.mxu0 %v3285
    %v3585 = vpop.f32.mrf.mxu0
    %v3586 = vadd.f32 0.0, %v3585
    %3587 = vmatmul.f32.gmra.mxu0 %v3284
    %v3588 = vpop.f32.mrf.mxu0
    %v3589 = vadd.f32 0.0, %v3588
    %3590 = vmatmul.f32.gmra.mxu0 %v3283
    %v3591 = vpop.f32.mrf.mxu0
    %v3592 = vadd.f32 0.0, %v3591
    %3593 = vmatmul.f32.gmra.mxu0 %v3282
    %v3594 = vpop.f32.mrf.mxu0
    %v3595 = vadd.f32 0.0, %v3594
    %3596 = vmatmul.f32.gmra.mxu0 %v3281
    %v3597 = vpop.f32.mrf.mxu0
    %v3598 = vadd.f32 0.0, %v3597
    %3599 = vmatmul.f32.gmra.mxu0 %v3280
    %v3600 = vpop.f32.mrf.mxu0
    %v3601 = vadd.f32 0.0, %v3600
    %3602 = vmatmul.f32.gmra.mxu0 %v3279
    %v3603 = vpop.f32.mrf.mxu0
    %v3604 = vadd.f32 0.0, %v3603
    %3605 = vmatmul.f32.gmra.mxu0 %v3278
    %v3606 = vpop.f32.mrf.mxu0
    %v3607 = vadd.f32 0.0, %v3606
    %3608 = vmatmul.f32.gmra.mxu0 %v3277
    %v3609 = vpop.f32.mrf.mxu0
    %v3610 = vadd.f32 0.0, %v3609
    %3611 = vmatmul.f32.gmra.mxu0 %v3276
    %v3612 = vpop.f32.mrf.mxu0
    %v3613 = vadd.f32 0.0, %v3612
    %3614 = vmatmul.f32.gmra.mxu0 %v3275
    %v3615 = vpop.f32.mrf.mxu0
    %v3616 = vadd.f32 0.0, %v3615
    %3617 = vmatmul.f32.gmra.mxu0 %v3274
    %v3618 = vpop.f32.mrf.mxu0
    %v3619 = vadd.f32 0.0, %v3618
    %3620 = vmatmul.f32.gmra.mxu0 %v3273
    %v3621 = vpop.f32.mrf.mxu0
    %v3622 = vadd.f32 0.0, %v3621
    %3623 = vmatmul.f32.gmra.mxu0 %v3272
    %v3624 = vpop.f32.mrf.mxu0
    %v3625 = vadd.f32 0.0, %v3624
    %3626 = vmatmul.f32.gmra.mxu0 %v3271
    %v3627 = vpop.f32.mrf.mxu0
    %v3628 = vadd.f32 0.0, %v3627
    %3629 = vmatmul.f32.gmra.mxu0 %v3352
    %v3630 = vpop.f32.mrf.mxu0
    %v3631 = vadd.f32 0.0, %v3630
    %3632 = vdwg.mxu0
    %v3633 = vadd.f32 %v3106, %v3388
    %v3634 = vadd.f32 %v3107, %v3391
    %v3635 = vadd.f32 %v3108, %v3394
    %v3636 = vadd.f32 %v3109, %v3397
    %v3637 = vadd.f32 %v3110, %v3400
    %v3638 = vadd.f32 %v3111, %v3403
    %v3639 = vadd.f32 %v3112, %v3406
    %v3640 = vadd.f32 %v3113, %v3409
    %v3641 = vadd.f32 %v3114, %v3412
    %v3642 = vadd.f32 %v3115, %v3415
    %v3643 = vadd.f32 %v3116, %v3418
    %v3644 = vadd.f32 %v3117, %v3421
    %v3645 = vadd.f32 %v3118, %v3424
    %v3646 = vadd.f32 %v3119, %v3427
    %v3647 = vadd.f32 %v3120, %v3430
    %v3648 = vadd.f32 %v3121, %v3433
    %v3649 = vadd.f32 %v3122, %v3436
    %v3650 = vadd.f32 %v3123, %v3439
    %v3651 = vadd.f32 %v3124, %v3442
    %v3652 = vadd.f32 %v3125, %v3445
    %v3653 = vadd.f32 %v3126, %v3448
    %v3654 = vadd.f32 %v3127, %v3451
    %v3655 = vadd.f32 %v3128, %v3454
    %v3656 = vadd.f32 %v3129, %v3457
    %v3657 = vadd.f32 %v3130, %v3460
    %v3658 = vadd.f32 %v3131, %v3463
    %v3659 = vadd.f32 %v3132, %v3466
    %v3660 = vadd.f32 %v3133, %v3469
    %v3661 = vadd.f32 %v3134, %v3472
    %v3662 = vadd.f32 %v3135, %v3475
    %v3663 = vadd.f32 %v3136, %v3478
    %v3664 = vadd.f32 %v3137, %v3481
    %v3665 = vadd.f32 %v3138, %v3484
    %v3666 = vadd.f32 %v3139, %v3487
    %v3667 = vadd.f32 %v3140, %v3490
    %v3668 = vadd.f32 %v3141, %v3493
    %v3669 = vadd.f32 %v3142, %v3496
    %v3670 = vadd.f32 %v3143, %v3499
    %v3671 = vadd.f32 %v3144, %v3502
    %v3672 = vadd.f32 %v3145, %v3505
    %v3673 = vadd.f32 %v3146, %v3508
    %v3674 = vadd.f32 %v3147, %v3511
    %v3675 = vadd.f32 %v3148, %v3514
    %v3676 = vadd.f32 %v3149, %v3517
    %v3677 = vadd.f32 %v3150, %v3520
    %v3678 = vadd.f32 %v3151, %v3523
    %v3679 = vadd.f32 %v3152, %v3526
    %v3680 = vadd.f32 %v3153, %v3529
    %v3681 = vadd.f32 %v3154, %v3532
    %v3682 = vadd.f32 %v3155, %v3535
    %v3683 = vadd.f32 %v3156, %v3538
    %v3684 = vadd.f32 %v3157, %v3541
    %v3685 = vadd.f32 %v3158, %v3544
    %v3686 = vadd.f32 %v3159, %v3547
    %v3687 = vadd.f32 %v3160, %v3550
    %v3688 = vadd.f32 %v3161, %v3553
    %v3689 = vadd.f32 %v3162, %v3556
    %v3690 = vadd.f32 %v3163, %v3559
    %v3691 = vadd.f32 %v3164, %v3562
    %v3692 = vadd.f32 %v3165, %v3565
    %v3693 = vadd.f32 %v3166, %v3568
    %v3694 = vadd.f32 %v3167, %v3571
    %v3695 = vadd.f32 %v3168, %v3574
    %v3696 = vadd.f32 %v3169, %v3577
    %v3697 = vadd.f32 %v3170, %v3580
    %v3698 = vadd.f32 %v3171, %v3583
    %v3699 = vadd.f32 %v3172, %v3586
    %v3700 = vadd.f32 %v3173, %v3589
    %v3701 = vadd.f32 %v3174, %v3592
    %v3702 = vadd.f32 %v3175, %v3595
    %v3703 = vadd.f32 %v3176, %v3598
    %v3704 = vadd.f32 %v3177, %v3601
    %v3705 = vadd.f32 %v3178, %v3604
    %v3706 = vadd.f32 %v3179, %v3607
    %v3707 = vadd.f32 %v3180, %v3610
    %v3708 = vadd.f32 %v3181, %v3613
    %v3709 = vadd.f32 %v3182, %v3616
    %v3710 = vadd.f32 %v3183, %v3619
    %v3711 = vadd.f32 %v3184, %v3622
    %v3712 = vadd.f32 %v3185, %v3625
    %v3713 = vadd.f32 %v3186, %v3628
    %v3714 = vadd.f32 %v3187, %v3631
    %s3715 = scalar_lea.vmem %s4, 768
    %v3716 = vld [vmem:[%s3715] sm:$0xff]
    %v3717 = vld [vmem:[%s3715 + $0x8] sm:$0xff]
    %v3718 = vld [vmem:[%s3715 + $0x10] sm:$0xff]
    %v3719 = vld [vmem:[%s3715 + $0x18] sm:$0xff]
    %v3720 = vld [vmem:[%s3715 + $0x20] sm:$0xff]
    %v3721 = vld [vmem:[%s3715 + $0x28] sm:$0xff]
    %v3722 = vld [vmem:[%s3715 + $0x30] sm:$0xff]
    %v3723 = vld [vmem:[%s3715 + $0x38] sm:$0xff]
    %v3724 = vld [vmem:[%s3715 + $0x40] sm:$0xff]
    %v3725 = vld [vmem:[%s3715 + $0x48] sm:$0xff]
    %v3726 = vld [vmem:[%s3715 + $0x50] sm:$0xff]
    %v3727 = vld [vmem:[%s3715 + $0x58] sm:$0xff]
    %v3728 = vld [vmem:[%s3715 + $0x60] sm:$0xff]
    %v3729 = vld [vmem:[%s3715 + $0x68] sm:$0xff]
    %v3730 = vld [vmem:[%s3715 + $0x70] sm:$0xff]
    %v3731 = vld [vmem:[%s3715 + $0x78] sm:$0xff]
    %3732 = vmatpush.msra.mxu0 %v3731
    %3733 = vmatpush.msra.mxu0 %v3730
    %3734 = vmatpush.msra.mxu0 %v3729
    %3735 = vmatpush.msra.mxu0 %v3728
    %3736 = vmatpush.msra.mxu0 %v3727
    %3737 = vmatpush.msra.mxu0 %v3726
    %3738 = vmatpush.msra.mxu0 %v3725
    %3739 = vmatpush.msra.mxu0 %v3724
    %3740 = vmatpush.msra.mxu0 %v3723
    %3741 = vmatpush.msra.mxu0 %v3722
    %3742 = vmatpush.msra.mxu0 %v3721
    %3743 = vmatpush.msra.mxu0 %v3720
    %3744 = vmatpush.msra.mxu0 %v3719
    %3745 = vmatpush.msra.mxu0 %v3718
    %3746 = vmatpush.msra.mxu0 %v3717
    %3747 = vmatpush.msra.mxu0 %v3716
    %3748 = vmatmul.f32.gmra.mxu0 %v3349
    %v3749 = vpop.f32.mrf.mxu0
    %v3750 = vadd.f32 0.0, %v3749
    %3751 = vmatmul.f32.gmra.mxu0 %v3348
    %v3752 = vpop.f32.mrf.mxu0
    %v3753 = vadd.f32 0.0, %v3752
    %3754 = vmatmul.f32.gmra.mxu0 %v3347
    %v3755 = vpop.f32.mrf.mxu0
    %v3756 = vadd.f32 0.0, %v3755
    %3757 = vmatmul.f32.gmra.mxu0 %v3346
    %v3758 = vpop.f32.mrf.mxu0
    %v3759 = vadd.f32 0.0, %v3758
    %3760 = vmatmul.f32.gmra.mxu0 %v3345
    %v3761 = vpop.f32.mrf.mxu0
    %v3762 = vadd.f32 0.0, %v3761
    %3763 = vmatmul.f32.gmra.mxu0 %v3344
    %v3764 = vpop.f32.mrf.mxu0
    %v3765 = vadd.f32 0.0, %v3764
    %3766 = vmatmul.f32.gmra.mxu0 %v3343
    %v3767 = vpop.f32.mrf.mxu0
    %v3768 = vadd.f32 0.0, %v3767
    %3769 = vmatmul.f32.gmra.mxu0 %v3342
    %v3770 = vpop.f32.mrf.mxu0
    %v3771 = vadd.f32 0.0, %v3770
    %3772 = vmatmul.f32.gmra.mxu0 %v3341
    %v3773 = vpop.f32.mrf.mxu0
    %v3774 = vadd.f32 0.0, %v3773
    %3775 = vmatmul.f32.gmra.mxu0 %v3340
    %v3776 = vpop.f32.mrf.mxu0
    %v3777 = vadd.f32 0.0, %v3776
    %3778 = vmatmul.f32.gmra.mxu0 %v3339
    %v3779 = vpop.f32.mrf.mxu0
    %v3780 = vadd.f32 0.0, %v3779
    %3781 = vmatmul.f32.gmra.mxu0 %v3338
    %v3782 = vpop.f32.mrf.mxu0
    %v3783 = vadd.f32 0.0, %v3782
    %3784 = vmatmul.f32.gmra.mxu0 %v3337
    %v3785 = vpop.f32.mrf.mxu0
    %v3786 = vadd.f32 0.0, %v3785
    %3787 = vmatmul.f32.gmra.mxu0 %v3336
    %v3788 = vpop.f32.mrf.mxu0
    %v3789 = vadd.f32 0.0, %v3788
    %3790 = vmatmul.f32.gmra.mxu0 %v3335
    %v3791 = vpop.f32.mrf.mxu0
    %v3792 = vadd.f32 0.0, %v3791
    %3793 = vmatmul.f32.gmra.mxu0 %v3334
    %v3794 = vpop.f32.mrf.mxu0
    %v3795 = vadd.f32 0.0, %v3794
    %3796 = vmatmul.f32.gmra.mxu0 %v3333
    %v3797 = vpop.f32.mrf.mxu0
    %v3798 = vadd.f32 0.0, %v3797
    %3799 = vmatmul.f32.gmra.mxu0 %v3332
    %v3800 = vpop.f32.mrf.mxu0
    %v3801 = vadd.f32 0.0, %v3800
    %3802 = vmatmul.f32.gmra.mxu0 %v3331
    %v3803 = vpop.f32.mrf.mxu0
    %v3804 = vadd.f32 0.0, %v3803
    %3805 = vmatmul.f32.gmra.mxu0 %v3330
    %v3806 = vpop.f32.mrf.mxu0
    %v3807 = vadd.f32 0.0, %v3806
    %3808 = vmatmul.f32.gmra.mxu0 %v3329
    %v3809 = vpop.f32.mrf.mxu0
    %v3810 = vadd.f32 0.0, %v3809
    %3811 = vmatmul.f32.gmra.mxu0 %v3328
    %v3812 = vpop.f32.mrf.mxu0
    %v3813 = vadd.f32 0.0, %v3812
    %3814 = vmatmul.f32.gmra.mxu0 %v3327
    %v3815 = vpop.f32.mrf.mxu0
    %v3816 = vadd.f32 0.0, %v3815
    %3817 = vmatmul.f32.gmra.mxu0 %v3326
    %v3818 = vpop.f32.mrf.mxu0
    %v3819 = vadd.f32 0.0, %v3818
    %3820 = vmatmul.f32.gmra.mxu0 %v3325
    %v3821 = vpop.f32.mrf.mxu0
    %v3822 = vadd.f32 0.0, %v3821
    %3823 = vmatmul.f32.gmra.mxu0 %v3324
    %v3824 = vpop.f32.mrf.mxu0
    %v3825 = vadd.f32 0.0, %v3824
    %3826 = vmatmul.f32.gmra.mxu0 %v3323
    %v3827 = vpop.f32.mrf.mxu0
    %v3828 = vadd.f32 0.0, %v3827
    %3829 = vmatmul.f32.gmra.mxu0 %v3322
    %v3830 = vpop.f32.mrf.mxu0
    %v3831 = vadd.f32 0.0, %v3830
    %3832 = vmatmul.f32.gmra.mxu0 %v3321
    %v3833 = vpop.f32.mrf.mxu0
    %v3834 = vadd.f32 0.0, %v3833
    %3835 = vmatmul.f32.gmra.mxu0 %v3320
    %v3836 = vpop.f32.mrf.mxu0
    %v3837 = vadd.f32 0.0, %v3836
    %3838 = vmatmul.f32.gmra.mxu0 %v3319
    %v3839 = vpop.f32.mrf.mxu0
    %v3840 = vadd.f32 0.0, %v3839
    %3841 = vmatmul.f32.gmra.mxu0 %v3318
    %v3842 = vpop.f32.mrf.mxu0
    %v3843 = vadd.f32 0.0, %v3842
    %3844 = vmatmul.f32.gmra.mxu0 %v3317
    %v3845 = vpop.f32.mrf.mxu0
    %v3846 = vadd.f32 0.0, %v3845
    %3847 = vmatmul.f32.gmra.mxu0 %v3316
    %v3848 = vpop.f32.mrf.mxu0
    %v3849 = vadd.f32 0.0, %v3848
    %3850 = vmatmul.f32.gmra.mxu0 %v3315
    %v3851 = vpop.f32.mrf.mxu0
    %v3852 = vadd.f32 0.0, %v3851
    %3853 = vmatmul.f32.gmra.mxu0 %v3314
    %v3854 = vpop.f32.mrf.mxu0
    %v3855 = vadd.f32 0.0, %v3854
    %3856 = vmatmul.f32.gmra.mxu0 %v3313
    %v3857 = vpop.f32.mrf.mxu0
    %v3858 = vadd.f32 0.0, %v3857
    %3859 = vmatmul.f32.gmra.mxu0 %v3312
    %v3860 = vpop.f32.mrf.mxu0
    %v3861 = vadd.f32 0.0, %v3860
    %3862 = vmatmul.f32.gmra.mxu0 %v3311
    %v3863 = vpop.f32.mrf.mxu0
    %v3864 = vadd.f32 0.0, %v3863
    %3865 = vmatmul.f32.gmra.mxu0 %v3310
    %v3866 = vpop.f32.mrf.mxu0
    %v3867 = vadd.f32 0.0, %v3866
    %3868 = vmatmul.f32.gmra.mxu0 %v3309
    %v3869 = vpop.f32.mrf.mxu0
    %v3870 = vadd.f32 0.0, %v3869
    %3871 = vmatmul.f32.gmra.mxu0 %v3308
    %v3872 = vpop.f32.mrf.mxu0
    %v3873 = vadd.f32 0.0, %v3872
    %3874 = vmatmul.f32.gmra.mxu0 %v3307
    %v3875 = vpop.f32.mrf.mxu0
    %v3876 = vadd.f32 0.0, %v3875
    %3877 = vmatmul.f32.gmra.mxu0 %v3306
    %v3878 = vpop.f32.mrf.mxu0
    %v3879 = vadd.f32 0.0, %v3878
    %3880 = vmatmul.f32.gmra.mxu0 %v3305
    %v3881 = vpop.f32.mrf.mxu0
    %v3882 = vadd.f32 0.0, %v3881
    %3883 = vmatmul.f32.gmra.mxu0 %v3304
    %v3884 = vpop.f32.mrf.mxu0
    %v3885 = vadd.f32 0.0, %v3884
    %3886 = vmatmul.f32.gmra.mxu0 %v3303
    %v3887 = vpop.f32.mrf.mxu0
    %v3888 = vadd.f32 0.0, %v3887
    %3889 = vmatmul.f32.gmra.mxu0 %v3302
    %v3890 = vpop.f32.mrf.mxu0
    %v3891 = vadd.f32 0.0, %v3890
    %3892 = vmatmul.f32.gmra.mxu0 %v3301
    %v3893 = vpop.f32.mrf.mxu0
    %v3894 = vadd.f32 0.0, %v3893
    %3895 = vmatmul.f32.gmra.mxu0 %v3300
    %v3896 = vpop.f32.mrf.mxu0
    %v3897 = vadd.f32 0.0, %v3896
    %3898 = vmatmul.f32.gmra.mxu0 %v3299
    %v3899 = vpop.f32.mrf.mxu0
    %v3900 = vadd.f32 0.0, %v3899
    %3901 = vmatmul.f32.gmra.mxu0 %v3298
    %v3902 = vpop.f32.mrf.mxu0
    %v3903 = vadd.f32 0.0, %v3902
    %3904 = vmatmul.f32.gmra.mxu0 %v3297
    %v3905 = vpop.f32.mrf.mxu0
    %v3906 = vadd.f32 0.0, %v3905
    %3907 = vmatmul.f32.gmra.mxu0 %v3296
    %v3908 = vpop.f32.mrf.mxu0
    %v3909 = vadd.f32 0.0, %v3908
    %3910 = vmatmul.f32.gmra.mxu0 %v3295
    %v3911 = vpop.f32.mrf.mxu0
    %v3912 = vadd.f32 0.0, %v3911
    %3913 = vmatmul.f32.gmra.mxu0 %v3294
    %v3914 = vpop.f32.mrf.mxu0
    %v3915 = vadd.f32 0.0, %v3914
    %3916 = vmatmul.f32.gmra.mxu0 %v3293
    %v3917 = vpop.f32.mrf.mxu0
    %v3918 = vadd.f32 0.0, %v3917
    %3919 = vmatmul.f32.gmra.mxu0 %v3292
    %v3920 = vpop.f32.mrf.mxu0
    %v3921 = vadd.f32 0.0, %v3920
    %3922 = vmatmul.f32.gmra.mxu0 %v3291
    %v3923 = vpop.f32.mrf.mxu0
    %v3924 = vadd.f32 0.0, %v3923
    %3925 = vmatmul.f32.gmra.mxu0 %v3290
    %v3926 = vpop.f32.mrf.mxu0
    %v3927 = vadd.f32 0.0, %v3926
    %3928 = vmatmul.f32.gmra.mxu0 %v3289
    %v3929 = vpop.f32.mrf.mxu0
    %v3930 = vadd.f32 0.0, %v3929
    %3931 = vmatmul.f32.gmra.mxu0 %v3288
    %v3932 = vpop.f32.mrf.mxu0
    %v3933 = vadd.f32 0.0, %v3932
    %3934 = vmatmul.f32.gmra.mxu0 %v3287
    %v3935 = vpop.f32.mrf.mxu0
    %v3936 = vadd.f32 0.0, %v3935
    %3937 = vmatmul.f32.gmra.mxu0 %v3286
    %v3938 = vpop.f32.mrf.mxu0
    %v3939 = vadd.f32 0.0, %v3938
    %3940 = vmatmul.f32.gmra.mxu0 %v3285
    %v3941 = vpop.f32.mrf.mxu0
    %v3942 = vadd.f32 0.0, %v3941
    %3943 = vmatmul.f32.gmra.mxu0 %v3284
    %v3944 = vpop.f32.mrf.mxu0
    %v3945 = vadd.f32 0.0, %v3944
    %3946 = vmatmul.f32.gmra.mxu0 %v3283
    %v3947 = vpop.f32.mrf.mxu0
    %v3948 = vadd.f32 0.0, %v3947
    %3949 = vmatmul.f32.gmra.mxu0 %v3282
    %v3950 = vpop.f32.mrf.mxu0
    %v3951 = vadd.f32 0.0, %v3950
    %3952 = vmatmul.f32.gmra.mxu0 %v3281
    %v3953 = vpop.f32.mrf.mxu0
    %v3954 = vadd.f32 0.0, %v3953
    %3955 = vmatmul.f32.gmra.mxu0 %v3280
    %v3956 = vpop.f32.mrf.mxu0
    %v3957 = vadd.f32 0.0, %v3956
    %3958 = vmatmul.f32.gmra.mxu0 %v3279
    %v3959 = vpop.f32.mrf.mxu0
    %v3960 = vadd.f32 0.0, %v3959
    %3961 = vmatmul.f32.gmra.mxu0 %v3278
    %v3962 = vpop.f32.mrf.mxu0
    %v3963 = vadd.f32 0.0, %v3962
    %3964 = vmatmul.f32.gmra.mxu0 %v3277
    %v3965 = vpop.f32.mrf.mxu0
    %v3966 = vadd.f32 0.0, %v3965
    %3967 = vmatmul.f32.gmra.mxu0 %v3276
    %v3968 = vpop.f32.mrf.mxu0
    %v3969 = vadd.f32 0.0, %v3968
    %3970 = vmatmul.f32.gmra.mxu0 %v3275
    %v3971 = vpop.f32.mrf.mxu0
    %v3972 = vadd.f32 0.0, %v3971
    %3973 = vmatmul.f32.gmra.mxu0 %v3274
    %v3974 = vpop.f32.mrf.mxu0
    %v3975 = vadd.f32 0.0, %v3974
    %3976 = vmatmul.f32.gmra.mxu0 %v3273
    %v3977 = vpop.f32.mrf.mxu0
    %v3978 = vadd.f32 0.0, %v3977
    %3979 = vmatmul.f32.gmra.mxu0 %v3272
    %v3980 = vpop.f32.mrf.mxu0
    %v3981 = vadd.f32 0.0, %v3980
    %3982 = vmatmul.f32.gmra.mxu0 %v3271
    %v3983 = vpop.f32.mrf.mxu0
    %v3984 = vadd.f32 0.0, %v3983
    %3985 = vmatmul.f32.gmra.mxu0 %v3352
    %v3986 = vpop.f32.mrf.mxu0
    %v3987 = vadd.f32 0.0, %v3986
    %3988 = vmatmul.f32.gmra.mxu0 %v3351
    %v3989 = vpop.f32.mrf.mxu0
    %v3990 = vadd.f32 0.0, %v3989
    %3991 = vmatmul.f32.gmra.mxu0 %v3350
    %v3992 = vpop.f32.mrf.mxu0
    %v3993 = vadd.f32 0.0, %v3992
    %3994 = vdwg.mxu0
    %v3995 = vadd.f32 %v3633, %v3750
    %v3996 = vadd.f32 %v3634, %v3753
    %v3997 = vadd.f32 %v3635, %v3756
    %v3998 = vadd.f32 %v3636, %v3759
    %v3999 = vadd.f32 %v3637, %v3762
    %v4000 = vadd.f32 %v3638, %v3765
    %v4001 = vadd.f32 %v3639, %v3768
    %v4002 = vadd.f32 %v3640, %v3771
    %v4003 = vadd.f32 %v3641, %v3774
    %v4004 = vadd.f32 %v3642, %v3777
    %v4005 = vadd.f32 %v3643, %v3780
    %v4006 = vadd.f32 %v3644, %v3783
    %v4007 = vadd.f32 %v3645, %v3786
    %v4008 = vadd.f32 %v3646, %v3789
    %v4009 = vadd.f32 %v3647, %v3792
    %v4010 = vadd.f32 %v3648, %v3795
    %v4011 = vadd.f32 %v3649, %v3798
    %v4012 = vadd.f32 %v3650, %v3801
    %v4013 = vadd.f32 %v3651, %v3804
    %v4014 = vadd.f32 %v3652, %v3807
    %v4015 = vadd.f32 %v3653, %v3810
    %v4016 = vadd.f32 %v3654, %v3813
    %v4017 = vadd.f32 %v3655, %v3816
    %v4018 = vadd.f32 %v3656, %v3819
    %v4019 = vadd.f32 %v3657, %v3822
    %v4020 = vadd.f32 %v3658, %v3825
    %v4021 = vadd.f32 %v3659, %v3828
    %v4022 = vadd.f32 %v3660, %v3831
    %v4023 = vadd.f32 %v3661, %v3834
    %v4024 = vadd.f32 %v3662, %v3837
    %v4025 = vadd.f32 %v3663, %v3840
    %v4026 = vadd.f32 %v3664, %v3843
    %v4027 = vadd.f32 %v3665, %v3846
    %v4028 = vadd.f32 %v3666, %v3849
    %v4029 = vadd.f32 %v3667, %v3852
    %v4030 = vadd.f32 %v3668, %v3855
    %v4031 = vadd.f32 %v3669, %v3858
    %v4032 = vadd.f32 %v3670, %v3861
    %v4033 = vadd.f32 %v3671, %v3864
    %v4034 = vadd.f32 %v3672, %v3867
    %v4035 = vadd.f32 %v3673, %v3870
    %v4036 = vadd.f32 %v3674, %v3873
    %v4037 = vadd.f32 %v3675, %v3876
    %v4038 = vadd.f32 %v3676, %v3879
    %v4039 = vadd.f32 %v3677, %v3882
    %v4040 = vadd.f32 %v3678, %v3885
    %v4041 = vadd.f32 %v3679, %v3888
    %v4042 = vadd.f32 %v3680, %v3891
    %v4043 = vadd.f32 %v3681, %v3894
    %v4044 = vadd.f32 %v3682, %v3897
    %v4045 = vadd.f32 %v3683, %v3900
    %v4046 = vadd.f32 %v3684, %v3903
    %v4047 = vadd.f32 %v3685, %v3906
    %v4048 = vadd.f32 %v3686, %v3909
    %v4049 = vadd.f32 %v3687, %v3912
    %v4050 = vadd.f32 %v3688, %v3915
    %v4051 = vadd.f32 %v3689, %v3918
    %v4052 = vadd.f32 %v3690, %v3921
    %v4053 = vadd.f32 %v3691, %v3924
    %v4054 = vadd.f32 %v3692, %v3927
    %v4055 = vadd.f32 %v3693, %v3930
    %v4056 = vadd.f32 %v3694, %v3933
    %v4057 = vadd.f32 %v3695, %v3936
    %v4058 = vadd.f32 %v3696, %v3939
    %v4059 = vadd.f32 %v3697, %v3942
    %v4060 = vadd.f32 %v3698, %v3945
    %v4061 = vadd.f32 %v3699, %v3948
    %v4062 = vadd.f32 %v3700, %v3951
    %v4063 = vadd.f32 %v3701, %v3954
    %v4064 = vadd.f32 %v3702, %v3957
    %v4065 = vadd.f32 %v3703, %v3960
    %v4066 = vadd.f32 %v3704, %v3963
    %v4067 = vadd.f32 %v3705, %v3966
    %v4068 = vadd.f32 %v3706, %v3969
    %v4069 = vadd.f32 %v3707, %v3972
    %v4070 = vadd.f32 %v3708, %v3975
    %v4071 = vadd.f32 %v3709, %v3978
    %v4072 = vadd.f32 %v3710, %v3981
    %v4073 = vadd.f32 %v3711, %v3984
    %v4074 = vadd.f32 %v3712, %v3987
    %v4075 = vadd.f32 %v3713, %v3990
    %v4076 = vadd.f32 %v3714, %v3993
    %v4077 = vrot.slane %v964, 2
    %v4078 = vrot.slane %v965, 2
    %v4079 = vrot.slane %v966, 2
    %v4080 = vrot.slane %v967, 2
    %v4081 = vrot.slane %v968, 2
    %v4082 = vrot.slane %v969, 2
    %v4083 = vrot.slane %v970, 2
    %v4084 = vrot.slane %v971, 2
    %v4085 = vrot.slane %v972, 2
    %v4086 = vrot.slane %v973, 2
    %v4087 = vrot.slane %v974, 2
    %v4088 = vrot.slane %v975, 2
    %v4089 = vrot.slane %v976, 2
    %v4090 = vrot.slane %v977, 2
    %v4091 = vrot.slane %v978, 2
    %v4092 = vrot.slane %v979, 2
    %v4093 = vrot.slane %v980, 2
    %v4094 = vrot.slane %v981, 2
    %v4095 = vrot.slane %v982, 2
    %v4096 = vrot.slane %v983, 2
    %v4097 = vrot.slane %v984, 2
    %v4098 = vrot.slane %v985, 2
    %v4099 = vrot.slane %v986, 2
    %v4100 = vrot.slane %v987, 2
    %v4101 = vrot.slane %v988, 2
    %v4102 = vrot.slane %v989, 2
    %v4103 = vrot.slane %v990, 2
    %v4104 = vrot.slane %v991, 2
    %v4105 = vrot.slane %v992, 2
    %v4106 = vrot.slane %v993, 2
    %v4107 = vrot.slane %v994, 2
    %v4108 = vrot.slane %v995, 2
    %v4109 = vrot.slane %v996, 2
    %v4110 = vrot.slane %v997, 2
    %v4111 = vrot.slane %v998, 2
    %v4112 = vrot.slane %v999, 2
    %v4113 = vrot.slane %v1000, 2
    %v4114 = vrot.slane %v1001, 2
    %v4115 = vrot.slane %v1002, 2
    %v4116 = vrot.slane %v1003, 2
    %v4117 = vrot.slane %v1004, 2
    %v4118 = vrot.slane %v1005, 2
    %v4119 = vrot.slane %v1006, 2
    %v4120 = vrot.slane %v1007, 2
    %v4121 = vrot.slane %v1008, 2
    %v4122 = vrot.slane %v1009, 2
    %v4123 = vrot.slane %v1010, 2
    %v4124 = vrot.slane %v1011, 2
    %v4125 = vrot.slane %v1012, 2
    %v4126 = vrot.slane %v1013, 2
    %v4127 = vrot.slane %v1014, 2
    %v4128 = vrot.slane %v1015, 2
    %v4129 = vrot.slane %v1016, 2
    %v4130 = vrot.slane %v1017, 2
    %v4131 = vrot.slane %v1018, 2
    %v4132 = vrot.slane %v1019, 2
    %v4133 = vrot.slane %v1020, 2
    %v4134 = vrot.slane %v1021, 2
    %v4135 = vrot.slane %v1022, 2
    %v4136 = vrot.slane %v1023, 2
    %v4137 = vrot.slane %v1024, 2
    %v4138 = vrot.slane %v1025, 2
    %v4139 = vrot.slane %v1026, 2
    %v4140 = vrot.slane %v1027, 2
    %v4141 = vrot.slane %v1028, 2
    %v4142 = vrot.slane %v1029, 2
    %v4143 = vrot.slane %v1030, 2
    %v4144 = vrot.slane %v1031, 2
    %v4145 = vrot.slane %v1032, 2
    %v4146 = vrot.slane %v1033, 2
    %v4147 = vrot.slane %v1034, 2
    %v4148 = vrot.slane %v1035, 2
    %v4149 = vrot.slane %v1036, 2
    %v4150 = vrot.slane %v1037, 2
    %v4151 = vrot.slane %v1038, 2
    %v4152 = vrot.slane %v1039, 2
    %v4153 = vrot.slane %v1040, 2
    %v4154 = vrot.slane %v1041, 2
    %v4155 = vrot.slane %v1042, 2
    %v4156 = vrot.slane %v1043, 2
    %v4157 = vrot.slane %v1044, 2
    %v4158 = vrot.slane %v1045, 2
    %vm4159 = vcmp.lt.s32.totalorder %v1129, 6
    %v4160 = vsel %vm4159, %v4157, %v4158
    %v4161 = vsel %vm4159, %v4156, %v4157
    %v4162 = vsel %vm4159, %v4155, %v4156
    %v4163 = vsel %vm4159, %v4154, %v4155
    %v4164 = vsel %vm4159, %v4153, %v4154
    %v4165 = vsel %vm4159, %v4152, %v4153
    %v4166 = vsel %vm4159, %v4151, %v4152
    %v4167 = vsel %vm4159, %v4150, %v4151
    %v4168 = vsel %vm4159, %v4149, %v4150
    %v4169 = vsel %vm4159, %v4148, %v4149
    %v4170 = vsel %vm4159, %v4147, %v4148
    %v4171 = vsel %vm4159, %v4146, %v4147
    %v4172 = vsel %vm4159, %v4145, %v4146
    %v4173 = vsel %vm4159, %v4144, %v4145
    %v4174 = vsel %vm4159, %v4143, %v4144
    %v4175 = vsel %vm4159, %v4142, %v4143
    %v4176 = vsel %vm4159, %v4141, %v4142
    %v4177 = vsel %vm4159, %v4140, %v4141
    %v4178 = vsel %vm4159, %v4139, %v4140
    %v4179 = vsel %vm4159, %v4138, %v4139
    %v4180 = vsel %vm4159, %v4137, %v4138
    %v4181 = vsel %vm4159, %v4136, %v4137
    %v4182 = vsel %vm4159, %v4135, %v4136
    %v4183 = vsel %vm4159, %v4134, %v4135
    %v4184 = vsel %vm4159, %v4133, %v4134
    %v4185 = vsel %vm4159, %v4132, %v4133
    %v4186 = vsel %vm4159, %v4131, %v4132
    %v4187 = vsel %vm4159, %v4130, %v4131
    %v4188 = vsel %vm4159, %v4129, %v4130
    %v4189 = vsel %vm4159, %v4128, %v4129
    %v4190 = vsel %vm4159, %v4127, %v4128
    %v4191 = vsel %vm4159, %v4126, %v4127
    %v4192 = vsel %vm4159, %v4125, %v4126
    %v4193 = vsel %vm4159, %v4124, %v4125
    %v4194 = vsel %vm4159, %v4123, %v4124
    %v4195 = vsel %vm4159, %v4122, %v4123
    %v4196 = vsel %vm4159, %v4121, %v4122
    %v4197 = vsel %vm4159, %v4120, %v4121
    %v4198 = vsel %vm4159, %v4119, %v4120
    %v4199 = vsel %vm4159, %v4118, %v4119
    %v4200 = vsel %vm4159, %v4117, %v4118
    %v4201 = vsel %vm4159, %v4116, %v4117
    %v4202 = vsel %vm4159, %v4115, %v4116
    %v4203 = vsel %vm4159, %v4114, %v4115
    %v4204 = vsel %vm4159, %v4113, %v4114
    %v4205 = vsel %vm4159, %v4112, %v4113
    %v4206 = vsel %vm4159, %v4111, %v4112
    %v4207 = vsel %vm4159, %v4110, %v4111
    %v4208 = vsel %vm4159, %v4109, %v4110
    %v4209 = vsel %vm4159, %v4108, %v4109
    %v4210 = vsel %vm4159, %v4107, %v4108
    %v4211 = vsel %vm4159, %v4106, %v4107
    %v4212 = vsel %vm4159, %v4105, %v4106
    %v4213 = vsel %vm4159, %v4104, %v4105
    %v4214 = vsel %vm4159, %v4103, %v4104
    %v4215 = vsel %vm4159, %v4102, %v4103
    %v4216 = vsel %vm4159, %v4101, %v4102
    %v4217 = vsel %vm4159, %v4100, %v4101
    %v4218 = vsel %vm4159, %v4099, %v4100
    %v4219 = vsel %vm4159, %v4098, %v4099
    %v4220 = vsel %vm4159, %v4097, %v4098
    %v4221 = vsel %vm4159, %v4096, %v4097
    %v4222 = vsel %vm4159, %v4095, %v4096
    %v4223 = vsel %vm4159, %v4094, %v4095
    %v4224 = vsel %vm4159, %v4093, %v4094
    %v4225 = vsel %vm4159, %v4092, %v4093
    %v4226 = vsel %vm4159, %v4091, %v4092
    %v4227 = vsel %vm4159, %v4090, %v4091
    %v4228 = vsel %vm4159, %v4089, %v4090
    %v4229 = vsel %vm4159, %v4088, %v4089
    %v4230 = vsel %vm4159, %v4087, %v4088
    %v4231 = vsel %vm4159, %v4086, %v4087
    %v4232 = vsel %vm4159, %v4085, %v4086
    %v4233 = vsel %vm4159, %v4084, %v4085
    %v4234 = vsel %vm4159, %v4083, %v4084
    %v4235 = vsel %vm4159, %v4082, %v4083
    %v4236 = vsel %vm4159, %v4081, %v4082
    %v4237 = vsel %vm4159, %v4080, %v4081
    %v4238 = vsel %vm4159, %v4079, %v4080
    %v4239 = vsel %vm4159, %v4078, %v4079
    %v4240 = vsel %vm4159, %v4077, %v4078
    %v4241 = vsel %vm4159, %v4158, %v4077
    %s4242 = scalar_lea.vmem %s4, 896
    %v4243 = vld [vmem:[%s4242] sm:$0xff]
    %v4244 = vld [vmem:[%s4242 + $0x8] sm:$0xff]
    %v4245 = vld [vmem:[%s4242 + $0x10] sm:$0xff]
    %v4246 = vld [vmem:[%s4242 + $0x18] sm:$0xff]
    %v4247 = vld [vmem:[%s4242 + $0x20] sm:$0xff]
    %v4248 = vld [vmem:[%s4242 + $0x28] sm:$0xff]
    %v4249 = vld [vmem:[%s4242 + $0x30] sm:$0xff]
    %v4250 = vld [vmem:[%s4242 + $0x38] sm:$0xff]
    %v4251 = vld [vmem:[%s4242 + $0x40] sm:$0xff]
    %v4252 = vld [vmem:[%s4242 + $0x48] sm:$0xff]
    %v4253 = vld [vmem:[%s4242 + $0x50] sm:$0xff]
    %v4254 = vld [vmem:[%s4242 + $0x58] sm:$0xff]
    %v4255 = vld [vmem:[%s4242 + $0x60] sm:$0xff]
    %v4256 = vld [vmem:[%s4242 + $0x68] sm:$0xff]
    %v4257 = vld [vmem:[%s4242 + $0x70] sm:$0xff]
    %v4258 = vld [vmem:[%s4242 + $0x78] sm:$0xff]
    %4259 = vmatpush.msra.mxu0 %v4258
    %4260 = vmatpush.msra.mxu0 %v4257
    %4261 = vmatpush.msra.mxu0 %v4256
    %4262 = vmatpush.msra.mxu0 %v4255
    %4263 = vmatpush.msra.mxu0 %v4254
    %4264 = vmatpush.msra.mxu0 %v4253
    %4265 = vmatpush.msra.mxu0 %v4252
    %4266 = vmatpush.msra.mxu0 %v4251
    %4267 = vmatpush.msra.mxu0 %v4250
    %4268 = vmatpush.msra.mxu0 %v4249
    %4269 = vmatpush.msra.mxu0 %v4248
    %4270 = vmatpush.msra.mxu0 %v4247
    %4271 = vmatpush.msra.mxu0 %v4246
    %4272 = vmatpush.msra.mxu0 %v4245
    %4273 = vmatpush.msra.mxu0 %v4244
    %4274 = vmatpush.msra.mxu0 %v4243
    %4275 = vmatmul.f32.gmra.mxu0 %v4238
    %v4276 = vpop.f32.mrf.mxu0
    %v4277 = vadd.f32 0.0, %v4276
    %4278 = vmatmul.f32.gmra.mxu0 %v4237
    %v4279 = vpop.f32.mrf.mxu0
    %v4280 = vadd.f32 0.0, %v4279
    %4281 = vmatmul.f32.gmra.mxu0 %v4236
    %v4282 = vpop.f32.mrf.mxu0
    %v4283 = vadd.f32 0.0, %v4282
    %4284 = vmatmul.f32.gmra.mxu0 %v4235
    %v4285 = vpop.f32.mrf.mxu0
    %v4286 = vadd.f32 0.0, %v4285
    %4287 = vmatmul.f32.gmra.mxu0 %v4234
    %v4288 = vpop.f32.mrf.mxu0
    %v4289 = vadd.f32 0.0, %v4288
    %4290 = vmatmul.f32.gmra.mxu0 %v4233
    %v4291 = vpop.f32.mrf.mxu0
    %v4292 = vadd.f32 0.0, %v4291
    %4293 = vmatmul.f32.gmra.mxu0 %v4232
    %v4294 = vpop.f32.mrf.mxu0
    %v4295 = vadd.f32 0.0, %v4294
    %4296 = vmatmul.f32.gmra.mxu0 %v4231
    %v4297 = vpop.f32.mrf.mxu0
    %v4298 = vadd.f32 0.0, %v4297
    %4299 = vmatmul.f32.gmra.mxu0 %v4230
    %v4300 = vpop.f32.mrf.mxu0
    %v4301 = vadd.f32 0.0, %v4300
    %4302 = vmatmul.f32.gmra.mxu0 %v4229
    %v4303 = vpop.f32.mrf.mxu0
    %v4304 = vadd.f32 0.0, %v4303
    %4305 = vmatmul.f32.gmra.mxu0 %v4228
    %v4306 = vpop.f32.mrf.mxu0
    %v4307 = vadd.f32 0.0, %v4306
    %4308 = vmatmul.f32.gmra.mxu0 %v4227
    %v4309 = vpop.f32.mrf.mxu0
    %v4310 = vadd.f32 0.0, %v4309
    %4311 = vmatmul.f32.gmra.mxu0 %v4226
    %v4312 = vpop.f32.mrf.mxu0
    %v4313 = vadd.f32 0.0, %v4312
    %4314 = vmatmul.f32.gmra.mxu0 %v4225
    %v4315 = vpop.f32.mrf.mxu0
    %v4316 = vadd.f32 0.0, %v4315
    %4317 = vmatmul.f32.gmra.mxu0 %v4224
    %v4318 = vpop.f32.mrf.mxu0
    %v4319 = vadd.f32 0.0, %v4318
    %4320 = vmatmul.f32.gmra.mxu0 %v4223
    %v4321 = vpop.f32.mrf.mxu0
    %v4322 = vadd.f32 0.0, %v4321
    %4323 = vmatmul.f32.gmra.mxu0 %v4222
    %v4324 = vpop.f32.mrf.mxu0
    %v4325 = vadd.f32 0.0, %v4324
    %4326 = vmatmul.f32.gmra.mxu0 %v4221
    %v4327 = vpop.f32.mrf.mxu0
    %v4328 = vadd.f32 0.0, %v4327
    %4329 = vmatmul.f32.gmra.mxu0 %v4220
    %v4330 = vpop.f32.mrf.mxu0
    %v4331 = vadd.f32 0.0, %v4330
    %4332 = vmatmul.f32.gmra.mxu0 %v4219
    %v4333 = vpop.f32.mrf.mxu0
    %v4334 = vadd.f32 0.0, %v4333
    %4335 = vmatmul.f32.gmra.mxu0 %v4218
    %v4336 = vpop.f32.mrf.mxu0
    %v4337 = vadd.f32 0.0, %v4336
    %4338 = vmatmul.f32.gmra.mxu0 %v4217
    %v4339 = vpop.f32.mrf.mxu0
    %v4340 = vadd.f32 0.0, %v4339
    %4341 = vmatmul.f32.gmra.mxu0 %v4216
    %v4342 = vpop.f32.mrf.mxu0
    %v4343 = vadd.f32 0.0, %v4342
    %4344 = vmatmul.f32.gmra.mxu0 %v4215
    %v4345 = vpop.f32.mrf.mxu0
    %v4346 = vadd.f32 0.0, %v4345
    %4347 = vmatmul.f32.gmra.mxu0 %v4214
    %v4348 = vpop.f32.mrf.mxu0
    %v4349 = vadd.f32 0.0, %v4348
    %4350 = vmatmul.f32.gmra.mxu0 %v4213
    %v4351 = vpop.f32.mrf.mxu0
    %v4352 = vadd.f32 0.0, %v4351
    %4353 = vmatmul.f32.gmra.mxu0 %v4212
    %v4354 = vpop.f32.mrf.mxu0
    %v4355 = vadd.f32 0.0, %v4354
    %4356 = vmatmul.f32.gmra.mxu0 %v4211
    %v4357 = vpop.f32.mrf.mxu0
    %v4358 = vadd.f32 0.0, %v4357
    %4359 = vmatmul.f32.gmra.mxu0 %v4210
    %v4360 = vpop.f32.mrf.mxu0
    %v4361 = vadd.f32 0.0, %v4360
    %4362 = vmatmul.f32.gmra.mxu0 %v4209
    %v4363 = vpop.f32.mrf.mxu0
    %v4364 = vadd.f32 0.0, %v4363
    %4365 = vmatmul.f32.gmra.mxu0 %v4208
    %v4366 = vpop.f32.mrf.mxu0
    %v4367 = vadd.f32 0.0, %v4366
    %4368 = vmatmul.f32.gmra.mxu0 %v4207
    %v4369 = vpop.f32.mrf.mxu0
    %v4370 = vadd.f32 0.0, %v4369
    %4371 = vmatmul.f32.gmra.mxu0 %v4206
    %v4372 = vpop.f32.mrf.mxu0
    %v4373 = vadd.f32 0.0, %v4372
    %4374 = vmatmul.f32.gmra.mxu0 %v4205
    %v4375 = vpop.f32.mrf.mxu0
    %v4376 = vadd.f32 0.0, %v4375
    %4377 = vmatmul.f32.gmra.mxu0 %v4204
    %v4378 = vpop.f32.mrf.mxu0
    %v4379 = vadd.f32 0.0, %v4378
    %4380 = vmatmul.f32.gmra.mxu0 %v4203
    %v4381 = vpop.f32.mrf.mxu0
    %v4382 = vadd.f32 0.0, %v4381
    %4383 = vmatmul.f32.gmra.mxu0 %v4202
    %v4384 = vpop.f32.mrf.mxu0
    %v4385 = vadd.f32 0.0, %v4384
    %4386 = vmatmul.f32.gmra.mxu0 %v4201
    %v4387 = vpop.f32.mrf.mxu0
    %v4388 = vadd.f32 0.0, %v4387
    %4389 = vmatmul.f32.gmra.mxu0 %v4200
    %v4390 = vpop.f32.mrf.mxu0
    %v4391 = vadd.f32 0.0, %v4390
    %4392 = vmatmul.f32.gmra.mxu0 %v4199
    %v4393 = vpop.f32.mrf.mxu0
    %v4394 = vadd.f32 0.0, %v4393
    %4395 = vmatmul.f32.gmra.mxu0 %v4198
    %v4396 = vpop.f32.mrf.mxu0
    %v4397 = vadd.f32 0.0, %v4396
    %4398 = vmatmul.f32.gmra.mxu0 %v4197
    %v4399 = vpop.f32.mrf.mxu0
    %v4400 = vadd.f32 0.0, %v4399
    %4401 = vmatmul.f32.gmra.mxu0 %v4196
    %v4402 = vpop.f32.mrf.mxu0
    %v4403 = vadd.f32 0.0, %v4402
    %4404 = vmatmul.f32.gmra.mxu0 %v4195
    %v4405 = vpop.f32.mrf.mxu0
    %v4406 = vadd.f32 0.0, %v4405
    %4407 = vmatmul.f32.gmra.mxu0 %v4194
    %v4408 = vpop.f32.mrf.mxu0
    %v4409 = vadd.f32 0.0, %v4408
    %4410 = vmatmul.f32.gmra.mxu0 %v4193
    %v4411 = vpop.f32.mrf.mxu0
    %v4412 = vadd.f32 0.0, %v4411
    %4413 = vmatmul.f32.gmra.mxu0 %v4192
    %v4414 = vpop.f32.mrf.mxu0
    %v4415 = vadd.f32 0.0, %v4414
    %4416 = vmatmul.f32.gmra.mxu0 %v4191
    %v4417 = vpop.f32.mrf.mxu0
    %v4418 = vadd.f32 0.0, %v4417
    %4419 = vmatmul.f32.gmra.mxu0 %v4190
    %v4420 = vpop.f32.mrf.mxu0
    %v4421 = vadd.f32 0.0, %v4420
    %4422 = vmatmul.f32.gmra.mxu0 %v4189
    %v4423 = vpop.f32.mrf.mxu0
    %v4424 = vadd.f32 0.0, %v4423
    %4425 = vmatmul.f32.gmra.mxu0 %v4188
    %v4426 = vpop.f32.mrf.mxu0
    %v4427 = vadd.f32 0.0, %v4426
    %4428 = vmatmul.f32.gmra.mxu0 %v4187
    %v4429 = vpop.f32.mrf.mxu0
    %v4430 = vadd.f32 0.0, %v4429
    %4431 = vmatmul.f32.gmra.mxu0 %v4186
    %v4432 = vpop.f32.mrf.mxu0
    %v4433 = vadd.f32 0.0, %v4432
    %4434 = vmatmul.f32.gmra.mxu0 %v4185
    %v4435 = vpop.f32.mrf.mxu0
    %v4436 = vadd.f32 0.0, %v4435
    %4437 = vmatmul.f32.gmra.mxu0 %v4184
    %v4438 = vpop.f32.mrf.mxu0
    %v4439 = vadd.f32 0.0, %v4438
    %4440 = vmatmul.f32.gmra.mxu0 %v4183
    %v4441 = vpop.f32.mrf.mxu0
    %v4442 = vadd.f32 0.0, %v4441
    %4443 = vmatmul.f32.gmra.mxu0 %v4182
    %v4444 = vpop.f32.mrf.mxu0
    %v4445 = vadd.f32 0.0, %v4444
    %4446 = vmatmul.f32.gmra.mxu0 %v4181
    %v4447 = vpop.f32.mrf.mxu0
    %v4448 = vadd.f32 0.0, %v4447
    %4449 = vmatmul.f32.gmra.mxu0 %v4180
    %v4450 = vpop.f32.mrf.mxu0
    %v4451 = vadd.f32 0.0, %v4450
    %4452 = vmatmul.f32.gmra.mxu0 %v4179
    %v4453 = vpop.f32.mrf.mxu0
    %v4454 = vadd.f32 0.0, %v4453
    %4455 = vmatmul.f32.gmra.mxu0 %v4178
    %v4456 = vpop.f32.mrf.mxu0
    %v4457 = vadd.f32 0.0, %v4456
    %4458 = vmatmul.f32.gmra.mxu0 %v4177
    %v4459 = vpop.f32.mrf.mxu0
    %v4460 = vadd.f32 0.0, %v4459
    %4461 = vmatmul.f32.gmra.mxu0 %v4176
    %v4462 = vpop.f32.mrf.mxu0
    %v4463 = vadd.f32 0.0, %v4462
    %4464 = vmatmul.f32.gmra.mxu0 %v4175
    %v4465 = vpop.f32.mrf.mxu0
    %v4466 = vadd.f32 0.0, %v4465
    %4467 = vmatmul.f32.gmra.mxu0 %v4174
    %v4468 = vpop.f32.mrf.mxu0
    %v4469 = vadd.f32 0.0, %v4468
    %4470 = vmatmul.f32.gmra.mxu0 %v4173
    %v4471 = vpop.f32.mrf.mxu0
    %v4472 = vadd.f32 0.0, %v4471
    %4473 = vmatmul.f32.gmra.mxu0 %v4172
    %v4474 = vpop.f32.mrf.mxu0
    %v4475 = vadd.f32 0.0, %v4474
    %4476 = vmatmul.f32.gmra.mxu0 %v4171
    %v4477 = vpop.f32.mrf.mxu0
    %v4478 = vadd.f32 0.0, %v4477
    %4479 = vmatmul.f32.gmra.mxu0 %v4170
    %v4480 = vpop.f32.mrf.mxu0
    %v4481 = vadd.f32 0.0, %v4480
    %4482 = vmatmul.f32.gmra.mxu0 %v4169
    %v4483 = vpop.f32.mrf.mxu0
    %v4484 = vadd.f32 0.0, %v4483
    %4485 = vmatmul.f32.gmra.mxu0 %v4168
    %v4486 = vpop.f32.mrf.mxu0
    %v4487 = vadd.f32 0.0, %v4486
    %4488 = vmatmul.f32.gmra.mxu0 %v4167
    %v4489 = vpop.f32.mrf.mxu0
    %v4490 = vadd.f32 0.0, %v4489
    %4491 = vmatmul.f32.gmra.mxu0 %v4166
    %v4492 = vpop.f32.mrf.mxu0
    %v4493 = vadd.f32 0.0, %v4492
    %4494 = vmatmul.f32.gmra.mxu0 %v4165
    %v4495 = vpop.f32.mrf.mxu0
    %v4496 = vadd.f32 0.0, %v4495
    %4497 = vmatmul.f32.gmra.mxu0 %v4164
    %v4498 = vpop.f32.mrf.mxu0
    %v4499 = vadd.f32 0.0, %v4498
    %4500 = vmatmul.f32.gmra.mxu0 %v4163
    %v4501 = vpop.f32.mrf.mxu0
    %v4502 = vadd.f32 0.0, %v4501
    %4503 = vmatmul.f32.gmra.mxu0 %v4162
    %v4504 = vpop.f32.mrf.mxu0
    %v4505 = vadd.f32 0.0, %v4504
    %4506 = vmatmul.f32.gmra.mxu0 %v4161
    %v4507 = vpop.f32.mrf.mxu0
    %v4508 = vadd.f32 0.0, %v4507
    %4509 = vmatmul.f32.gmra.mxu0 %v4160
    %v4510 = vpop.f32.mrf.mxu0
    %v4511 = vadd.f32 0.0, %v4510
    %4512 = vmatmul.f32.gmra.mxu0 %v4241
    %v4513 = vpop.f32.mrf.mxu0
    %v4514 = vadd.f32 0.0, %v4513
    %4515 = vmatmul.f32.gmra.mxu0 %v4240
    %v4516 = vpop.f32.mrf.mxu0
    %v4517 = vadd.f32 0.0, %v4516
    %4518 = vmatmul.f32.gmra.mxu0 %v4239
    %v4519 = vpop.f32.mrf.mxu0
    %v4520 = vadd.f32 0.0, %v4519
    %4521 = vdwg.mxu0
    %v4522 = vadd.f32 %v3995, %v4277
    %v4523 = vadd.f32 %v3996, %v4280
    %v4524 = vadd.f32 %v3997, %v4283
    %v4525 = vadd.f32 %v3998, %v4286
    %v4526 = vadd.f32 %v3999, %v4289
    %v4527 = vadd.f32 %v4000, %v4292
    %v4528 = vadd.f32 %v4001, %v4295
    %v4529 = vadd.f32 %v4002, %v4298
    %v4530 = vadd.f32 %v4003, %v4301
    %v4531 = vadd.f32 %v4004, %v4304
    %v4532 = vadd.f32 %v4005, %v4307
    %v4533 = vadd.f32 %v4006, %v4310
    %v4534 = vadd.f32 %v4007, %v4313
    %v4535 = vadd.f32 %v4008, %v4316
    %v4536 = vadd.f32 %v4009, %v4319
    %v4537 = vadd.f32 %v4010, %v4322
    %v4538 = vadd.f32 %v4011, %v4325
    %v4539 = vadd.f32 %v4012, %v4328
    %v4540 = vadd.f32 %v4013, %v4331
    %v4541 = vadd.f32 %v4014, %v4334
    %v4542 = vadd.f32 %v4015, %v4337
    %v4543 = vadd.f32 %v4016, %v4340
    %v4544 = vadd.f32 %v4017, %v4343
    %v4545 = vadd.f32 %v4018, %v4346
    %v4546 = vadd.f32 %v4019, %v4349
    %v4547 = vadd.f32 %v4020, %v4352
    %v4548 = vadd.f32 %v4021, %v4355
    %v4549 = vadd.f32 %v4022, %v4358
    %v4550 = vadd.f32 %v4023, %v4361
    %v4551 = vadd.f32 %v4024, %v4364
    %v4552 = vadd.f32 %v4025, %v4367
    %v4553 = vadd.f32 %v4026, %v4370
    %v4554 = vadd.f32 %v4027, %v4373
    %v4555 = vadd.f32 %v4028, %v4376
    %v4556 = vadd.f32 %v4029, %v4379
    %v4557 = vadd.f32 %v4030, %v4382
    %v4558 = vadd.f32 %v4031, %v4385
    %v4559 = vadd.f32 %v4032, %v4388
    %v4560 = vadd.f32 %v4033, %v4391
    %v4561 = vadd.f32 %v4034, %v4394
    %v4562 = vadd.f32 %v4035, %v4397
    %v4563 = vadd.f32 %v4036, %v4400
    %v4564 = vadd.f32 %v4037, %v4403
    %v4565 = vadd.f32 %v4038, %v4406
    %v4566 = vadd.f32 %v4039, %v4409
    %v4567 = vadd.f32 %v4040, %v4412
    %v4568 = vadd.f32 %v4041, %v4415
    %v4569 = vadd.f32 %v4042, %v4418
    %v4570 = vadd.f32 %v4043, %v4421
    %v4571 = vadd.f32 %v4044, %v4424
    %v4572 = vadd.f32 %v4045, %v4427
    %v4573 = vadd.f32 %v4046, %v4430
    %v4574 = vadd.f32 %v4047, %v4433
    %v4575 = vadd.f32 %v4048, %v4436
    %v4576 = vadd.f32 %v4049, %v4439
    %v4577 = vadd.f32 %v4050, %v4442
    %v4578 = vadd.f32 %v4051, %v4445
    %v4579 = vadd.f32 %v4052, %v4448
    %v4580 = vadd.f32 %v4053, %v4451
    %v4581 = vadd.f32 %v4054, %v4454
    %v4582 = vadd.f32 %v4055, %v4457
    %v4583 = vadd.f32 %v4056, %v4460
    %v4584 = vadd.f32 %v4057, %v4463
    %v4585 = vadd.f32 %v4058, %v4466
    %v4586 = vadd.f32 %v4059, %v4469
    %v4587 = vadd.f32 %v4060, %v4472
    %v4588 = vadd.f32 %v4061, %v4475
    %v4589 = vadd.f32 %v4062, %v4478
    %v4590 = vadd.f32 %v4063, %v4481
    %v4591 = vadd.f32 %v4064, %v4484
    %v4592 = vadd.f32 %v4065, %v4487
    %v4593 = vadd.f32 %v4066, %v4490
    %v4594 = vadd.f32 %v4067, %v4493
    %v4595 = vadd.f32 %v4068, %v4496
    %v4596 = vadd.f32 %v4069, %v4499
    %v4597 = vadd.f32 %v4070, %v4502
    %v4598 = vadd.f32 %v4071, %v4505
    %v4599 = vadd.f32 %v4072, %v4508
    %v4600 = vadd.f32 %v4073, %v4511
    %v4601 = vadd.f32 %v4074, %v4514
    %v4602 = vadd.f32 %v4075, %v4517
    %v4603 = vadd.f32 %v4076, %v4520
    %v4604 = vrot.slane %v964, 3
    %v4605 = vrot.slane %v965, 3
    %v4606 = vrot.slane %v966, 3
    %v4607 = vrot.slane %v967, 3
    %v4608 = vrot.slane %v968, 3
    %v4609 = vrot.slane %v969, 3
    %v4610 = vrot.slane %v970, 3
    %v4611 = vrot.slane %v971, 3
    %v4612 = vrot.slane %v972, 3
    %v4613 = vrot.slane %v973, 3
    %v4614 = vrot.slane %v974, 3
    %v4615 = vrot.slane %v975, 3
    %v4616 = vrot.slane %v976, 3
    %v4617 = vrot.slane %v977, 3
    %v4618 = vrot.slane %v978, 3
    %v4619 = vrot.slane %v979, 3
    %v4620 = vrot.slane %v980, 3
    %v4621 = vrot.slane %v981, 3
    %v4622 = vrot.slane %v982, 3
    %v4623 = vrot.slane %v983, 3
    %v4624 = vrot.slane %v984, 3
    %v4625 = vrot.slane %v985, 3
    %v4626 = vrot.slane %v986, 3
    %v4627 = vrot.slane %v987, 3
    %v4628 = vrot.slane %v988, 3
    %v4629 = vrot.slane %v989, 3
    %v4630 = vrot.slane %v990, 3
    %v4631 = vrot.slane %v991, 3
    %v4632 = vrot.slane %v992, 3
    %v4633 = vrot.slane %v993, 3
    %v4634 = vrot.slane %v994, 3
    %v4635 = vrot.slane %v995, 3
    %v4636 = vrot.slane %v996, 3
    %v4637 = vrot.slane %v997, 3
    %v4638 = vrot.slane %v998, 3
    %v4639 = vrot.slane %v999, 3
    %v4640 = vrot.slane %v1000, 3
    %v4641 = vrot.slane %v1001, 3
    %v4642 = vrot.slane %v1002, 3
    %v4643 = vrot.slane %v1003, 3
    %v4644 = vrot.slane %v1004, 3
    %v4645 = vrot.slane %v1005, 3
    %v4646 = vrot.slane %v1006, 3
    %v4647 = vrot.slane %v1007, 3
    %v4648 = vrot.slane %v1008, 3
    %v4649 = vrot.slane %v1009, 3
    %v4650 = vrot.slane %v1010, 3
    %v4651 = vrot.slane %v1011, 3
    %v4652 = vrot.slane %v1012, 3
    %v4653 = vrot.slane %v1013, 3
    %v4654 = vrot.slane %v1014, 3
    %v4655 = vrot.slane %v1015, 3
    %v4656 = vrot.slane %v1016, 3
    %v4657 = vrot.slane %v1017, 3
    %v4658 = vrot.slane %v1018, 3
    %v4659 = vrot.slane %v1019, 3
    %v4660 = vrot.slane %v1020, 3
    %v4661 = vrot.slane %v1021, 3
    %v4662 = vrot.slane %v1022, 3
    %v4663 = vrot.slane %v1023, 3
    %v4664 = vrot.slane %v1024, 3
    %v4665 = vrot.slane %v1025, 3
    %v4666 = vrot.slane %v1026, 3
    %v4667 = vrot.slane %v1027, 3
    %v4668 = vrot.slane %v1028, 3
    %v4669 = vrot.slane %v1029, 3
    %v4670 = vrot.slane %v1030, 3
    %v4671 = vrot.slane %v1031, 3
    %v4672 = vrot.slane %v1032, 3
    %v4673 = vrot.slane %v1033, 3
    %v4674 = vrot.slane %v1034, 3
    %v4675 = vrot.slane %v1035, 3
    %v4676 = vrot.slane %v1036, 3
    %v4677 = vrot.slane %v1037, 3
    %v4678 = vrot.slane %v1038, 3
    %v4679 = vrot.slane %v1039, 3
    %v4680 = vrot.slane %v1040, 3
    %v4681 = vrot.slane %v1041, 3
    %v4682 = vrot.slane %v1042, 3
    %v4683 = vrot.slane %v1043, 3
    %v4684 = vrot.slane %v1044, 3
    %v4685 = vrot.slane %v1045, 3
    %vm4686 = vcmp.lt.s32.totalorder %v1129, 5
    %v4687 = vsel %vm4686, %v4684, %v4685
    %v4688 = vsel %vm4686, %v4683, %v4684
    %v4689 = vsel %vm4686, %v4682, %v4683
    %v4690 = vsel %vm4686, %v4681, %v4682
    %v4691 = vsel %vm4686, %v4680, %v4681
    %v4692 = vsel %vm4686, %v4679, %v4680
    %v4693 = vsel %vm4686, %v4678, %v4679
    %v4694 = vsel %vm4686, %v4677, %v4678
    %v4695 = vsel %vm4686, %v4676, %v4677
    %v4696 = vsel %vm4686, %v4675, %v4676
    %v4697 = vsel %vm4686, %v4674, %v4675
    %v4698 = vsel %vm4686, %v4673, %v4674
    %v4699 = vsel %vm4686, %v4672, %v4673
    %v4700 = vsel %vm4686, %v4671, %v4672
    %v4701 = vsel %vm4686, %v4670, %v4671
    %v4702 = vsel %vm4686, %v4669, %v4670
    %v4703 = vsel %vm4686, %v4668, %v4669
    %v4704 = vsel %vm4686, %v4667, %v4668
    %v4705 = vsel %vm4686, %v4666, %v4667
    %v4706 = vsel %vm4686, %v4665, %v4666
    %v4707 = vsel %vm4686, %v4664, %v4665
    %v4708 = vsel %vm4686, %v4663, %v4664
    %v4709 = vsel %vm4686, %v4662, %v4663
    %v4710 = vsel %vm4686, %v4661, %v4662
    %v4711 = vsel %vm4686, %v4660, %v4661
    %v4712 = vsel %vm4686, %v4659, %v4660
    %v4713 = vsel %vm4686, %v4658, %v4659
    %v4714 = vsel %vm4686, %v4657, %v4658
    %v4715 = vsel %vm4686, %v4656, %v4657
    %v4716 = vsel %vm4686, %v4655, %v4656
    %v4717 = vsel %vm4686, %v4654, %v4655
    %v4718 = vsel %vm4686, %v4653, %v4654
    %v4719 = vsel %vm4686, %v4652, %v4653
    %v4720 = vsel %vm4686, %v4651, %v4652
    %v4721 = vsel %vm4686, %v4650, %v4651
    %v4722 = vsel %vm4686, %v4649, %v4650
    %v4723 = vsel %vm4686, %v4648, %v4649
    %v4724 = vsel %vm4686, %v4647, %v4648
    %v4725 = vsel %vm4686, %v4646, %v4647
    %v4726 = vsel %vm4686, %v4645, %v4646
    %v4727 = vsel %vm4686, %v4644, %v4645
    %v4728 = vsel %vm4686, %v4643, %v4644
    %v4729 = vsel %vm4686, %v4642, %v4643
    %v4730 = vsel %vm4686, %v4641, %v4642
    %v4731 = vsel %vm4686, %v4640, %v4641
    %v4732 = vsel %vm4686, %v4639, %v4640
    %v4733 = vsel %vm4686, %v4638, %v4639
    %v4734 = vsel %vm4686, %v4637, %v4638
    %v4735 = vsel %vm4686, %v4636, %v4637
    %v4736 = vsel %vm4686, %v4635, %v4636
    %v4737 = vsel %vm4686, %v4634, %v4635
    %v4738 = vsel %vm4686, %v4633, %v4634
    %v4739 = vsel %vm4686, %v4632, %v4633
    %v4740 = vsel %vm4686, %v4631, %v4632
    %v4741 = vsel %vm4686, %v4630, %v4631
    %v4742 = vsel %vm4686, %v4629, %v4630
    %v4743 = vsel %vm4686, %v4628, %v4629
    %v4744 = vsel %vm4686, %v4627, %v4628
    %v4745 = vsel %vm4686, %v4626, %v4627
    %v4746 = vsel %vm4686, %v4625, %v4626
    %v4747 = vsel %vm4686, %v4624, %v4625
    %v4748 = vsel %vm4686, %v4623, %v4624
    %v4749 = vsel %vm4686, %v4622, %v4623
    %v4750 = vsel %vm4686, %v4621, %v4622
    %v4751 = vsel %vm4686, %v4620, %v4621
    %v4752 = vsel %vm4686, %v4619, %v4620
    %v4753 = vsel %vm4686, %v4618, %v4619
    %v4754 = vsel %vm4686, %v4617, %v4618
    %v4755 = vsel %vm4686, %v4616, %v4617
    %v4756 = vsel %vm4686, %v4615, %v4616
    %v4757 = vsel %vm4686, %v4614, %v4615
    %v4758 = vsel %vm4686, %v4613, %v4614
    %v4759 = vsel %vm4686, %v4612, %v4613
    %v4760 = vsel %vm4686, %v4611, %v4612
    %v4761 = vsel %vm4686, %v4610, %v4611
    %v4762 = vsel %vm4686, %v4609, %v4610
    %v4763 = vsel %vm4686, %v4608, %v4609
    %v4764 = vsel %vm4686, %v4607, %v4608
    %v4765 = vsel %vm4686, %v4606, %v4607
    %v4766 = vsel %vm4686, %v4605, %v4606
    %v4767 = vsel %vm4686, %v4604, %v4605
    %v4768 = vsel %vm4686, %v4685, %v4604
    %s4769 = scalar_lea.vmem %s4, 1024
    %v4770 = vld [vmem:[%s4769] sm:$0xff]
    %v4771 = vld [vmem:[%s4769 + $0x8] sm:$0xff]
    %v4772 = vld [vmem:[%s4769 + $0x10] sm:$0xff]
    %v4773 = vld [vmem:[%s4769 + $0x18] sm:$0xff]
    %v4774 = vld [vmem:[%s4769 + $0x20] sm:$0xff]
    %v4775 = vld [vmem:[%s4769 + $0x28] sm:$0xff]
    %v4776 = vld [vmem:[%s4769 + $0x30] sm:$0xff]
    %v4777 = vld [vmem:[%s4769 + $0x38] sm:$0xff]
    %v4778 = vld [vmem:[%s4769 + $0x40] sm:$0xff]
    %v4779 = vld [vmem:[%s4769 + $0x48] sm:$0xff]
    %v4780 = vld [vmem:[%s4769 + $0x50] sm:$0xff]
    %v4781 = vld [vmem:[%s4769 + $0x58] sm:$0xff]
    %v4782 = vld [vmem:[%s4769 + $0x60] sm:$0xff]
    %v4783 = vld [vmem:[%s4769 + $0x68] sm:$0xff]
    %v4784 = vld [vmem:[%s4769 + $0x70] sm:$0xff]
    %v4785 = vld [vmem:[%s4769 + $0x78] sm:$0xff]
    %4786 = vmatpush.msra.mxu0 %v4785
    %4787 = vmatpush.msra.mxu0 %v4784
    %4788 = vmatpush.msra.mxu0 %v4783
    %4789 = vmatpush.msra.mxu0 %v4782
    %4790 = vmatpush.msra.mxu0 %v4781
    %4791 = vmatpush.msra.mxu0 %v4780
    %4792 = vmatpush.msra.mxu0 %v4779
    %4793 = vmatpush.msra.mxu0 %v4778
    %4794 = vmatpush.msra.mxu0 %v4777
    %4795 = vmatpush.msra.mxu0 %v4776
    %4796 = vmatpush.msra.mxu0 %v4775
    %4797 = vmatpush.msra.mxu0 %v4774
    %4798 = vmatpush.msra.mxu0 %v4773
    %4799 = vmatpush.msra.mxu0 %v4772
    %4800 = vmatpush.msra.mxu0 %v4771
    %4801 = vmatpush.msra.mxu0 %v4770
    %4802 = vmatmul.f32.gmra.mxu0 %v4765
    %v4803 = vpop.f32.mrf.mxu0
    %v4804 = vadd.f32 0.0, %v4803
    %4805 = vmatmul.f32.gmra.mxu0 %v4764
    %v4806 = vpop.f32.mrf.mxu0
    %v4807 = vadd.f32 0.0, %v4806
    %4808 = vmatmul.f32.gmra.mxu0 %v4763
    %v4809 = vpop.f32.mrf.mxu0
    %v4810 = vadd.f32 0.0, %v4809
    %4811 = vmatmul.f32.gmra.mxu0 %v4762
    %v4812 = vpop.f32.mrf.mxu0
    %v4813 = vadd.f32 0.0, %v4812
    %4814 = vmatmul.f32.gmra.mxu0 %v4761
    %v4815 = vpop.f32.mrf.mxu0
    %v4816 = vadd.f32 0.0, %v4815
    %4817 = vmatmul.f32.gmra.mxu0 %v4760
    %v4818 = vpop.f32.mrf.mxu0
    %v4819 = vadd.f32 0.0, %v4818
    %4820 = vmatmul.f32.gmra.mxu0 %v4759
    %v4821 = vpop.f32.mrf.mxu0
    %v4822 = vadd.f32 0.0, %v4821
    %4823 = vmatmul.f32.gmra.mxu0 %v4758
    %v4824 = vpop.f32.mrf.mxu0
    %v4825 = vadd.f32 0.0, %v4824
    %4826 = vmatmul.f32.gmra.mxu0 %v4757
    %v4827 = vpop.f32.mrf.mxu0
    %v4828 = vadd.f32 0.0, %v4827
    %4829 = vmatmul.f32.gmra.mxu0 %v4756
    %v4830 = vpop.f32.mrf.mxu0
    %v4831 = vadd.f32 0.0, %v4830
    %4832 = vmatmul.f32.gmra.mxu0 %v4755
    %v4833 = vpop.f32.mrf.mxu0
    %v4834 = vadd.f32 0.0, %v4833
    %4835 = vmatmul.f32.gmra.mxu0 %v4754
    %v4836 = vpop.f32.mrf.mxu0
    %v4837 = vadd.f32 0.0, %v4836
    %4838 = vmatmul.f32.gmra.mxu0 %v4753
    %v4839 = vpop.f32.mrf.mxu0
    %v4840 = vadd.f32 0.0, %v4839
    %4841 = vmatmul.f32.gmra.mxu0 %v4752
    %v4842 = vpop.f32.mrf.mxu0
    %v4843 = vadd.f32 0.0, %v4842
    %4844 = vmatmul.f32.gmra.mxu0 %v4751
    %v4845 = vpop.f32.mrf.mxu0
    %v4846 = vadd.f32 0.0, %v4845
    %4847 = vmatmul.f32.gmra.mxu0 %v4750
    %v4848 = vpop.f32.mrf.mxu0
    %v4849 = vadd.f32 0.0, %v4848
    %4850 = vmatmul.f32.gmra.mxu0 %v4749
    %v4851 = vpop.f32.mrf.mxu0
    %v4852 = vadd.f32 0.0, %v4851
    %4853 = vmatmul.f32.gmra.mxu0 %v4748
    %v4854 = vpop.f32.mrf.mxu0
    %v4855 = vadd.f32 0.0, %v4854
    %4856 = vmatmul.f32.gmra.mxu0 %v4747
    %v4857 = vpop.f32.mrf.mxu0
    %v4858 = vadd.f32 0.0, %v4857
    %4859 = vmatmul.f32.gmra.mxu0 %v4746
    %v4860 = vpop.f32.mrf.mxu0
    %v4861 = vadd.f32 0.0, %v4860
    %4862 = vmatmul.f32.gmra.mxu0 %v4745
    %v4863 = vpop.f32.mrf.mxu0
    %v4864 = vadd.f32 0.0, %v4863
    %4865 = vmatmul.f32.gmra.mxu0 %v4744
    %v4866 = vpop.f32.mrf.mxu0
    %v4867 = vadd.f32 0.0, %v4866
    %4868 = vmatmul.f32.gmra.mxu0 %v4743
    %v4869 = vpop.f32.mrf.mxu0
    %v4870 = vadd.f32 0.0, %v4869
    %4871 = vmatmul.f32.gmra.mxu0 %v4742
    %v4872 = vpop.f32.mrf.mxu0
    %v4873 = vadd.f32 0.0, %v4872
    %4874 = vmatmul.f32.gmra.mxu0 %v4741
    %v4875 = vpop.f32.mrf.mxu0
    %v4876 = vadd.f32 0.0, %v4875
    %4877 = vmatmul.f32.gmra.mxu0 %v4740
    %v4878 = vpop.f32.mrf.mxu0
    %v4879 = vadd.f32 0.0, %v4878
    %4880 = vmatmul.f32.gmra.mxu0 %v4739
    %v4881 = vpop.f32.mrf.mxu0
    %v4882 = vadd.f32 0.0, %v4881
    %4883 = vmatmul.f32.gmra.mxu0 %v4738
    %v4884 = vpop.f32.mrf.mxu0
    %v4885 = vadd.f32 0.0, %v4884
    %4886 = vmatmul.f32.gmra.mxu0 %v4737
    %v4887 = vpop.f32.mrf.mxu0
    %v4888 = vadd.f32 0.0, %v4887
    %4889 = vmatmul.f32.gmra.mxu0 %v4736
    %v4890 = vpop.f32.mrf.mxu0
    %v4891 = vadd.f32 0.0, %v4890
    %4892 = vmatmul.f32.gmra.mxu0 %v4735
    %v4893 = vpop.f32.mrf.mxu0
    %v4894 = vadd.f32 0.0, %v4893
    %4895 = vmatmul.f32.gmra.mxu0 %v4734
    %v4896 = vpop.f32.mrf.mxu0
    %v4897 = vadd.f32 0.0, %v4896
    %4898 = vmatmul.f32.gmra.mxu0 %v4733
    %v4899 = vpop.f32.mrf.mxu0
    %v4900 = vadd.f32 0.0, %v4899
    %4901 = vmatmul.f32.gmra.mxu0 %v4732
    %v4902 = vpop.f32.mrf.mxu0
    %v4903 = vadd.f32 0.0, %v4902
    %4904 = vmatmul.f32.gmra.mxu0 %v4731
    %v4905 = vpop.f32.mrf.mxu0
    %v4906 = vadd.f32 0.0, %v4905
    %4907 = vmatmul.f32.gmra.mxu0 %v4730
    %v4908 = vpop.f32.mrf.mxu0
    %v4909 = vadd.f32 0.0, %v4908
    %4910 = vmatmul.f32.gmra.mxu0 %v4729
    %v4911 = vpop.f32.mrf.mxu0
    %v4912 = vadd.f32 0.0, %v4911
    %4913 = vmatmul.f32.gmra.mxu0 %v4728
    %v4914 = vpop.f32.mrf.mxu0
    %v4915 = vadd.f32 0.0, %v4914
    %4916 = vmatmul.f32.gmra.mxu0 %v4727
    %v4917 = vpop.f32.mrf.mxu0
    %v4918 = vadd.f32 0.0, %v4917
    %4919 = vmatmul.f32.gmra.mxu0 %v4726
    %v4920 = vpop.f32.mrf.mxu0
    %v4921 = vadd.f32 0.0, %v4920
    %4922 = vmatmul.f32.gmra.mxu0 %v4725
    %v4923 = vpop.f32.mrf.mxu0
    %v4924 = vadd.f32 0.0, %v4923
    %4925 = vmatmul.f32.gmra.mxu0 %v4724
    %v4926 = vpop.f32.mrf.mxu0
    %v4927 = vadd.f32 0.0, %v4926
    %4928 = vmatmul.f32.gmra.mxu0 %v4723
    %v4929 = vpop.f32.mrf.mxu0
    %v4930 = vadd.f32 0.0, %v4929
    %4931 = vmatmul.f32.gmra.mxu0 %v4722
    %v4932 = vpop.f32.mrf.mxu0
    %v4933 = vadd.f32 0.0, %v4932
    %4934 = vmatmul.f32.gmra.mxu0 %v4721
    %v4935 = vpop.f32.mrf.mxu0
    %v4936 = vadd.f32 0.0, %v4935
    %4937 = vmatmul.f32.gmra.mxu0 %v4720
    %v4938 = vpop.f32.mrf.mxu0
    %v4939 = vadd.f32 0.0, %v4938
    %4940 = vmatmul.f32.gmra.mxu0 %v4719
    %v4941 = vpop.f32.mrf.mxu0
    %v4942 = vadd.f32 0.0, %v4941
    %4943 = vmatmul.f32.gmra.mxu0 %v4718
    %v4944 = vpop.f32.mrf.mxu0
    %v4945 = vadd.f32 0.0, %v4944
    %4946 = vmatmul.f32.gmra.mxu0 %v4717
    %v4947 = vpop.f32.mrf.mxu0
    %v4948 = vadd.f32 0.0, %v4947
    %4949 = vmatmul.f32.gmra.mxu0 %v4716
    %v4950 = vpop.f32.mrf.mxu0
    %v4951 = vadd.f32 0.0, %v4950
    %4952 = vmatmul.f32.gmra.mxu0 %v4715
    %v4953 = vpop.f32.mrf.mxu0
    %v4954 = vadd.f32 0.0, %v4953
    %4955 = vmatmul.f32.gmra.mxu0 %v4714
    %v4956 = vpop.f32.mrf.mxu0
    %v4957 = vadd.f32 0.0, %v4956
    %4958 = vmatmul.f32.gmra.mxu0 %v4713
    %v4959 = vpop.f32.mrf.mxu0
    %v4960 = vadd.f32 0.0, %v4959
    %4961 = vmatmul.f32.gmra.mxu0 %v4712
    %v4962 = vpop.f32.mrf.mxu0
    %v4963 = vadd.f32 0.0, %v4962
    %4964 = vmatmul.f32.gmra.mxu0 %v4711
    %v4965 = vpop.f32.mrf.mxu0
    %v4966 = vadd.f32 0.0, %v4965
    %4967 = vmatmul.f32.gmra.mxu0 %v4710
    %v4968 = vpop.f32.mrf.mxu0
    %v4969 = vadd.f32 0.0, %v4968
    %4970 = vmatmul.f32.gmra.mxu0 %v4709
    %v4971 = vpop.f32.mrf.mxu0
    %v4972 = vadd.f32 0.0, %v4971
    %4973 = vmatmul.f32.gmra.mxu0 %v4708
    %v4974 = vpop.f32.mrf.mxu0
    %v4975 = vadd.f32 0.0, %v4974
    %4976 = vmatmul.f32.gmra.mxu0 %v4707
    %v4977 = vpop.f32.mrf.mxu0
    %v4978 = vadd.f32 0.0, %v4977
    %4979 = vmatmul.f32.gmra.mxu0 %v4706
    %v4980 = vpop.f32.mrf.mxu0
    %v4981 = vadd.f32 0.0, %v4980
    %4982 = vmatmul.f32.gmra.mxu0 %v4705
    %v4983 = vpop.f32.mrf.mxu0
    %v4984 = vadd.f32 0.0, %v4983
    %4985 = vmatmul.f32.gmra.mxu0 %v4704
    %v4986 = vpop.f32.mrf.mxu0
    %v4987 = vadd.f32 0.0, %v4986
    %4988 = vmatmul.f32.gmra.mxu0 %v4703
    %v4989 = vpop.f32.mrf.mxu0
    %v4990 = vadd.f32 0.0, %v4989
    %4991 = vmatmul.f32.gmra.mxu0 %v4702
    %v4992 = vpop.f32.mrf.mxu0
    %v4993 = vadd.f32 0.0, %v4992
    %4994 = vmatmul.f32.gmra.mxu0 %v4701
    %v4995 = vpop.f32.mrf.mxu0
    %v4996 = vadd.f32 0.0, %v4995
    %4997 = vmatmul.f32.gmra.mxu0 %v4700
    %v4998 = vpop.f32.mrf.mxu0
    %v4999 = vadd.f32 0.0, %v4998
    %5000 = vmatmul.f32.gmra.mxu0 %v4699
    %v5001 = vpop.f32.mrf.mxu0
    %v5002 = vadd.f32 0.0, %v5001
    %5003 = vmatmul.f32.gmra.mxu0 %v4698
    %v5004 = vpop.f32.mrf.mxu0
    %v5005 = vadd.f32 0.0, %v5004
    %5006 = vmatmul.f32.gmra.mxu0 %v4697
    %v5007 = vpop.f32.mrf.mxu0
    %v5008 = vadd.f32 0.0, %v5007
    %5009 = vmatmul.f32.gmra.mxu0 %v4696
    %v5010 = vpop.f32.mrf.mxu0
    %v5011 = vadd.f32 0.0, %v5010
    %5012 = vmatmul.f32.gmra.mxu0 %v4695
    %v5013 = vpop.f32.mrf.mxu0
    %v5014 = vadd.f32 0.0, %v5013
    %5015 = vmatmul.f32.gmra.mxu0 %v4694
    %v5016 = vpop.f32.mrf.mxu0
    %v5017 = vadd.f32 0.0, %v5016
    %5018 = vmatmul.f32.gmra.mxu0 %v4693
    %v5019 = vpop.f32.mrf.mxu0
    %v5020 = vadd.f32 0.0, %v5019
    %5021 = vmatmul.f32.gmra.mxu0 %v4692
    %v5022 = vpop.f32.mrf.mxu0
    %v5023 = vadd.f32 0.0, %v5022
    %5024 = vmatmul.f32.gmra.mxu0 %v4691
    %v5025 = vpop.f32.mrf.mxu0
    %v5026 = vadd.f32 0.0, %v5025
    %5027 = vmatmul.f32.gmra.mxu0 %v4690
    %v5028 = vpop.f32.mrf.mxu0
    %v5029 = vadd.f32 0.0, %v5028
    %5030 = vmatmul.f32.gmra.mxu0 %v4689
    %v5031 = vpop.f32.mrf.mxu0
    %v5032 = vadd.f32 0.0, %v5031
    %5033 = vmatmul.f32.gmra.mxu0 %v4688
    %v5034 = vpop.f32.mrf.mxu0
    %v5035 = vadd.f32 0.0, %v5034
    %5036 = vmatmul.f32.gmra.mxu0 %v4687
    %v5037 = vpop.f32.mrf.mxu0
    %v5038 = vadd.f32 0.0, %v5037
    %5039 = vmatmul.f32.gmra.mxu0 %v4768
    %v5040 = vpop.f32.mrf.mxu0
    %v5041 = vadd.f32 0.0, %v5040
    %5042 = vmatmul.f32.gmra.mxu0 %v4767
    %v5043 = vpop.f32.mrf.mxu0
    %v5044 = vadd.f32 0.0, %v5043
    %5045 = vmatmul.f32.gmra.mxu0 %v4766
    %v5046 = vpop.f32.mrf.mxu0
    %v5047 = vadd.f32 0.0, %v5046
    %5048 = vdwg.mxu0
    %v5049 = vadd.f32 %v4522, %v4804
    %v5050 = vadd.f32 %v4523, %v4807
    %v5051 = vadd.f32 %v4524, %v4810
    %v5052 = vadd.f32 %v4525, %v4813
    %v5053 = vadd.f32 %v4526, %v4816
    %v5054 = vadd.f32 %v4527, %v4819
    %v5055 = vadd.f32 %v4528, %v4822
    %v5056 = vadd.f32 %v4529, %v4825
    %v5057 = vadd.f32 %v4530, %v4828
    %v5058 = vadd.f32 %v4531, %v4831
    %v5059 = vadd.f32 %v4532, %v4834
    %v5060 = vadd.f32 %v4533, %v4837
    %v5061 = vadd.f32 %v4534, %v4840
    %v5062 = vadd.f32 %v4535, %v4843
    %v5063 = vadd.f32 %v4536, %v4846
    %v5064 = vadd.f32 %v4537, %v4849
    %v5065 = vadd.f32 %v4538, %v4852
    %v5066 = vadd.f32 %v4539, %v4855
    %v5067 = vadd.f32 %v4540, %v4858
    %v5068 = vadd.f32 %v4541, %v4861
    %v5069 = vadd.f32 %v4542, %v4864
    %v5070 = vadd.f32 %v4543, %v4867
    %v5071 = vadd.f32 %v4544, %v4870
    %v5072 = vadd.f32 %v4545, %v4873
    %v5073 = vadd.f32 %v4546, %v4876
    %v5074 = vadd.f32 %v4547, %v4879
    %v5075 = vadd.f32 %v4548, %v4882
    %v5076 = vadd.f32 %v4549, %v4885
    %v5077 = vadd.f32 %v4550, %v4888
    %v5078 = vadd.f32 %v4551, %v4891
    %v5079 = vadd.f32 %v4552, %v4894
    %v5080 = vadd.f32 %v4553, %v4897
    %v5081 = vadd.f32 %v4554, %v4900
    %v5082 = vadd.f32 %v4555, %v4903
    %v5083 = vadd.f32 %v4556, %v4906
    %v5084 = vadd.f32 %v4557, %v4909
    %v5085 = vadd.f32 %v4558, %v4912
    %v5086 = vadd.f32 %v4559, %v4915
    %v5087 = vadd.f32 %v4560, %v4918
    %v5088 = vadd.f32 %v4561, %v4921
    %v5089 = vadd.f32 %v4562, %v4924
    %v5090 = vadd.f32 %v4563, %v4927
    %v5091 = vadd.f32 %v4564, %v4930
    %v5092 = vadd.f32 %v4565, %v4933
    %v5093 = vadd.f32 %v4566, %v4936
    %v5094 = vadd.f32 %v4567, %v4939
    %v5095 = vadd.f32 %v4568, %v4942
    %v5096 = vadd.f32 %v4569, %v4945
    %v5097 = vadd.f32 %v4570, %v4948
    %v5098 = vadd.f32 %v4571, %v4951
    %v5099 = vadd.f32 %v4572, %v4954
    %v5100 = vadd.f32 %v4573, %v4957
    %v5101 = vadd.f32 %v4574, %v4960
    %v5102 = vadd.f32 %v4575, %v4963
    %v5103 = vadd.f32 %v4576, %v4966
    %v5104 = vadd.f32 %v4577, %v4969
    %v5105 = vadd.f32 %v4578, %v4972
    %v5106 = vadd.f32 %v4579, %v4975
    %v5107 = vadd.f32 %v4580, %v4978
    %v5108 = vadd.f32 %v4581, %v4981
    %v5109 = vadd.f32 %v4582, %v4984
    %v5110 = vadd.f32 %v4583, %v4987
    %v5111 = vadd.f32 %v4584, %v4990
    %v5112 = vadd.f32 %v4585, %v4993
    %v5113 = vadd.f32 %v4586, %v4996
    %v5114 = vadd.f32 %v4587, %v4999
    %v5115 = vadd.f32 %v4588, %v5002
    %v5116 = vadd.f32 %v4589, %v5005
    %v5117 = vadd.f32 %v4590, %v5008
    %v5118 = vadd.f32 %v4591, %v5011
    %v5119 = vadd.f32 %v4592, %v5014
    %v5120 = vadd.f32 %v4593, %v5017
    %v5121 = vadd.f32 %v4594, %v5020
    %v5122 = vadd.f32 %v4595, %v5023
    %v5123 = vadd.f32 %v4596, %v5026
    %v5124 = vadd.f32 %v4597, %v5029
    %v5125 = vadd.f32 %v4598, %v5032
    %v5126 = vadd.f32 %v4599, %v5035
    %v5127 = vadd.f32 %v4600, %v5038
    %v5128 = vadd.f32 %v4601, %v5041
    %v5129 = vadd.f32 %v4602, %v5044
    %v5130 = vadd.f32 %v4603, %v5047
    %v5131 = vld [vmem:[%s5] sm:$0x1]
    %v5133 = vperm.slane %v5131, 0
    %v5135 = vadd.f32 %v5049, %v5133
    %v5136 = vadd.f32 %v5050, %v5133
    %v5137 = vadd.f32 %v5051, %v5133
    %v5138 = vadd.f32 %v5052, %v5133
    %v5139 = vadd.f32 %v5053, %v5133
    %v5140 = vadd.f32 %v5054, %v5133
    %v5141 = vadd.f32 %v5055, %v5133
    %v5142 = vadd.f32 %v5056, %v5133
    %v5143 = vadd.f32 %v5057, %v5133
    %v5144 = vadd.f32 %v5058, %v5133
    %v5145 = vadd.f32 %v5059, %v5133
    %v5146 = vadd.f32 %v5060, %v5133
    %v5147 = vadd.f32 %v5061, %v5133
    %v5148 = vadd.f32 %v5062, %v5133
    %v5149 = vadd.f32 %v5063, %v5133
    %v5150 = vadd.f32 %v5064, %v5133
    %v5151 = vadd.f32 %v5065, %v5133
    %v5152 = vadd.f32 %v5066, %v5133
    %v5153 = vadd.f32 %v5067, %v5133
    %v5154 = vadd.f32 %v5068, %v5133
    %v5155 = vadd.f32 %v5069, %v5133
    %v5156 = vadd.f32 %v5070, %v5133
    %v5157 = vadd.f32 %v5071, %v5133
    %v5158 = vadd.f32 %v5072, %v5133
    %v5159 = vadd.f32 %v5073, %v5133
    %v5160 = vadd.f32 %v5074, %v5133
    %v5161 = vadd.f32 %v5075, %v5133
    %v5162 = vadd.f32 %v5076, %v5133
    %v5163 = vadd.f32 %v5077, %v5133
    %v5164 = vadd.f32 %v5078, %v5133
    %v5165 = vadd.f32 %v5079, %v5133
    %v5166 = vadd.f32 %v5080, %v5133
    %v5167 = vadd.f32 %v5081, %v5133
    %v5168 = vadd.f32 %v5082, %v5133
    %v5169 = vadd.f32 %v5083, %v5133
    %v5170 = vadd.f32 %v5084, %v5133
    %v5171 = vadd.f32 %v5085, %v5133
    %v5172 = vadd.f32 %v5086, %v5133
    %v5173 = vadd.f32 %v5087, %v5133
    %v5174 = vadd.f32 %v5088, %v5133
    %v5175 = vadd.f32 %v5089, %v5133
    %v5176 = vadd.f32 %v5090, %v5133
    %v5177 = vadd.f32 %v5091, %v5133
    %v5178 = vadd.f32 %v5092, %v5133
    %v5179 = vadd.f32 %v5093, %v5133
    %v5180 = vadd.f32 %v5094, %v5133
    %v5181 = vadd.f32 %v5095, %v5133
    %v5182 = vadd.f32 %v5096, %v5133
    %v5183 = vadd.f32 %v5097, %v5133
    %v5184 = vadd.f32 %v5098, %v5133
    %v5185 = vadd.f32 %v5099, %v5133
    %v5186 = vadd.f32 %v5100, %v5133
    %v5187 = vadd.f32 %v5101, %v5133
    %v5188 = vadd.f32 %v5102, %v5133
    %v5189 = vadd.f32 %v5103, %v5133
    %v5190 = vadd.f32 %v5104, %v5133
    %v5191 = vadd.f32 %v5105, %v5133
    %v5192 = vadd.f32 %v5106, %v5133
    %v5193 = vadd.f32 %v5107, %v5133
    %v5194 = vadd.f32 %v5108, %v5133
    %v5195 = vadd.f32 %v5109, %v5133
    %v5196 = vadd.f32 %v5110, %v5133
    %v5197 = vadd.f32 %v5111, %v5133
    %v5198 = vadd.f32 %v5112, %v5133
    %v5199 = vadd.f32 %v5113, %v5133
    %v5200 = vadd.f32 %v5114, %v5133
    %v5201 = vadd.f32 %v5115, %v5133
    %v5202 = vadd.f32 %v5116, %v5133
    %v5203 = vadd.f32 %v5117, %v5133
    %v5204 = vadd.f32 %v5118, %v5133
    %v5205 = vadd.f32 %v5119, %v5133
    %v5206 = vadd.f32 %v5120, %v5133
    %v5207 = vadd.f32 %v5121, %v5133
    %v5208 = vadd.f32 %v5122, %v5133
    %v5209 = vadd.f32 %v5123, %v5133
    %v5210 = vadd.f32 %v5124, %v5133
    %v5211 = vadd.f32 %v5125, %v5133
    %v5212 = vadd.f32 %v5126, %v5133
    %v5213 = vadd.f32 %v5127, %v5133
    %v5214 = vadd.f32 %v5128, %v5133
    %v5215 = vadd.f32 %v5129, %v5133
    %v5216 = vadd.f32 %v5130, %v5133
    %v5217 = vmax.f32 %v5135, 0.0
    %v5218 = vmax.f32 %v5136, 0.0
    %v5219 = vmax.f32 %v5137, 0.0
    %v5220 = vmax.f32 %v5138, 0.0
    %v5221 = vmax.f32 %v5139, 0.0
    %v5222 = vmax.f32 %v5140, 0.0
    %v5223 = vmax.f32 %v5141, 0.0
    %v5224 = vmax.f32 %v5142, 0.0
    %v5225 = vmax.f32 %v5143, 0.0
    %v5226 = vmax.f32 %v5144, 0.0
    %v5227 = vmax.f32 %v5145, 0.0
    %v5228 = vmax.f32 %v5146, 0.0
    %v5229 = vmax.f32 %v5147, 0.0
    %v5230 = vmax.f32 %v5148, 0.0
    %v5231 = vmax.f32 %v5149, 0.0
    %v5232 = vmax.f32 %v5150, 0.0
    %v5233 = vmax.f32 %v5151, 0.0
    %v5234 = vmax.f32 %v5152, 0.0
    %v5235 = vmax.f32 %v5153, 0.0
    %v5236 = vmax.f32 %v5154, 0.0
    %v5237 = vmax.f32 %v5155, 0.0
    %v5238 = vmax.f32 %v5156, 0.0
    %v5239 = vmax.f32 %v5157, 0.0
    %v5240 = vmax.f32 %v5158, 0.0
    %v5241 = vmax.f32 %v5159, 0.0
    %v5242 = vmax.f32 %v5160, 0.0
    %v5243 = vmax.f32 %v5161, 0.0
    %v5244 = vmax.f32 %v5162, 0.0
    %v5245 = vmax.f32 %v5163, 0.0
    %v5246 = vmax.f32 %v5164, 0.0
    %v5247 = vmax.f32 %v5165, 0.0
    %v5248 = vmax.f32 %v5166, 0.0
    %v5249 = vmax.f32 %v5167, 0.0
    %v5250 = vmax.f32 %v5168, 0.0
    %v5251 = vmax.f32 %v5169, 0.0
    %v5252 = vmax.f32 %v5170, 0.0
    %v5253 = vmax.f32 %v5171, 0.0
    %v5254 = vmax.f32 %v5172, 0.0
    %v5255 = vmax.f32 %v5173, 0.0
    %v5256 = vmax.f32 %v5174, 0.0
    %v5257 = vmax.f32 %v5175, 0.0
    %v5258 = vmax.f32 %v5176, 0.0
    %v5259 = vmax.f32 %v5177, 0.0
    %v5260 = vmax.f32 %v5178, 0.0
    %v5261 = vmax.f32 %v5179, 0.0
    %v5262 = vmax.f32 %v5180, 0.0
    %v5263 = vmax.f32 %v5181, 0.0
    %v5264 = vmax.f32 %v5182, 0.0
    %v5265 = vmax.f32 %v5183, 0.0
    %v5266 = vmax.f32 %v5184, 0.0
    %v5267 = vmax.f32 %v5185, 0.0
    %v5268 = vmax.f32 %v5186, 0.0
    %v5269 = vmax.f32 %v5187, 0.0
    %v5270 = vmax.f32 %v5188, 0.0
    %v5271 = vmax.f32 %v5189, 0.0
    %v5272 = vmax.f32 %v5190, 0.0
    %v5273 = vmax.f32 %v5191, 0.0
    %v5274 = vmax.f32 %v5192, 0.0
    %v5275 = vmax.f32 %v5193, 0.0
    %v5276 = vmax.f32 %v5194, 0.0
    %v5277 = vmax.f32 %v5195, 0.0
    %v5278 = vmax.f32 %v5196, 0.0
    %v5279 = vmax.f32 %v5197, 0.0
    %v5280 = vmax.f32 %v5198, 0.0
    %v5281 = vmax.f32 %v5199, 0.0
    %v5282 = vmax.f32 %v5200, 0.0
    %v5283 = vmax.f32 %v5201, 0.0
    %v5284 = vmax.f32 %v5202, 0.0
    %v5285 = vmax.f32 %v5203, 0.0
    %v5286 = vmax.f32 %v5204, 0.0
    %v5287 = vmax.f32 %v5205, 0.0
    %v5288 = vmax.f32 %v5206, 0.0
    %v5289 = vmax.f32 %v5207, 0.0
    %v5290 = vmax.f32 %v5208, 0.0
    %v5291 = vmax.f32 %v5209, 0.0
    %v5292 = vmax.f32 %v5210, 0.0
    %v5293 = vmax.f32 %v5211, 0.0
    %v5294 = vmax.f32 %v5212, 0.0
    %v5295 = vmax.f32 %v5213, 0.0
    %v5296 = vmax.f32 %v5214, 0.0
    %v5297 = vmax.f32 %v5215, 0.0
    %v5298 = vmax.f32 %v5216, 0.0
    %v5299 = vmul.f32 %v5217, %v36
    %v5300 = vmul.f32 %v5218, %v37
    %v5301 = vmul.f32 %v5219, %v38
    %v5302 = vmul.f32 %v5220, %v39
    %v5303 = vmul.f32 %v5221, %v40
    %v5304 = vmul.f32 %v5222, %v41
    %v5305 = vmul.f32 %v5223, %v42
    %v5306 = vmul.f32 %v5224, %v43
    %v5307 = vmul.f32 %v5225, %v44
    %v5308 = vmul.f32 %v5226, %v45
    %v5309 = vmul.f32 %v5227, %v46
    %v5310 = vmul.f32 %v5228, %v47
    %v5311 = vmul.f32 %v5229, %v48
    %v5312 = vmul.f32 %v5230, %v49
    %v5313 = vmul.f32 %v5231, %v50
    %v5314 = vmul.f32 %v5232, %v51
    %v5315 = vmul.f32 %v5233, %v52
    %v5316 = vmul.f32 %v5234, %v53
    %v5317 = vmul.f32 %v5235, %v54
    %v5318 = vmul.f32 %v5236, %v55
    %v5319 = vmul.f32 %v5237, %v56
    %v5320 = vmul.f32 %v5238, %v57
    %v5321 = vmul.f32 %v5239, %v58
    %v5322 = vmul.f32 %v5240, %v59
    %v5323 = vmul.f32 %v5241, %v60
    %v5324 = vmul.f32 %v5242, %v61
    %v5325 = vmul.f32 %v5243, %v62
    %v5326 = vmul.f32 %v5244, %v63
    %v5327 = vmul.f32 %v5245, %v64
    %v5328 = vmul.f32 %v5246, %v65
    %v5329 = vmul.f32 %v5247, %v66
    %v5330 = vmul.f32 %v5248, %v67
    %v5331 = vmul.f32 %v5249, %v68
    %v5332 = vmul.f32 %v5250, %v69
    %v5333 = vmul.f32 %v5251, %v70
    %v5334 = vmul.f32 %v5252, %v71
    %v5335 = vmul.f32 %v5253, %v72
    %v5336 = vmul.f32 %v5254, %v73
    %v5337 = vmul.f32 %v5255, %v74
    %v5338 = vmul.f32 %v5256, %v75
    %v5339 = vmul.f32 %v5257, %v76
    %v5340 = vmul.f32 %v5258, %v77
    %v5341 = vmul.f32 %v5259, %v78
    %v5342 = vmul.f32 %v5260, %v79
    %v5343 = vmul.f32 %v5261, %v80
    %v5344 = vmul.f32 %v5262, %v81
    %v5345 = vmul.f32 %v5263, %v82
    %v5346 = vmul.f32 %v5264, %v83
    %v5347 = vmul.f32 %v5265, %v84
    %v5348 = vmul.f32 %v5266, %v85
    %v5349 = vmul.f32 %v5267, %v86
    %v5350 = vmul.f32 %v5268, %v87
    %v5351 = vmul.f32 %v5269, %v88
    %v5352 = vmul.f32 %v5270, %v89
    %v5353 = vmul.f32 %v5271, %v90
    %v5354 = vmul.f32 %v5272, %v91
    %v5355 = vmul.f32 %v5273, %v92
    %v5356 = vmul.f32 %v5274, %v93
    %v5357 = vmul.f32 %v5275, %v94
    %v5358 = vmul.f32 %v5276, %v95
    %v5359 = vmul.f32 %v5277, %v96
    %v5360 = vmul.f32 %v5278, %v97
    %v5361 = vmul.f32 %v5279, %v98
    %v5362 = vmul.f32 %v5280, %v99
    %v5363 = vmul.f32 %v5281, %v100
    %v5364 = vmul.f32 %v5282, %v101
    %v5365 = vmul.f32 %v5283, %v102
    %v5366 = vmul.f32 %v5284, %v103
    %v5367 = vmul.f32 %v5285, %v104
    %v5368 = vmul.f32 %v5286, %v105
    %v5369 = vmul.f32 %v5287, %v106
    %v5370 = vmul.f32 %v5288, %v107
    %v5371 = vmul.f32 %v5289, %v108
    %v5372 = vmul.f32 %v5290, %v109
    %v5373 = vmul.f32 %v5291, %v110
    %v5374 = vmul.f32 %v5292, %v111
    %v5375 = vmul.f32 %v5293, %v112
    %v5376 = vmul.f32 %v5294, %v113
    %v5377 = vmul.f32 %v5295, %v114
    %v5378 = vmul.f32 %v5296, %v115
    %v5379 = vmul.f32 %v5297, %v116
    %v5380 = vmul.f32 %v5298, %v117
    %5381 = vst [vmem:[#allocation2] sm:$0xff] %v5299
    %5382 = vst [vmem:[#allocation2 + $0x8] sm:$0xff] %v5300
    %5383 = vst [vmem:[#allocation2 + $0x10] sm:$0xff] %v5301
    %5384 = vst [vmem:[#allocation2 + $0x18] sm:$0xff] %v5302
    %5385 = vst [vmem:[#allocation2 + $0x20] sm:$0xff] %v5303
    %5386 = vst [vmem:[#allocation2 + $0x28] sm:$0xff] %v5304
    %5387 = vst [vmem:[#allocation2 + $0x30] sm:$0xff] %v5305
    %5388 = vst [vmem:[#allocation2 + $0x38] sm:$0xff] %v5306
    %5389 = vst [vmem:[#allocation2 + $0x40] sm:$0xff] %v5307
    %5390 = vst [vmem:[#allocation2 + $0x48] sm:$0xff] %v5308
    %5391 = vst [vmem:[#allocation2 + $0x50] sm:$0xff] %v5309
    %5392 = vst [vmem:[#allocation2 + $0x58] sm:$0xff] %v5310
    %5393 = vst [vmem:[#allocation2 + $0x60] sm:$0xff] %v5311
    %5394 = vst [vmem:[#allocation2 + $0x68] sm:$0xff] %v5312
    %5395 = vst [vmem:[#allocation2 + $0x70] sm:$0xff] %v5313
    %5396 = vst [vmem:[#allocation2 + $0x78] sm:$0xff] %v5314
    %5397 = vst [vmem:[#allocation2 + $0x80] sm:$0xff] %v5315
    %5398 = vst [vmem:[#allocation2 + $0x88] sm:$0xff] %v5316
    %5399 = vst [vmem:[#allocation2 + $0x90] sm:$0xff] %v5317
    %5400 = vst [vmem:[#allocation2 + $0x98] sm:$0xff] %v5318
    %5401 = vst [vmem:[#allocation2 + $0xa0] sm:$0xff] %v5319
    %5402 = vst [vmem:[#allocation2 + $0xa8] sm:$0xff] %v5320
    %5403 = vst [vmem:[#allocation2 + $0xb0] sm:$0xff] %v5321
    %5404 = vst [vmem:[#allocation2 + $0xb8] sm:$0xff] %v5322
    %5405 = vst [vmem:[#allocation2 + $0xc0] sm:$0xff] %v5323
    %5406 = vst [vmem:[#allocation2 + $0xc8] sm:$0xff] %v5324
    %5407 = vst [vmem:[#allocation2 + $0xd0] sm:$0xff] %v5325
    %5408 = vst [vmem:[#allocation2 + $0xd8] sm:$0xff] %v5326
    %5409 = vst [vmem:[#allocation2 + $0xe0] sm:$0xff] %v5327
    %5410 = vst [vmem:[#allocation2 + $0xe8] sm:$0xff] %v5328
    %5411 = vst [vmem:[#allocation2 + $0xf0] sm:$0xff] %v5329
    %5412 = vst [vmem:[#allocation2 + $0xf8] sm:$0xff] %v5330
    %5413 = vst [vmem:[#allocation2 + $0x100] sm:$0xff] %v5331
    %5414 = vst [vmem:[#allocation2 + $0x108] sm:$0xff] %v5332
    %5415 = vst [vmem:[#allocation2 + $0x110] sm:$0xff] %v5333
    %5416 = vst [vmem:[#allocation2 + $0x118] sm:$0xff] %v5334
    %5417 = vst [vmem:[#allocation2 + $0x120] sm:$0xff] %v5335
    %5418 = vst [vmem:[#allocation2 + $0x128] sm:$0xff] %v5336
    %5419 = vst [vmem:[#allocation2 + $0x130] sm:$0xff] %v5337
    %5420 = vst [vmem:[#allocation2 + $0x138] sm:$0xff] %v5338
    %5421 = vst [vmem:[#allocation2 + $0x140] sm:$0xff] %v5339
    %5422 = vst [vmem:[#allocation2 + $0x148] sm:$0xff] %v5340
    %5423 = vst [vmem:[#allocation2 + $0x150] sm:$0xff] %v5341
    %5424 = vst [vmem:[#allocation2 + $0x158] sm:$0xff] %v5342
    %5425 = vst [vmem:[#allocation2 + $0x160] sm:$0xff] %v5343
    %5426 = vst [vmem:[#allocation2 + $0x168] sm:$0xff] %v5344
    %5427 = vst [vmem:[#allocation2 + $0x170] sm:$0xff] %v5345
    %5428 = vst [vmem:[#allocation2 + $0x178] sm:$0xff] %v5346
    %5429 = vst [vmem:[#allocation2 + $0x180] sm:$0xff] %v5347
    %5430 = vst [vmem:[#allocation2 + $0x188] sm:$0xff] %v5348
    %5431 = vst [vmem:[#allocation2 + $0x190] sm:$0xff] %v5349
    %5432 = vst [vmem:[#allocation2 + $0x198] sm:$0xff] %v5350
    %5433 = vst [vmem:[#allocation2 + $0x1a0] sm:$0xff] %v5351
    %5434 = vst [vmem:[#allocation2 + $0x1a8] sm:$0xff] %v5352
    %5435 = vst [vmem:[#allocation2 + $0x1b0] sm:$0xff] %v5353
    %5436 = vst [vmem:[#allocation2 + $0x1b8] sm:$0xff] %v5354
    %5437 = vst [vmem:[#allocation2 + $0x1c0] sm:$0xff] %v5355
    %5438 = vst [vmem:[#allocation2 + $0x1c8] sm:$0xff] %v5356
    %5439 = vst [vmem:[#allocation2 + $0x1d0] sm:$0xff] %v5357
    %5440 = vst [vmem:[#allocation2 + $0x1d8] sm:$0xff] %v5358
    %5441 = vst [vmem:[#allocation2 + $0x1e0] sm:$0xff] %v5359
    %5442 = vst [vmem:[#allocation2 + $0x1e8] sm:$0xff] %v5360
    %5443 = vst [vmem:[#allocation2 + $0x1f0] sm:$0xff] %v5361
    %5444 = vst [vmem:[#allocation2 + $0x1f8] sm:$0xff] %v5362
    %5445 = vst [vmem:[#allocation2 + $0x200] sm:$0xff] %v5363
    %5446 = vst [vmem:[#allocation2 + $0x208] sm:$0xff] %v5364
    %5447 = vst [vmem:[#allocation2 + $0x210] sm:$0xff] %v5365
    %5448 = vst [vmem:[#allocation2 + $0x218] sm:$0xff] %v5366
    %5449 = vst [vmem:[#allocation2 + $0x220] sm:$0xff] %v5367
    %5450 = vst [vmem:[#allocation2 + $0x228] sm:$0xff] %v5368
    %5451 = vst [vmem:[#allocation2 + $0x230] sm:$0xff] %v5369
    %5452 = vst [vmem:[#allocation2 + $0x238] sm:$0xff] %v5370
    %5453 = vst [vmem:[#allocation2 + $0x240] sm:$0xff] %v5371
    %5454 = vst [vmem:[#allocation2 + $0x248] sm:$0xff] %v5372
    %5455 = vst [vmem:[#allocation2 + $0x250] sm:$0xff] %v5373
    %5456 = vst [vmem:[#allocation2 + $0x258] sm:$0xff] %v5374
    %5457 = vst [vmem:[#allocation2 + $0x260] sm:$0xff] %v5375
    %5458 = vst [vmem:[#allocation2 + $0x268] sm:$0xff] %v5376
    %5459 = vst [vmem:[#allocation2 + $0x270] sm:$0xff] %v5377
    %5460 = vst [vmem:[#allocation2 + $0x278] sm:$0xff] %v5378
    %5461 = vst [vmem:[#allocation2 + $0x280] sm:$0xff] %v5379
    %5462 = vst [vmem:[#allocation2 + $0x288] sm:$0xff] %v5380
    %v5463 = vld [vmem:[#allocation2] sm:$0xff]
    %v5464 = vld [vmem:[#allocation2 + $0x8] sm:$0xff]
    %v5465 = vld [vmem:[#allocation2 + $0x10] sm:$0xff]
    %v5466 = vld [vmem:[#allocation2 + $0x18] sm:$0xff]
    %v5467 = vld [vmem:[#allocation2 + $0x20] sm:$0xff]
    %v5468 = vld [vmem:[#allocation2 + $0x28] sm:$0xff]
    %v5469 = vld [vmem:[#allocation2 + $0x30] sm:$0xff]
    %v5470 = vld [vmem:[#allocation2 + $0x38] sm:$0xff]
    %v5471 = vld [vmem:[#allocation2 + $0x40] sm:$0xff]
    %v5472 = vld [vmem:[#allocation2 + $0x48] sm:$0xff]
    %v5473 = vld [vmem:[#allocation2 + $0x50] sm:$0xff]
    %v5474 = vld [vmem:[#allocation2 + $0x58] sm:$0xff]
    %v5475 = vld [vmem:[#allocation2 + $0x60] sm:$0xff]
    %v5476 = vld [vmem:[#allocation2 + $0x68] sm:$0xff]
    %v5477 = vld [vmem:[#allocation2 + $0x70] sm:$0xff]
    %v5478 = vld [vmem:[#allocation2 + $0x78] sm:$0xff]
    %v5479 = vld [vmem:[#allocation2 + $0x80] sm:$0xff]
    %v5480 = vld [vmem:[#allocation2 + $0x88] sm:$0xff]
    %v5481 = vld [vmem:[#allocation2 + $0x90] sm:$0xff]
    %v5482 = vld [vmem:[#allocation2 + $0x98] sm:$0xff]
    %v5483 = vld [vmem:[#allocation2 + $0xa0] sm:$0xff]
    %v5484 = vld [vmem:[#allocation2 + $0xa8] sm:$0xff]
    %v5485 = vld [vmem:[#allocation2 + $0xb0] sm:$0xff]
    %v5486 = vld [vmem:[#allocation2 + $0xb8] sm:$0xff]
    %v5487 = vld [vmem:[#allocation2 + $0xc0] sm:$0xff]
    %v5488 = vld [vmem:[#allocation2 + $0xc8] sm:$0xff]
    %v5489 = vld [vmem:[#allocation2 + $0xd0] sm:$0xff]
    %v5490 = vld [vmem:[#allocation2 + $0xd8] sm:$0xff]
    %v5491 = vld [vmem:[#allocation2 + $0xe0] sm:$0xff]
    %v5492 = vld [vmem:[#allocation2 + $0xe8] sm:$0xff]
    %v5493 = vld [vmem:[#allocation2 + $0xf0] sm:$0xff]
    %v5494 = vld [vmem:[#allocation2 + $0xf8] sm:$0xff]
    %v5495 = vld [vmem:[#allocation2 + $0x100] sm:$0xff]
    %v5496 = vld [vmem:[#allocation2 + $0x108] sm:$0xff]
    %v5497 = vld [vmem:[#allocation2 + $0x110] sm:$0xff]
    %v5498 = vld [vmem:[#allocation2 + $0x118] sm:$0xff]
    %v5499 = vld [vmem:[#allocation2 + $0x120] sm:$0xff]
    %v5500 = vld [vmem:[#allocation2 + $0x128] sm:$0xff]
    %v5501 = vld [vmem:[#allocation2 + $0x130] sm:$0xff]
    %v5502 = vld [vmem:[#allocation2 + $0x138] sm:$0xff]
    %v5503 = vld [vmem:[#allocation2 + $0x140] sm:$0xff]
    %v5504 = vld [vmem:[#allocation2 + $0x148] sm:$0xff]
    %v5505 = vld [vmem:[#allocation2 + $0x150] sm:$0xff]
    %v5506 = vld [vmem:[#allocation2 + $0x158] sm:$0xff]
    %v5507 = vld [vmem:[#allocation2 + $0x160] sm:$0xff]
    %v5508 = vld [vmem:[#allocation2 + $0x168] sm:$0xff]
    %v5509 = vld [vmem:[#allocation2 + $0x170] sm:$0xff]
    %v5510 = vld [vmem:[#allocation2 + $0x178] sm:$0xff]
    %v5511 = vld [vmem:[#allocation2 + $0x180] sm:$0xff]
    %v5512 = vld [vmem:[#allocation2 + $0x188] sm:$0xff]
    %v5513 = vld [vmem:[#allocation2 + $0x190] sm:$0xff]
    %v5514 = vld [vmem:[#allocation2 + $0x198] sm:$0xff]
    %v5515 = vld [vmem:[#allocation2 + $0x1a0] sm:$0xff]
    %v5516 = vld [vmem:[#allocation2 + $0x1a8] sm:$0xff]
    %v5517 = vld [vmem:[#allocation2 + $0x1b0] sm:$0xff]
    %v5518 = vld [vmem:[#allocation2 + $0x1b8] sm:$0xff]
    %v5519 = vld [vmem:[#allocation2 + $0x1c0] sm:$0xff]
    %v5520 = vld [vmem:[#allocation2 + $0x1c8] sm:$0xff]
    %v5521 = vld [vmem:[#allocation2 + $0x1d0] sm:$0xff]
    %v5522 = vld [vmem:[#allocation2 + $0x1d8] sm:$0xff]
    %v5523 = vld [vmem:[#allocation2 + $0x1e0] sm:$0xff]
    %v5524 = vld [vmem:[#allocation2 + $0x1e8] sm:$0xff]
    %v5525 = vld [vmem:[#allocation2 + $0x1f0] sm:$0xff]
    %v5526 = vld [vmem:[#allocation2 + $0x1f8] sm:$0xff]
    %v5527 = vld [vmem:[#allocation2 + $0x200] sm:$0xff]
    %v5528 = vld [vmem:[#allocation2 + $0x208] sm:$0xff]
    %v5529 = vld [vmem:[#allocation2 + $0x210] sm:$0xff]
    %v5530 = vld [vmem:[#allocation2 + $0x218] sm:$0xff]
    %v5531 = vld [vmem:[#allocation2 + $0x220] sm:$0xff]
    %v5532 = vld [vmem:[#allocation2 + $0x228] sm:$0xff]
    %v5533 = vld [vmem:[#allocation2 + $0x230] sm:$0xff]
    %v5534 = vld [vmem:[#allocation2 + $0x238] sm:$0xff]
    %v5535 = vld [vmem:[#allocation2 + $0x240] sm:$0xff]
    %v5536 = vld [vmem:[#allocation2 + $0x248] sm:$0xff]
    %v5537 = vld [vmem:[#allocation2 + $0x250] sm:$0xff]
    %v5538 = vld [vmem:[#allocation2 + $0x258] sm:$0xff]
    %v5539 = vld [vmem:[#allocation2 + $0x260] sm:$0xff]
    %v5540 = vld [vmem:[#allocation2 + $0x268] sm:$0xff]
    %v5541 = vld [vmem:[#allocation2 + $0x270] sm:$0xff]
    %v5542 = vld [vmem:[#allocation2 + $0x278] sm:$0xff]
    %v5543 = vld [vmem:[#allocation2 + $0x280] sm:$0xff]
    %v5544 = vld [vmem:[#allocation2 + $0x288] sm:$0xff]
    %v5545 = vrot.slane %v5463, 5
    %v5546 = vrot.slane %v5464, 5
    %v5547 = vrot.slane %v5465, 5
    %v5548 = vrot.slane %v5466, 5
    %v5549 = vrot.slane %v5467, 5
    %v5550 = vrot.slane %v5468, 5
    %v5551 = vrot.slane %v5469, 5
    %v5552 = vrot.slane %v5470, 5
    %v5553 = vrot.slane %v5471, 5
    %v5554 = vrot.slane %v5472, 5
    %v5555 = vrot.slane %v5473, 5
    %v5556 = vrot.slane %v5474, 5
    %v5557 = vrot.slane %v5475, 5
    %v5558 = vrot.slane %v5476, 5
    %v5559 = vrot.slane %v5477, 5
    %v5560 = vrot.slane %v5478, 5
    %v5561 = vrot.slane %v5479, 5
    %v5562 = vrot.slane %v5480, 5
    %v5563 = vrot.slane %v5481, 5
    %v5564 = vrot.slane %v5482, 5
    %v5565 = vrot.slane %v5483, 5
    %v5566 = vrot.slane %v5484, 5
    %v5567 = vrot.slane %v5485, 5
    %v5568 = vrot.slane %v5486, 5
    %v5569 = vrot.slane %v5487, 5
    %v5570 = vrot.slane %v5488, 5
    %v5571 = vrot.slane %v5489, 5
    %v5572 = vrot.slane %v5490, 5
    %v5573 = vrot.slane %v5491, 5
    %v5574 = vrot.slane %v5492, 5
    %v5575 = vrot.slane %v5493, 5
    %v5576 = vrot.slane %v5494, 5
    %v5577 = vrot.slane %v5495, 5
    %v5578 = vrot.slane %v5496, 5
    %v5579 = vrot.slane %v5497, 5
    %v5580 = vrot.slane %v5498, 5
    %v5581 = vrot.slane %v5499, 5
    %v5582 = vrot.slane %v5500, 5
    %v5583 = vrot.slane %v5501, 5
    %v5584 = vrot.slane %v5502, 5
    %v5585 = vrot.slane %v5503, 5
    %v5586 = vrot.slane %v5504, 5
    %v5587 = vrot.slane %v5505, 5
    %v5588 = vrot.slane %v5506, 5
    %v5589 = vrot.slane %v5507, 5
    %v5590 = vrot.slane %v5508, 5
    %v5591 = vrot.slane %v5509, 5
    %v5592 = vrot.slane %v5510, 5
    %v5593 = vrot.slane %v5511, 5
    %v5594 = vrot.slane %v5512, 5
    %v5595 = vrot.slane %v5513, 5
    %v5596 = vrot.slane %v5514, 5
    %v5597 = vrot.slane %v5515, 5
    %v5598 = vrot.slane %v5516, 5
    %v5599 = vrot.slane %v5517, 5
    %v5600 = vrot.slane %v5518, 5
    %v5601 = vrot.slane %v5519, 5
    %v5602 = vrot.slane %v5520, 5
    %v5603 = vrot.slane %v5521, 5
    %v5604 = vrot.slane %v5522, 5
    %v5605 = vrot.slane %v5523, 5
    %v5606 = vrot.slane %v5524, 5
    %v5607 = vrot.slane %v5525, 5
    %v5608 = vrot.slane %v5526, 5
    %v5609 = vrot.slane %v5527, 5
    %v5610 = vrot.slane %v5528, 5
    %v5611 = vrot.slane %v5529, 5
    %v5612 = vrot.slane %v5530, 5
    %v5613 = vrot.slane %v5531, 5
    %v5614 = vrot.slane %v5532, 5
    %v5615 = vrot.slane %v5533, 5
    %v5616 = vrot.slane %v5534, 5
    %v5617 = vrot.slane %v5535, 5
    %v5618 = vrot.slane %v5536, 5
    %v5619 = vrot.slane %v5537, 5
    %v5620 = vrot.slane %v5538, 5
    %v5621 = vrot.slane %v5539, 5
    %v5622 = vrot.slane %v5540, 5
    %v5623 = vrot.slane %v5541, 5
    %v5624 = vrot.slane %v5542, 5
    %v5625 = vrot.slane %v5543, 5
    %v5626 = vrot.slane %v5544, 5
    %v5627 = vsel %vm1130, %v5625, %v5626
    %v5628 = vsel %vm1130, %v5624, %v5625
    %v5629 = vsel %vm1130, %v5623, %v5624
    %v5630 = vsel %vm1130, %v5622, %v5623
    %v5631 = vsel %vm1130, %v5621, %v5622
    %v5632 = vsel %vm1130, %v5620, %v5621
    %v5633 = vsel %vm1130, %v5619, %v5620
    %v5634 = vsel %vm1130, %v5618, %v5619
    %v5635 = vsel %vm1130, %v5617, %v5618
    %v5636 = vsel %vm1130, %v5616, %v5617
    %v5637 = vsel %vm1130, %v5615, %v5616
    %v5638 = vsel %vm1130, %v5614, %v5615
    %v5639 = vsel %vm1130, %v5613, %v5614
    %v5640 = vsel %vm1130, %v5612, %v5613
    %v5641 = vsel %vm1130, %v5611, %v5612
    %v5642 = vsel %vm1130, %v5610, %v5611
    %v5643 = vsel %vm1130, %v5609, %v5610
    %v5644 = vsel %vm1130, %v5608, %v5609
    %v5645 = vsel %vm1130, %v5607, %v5608
    %v5646 = vsel %vm1130, %v5606, %v5607
    %v5647 = vsel %vm1130, %v5605, %v5606
    %v5648 = vsel %vm1130, %v5604, %v5605
    %v5649 = vsel %vm1130, %v5603, %v5604
    %v5650 = vsel %vm1130, %v5602, %v5603
    %v5651 = vsel %vm1130, %v5601, %v5602
    %v5652 = vsel %vm1130, %v5600, %v5601
    %v5653 = vsel %vm1130, %v5599, %v5600
    %v5654 = vsel %vm1130, %v5598, %v5599
    %v5655 = vsel %vm1130, %v5597, %v5598
    %v5656 = vsel %vm1130, %v5596, %v5597
    %v5657 = vsel %vm1130, %v5595, %v5596
    %v5658 = vsel %vm1130, %v5594, %v5595
    %v5659 = vsel %vm1130, %v5593, %v5594
    %v5660 = vsel %vm1130, %v5592, %v5593
    %v5661 = vsel %vm1130, %v5591, %v5592
    %v5662 = vsel %vm1130, %v5590, %v5591
    %v5663 = vsel %vm1130, %v5589, %v5590
    %v5664 = vsel %vm1130, %v5588, %v5589
    %v5665 = vsel %vm1130, %v5587, %v5588
    %v5666 = vsel %vm1130, %v5586, %v5587
    %v5667 = vsel %vm1130, %v5585, %v5586
    %v5668 = vsel %vm1130, %v5584, %v5585
    %v5669 = vsel %vm1130, %v5583, %v5584
    %v5670 = vsel %vm1130, %v5582, %v5583
    %v5671 = vsel %vm1130, %v5581, %v5582
    %v5672 = vsel %vm1130, %v5580, %v5581
    %v5673 = vsel %vm1130, %v5579, %v5580
    %v5674 = vsel %vm1130, %v5578, %v5579
    %v5675 = vsel %vm1130, %v5577, %v5578
    %v5676 = vsel %vm1130, %v5576, %v5577
    %v5677 = vsel %vm1130, %v5575, %v5576
    %v5678 = vsel %vm1130, %v5574, %v5575
    %v5679 = vsel %vm1130, %v5573, %v5574
    %v5680 = vsel %vm1130, %v5572, %v5573
    %v5681 = vsel %vm1130, %v5571, %v5572
    %v5682 = vsel %vm1130, %v5570, %v5571
    %v5683 = vsel %vm1130, %v5569, %v5570
    %v5684 = vsel %vm1130, %v5568, %v5569
    %v5685 = vsel %vm1130, %v5567, %v5568
    %v5686 = vsel %vm1130, %v5566, %v5567
    %v5687 = vsel %vm1130, %v5565, %v5566
    %v5688 = vsel %vm1130, %v5564, %v5565
    %v5689 = vsel %vm1130, %v5563, %v5564
    %v5690 = vsel %vm1130, %v5562, %v5563
    %v5691 = vsel %vm1130, %v5561, %v5562
    %v5692 = vsel %vm1130, %v5560, %v5561
    %v5693 = vsel %vm1130, %v5559, %v5560
    %v5694 = vsel %vm1130, %v5558, %v5559
    %v5695 = vsel %vm1130, %v5557, %v5558
    %v5696 = vsel %vm1130, %v5556, %v5557
    %v5697 = vsel %vm1130, %v5555, %v5556
    %v5698 = vsel %vm1130, %v5554, %v5555
    %v5699 = vsel %vm1130, %v5553, %v5554
    %v5700 = vsel %vm1130, %v5552, %v5553
    %v5701 = vsel %vm1130, %v5551, %v5552
    %v5702 = vsel %vm1130, %v5550, %v5551
    %v5703 = vsel %vm1130, %v5549, %v5550
    %v5704 = vsel %vm1130, %v5548, %v5549
    %v5705 = vsel %vm1130, %v5547, %v5548
    %v5706 = vsel %vm1130, %v5546, %v5547
    %v5707 = vsel %vm1130, %v5545, %v5546
    %v5708 = vsel %vm1130, %v5626, %v5545
    %v5709 = vld [vmem:[%s6] sm:$0xff]
    %v5710 = vld [vmem:[%s6 + $0x8] sm:$0xff]
    %v5711 = vld [vmem:[%s6 + $0x10] sm:$0xff]
    %v5712 = vld [vmem:[%s6 + $0x18] sm:$0xff]
    %v5713 = vld [vmem:[%s6 + $0x20] sm:$0xff]
    %v5714 = vld [vmem:[%s6 + $0x28] sm:$0xff]
    %v5715 = vld [vmem:[%s6 + $0x30] sm:$0xff]
    %v5716 = vld [vmem:[%s6 + $0x38] sm:$0xff]
    %v5717 = vld [vmem:[%s6 + $0x40] sm:$0xff]
    %v5718 = vld [vmem:[%s6 + $0x48] sm:$0xff]
    %v5719 = vld [vmem:[%s6 + $0x50] sm:$0xff]
    %v5720 = vld [vmem:[%s6 + $0x58] sm:$0xff]
    %v5721 = vld [vmem:[%s6 + $0x60] sm:$0xff]
    %v5722 = vld [vmem:[%s6 + $0x68] sm:$0xff]
    %v5723 = vld [vmem:[%s6 + $0x70] sm:$0xff]
    %v5724 = vld [vmem:[%s6 + $0x78] sm:$0xff]
    %v5725 = vrot.slane %v5463, 6
    %v5726 = vrot.slane %v5464, 6
    %v5727 = vrot.slane %v5465, 6
    %v5728 = vrot.slane %v5466, 6
    %v5729 = vrot.slane %v5467, 6
    %v5730 = vrot.slane %v5468, 6
    %v5731 = vrot.slane %v5469, 6
    %v5732 = vrot.slane %v5470, 6
    %v5733 = vrot.slane %v5471, 6
    %v5734 = vrot.slane %v5472, 6
    %v5735 = vrot.slane %v5473, 6
    %v5736 = vrot.slane %v5474, 6
    %v5737 = vrot.slane %v5475, 6
    %v5738 = vrot.slane %v5476, 6
    %v5739 = vrot.slane %v5477, 6
    %v5740 = vrot.slane %v5478, 6
    %v5741 = vrot.slane %v5479, 6
    %v5742 = vrot.slane %v5480, 6
    %v5743 = vrot.slane %v5481, 6
    %v5744 = vrot.slane %v5482, 6
    %v5745 = vrot.slane %v5483, 6
    %v5746 = vrot.slane %v5484, 6
    %v5747 = vrot.slane %v5485, 6
    %v5748 = vrot.slane %v5486, 6
    %v5749 = vrot.slane %v5487, 6
    %v5750 = vrot.slane %v5488, 6
    %v5751 = vrot.slane %v5489, 6
    %v5752 = vrot.slane %v5490, 6
    %v5753 = vrot.slane %v5491, 6
    %v5754 = vrot.slane %v5492, 6
    %v5755 = vrot.slane %v5493, 6
    %v5756 = vrot.slane %v5494, 6
    %v5757 = vrot.slane %v5495, 6
    %v5758 = vrot.slane %v5496, 6
    %v5759 = vrot.slane %v5497, 6
    %v5760 = vrot.slane %v5498, 6
    %v5761 = vrot.slane %v5499, 6
    %v5762 = vrot.slane %v5500, 6
    %v5763 = vrot.slane %v5501, 6
    %v5764 = vrot.slane %v5502, 6
    %v5765 = vrot.slane %v5503, 6
    %v5766 = vrot.slane %v5504, 6
    %v5767 = vrot.slane %v5505, 6
    %v5768 = vrot.slane %v5506, 6
    %v5769 = vrot.slane %v5507, 6
    %v5770 = vrot.slane %v5508, 6
    %v5771 = vrot.slane %v5509, 6
    %v5772 = vrot.slane %v5510, 6
    %v5773 = vrot.slane %v5511, 6
    %v5774 = vrot.slane %v5512, 6
    %v5775 = vrot.slane %v5513, 6
    %v5776 = vrot.slane %v5514, 6
    %v5777 = vrot.slane %v5515, 6
    %v5778 = vrot.slane %v5516, 6
    %v5779 = vrot.slane %v5517, 6
    %v5780 = vrot.slane %v5518, 6
    %v5781 = vrot.slane %v5519, 6
    %v5782 = vrot.slane %v5520, 6
    %v5783 = vrot.slane %v5521, 6
    %v5784 = vrot.slane %v5522, 6
    %v5785 = vrot.slane %v5523, 6
    %v5786 = vrot.slane %v5524, 6
    %v5787 = vrot.slane %v5525, 6
    %v5788 = vrot.slane %v5526, 6
    %v5789 = vrot.slane %v5527, 6
    %v5790 = vrot.slane %v5528, 6
    %v5791 = vrot.slane %v5529, 6
    %v5792 = vrot.slane %v5530, 6
    %v5793 = vrot.slane %v5531, 6
    %v5794 = vrot.slane %v5532, 6
    %v5795 = vrot.slane %v5533, 6
    %v5796 = vrot.slane %v5534, 6
    %v5797 = vrot.slane %v5535, 6
    %v5798 = vrot.slane %v5536, 6
    %v5799 = vrot.slane %v5537, 6
    %v5800 = vrot.slane %v5538, 6
    %v5801 = vrot.slane %v5539, 6
    %v5802 = vrot.slane %v5540, 6
    %v5803 = vrot.slane %v5541, 6
    %v5804 = vrot.slane %v5542, 6
    %v5805 = vrot.slane %v5543, 6
    %v5806 = vrot.slane %v5544, 6
    %v5807 = vsel %vm1311, %v5805, %v5806
    %v5808 = vsel %vm1311, %v5804, %v5805
    %v5809 = vsel %vm1311, %v5803, %v5804
    %v5810 = vsel %vm1311, %v5802, %v5803
    %v5811 = vsel %vm1311, %v5801, %v5802
    %v5812 = vsel %vm1311, %v5800, %v5801
    %v5813 = vsel %vm1311, %v5799, %v5800
    %v5814 = vsel %vm1311, %v5798, %v5799
    %v5815 = vsel %vm1311, %v5797, %v5798
    %v5816 = vsel %vm1311, %v5796, %v5797
    %v5817 = vsel %vm1311, %v5795, %v5796
    %v5818 = vsel %vm1311, %v5794, %v5795
    %v5819 = vsel %vm1311, %v5793, %v5794
    %v5820 = vsel %vm1311, %v5792, %v5793
    %v5821 = vsel %vm1311, %v5791, %v5792
    %v5822 = vsel %vm1311, %v5790, %v5791
    %v5823 = vsel %vm1311, %v5789, %v5790
    %v5824 = vsel %vm1311, %v5788, %v5789
    %v5825 = vsel %vm1311, %v5787, %v5788
    %v5826 = vsel %vm1311, %v5786, %v5787
    %v5827 = vsel %vm1311, %v5785, %v5786
    %v5828 = vsel %vm1311, %v5784, %v5785
    %v5829 = vsel %vm1311, %v5783, %v5784
    %v5830 = vsel %vm1311, %v5782, %v5783
    %v5831 = vsel %vm1311, %v5781, %v5782
    %v5832 = vsel %vm1311, %v5780, %v5781
    %v5833 = vsel %vm1311, %v5779, %v5780
    %v5834 = vsel %vm1311, %v5778, %v5779
    %v5835 = vsel %vm1311, %v5777, %v5778
    %v5836 = vsel %vm1311, %v5776, %v5777
    %v5837 = vsel %vm1311, %v5775, %v5776
    %v5838 = vsel %vm1311, %v5774, %v5775
    %v5839 = vsel %vm1311, %v5773, %v5774
    %v5840 = vsel %vm1311, %v5772, %v5773
    %v5841 = vsel %vm1311, %v5771, %v5772
    %v5842 = vsel %vm1311, %v5770, %v5771
    %v5843 = vsel %vm1311, %v5769, %v5770
    %v5844 = vsel %vm1311, %v5768, %v5769
    %v5845 = vsel %vm1311, %v5767, %v5768
    %v5846 = vsel %vm1311, %v5766, %v5767
    %v5847 = vsel %vm1311, %v5765, %v5766
    %v5848 = vsel %vm1311, %v5764, %v5765
    %v5849 = vsel %vm1311, %v5763, %v5764
    %v5850 = vsel %vm1311, %v5762, %v5763
    %v5851 = vsel %vm1311, %v5761, %v5762
    %v5852 = vsel %vm1311, %v5760, %v5761
    %v5853 = vsel %vm1311, %v5759, %v5760
    %v5854 = vsel %vm1311, %v5758, %v5759
    %v5855 = vsel %vm1311, %v5757, %v5758
    %v5856 = vsel %vm1311, %v5756, %v5757
    %v5857 = vsel %vm1311, %v5755, %v5756
    %v5858 = vsel %vm1311, %v5754, %v5755
    %v5859 = vsel %vm1311, %v5753, %v5754
    %v5860 = vsel %vm1311, %v5752, %v5753
    %v5861 = vsel %vm1311, %v5751, %v5752
    %v5862 = vsel %vm1311, %v5750, %v5751
    %v5863 = vsel %vm1311, %v5749, %v5750
    %v5864 = vsel %vm1311, %v5748, %v5749
    %v5865 = vsel %vm1311, %v5747, %v5748
    %v5866 = vsel %vm1311, %v5746, %v5747
    %v5867 = vsel %vm1311, %v5745, %v5746
    %v5868 = vsel %vm1311, %v5744, %v5745
    %v5869 = vsel %vm1311, %v5743, %v5744
    %v5870 = vsel %vm1311, %v5742, %v5743
    %v5871 = vsel %vm1311, %v5741, %v5742
    %v5872 = vsel %vm1311, %v5740, %v5741
    %v5873 = vsel %vm1311, %v5739, %v5740
    %v5874 = vsel %vm1311, %v5738, %v5739
    %v5875 = vsel %vm1311, %v5737, %v5738
    %v5876 = vsel %vm1311, %v5736, %v5737
    %v5877 = vsel %vm1311, %v5735, %v5736
    %v5878 = vsel %vm1311, %v5734, %v5735
    %v5879 = vsel %vm1311, %v5733, %v5734
    %v5880 = vsel %vm1311, %v5732, %v5733
    %v5881 = vsel %vm1311, %v5731, %v5732
    %v5882 = vsel %vm1311, %v5730, %v5731
    %v5883 = vsel %vm1311, %v5729, %v5730
    %v5884 = vsel %vm1311, %v5728, %v5729
    %v5885 = vsel %vm1311, %v5727, %v5728
    %v5886 = vsel %vm1311, %v5726, %v5727
    %v5887 = vsel %vm1311, %v5725, %v5726
    %v5888 = vsel %vm1311, %v5806, %v5725
    %s5889 = scalar_lea.vmem %s6, 128
    %v5890 = vld [vmem:[%s5889] sm:$0xff]
    %v5891 = vld [vmem:[%s5889 + $0x8] sm:$0xff]
    %v5892 = vld [vmem:[%s5889 + $0x10] sm:$0xff]
    %v5893 = vld [vmem:[%s5889 + $0x18] sm:$0xff]
    %v5894 = vld [vmem:[%s5889 + $0x20] sm:$0xff]
    %v5895 = vld [vmem:[%s5889 + $0x28] sm:$0xff]
    %v5896 = vld [vmem:[%s5889 + $0x30] sm:$0xff]
    %v5897 = vld [vmem:[%s5889 + $0x38] sm:$0xff]
    %v5898 = vld [vmem:[%s5889 + $0x40] sm:$0xff]
    %v5899 = vld [vmem:[%s5889 + $0x48] sm:$0xff]
    %v5900 = vld [vmem:[%s5889 + $0x50] sm:$0xff]
    %v5901 = vld [vmem:[%s5889 + $0x58] sm:$0xff]
    %v5902 = vld [vmem:[%s5889 + $0x60] sm:$0xff]
    %v5903 = vld [vmem:[%s5889 + $0x68] sm:$0xff]
    %v5904 = vld [vmem:[%s5889 + $0x70] sm:$0xff]
    %v5905 = vld [vmem:[%s5889 + $0x78] sm:$0xff]
    %5906 = vmatpush.msra.mxu0 %v5905
    %5907 = vmatpush.msra.mxu0 %v5904
    %5908 = vmatpush.msra.mxu0 %v5903
    %5909 = vmatpush.msra.mxu0 %v5902
    %5910 = vmatpush.msra.mxu0 %v5901
    %5911 = vmatpush.msra.mxu0 %v5900
    %5912 = vmatpush.msra.mxu0 %v5899
    %5913 = vmatpush.msra.mxu0 %v5898
    %5914 = vmatpush.msra.mxu0 %v5897
    %5915 = vmatpush.msra.mxu0 %v5896
    %5916 = vmatpush.msra.mxu0 %v5895
    %5917 = vmatpush.msra.mxu0 %v5894
    %5918 = vmatpush.msra.mxu0 %v5893
    %5919 = vmatpush.msra.mxu0 %v5892
    %5920 = vmatpush.msra.mxu0 %v5891
    %5921 = vmatpush.msra.mxu0 %v5890
    %5922 = vmatmul.f32.gmra.mxu0 %v5808
    %v5923 = vpop.f32.mrf.mxu0
    %v5924 = vadd.f32 0.0, %v5923
    %5925 = vmatmul.f32.gmra.mxu0 %v5807
    %v5926 = vpop.f32.mrf.mxu0
    %v5927 = vadd.f32 0.0, %v5926
    %5928 = vmatmul.f32.gmra.mxu0 %v5888
    %v5929 = vpop.f32.mrf.mxu0
    %v5930 = vadd.f32 0.0, %v5929
    %5931 = vmatmul.f32.gmra.mxu0 %v5887
    %v5932 = vpop.f32.mrf.mxu0
    %v5933 = vadd.f32 0.0, %v5932
    %5934 = vmatmul.f32.gmra.mxu0 %v5886
    %v5935 = vpop.f32.mrf.mxu0
    %v5936 = vadd.f32 0.0, %v5935
    %5937 = vmatmul.f32.gmra.mxu0 %v5885
    %v5938 = vpop.f32.mrf.mxu0
    %v5939 = vadd.f32 0.0, %v5938
    %5940 = vmatmul.f32.gmra.mxu0 %v5884
    %v5941 = vpop.f32.mrf.mxu0
    %v5942 = vadd.f32 0.0, %v5941
    %5943 = vmatmul.f32.gmra.mxu0 %v5883
    %v5944 = vpop.f32.mrf.mxu0
    %v5945 = vadd.f32 0.0, %v5944
    %5946 = vmatmul.f32.gmra.mxu0 %v5882
    %v5947 = vpop.f32.mrf.mxu0
    %v5948 = vadd.f32 0.0, %v5947
    %5949 = vmatmul.f32.gmra.mxu0 %v5881
    %v5950 = vpop.f32.mrf.mxu0
    %v5951 = vadd.f32 0.0, %v5950
    %5952 = vmatmul.f32.gmra.mxu0 %v5880
    %v5953 = vpop.f32.mrf.mxu0
    %v5954 = vadd.f32 0.0, %v5953
    %5955 = vmatmul.f32.gmra.mxu0 %v5879
    %v5956 = vpop.f32.mrf.mxu0
    %v5957 = vadd.f32 0.0, %v5956
    %5958 = vmatmul.f32.gmra.mxu0 %v5878
    %v5959 = vpop.f32.mrf.mxu0
    %v5960 = vadd.f32 0.0, %v5959
    %5961 = vmatmul.f32.gmra.mxu0 %v5877
    %v5962 = vpop.f32.mrf.mxu0
    %v5963 = vadd.f32 0.0, %v5962
    %5964 = vmatmul.f32.gmra.mxu0 %v5876
    %v5965 = vpop.f32.mrf.mxu0
    %v5966 = vadd.f32 0.0, %v5965
    %5967 = vmatmul.f32.gmra.mxu0 %v5875
    %v5968 = vpop.f32.mrf.mxu0
    %v5969 = vadd.f32 0.0, %v5968
    %5970 = vmatmul.f32.gmra.mxu0 %v5874
    %v5971 = vpop.f32.mrf.mxu0
    %v5972 = vadd.f32 0.0, %v5971
    %5973 = vmatmul.f32.gmra.mxu0 %v5873
    %v5974 = vpop.f32.mrf.mxu0
    %v5975 = vadd.f32 0.0, %v5974
    %5976 = vmatmul.f32.gmra.mxu0 %v5872
    %v5977 = vpop.f32.mrf.mxu0
    %v5978 = vadd.f32 0.0, %v5977
    %5979 = vmatmul.f32.gmra.mxu0 %v5871
    %v5980 = vpop.f32.mrf.mxu0
    %v5981 = vadd.f32 0.0, %v5980
    %5982 = vmatmul.f32.gmra.mxu0 %v5870
    %v5983 = vpop.f32.mrf.mxu0
    %v5984 = vadd.f32 0.0, %v5983
    %5985 = vmatmul.f32.gmra.mxu0 %v5869
    %v5986 = vpop.f32.mrf.mxu0
    %v5987 = vadd.f32 0.0, %v5986
    %5988 = vmatmul.f32.gmra.mxu0 %v5868
    %v5989 = vpop.f32.mrf.mxu0
    %v5990 = vadd.f32 0.0, %v5989
    %5991 = vmatmul.f32.gmra.mxu0 %v5867
    %v5992 = vpop.f32.mrf.mxu0
    %v5993 = vadd.f32 0.0, %v5992
    %5994 = vmatmul.f32.gmra.mxu0 %v5866
    %v5995 = vpop.f32.mrf.mxu0
    %v5996 = vadd.f32 0.0, %v5995
    %5997 = vmatmul.f32.gmra.mxu0 %v5865
    %v5998 = vpop.f32.mrf.mxu0
    %v5999 = vadd.f32 0.0, %v5998
    %6000 = vmatmul.f32.gmra.mxu0 %v5864
    %v6001 = vpop.f32.mrf.mxu0
    %v6002 = vadd.f32 0.0, %v6001
    %6003 = vmatmul.f32.gmra.mxu0 %v5863
    %v6004 = vpop.f32.mrf.mxu0
    %v6005 = vadd.f32 0.0, %v6004
    %6006 = vmatmul.f32.gmra.mxu0 %v5862
    %v6007 = vpop.f32.mrf.mxu0
    %v6008 = vadd.f32 0.0, %v6007
    %6009 = vmatmul.f32.gmra.mxu0 %v5861
    %v6010 = vpop.f32.mrf.mxu0
    %v6011 = vadd.f32 0.0, %v6010
    %6012 = vmatmul.f32.gmra.mxu0 %v5860
    %v6013 = vpop.f32.mrf.mxu0
    %v6014 = vadd.f32 0.0, %v6013
    %6015 = vmatmul.f32.gmra.mxu0 %v5859
    %v6016 = vpop.f32.mrf.mxu0
    %v6017 = vadd.f32 0.0, %v6016
    %6018 = vmatmul.f32.gmra.mxu0 %v5858
    %v6019 = vpop.f32.mrf.mxu0
    %v6020 = vadd.f32 0.0, %v6019
    %6021 = vmatmul.f32.gmra.mxu0 %v5857
    %v6022 = vpop.f32.mrf.mxu0
    %v6023 = vadd.f32 0.0, %v6022
    %6024 = vmatmul.f32.gmra.mxu0 %v5856
    %v6025 = vpop.f32.mrf.mxu0
    %v6026 = vadd.f32 0.0, %v6025
    %6027 = vmatmul.f32.gmra.mxu0 %v5855
    %v6028 = vpop.f32.mrf.mxu0
    %v6029 = vadd.f32 0.0, %v6028
    %6030 = vmatmul.f32.gmra.mxu0 %v5854
    %v6031 = vpop.f32.mrf.mxu0
    %v6032 = vadd.f32 0.0, %v6031
    %6033 = vmatmul.f32.gmra.mxu0 %v5853
    %v6034 = vpop.f32.mrf.mxu0
    %v6035 = vadd.f32 0.0, %v6034
    %6036 = vmatmul.f32.gmra.mxu0 %v5852
    %v6037 = vpop.f32.mrf.mxu0
    %v6038 = vadd.f32 0.0, %v6037
    %6039 = vmatmul.f32.gmra.mxu0 %v5851
    %v6040 = vpop.f32.mrf.mxu0
    %v6041 = vadd.f32 0.0, %v6040
    %6042 = vmatmul.f32.gmra.mxu0 %v5850
    %v6043 = vpop.f32.mrf.mxu0
    %v6044 = vadd.f32 0.0, %v6043
    %6045 = vmatmul.f32.gmra.mxu0 %v5849
    %v6046 = vpop.f32.mrf.mxu0
    %v6047 = vadd.f32 0.0, %v6046
    %6048 = vmatmul.f32.gmra.mxu0 %v5848
    %v6049 = vpop.f32.mrf.mxu0
    %v6050 = vadd.f32 0.0, %v6049
    %6051 = vmatmul.f32.gmra.mxu0 %v5847
    %v6052 = vpop.f32.mrf.mxu0
    %v6053 = vadd.f32 0.0, %v6052
    %6054 = vmatmul.f32.gmra.mxu0 %v5846
    %v6055 = vpop.f32.mrf.mxu0
    %v6056 = vadd.f32 0.0, %v6055
    %6057 = vmatmul.f32.gmra.mxu0 %v5845
    %v6058 = vpop.f32.mrf.mxu0
    %v6059 = vadd.f32 0.0, %v6058
    %6060 = vmatmul.f32.gmra.mxu0 %v5844
    %v6061 = vpop.f32.mrf.mxu0
    %v6062 = vadd.f32 0.0, %v6061
    %6063 = vmatmul.f32.gmra.mxu0 %v5843
    %v6064 = vpop.f32.mrf.mxu0
    %v6065 = vadd.f32 0.0, %v6064
    %6066 = vmatmul.f32.gmra.mxu0 %v5842
    %v6067 = vpop.f32.mrf.mxu0
    %v6068 = vadd.f32 0.0, %v6067
    %6069 = vmatmul.f32.gmra.mxu0 %v5841
    %v6070 = vpop.f32.mrf.mxu0
    %v6071 = vadd.f32 0.0, %v6070
    %6072 = vmatmul.f32.gmra.mxu0 %v5840
    %v6073 = vpop.f32.mrf.mxu0
    %v6074 = vadd.f32 0.0, %v6073
    %6075 = vmatmul.f32.gmra.mxu0 %v5839
    %v6076 = vpop.f32.mrf.mxu0
    %v6077 = vadd.f32 0.0, %v6076
    %6078 = vmatmul.f32.gmra.mxu0 %v5838
    %v6079 = vpop.f32.mrf.mxu0
    %v6080 = vadd.f32 0.0, %v6079
    %6081 = vmatmul.f32.gmra.mxu0 %v5837
    %v6082 = vpop.f32.mrf.mxu0
    %v6083 = vadd.f32 0.0, %v6082
    %6084 = vmatmul.f32.gmra.mxu0 %v5836
    %v6085 = vpop.f32.mrf.mxu0
    %v6086 = vadd.f32 0.0, %v6085
    %6087 = vmatmul.f32.gmra.mxu0 %v5835
    %v6088 = vpop.f32.mrf.mxu0
    %v6089 = vadd.f32 0.0, %v6088
    %6090 = vmatmul.f32.gmra.mxu0 %v5834
    %v6091 = vpop.f32.mrf.mxu0
    %v6092 = vadd.f32 0.0, %v6091
    %6093 = vmatmul.f32.gmra.mxu0 %v5833
    %v6094 = vpop.f32.mrf.mxu0
    %v6095 = vadd.f32 0.0, %v6094
    %6096 = vmatmul.f32.gmra.mxu0 %v5832
    %v6097 = vpop.f32.mrf.mxu0
    %v6098 = vadd.f32 0.0, %v6097
    %6099 = vmatmul.f32.gmra.mxu0 %v5831
    %v6100 = vpop.f32.mrf.mxu0
    %v6101 = vadd.f32 0.0, %v6100
    %6102 = vmatmul.f32.gmra.mxu0 %v5830
    %v6103 = vpop.f32.mrf.mxu0
    %v6104 = vadd.f32 0.0, %v6103
    %6105 = vmatmul.f32.gmra.mxu0 %v5829
    %v6106 = vpop.f32.mrf.mxu0
    %v6107 = vadd.f32 0.0, %v6106
    %6108 = vmatmul.f32.gmra.mxu0 %v5828
    %v6109 = vpop.f32.mrf.mxu0
    %v6110 = vadd.f32 0.0, %v6109
    %6111 = vmatmul.f32.gmra.mxu0 %v5827
    %v6112 = vpop.f32.mrf.mxu0
    %v6113 = vadd.f32 0.0, %v6112
    %6114 = vmatmul.f32.gmra.mxu0 %v5826
    %v6115 = vpop.f32.mrf.mxu0
    %v6116 = vadd.f32 0.0, %v6115
    %6117 = vmatmul.f32.gmra.mxu0 %v5825
    %v6118 = vpop.f32.mrf.mxu0
    %v6119 = vadd.f32 0.0, %v6118
    %6120 = vmatmul.f32.gmra.mxu0 %v5824
    %v6121 = vpop.f32.mrf.mxu0
    %v6122 = vadd.f32 0.0, %v6121
    %6123 = vmatmul.f32.gmra.mxu0 %v5823
    %v6124 = vpop.f32.mrf.mxu0
    %v6125 = vadd.f32 0.0, %v6124
    %6126 = vmatmul.f32.gmra.mxu0 %v5822
    %v6127 = vpop.f32.mrf.mxu0
    %v6128 = vadd.f32 0.0, %v6127
    %6129 = vmatmul.f32.gmra.mxu0 %v5821
    %v6130 = vpop.f32.mrf.mxu0
    %v6131 = vadd.f32 0.0, %v6130
    %6132 = vmatmul.f32.gmra.mxu0 %v5820
    %v6133 = vpop.f32.mrf.mxu0
    %v6134 = vadd.f32 0.0, %v6133
    %6135 = vmatmul.f32.gmra.mxu0 %v5819
    %v6136 = vpop.f32.mrf.mxu0
    %v6137 = vadd.f32 0.0, %v6136
    %6138 = vmatmul.f32.gmra.mxu0 %v5818
    %v6139 = vpop.f32.mrf.mxu0
    %v6140 = vadd.f32 0.0, %v6139
    %6141 = vmatmul.f32.gmra.mxu0 %v5817
    %v6142 = vpop.f32.mrf.mxu0
    %v6143 = vadd.f32 0.0, %v6142
    %6144 = vmatmul.f32.gmra.mxu0 %v5816
    %v6145 = vpop.f32.mrf.mxu0
    %v6146 = vadd.f32 0.0, %v6145
    %6147 = vmatmul.f32.gmra.mxu0 %v5815
    %v6148 = vpop.f32.mrf.mxu0
    %v6149 = vadd.f32 0.0, %v6148
    %6150 = vmatmul.f32.gmra.mxu0 %v5814
    %v6151 = vpop.f32.mrf.mxu0
    %v6152 = vadd.f32 0.0, %v6151
    %6153 = vmatmul.f32.gmra.mxu0 %v5813
    %v6154 = vpop.f32.mrf.mxu0
    %v6155 = vadd.f32 0.0, %v6154
    %6156 = vmatmul.f32.gmra.mxu0 %v5812
    %v6157 = vpop.f32.mrf.mxu0
    %v6158 = vadd.f32 0.0, %v6157
    %6159 = vmatmul.f32.gmra.mxu0 %v5811
    %v6160 = vpop.f32.mrf.mxu0
    %v6161 = vadd.f32 0.0, %v6160
    %6162 = vmatmul.f32.gmra.mxu0 %v5810
    %v6163 = vpop.f32.mrf.mxu0
    %v6164 = vadd.f32 0.0, %v6163
    %6165 = vmatmul.f32.gmra.mxu0 %v5809
    %v6166 = vpop.f32.mrf.mxu0
    %v6167 = vadd.f32 0.0, %v6166
    %6168 = vdwg.mxu0
    %6169 = vmatpush.msra.mxu0 %v5724
    %6170 = vmatpush.msra.mxu0 %v5723
    %6171 = vmatpush.msra.mxu0 %v5722
    %6172 = vmatpush.msra.mxu0 %v5721
    %6173 = vmatpush.msra.mxu0 %v5720
    %6174 = vmatpush.msra.mxu0 %v5719
    %6175 = vmatpush.msra.mxu0 %v5718
    %6176 = vmatpush.msra.mxu0 %v5717
    %6177 = vmatpush.msra.mxu0 %v5716
    %6178 = vmatpush.msra.mxu0 %v5715
    %6179 = vmatpush.msra.mxu0 %v5714
    %6180 = vmatpush.msra.mxu0 %v5713
    %6181 = vmatpush.msra.mxu0 %v5712
    %6182 = vmatpush.msra.mxu0 %v5711
    %6183 = vmatpush.msra.mxu0 %v5710
    %6184 = vmatpush.msra.mxu0 %v5709
    %6185 = vmatmul.f32.gmra.mxu0 %v5628
    %v6186 = vpop.f32.mrf.mxu0
    %v6187 = vadd.f32 %v5924, %v6186
    %6188 = vmatmul.f32.gmra.mxu0 %v5627
    %v6189 = vpop.f32.mrf.mxu0
    %v6190 = vadd.f32 %v5927, %v6189
    %6191 = vmatmul.f32.gmra.mxu0 %v5708
    %v6192 = vpop.f32.mrf.mxu0
    %v6193 = vadd.f32 %v5930, %v6192
    %6194 = vmatmul.f32.gmra.mxu0 %v5707
    %v6195 = vpop.f32.mrf.mxu0
    %v6196 = vadd.f32 %v5933, %v6195
    %6197 = vmatmul.f32.gmra.mxu0 %v5706
    %v6198 = vpop.f32.mrf.mxu0
    %v6199 = vadd.f32 %v5936, %v6198
    %6200 = vmatmul.f32.gmra.mxu0 %v5705
    %v6201 = vpop.f32.mrf.mxu0
    %v6202 = vadd.f32 %v5939, %v6201
    %6203 = vmatmul.f32.gmra.mxu0 %v5704
    %v6204 = vpop.f32.mrf.mxu0
    %v6205 = vadd.f32 %v5942, %v6204
    %6206 = vmatmul.f32.gmra.mxu0 %v5703
    %v6207 = vpop.f32.mrf.mxu0
    %v6208 = vadd.f32 %v5945, %v6207
    %6209 = vmatmul.f32.gmra.mxu0 %v5702
    %v6210 = vpop.f32.mrf.mxu0
    %v6211 = vadd.f32 %v5948, %v6210
    %6212 = vmatmul.f32.gmra.mxu0 %v5701
    %v6213 = vpop.f32.mrf.mxu0
    %v6214 = vadd.f32 %v5951, %v6213
    %6215 = vmatmul.f32.gmra.mxu0 %v5700
    %v6216 = vpop.f32.mrf.mxu0
    %v6217 = vadd.f32 %v5954, %v6216
    %6218 = vmatmul.f32.gmra.mxu0 %v5699
    %v6219 = vpop.f32.mrf.mxu0
    %v6220 = vadd.f32 %v5957, %v6219
    %6221 = vmatmul.f32.gmra.mxu0 %v5698
    %v6222 = vpop.f32.mrf.mxu0
    %v6223 = vadd.f32 %v5960, %v6222
    %6224 = vmatmul.f32.gmra.mxu0 %v5697
    %v6225 = vpop.f32.mrf.mxu0
    %v6226 = vadd.f32 %v5963, %v6225
    %6227 = vmatmul.f32.gmra.mxu0 %v5696
    %v6228 = vpop.f32.mrf.mxu0
    %v6229 = vadd.f32 %v5966, %v6228
    %6230 = vmatmul.f32.gmra.mxu0 %v5695
    %v6231 = vpop.f32.mrf.mxu0
    %v6232 = vadd.f32 %v5969, %v6231
    %6233 = vmatmul.f32.gmra.mxu0 %v5694
    %v6234 = vpop.f32.mrf.mxu0
    %v6235 = vadd.f32 %v5972, %v6234
    %6236 = vmatmul.f32.gmra.mxu0 %v5693
    %v6237 = vpop.f32.mrf.mxu0
    %v6238 = vadd.f32 %v5975, %v6237
    %6239 = vmatmul.f32.gmra.mxu0 %v5692
    %v6240 = vpop.f32.mrf.mxu0
    %v6241 = vadd.f32 %v5978, %v6240
    %6242 = vmatmul.f32.gmra.mxu0 %v5691
    %v6243 = vpop.f32.mrf.mxu0
    %v6244 = vadd.f32 %v5981, %v6243
    %6245 = vmatmul.f32.gmra.mxu0 %v5690
    %v6246 = vpop.f32.mrf.mxu0
    %v6247 = vadd.f32 %v5984, %v6246
    %6248 = vmatmul.f32.gmra.mxu0 %v5689
    %v6249 = vpop.f32.mrf.mxu0
    %v6250 = vadd.f32 %v5987, %v6249
    %6251 = vmatmul.f32.gmra.mxu0 %v5688
    %v6252 = vpop.f32.mrf.mxu0
    %v6253 = vadd.f32 %v5990, %v6252
    %6254 = vmatmul.f32.gmra.mxu0 %v5687
    %v6255 = vpop.f32.mrf.mxu0
    %v6256 = vadd.f32 %v5993, %v6255
    %6257 = vmatmul.f32.gmra.mxu0 %v5686
    %v6258 = vpop.f32.mrf.mxu0
    %v6259 = vadd.f32 %v5996, %v6258
    %6260 = vmatmul.f32.gmra.mxu0 %v5685
    %v6261 = vpop.f32.mrf.mxu0
    %v6262 = vadd.f32 %v5999, %v6261
    %6263 = vmatmul.f32.gmra.mxu0 %v5684
    %v6264 = vpop.f32.mrf.mxu0
    %v6265 = vadd.f32 %v6002, %v6264
    %6266 = vmatmul.f32.gmra.mxu0 %v5683
    %v6267 = vpop.f32.mrf.mxu0
    %v6268 = vadd.f32 %v6005, %v6267
    %6269 = vmatmul.f32.gmra.mxu0 %v5682
    %v6270 = vpop.f32.mrf.mxu0
    %v6271 = vadd.f32 %v6008, %v6270
    %6272 = vmatmul.f32.gmra.mxu0 %v5681
    %v6273 = vpop.f32.mrf.mxu0
    %v6274 = vadd.f32 %v6011, %v6273
    %6275 = vmatmul.f32.gmra.mxu0 %v5680
    %v6276 = vpop.f32.mrf.mxu0
    %v6277 = vadd.f32 %v6014, %v6276
    %6278 = vmatmul.f32.gmra.mxu0 %v5679
    %v6279 = vpop.f32.mrf.mxu0
    %v6280 = vadd.f32 %v6017, %v6279
    %6281 = vmatmul.f32.gmra.mxu0 %v5678
    %v6282 = vpop.f32.mrf.mxu0
    %v6283 = vadd.f32 %v6020, %v6282
    %6284 = vmatmul.f32.gmra.mxu0 %v5677
    %v6285 = vpop.f32.mrf.mxu0
    %v6286 = vadd.f32 %v6023, %v6285
    %6287 = vmatmul.f32.gmra.mxu0 %v5676
    %v6288 = vpop.f32.mrf.mxu0
    %v6289 = vadd.f32 %v6026, %v6288
    %6290 = vmatmul.f32.gmra.mxu0 %v5675
    %v6291 = vpop.f32.mrf.mxu0
    %v6292 = vadd.f32 %v6029, %v6291
    %6293 = vmatmul.f32.gmra.mxu0 %v5674
    %v6294 = vpop.f32.mrf.mxu0
    %v6295 = vadd.f32 %v6032, %v6294
    %6296 = vmatmul.f32.gmra.mxu0 %v5673
    %v6297 = vpop.f32.mrf.mxu0
    %v6298 = vadd.f32 %v6035, %v6297
    %6299 = vmatmul.f32.gmra.mxu0 %v5672
    %v6300 = vpop.f32.mrf.mxu0
    %v6301 = vadd.f32 %v6038, %v6300
    %6302 = vmatmul.f32.gmra.mxu0 %v5671
    %v6303 = vpop.f32.mrf.mxu0
    %v6304 = vadd.f32 %v6041, %v6303
    %6305 = vmatmul.f32.gmra.mxu0 %v5670
    %v6306 = vpop.f32.mrf.mxu0
    %v6307 = vadd.f32 %v6044, %v6306
    %6308 = vmatmul.f32.gmra.mxu0 %v5669
    %v6309 = vpop.f32.mrf.mxu0
    %v6310 = vadd.f32 %v6047, %v6309
    %6311 = vmatmul.f32.gmra.mxu0 %v5668
    %v6312 = vpop.f32.mrf.mxu0
    %v6313 = vadd.f32 %v6050, %v6312
    %6314 = vmatmul.f32.gmra.mxu0 %v5667
    %v6315 = vpop.f32.mrf.mxu0
    %v6316 = vadd.f32 %v6053, %v6315
    %6317 = vmatmul.f32.gmra.mxu0 %v5666
    %v6318 = vpop.f32.mrf.mxu0
    %v6319 = vadd.f32 %v6056, %v6318
    %6320 = vmatmul.f32.gmra.mxu0 %v5665
    %v6321 = vpop.f32.mrf.mxu0
    %v6322 = vadd.f32 %v6059, %v6321
    %6323 = vmatmul.f32.gmra.mxu0 %v5664
    %v6324 = vpop.f32.mrf.mxu0
    %v6325 = vadd.f32 %v6062, %v6324
    %6326 = vmatmul.f32.gmra.mxu0 %v5663
    %v6327 = vpop.f32.mrf.mxu0
    %v6328 = vadd.f32 %v6065, %v6327
    %6329 = vmatmul.f32.gmra.mxu0 %v5662
    %v6330 = vpop.f32.mrf.mxu0
    %v6331 = vadd.f32 %v6068, %v6330
    %6332 = vmatmul.f32.gmra.mxu0 %v5661
    %v6333 = vpop.f32.mrf.mxu0
    %v6334 = vadd.f32 %v6071, %v6333
    %6335 = vmatmul.f32.gmra.mxu0 %v5660
    %v6336 = vpop.f32.mrf.mxu0
    %v6337 = vadd.f32 %v6074, %v6336
    %6338 = vmatmul.f32.gmra.mxu0 %v5659
    %v6339 = vpop.f32.mrf.mxu0
    %v6340 = vadd.f32 %v6077, %v6339
    %6341 = vmatmul.f32.gmra.mxu0 %v5658
    %v6342 = vpop.f32.mrf.mxu0
    %v6343 = vadd.f32 %v6080, %v6342
    %6344 = vmatmul.f32.gmra.mxu0 %v5657
    %v6345 = vpop.f32.mrf.mxu0
    %v6346 = vadd.f32 %v6083, %v6345
    %6347 = vmatmul.f32.gmra.mxu0 %v5656
    %v6348 = vpop.f32.mrf.mxu0
    %v6349 = vadd.f32 %v6086, %v6348
    %6350 = vmatmul.f32.gmra.mxu0 %v5655
    %v6351 = vpop.f32.mrf.mxu0
    %v6352 = vadd.f32 %v6089, %v6351
    %6353 = vmatmul.f32.gmra.mxu0 %v5654
    %v6354 = vpop.f32.mrf.mxu0
    %v6355 = vadd.f32 %v6092, %v6354
    %6356 = vmatmul.f32.gmra.mxu0 %v5653
    %v6357 = vpop.f32.mrf.mxu0
    %v6358 = vadd.f32 %v6095, %v6357
    %6359 = vmatmul.f32.gmra.mxu0 %v5652
    %v6360 = vpop.f32.mrf.mxu0
    %v6361 = vadd.f32 %v6098, %v6360
    %6362 = vmatmul.f32.gmra.mxu0 %v5651
    %v6363 = vpop.f32.mrf.mxu0
    %v6364 = vadd.f32 %v6101, %v6363
    %6365 = vmatmul.f32.gmra.mxu0 %v5650
    %v6366 = vpop.f32.mrf.mxu0
    %v6367 = vadd.f32 %v6104, %v6366
    %6368 = vmatmul.f32.gmra.mxu0 %v5649
    %v6369 = vpop.f32.mrf.mxu0
    %v6370 = vadd.f32 %v6107, %v6369
    %6371 = vmatmul.f32.gmra.mxu0 %v5648
    %v6372 = vpop.f32.mrf.mxu0
    %v6373 = vadd.f32 %v6110, %v6372
    %6374 = vmatmul.f32.gmra.mxu0 %v5647
    %v6375 = vpop.f32.mrf.mxu0
    %v6376 = vadd.f32 %v6113, %v6375
    %6377 = vmatmul.f32.gmra.mxu0 %v5646
    %v6378 = vpop.f32.mrf.mxu0
    %v6379 = vadd.f32 %v6116, %v6378
    %6380 = vmatmul.f32.gmra.mxu0 %v5645
    %v6381 = vpop.f32.mrf.mxu0
    %v6382 = vadd.f32 %v6119, %v6381
    %6383 = vmatmul.f32.gmra.mxu0 %v5644
    %v6384 = vpop.f32.mrf.mxu0
    %v6385 = vadd.f32 %v6122, %v6384
    %6386 = vmatmul.f32.gmra.mxu0 %v5643
    %v6387 = vpop.f32.mrf.mxu0
    %v6388 = vadd.f32 %v6125, %v6387
    %6389 = vmatmul.f32.gmra.mxu0 %v5642
    %v6390 = vpop.f32.mrf.mxu0
    %v6391 = vadd.f32 %v6128, %v6390
    %6392 = vmatmul.f32.gmra.mxu0 %v5641
    %v6393 = vpop.f32.mrf.mxu0
    %v6394 = vadd.f32 %v6131, %v6393
    %6395 = vmatmul.f32.gmra.mxu0 %v5640
    %v6396 = vpop.f32.mrf.mxu0
    %v6397 = vadd.f32 %v6134, %v6396
    %6398 = vmatmul.f32.gmra.mxu0 %v5639
    %v6399 = vpop.f32.mrf.mxu0
    %v6400 = vadd.f32 %v6137, %v6399
    %6401 = vmatmul.f32.gmra.mxu0 %v5638
    %v6402 = vpop.f32.mrf.mxu0
    %v6403 = vadd.f32 %v6140, %v6402
    %6404 = vmatmul.f32.gmra.mxu0 %v5637
    %v6405 = vpop.f32.mrf.mxu0
    %v6406 = vadd.f32 %v6143, %v6405
    %6407 = vmatmul.f32.gmra.mxu0 %v5636
    %v6408 = vpop.f32.mrf.mxu0
    %v6409 = vadd.f32 %v6146, %v6408
    %6410 = vmatmul.f32.gmra.mxu0 %v5635
    %v6411 = vpop.f32.mrf.mxu0
    %v6412 = vadd.f32 %v6149, %v6411
    %6413 = vmatmul.f32.gmra.mxu0 %v5634
    %v6414 = vpop.f32.mrf.mxu0
    %v6415 = vadd.f32 %v6152, %v6414
    %6416 = vmatmul.f32.gmra.mxu0 %v5633
    %v6417 = vpop.f32.mrf.mxu0
    %v6418 = vadd.f32 %v6155, %v6417
    %6419 = vmatmul.f32.gmra.mxu0 %v5632
    %v6420 = vpop.f32.mrf.mxu0
    %v6421 = vadd.f32 %v6158, %v6420
    %6422 = vmatmul.f32.gmra.mxu0 %v5631
    %v6423 = vpop.f32.mrf.mxu0
    %v6424 = vadd.f32 %v6161, %v6423
    %6425 = vmatmul.f32.gmra.mxu0 %v5630
    %v6426 = vpop.f32.mrf.mxu0
    %v6427 = vadd.f32 %v6164, %v6426
    %6428 = vmatmul.f32.gmra.mxu0 %v5629
    %v6429 = vpop.f32.mrf.mxu0
    %v6430 = vadd.f32 %v6167, %v6429
    %6431 = vdwg.mxu0
    %v6432 = vrot.slane %v5463, 7
    %v6433 = vrot.slane %v5464, 7
    %v6434 = vrot.slane %v5465, 7
    %v6435 = vrot.slane %v5466, 7
    %v6436 = vrot.slane %v5467, 7
    %v6437 = vrot.slane %v5468, 7
    %v6438 = vrot.slane %v5469, 7
    %v6439 = vrot.slane %v5470, 7
    %v6440 = vrot.slane %v5471, 7
    %v6441 = vrot.slane %v5472, 7
    %v6442 = vrot.slane %v5473, 7
    %v6443 = vrot.slane %v5474, 7
    %v6444 = vrot.slane %v5475, 7
    %v6445 = vrot.slane %v5476, 7
    %v6446 = vrot.slane %v5477, 7
    %v6447 = vrot.slane %v5478, 7
    %v6448 = vrot.slane %v5479, 7
    %v6449 = vrot.slane %v5480, 7
    %v6450 = vrot.slane %v5481, 7
    %v6451 = vrot.slane %v5482, 7
    %v6452 = vrot.slane %v5483, 7
    %v6453 = vrot.slane %v5484, 7
    %v6454 = vrot.slane %v5485, 7
    %v6455 = vrot.slane %v5486, 7
    %v6456 = vrot.slane %v5487, 7
    %v6457 = vrot.slane %v5488, 7
    %v6458 = vrot.slane %v5489, 7
    %v6459 = vrot.slane %v5490, 7
    %v6460 = vrot.slane %v5491, 7
    %v6461 = vrot.slane %v5492, 7
    %v6462 = vrot.slane %v5493, 7
    %v6463 = vrot.slane %v5494, 7
    %v6464 = vrot.slane %v5495, 7
    %v6465 = vrot.slane %v5496, 7
    %v6466 = vrot.slane %v5497, 7
    %v6467 = vrot.slane %v5498, 7
    %v6468 = vrot.slane %v5499, 7
    %v6469 = vrot.slane %v5500, 7
    %v6470 = vrot.slane %v5501, 7
    %v6471 = vrot.slane %v5502, 7
    %v6472 = vrot.slane %v5503, 7
    %v6473 = vrot.slane %v5504, 7
    %v6474 = vrot.slane %v5505, 7
    %v6475 = vrot.slane %v5506, 7
    %v6476 = vrot.slane %v5507, 7
    %v6477 = vrot.slane %v5508, 7
    %v6478 = vrot.slane %v5509, 7
    %v6479 = vrot.slane %v5510, 7
    %v6480 = vrot.slane %v5511, 7
    %v6481 = vrot.slane %v5512, 7
    %v6482 = vrot.slane %v5513, 7
    %v6483 = vrot.slane %v5514, 7
    %v6484 = vrot.slane %v5515, 7
    %v6485 = vrot.slane %v5516, 7
    %v6486 = vrot.slane %v5517, 7
    %v6487 = vrot.slane %v5518, 7
    %v6488 = vrot.slane %v5519, 7
    %v6489 = vrot.slane %v5520, 7
    %v6490 = vrot.slane %v5521, 7
    %v6491 = vrot.slane %v5522, 7
    %v6492 = vrot.slane %v5523, 7
    %v6493 = vrot.slane %v5524, 7
    %v6494 = vrot.slane %v5525, 7
    %v6495 = vrot.slane %v5526, 7
    %v6496 = vrot.slane %v5527, 7
    %v6497 = vrot.slane %v5528, 7
    %v6498 = vrot.slane %v5529, 7
    %v6499 = vrot.slane %v5530, 7
    %v6500 = vrot.slane %v5531, 7
    %v6501 = vrot.slane %v5532, 7
    %v6502 = vrot.slane %v5533, 7
    %v6503 = vrot.slane %v5534, 7
    %v6504 = vrot.slane %v5535, 7
    %v6505 = vrot.slane %v5536, 7
    %v6506 = vrot.slane %v5537, 7
    %v6507 = vrot.slane %v5538, 7
    %v6508 = vrot.slane %v5539, 7
    %v6509 = vrot.slane %v5540, 7
    %v6510 = vrot.slane %v5541, 7
    %v6511 = vrot.slane %v5542, 7
    %v6512 = vrot.slane %v5543, 7
    %v6513 = vrot.slane %v5544, 7
    %v6514 = vsel %vm2019, %v6512, %v6513
    %v6515 = vsel %vm2019, %v6511, %v6512
    %v6516 = vsel %vm2019, %v6510, %v6511
    %v6517 = vsel %vm2019, %v6509, %v6510
    %v6518 = vsel %vm2019, %v6508, %v6509
    %v6519 = vsel %vm2019, %v6507, %v6508
    %v6520 = vsel %vm2019, %v6506, %v6507
    %v6521 = vsel %vm2019, %v6505, %v6506
    %v6522 = vsel %vm2019, %v6504, %v6505
    %v6523 = vsel %vm2019, %v6503, %v6504
    %v6524 = vsel %vm2019, %v6502, %v6503
    %v6525 = vsel %vm2019, %v6501, %v6502
    %v6526 = vsel %vm2019, %v6500, %v6501
    %v6527 = vsel %vm2019, %v6499, %v6500
    %v6528 = vsel %vm2019, %v6498, %v6499
    %v6529 = vsel %vm2019, %v6497, %v6498
    %v6530 = vsel %vm2019, %v6496, %v6497
    %v6531 = vsel %vm2019, %v6495, %v6496
    %v6532 = vsel %vm2019, %v6494, %v6495
    %v6533 = vsel %vm2019, %v6493, %v6494
    %v6534 = vsel %vm2019, %v6492, %v6493
    %v6535 = vsel %vm2019, %v6491, %v6492
    %v6536 = vsel %vm2019, %v6490, %v6491
    %v6537 = vsel %vm2019, %v6489, %v6490
    %v6538 = vsel %vm2019, %v6488, %v6489
    %v6539 = vsel %vm2019, %v6487, %v6488
    %v6540 = vsel %vm2019, %v6486, %v6487
    %v6541 = vsel %vm2019, %v6485, %v6486
    %v6542 = vsel %vm2019, %v6484, %v6485
    %v6543 = vsel %vm2019, %v6483, %v6484
    %v6544 = vsel %vm2019, %v6482, %v6483
    %v6545 = vsel %vm2019, %v6481, %v6482
    %v6546 = vsel %vm2019, %v6480, %v6481
    %v6547 = vsel %vm2019, %v6479, %v6480
    %v6548 = vsel %vm2019, %v6478, %v6479
    %v6549 = vsel %vm2019, %v6477, %v6478
    %v6550 = vsel %vm2019, %v6476, %v6477
    %v6551 = vsel %vm2019, %v6475, %v6476
    %v6552 = vsel %vm2019, %v6474, %v6475
    %v6553 = vsel %vm2019, %v6473, %v6474
    %v6554 = vsel %vm2019, %v6472, %v6473
    %v6555 = vsel %vm2019, %v6471, %v6472
    %v6556 = vsel %vm2019, %v6470, %v6471
    %v6557 = vsel %vm2019, %v6469, %v6470
    %v6558 = vsel %vm2019, %v6468, %v6469
    %v6559 = vsel %vm2019, %v6467, %v6468
    %v6560 = vsel %vm2019, %v6466, %v6467
    %v6561 = vsel %vm2019, %v6465, %v6466
    %v6562 = vsel %vm2019, %v6464, %v6465
    %v6563 = vsel %vm2019, %v6463, %v6464
    %v6564 = vsel %vm2019, %v6462, %v6463
    %v6565 = vsel %vm2019, %v6461, %v6462
    %v6566 = vsel %vm2019, %v6460, %v6461
    %v6567 = vsel %vm2019, %v6459, %v6460
    %v6568 = vsel %vm2019, %v6458, %v6459
    %v6569 = vsel %vm2019, %v6457, %v6458
    %v6570 = vsel %vm2019, %v6456, %v6457
    %v6571 = vsel %vm2019, %v6455, %v6456
    %v6572 = vsel %vm2019, %v6454, %v6455
    %v6573 = vsel %vm2019, %v6453, %v6454
    %v6574 = vsel %vm2019, %v6452, %v6453
    %v6575 = vsel %vm2019, %v6451, %v6452
    %v6576 = vsel %vm2019, %v6450, %v6451
    %v6577 = vsel %vm2019, %v6449, %v6450
    %v6578 = vsel %vm2019, %v6448, %v6449
    %v6579 = vsel %vm2019, %v6447, %v6448
    %v6580 = vsel %vm2019, %v6446, %v6447
    %v6581 = vsel %vm2019, %v6445, %v6446
    %v6582 = vsel %vm2019, %v6444, %v6445
    %v6583 = vsel %vm2019, %v6443, %v6444
    %v6584 = vsel %vm2019, %v6442, %v6443
    %v6585 = vsel %vm2019, %v6441, %v6442
    %v6586 = vsel %vm2019, %v6440, %v6441
    %v6587 = vsel %vm2019, %v6439, %v6440
    %v6588 = vsel %vm2019, %v6438, %v6439
    %v6589 = vsel %vm2019, %v6437, %v6438
    %v6590 = vsel %vm2019, %v6436, %v6437
    %v6591 = vsel %vm2019, %v6435, %v6436
    %v6592 = vsel %vm2019, %v6434, %v6435
    %v6593 = vsel %vm2019, %v6433, %v6434
    %v6594 = vsel %vm2019, %v6432, %v6433
    %v6595 = vsel %vm2019, %v6513, %v6432
    %s6596 = scalar_lea.vmem %s6, 256
    %v6597 = vld [vmem:[%s6596] sm:$0xff]
    %v6598 = vld [vmem:[%s6596 + $0x8] sm:$0xff]
    %v6599 = vld [vmem:[%s6596 + $0x10] sm:$0xff]
    %v6600 = vld [vmem:[%s6596 + $0x18] sm:$0xff]
    %v6601 = vld [vmem:[%s6596 + $0x20] sm:$0xff]
    %v6602 = vld [vmem:[%s6596 + $0x28] sm:$0xff]
    %v6603 = vld [vmem:[%s6596 + $0x30] sm:$0xff]
    %v6604 = vld [vmem:[%s6596 + $0x38] sm:$0xff]
    %v6605 = vld [vmem:[%s6596 + $0x40] sm:$0xff]
    %v6606 = vld [vmem:[%s6596 + $0x48] sm:$0xff]
    %v6607 = vld [vmem:[%s6596 + $0x50] sm:$0xff]
    %v6608 = vld [vmem:[%s6596 + $0x58] sm:$0xff]
    %v6609 = vld [vmem:[%s6596 + $0x60] sm:$0xff]
    %v6610 = vld [vmem:[%s6596 + $0x68] sm:$0xff]
    %v6611 = vld [vmem:[%s6596 + $0x70] sm:$0xff]
    %v6612 = vld [vmem:[%s6596 + $0x78] sm:$0xff]
    %6613 = vmatpush.msra.mxu0 %v6612
    %6614 = vmatpush.msra.mxu0 %v6611
    %6615 = vmatpush.msra.mxu0 %v6610
    %6616 = vmatpush.msra.mxu0 %v6609
    %6617 = vmatpush.msra.mxu0 %v6608
    %6618 = vmatpush.msra.mxu0 %v6607
    %6619 = vmatpush.msra.mxu0 %v6606
    %6620 = vmatpush.msra.mxu0 %v6605
    %6621 = vmatpush.msra.mxu0 %v6604
    %6622 = vmatpush.msra.mxu0 %v6603
    %6623 = vmatpush.msra.mxu0 %v6602
    %6624 = vmatpush.msra.mxu0 %v6601
    %6625 = vmatpush.msra.mxu0 %v6600
    %6626 = vmatpush.msra.mxu0 %v6599
    %6627 = vmatpush.msra.mxu0 %v6598
    %6628 = vmatpush.msra.mxu0 %v6597
    %6629 = vmatmul.f32.gmra.mxu0 %v6515
    %v6630 = vpop.f32.mrf.mxu0
    %v6631 = vadd.f32 0.0, %v6630
    %6632 = vmatmul.f32.gmra.mxu0 %v6514
    %v6633 = vpop.f32.mrf.mxu0
    %v6634 = vadd.f32 0.0, %v6633
    %6635 = vmatmul.f32.gmra.mxu0 %v6595
    %v6636 = vpop.f32.mrf.mxu0
    %v6637 = vadd.f32 0.0, %v6636
    %6638 = vmatmul.f32.gmra.mxu0 %v6594
    %v6639 = vpop.f32.mrf.mxu0
    %v6640 = vadd.f32 0.0, %v6639
    %6641 = vmatmul.f32.gmra.mxu0 %v6593
    %v6642 = vpop.f32.mrf.mxu0
    %v6643 = vadd.f32 0.0, %v6642
    %6644 = vmatmul.f32.gmra.mxu0 %v6592
    %v6645 = vpop.f32.mrf.mxu0
    %v6646 = vadd.f32 0.0, %v6645
    %6647 = vmatmul.f32.gmra.mxu0 %v6591
    %v6648 = vpop.f32.mrf.mxu0
    %v6649 = vadd.f32 0.0, %v6648
    %6650 = vmatmul.f32.gmra.mxu0 %v6590
    %v6651 = vpop.f32.mrf.mxu0
    %v6652 = vadd.f32 0.0, %v6651
    %6653 = vmatmul.f32.gmra.mxu0 %v6589
    %v6654 = vpop.f32.mrf.mxu0
    %v6655 = vadd.f32 0.0, %v6654
    %6656 = vmatmul.f32.gmra.mxu0 %v6588
    %v6657 = vpop.f32.mrf.mxu0
    %v6658 = vadd.f32 0.0, %v6657
    %6659 = vmatmul.f32.gmra.mxu0 %v6587
    %v6660 = vpop.f32.mrf.mxu0
    %v6661 = vadd.f32 0.0, %v6660
    %6662 = vmatmul.f32.gmra.mxu0 %v6586
    %v6663 = vpop.f32.mrf.mxu0
    %v6664 = vadd.f32 0.0, %v6663
    %6665 = vmatmul.f32.gmra.mxu0 %v6585
    %v6666 = vpop.f32.mrf.mxu0
    %v6667 = vadd.f32 0.0, %v6666
    %6668 = vmatmul.f32.gmra.mxu0 %v6584
    %v6669 = vpop.f32.mrf.mxu0
    %v6670 = vadd.f32 0.0, %v6669
    %6671 = vmatmul.f32.gmra.mxu0 %v6583
    %v6672 = vpop.f32.mrf.mxu0
    %v6673 = vadd.f32 0.0, %v6672
    %6674 = vmatmul.f32.gmra.mxu0 %v6582
    %v6675 = vpop.f32.mrf.mxu0
    %v6676 = vadd.f32 0.0, %v6675
    %6677 = vmatmul.f32.gmra.mxu0 %v6581
    %v6678 = vpop.f32.mrf.mxu0
    %v6679 = vadd.f32 0.0, %v6678
    %6680 = vmatmul.f32.gmra.mxu0 %v6580
    %v6681 = vpop.f32.mrf.mxu0
    %v6682 = vadd.f32 0.0, %v6681
    %6683 = vmatmul.f32.gmra.mxu0 %v6579
    %v6684 = vpop.f32.mrf.mxu0
    %v6685 = vadd.f32 0.0, %v6684
    %6686 = vmatmul.f32.gmra.mxu0 %v6578
    %v6687 = vpop.f32.mrf.mxu0
    %v6688 = vadd.f32 0.0, %v6687
    %6689 = vmatmul.f32.gmra.mxu0 %v6577
    %v6690 = vpop.f32.mrf.mxu0
    %v6691 = vadd.f32 0.0, %v6690
    %6692 = vmatmul.f32.gmra.mxu0 %v6576
    %v6693 = vpop.f32.mrf.mxu0
    %v6694 = vadd.f32 0.0, %v6693
    %6695 = vmatmul.f32.gmra.mxu0 %v6575
    %v6696 = vpop.f32.mrf.mxu0
    %v6697 = vadd.f32 0.0, %v6696
    %6698 = vmatmul.f32.gmra.mxu0 %v6574
    %v6699 = vpop.f32.mrf.mxu0
    %v6700 = vadd.f32 0.0, %v6699
    %6701 = vmatmul.f32.gmra.mxu0 %v6573
    %v6702 = vpop.f32.mrf.mxu0
    %v6703 = vadd.f32 0.0, %v6702
    %6704 = vmatmul.f32.gmra.mxu0 %v6572
    %v6705 = vpop.f32.mrf.mxu0
    %v6706 = vadd.f32 0.0, %v6705
    %6707 = vmatmul.f32.gmra.mxu0 %v6571
    %v6708 = vpop.f32.mrf.mxu0
    %v6709 = vadd.f32 0.0, %v6708
    %6710 = vmatmul.f32.gmra.mxu0 %v6570
    %v6711 = vpop.f32.mrf.mxu0
    %v6712 = vadd.f32 0.0, %v6711
    %6713 = vmatmul.f32.gmra.mxu0 %v6569
    %v6714 = vpop.f32.mrf.mxu0
    %v6715 = vadd.f32 0.0, %v6714
    %6716 = vmatmul.f32.gmra.mxu0 %v6568
    %v6717 = vpop.f32.mrf.mxu0
    %v6718 = vadd.f32 0.0, %v6717
    %6719 = vmatmul.f32.gmra.mxu0 %v6567
    %v6720 = vpop.f32.mrf.mxu0
    %v6721 = vadd.f32 0.0, %v6720
    %6722 = vmatmul.f32.gmra.mxu0 %v6566
    %v6723 = vpop.f32.mrf.mxu0
    %v6724 = vadd.f32 0.0, %v6723
    %6725 = vmatmul.f32.gmra.mxu0 %v6565
    %v6726 = vpop.f32.mrf.mxu0
    %v6727 = vadd.f32 0.0, %v6726
    %6728 = vmatmul.f32.gmra.mxu0 %v6564
    %v6729 = vpop.f32.mrf.mxu0
    %v6730 = vadd.f32 0.0, %v6729
    %6731 = vmatmul.f32.gmra.mxu0 %v6563
    %v6732 = vpop.f32.mrf.mxu0
    %v6733 = vadd.f32 0.0, %v6732
    %6734 = vmatmul.f32.gmra.mxu0 %v6562
    %v6735 = vpop.f32.mrf.mxu0
    %v6736 = vadd.f32 0.0, %v6735
    %6737 = vmatmul.f32.gmra.mxu0 %v6561
    %v6738 = vpop.f32.mrf.mxu0
    %v6739 = vadd.f32 0.0, %v6738
    %6740 = vmatmul.f32.gmra.mxu0 %v6560
    %v6741 = vpop.f32.mrf.mxu0
    %v6742 = vadd.f32 0.0, %v6741
    %6743 = vmatmul.f32.gmra.mxu0 %v6559
    %v6744 = vpop.f32.mrf.mxu0
    %v6745 = vadd.f32 0.0, %v6744
    %6746 = vmatmul.f32.gmra.mxu0 %v6558
    %v6747 = vpop.f32.mrf.mxu0
    %v6748 = vadd.f32 0.0, %v6747
    %6749 = vmatmul.f32.gmra.mxu0 %v6557
    %v6750 = vpop.f32.mrf.mxu0
    %v6751 = vadd.f32 0.0, %v6750
    %6752 = vmatmul.f32.gmra.mxu0 %v6556
    %v6753 = vpop.f32.mrf.mxu0
    %v6754 = vadd.f32 0.0, %v6753
    %6755 = vmatmul.f32.gmra.mxu0 %v6555
    %v6756 = vpop.f32.mrf.mxu0
    %v6757 = vadd.f32 0.0, %v6756
    %6758 = vmatmul.f32.gmra.mxu0 %v6554
    %v6759 = vpop.f32.mrf.mxu0
    %v6760 = vadd.f32 0.0, %v6759
    %6761 = vmatmul.f32.gmra.mxu0 %v6553
    %v6762 = vpop.f32.mrf.mxu0
    %v6763 = vadd.f32 0.0, %v6762
    %6764 = vmatmul.f32.gmra.mxu0 %v6552
    %v6765 = vpop.f32.mrf.mxu0
    %v6766 = vadd.f32 0.0, %v6765
    %6767 = vmatmul.f32.gmra.mxu0 %v6551
    %v6768 = vpop.f32.mrf.mxu0
    %v6769 = vadd.f32 0.0, %v6768
    %6770 = vmatmul.f32.gmra.mxu0 %v6550
    %v6771 = vpop.f32.mrf.mxu0
    %v6772 = vadd.f32 0.0, %v6771
    %6773 = vmatmul.f32.gmra.mxu0 %v6549
    %v6774 = vpop.f32.mrf.mxu0
    %v6775 = vadd.f32 0.0, %v6774
    %6776 = vmatmul.f32.gmra.mxu0 %v6548
    %v6777 = vpop.f32.mrf.mxu0
    %v6778 = vadd.f32 0.0, %v6777
    %6779 = vmatmul.f32.gmra.mxu0 %v6547
    %v6780 = vpop.f32.mrf.mxu0
    %v6781 = vadd.f32 0.0, %v6780
    %6782 = vmatmul.f32.gmra.mxu0 %v6546
    %v6783 = vpop.f32.mrf.mxu0
    %v6784 = vadd.f32 0.0, %v6783
    %6785 = vmatmul.f32.gmra.mxu0 %v6545
    %v6786 = vpop.f32.mrf.mxu0
    %v6787 = vadd.f32 0.0, %v6786
    %6788 = vmatmul.f32.gmra.mxu0 %v6544
    %v6789 = vpop.f32.mrf.mxu0
    %v6790 = vadd.f32 0.0, %v6789
    %6791 = vmatmul.f32.gmra.mxu0 %v6543
    %v6792 = vpop.f32.mrf.mxu0
    %v6793 = vadd.f32 0.0, %v6792
    %6794 = vmatmul.f32.gmra.mxu0 %v6542
    %v6795 = vpop.f32.mrf.mxu0
    %v6796 = vadd.f32 0.0, %v6795
    %6797 = vmatmul.f32.gmra.mxu0 %v6541
    %v6798 = vpop.f32.mrf.mxu0
    %v6799 = vadd.f32 0.0, %v6798
    %6800 = vmatmul.f32.gmra.mxu0 %v6540
    %v6801 = vpop.f32.mrf.mxu0
    %v6802 = vadd.f32 0.0, %v6801
    %6803 = vmatmul.f32.gmra.mxu0 %v6539
    %v6804 = vpop.f32.mrf.mxu0
    %v6805 = vadd.f32 0.0, %v6804
    %6806 = vmatmul.f32.gmra.mxu0 %v6538
    %v6807 = vpop.f32.mrf.mxu0
    %v6808 = vadd.f32 0.0, %v6807
    %6809 = vmatmul.f32.gmra.mxu0 %v6537
    %v6810 = vpop.f32.mrf.mxu0
    %v6811 = vadd.f32 0.0, %v6810
    %6812 = vmatmul.f32.gmra.mxu0 %v6536
    %v6813 = vpop.f32.mrf.mxu0
    %v6814 = vadd.f32 0.0, %v6813
    %6815 = vmatmul.f32.gmra.mxu0 %v6535
    %v6816 = vpop.f32.mrf.mxu0
    %v6817 = vadd.f32 0.0, %v6816
    %6818 = vmatmul.f32.gmra.mxu0 %v6534
    %v6819 = vpop.f32.mrf.mxu0
    %v6820 = vadd.f32 0.0, %v6819
    %6821 = vmatmul.f32.gmra.mxu0 %v6533
    %v6822 = vpop.f32.mrf.mxu0
    %v6823 = vadd.f32 0.0, %v6822
    %6824 = vmatmul.f32.gmra.mxu0 %v6532
    %v6825 = vpop.f32.mrf.mxu0
    %v6826 = vadd.f32 0.0, %v6825
    %6827 = vmatmul.f32.gmra.mxu0 %v6531
    %v6828 = vpop.f32.mrf.mxu0
    %v6829 = vadd.f32 0.0, %v6828
    %6830 = vmatmul.f32.gmra.mxu0 %v6530
    %v6831 = vpop.f32.mrf.mxu0
    %v6832 = vadd.f32 0.0, %v6831
    %6833 = vmatmul.f32.gmra.mxu0 %v6529
    %v6834 = vpop.f32.mrf.mxu0
    %v6835 = vadd.f32 0.0, %v6834
    %6836 = vmatmul.f32.gmra.mxu0 %v6528
    %v6837 = vpop.f32.mrf.mxu0
    %v6838 = vadd.f32 0.0, %v6837
    %6839 = vmatmul.f32.gmra.mxu0 %v6527
    %v6840 = vpop.f32.mrf.mxu0
    %v6841 = vadd.f32 0.0, %v6840
    %6842 = vmatmul.f32.gmra.mxu0 %v6526
    %v6843 = vpop.f32.mrf.mxu0
    %v6844 = vadd.f32 0.0, %v6843
    %6845 = vmatmul.f32.gmra.mxu0 %v6525
    %v6846 = vpop.f32.mrf.mxu0
    %v6847 = vadd.f32 0.0, %v6846
    %6848 = vmatmul.f32.gmra.mxu0 %v6524
    %v6849 = vpop.f32.mrf.mxu0
    %v6850 = vadd.f32 0.0, %v6849
    %6851 = vmatmul.f32.gmra.mxu0 %v6523
    %v6852 = vpop.f32.mrf.mxu0
    %v6853 = vadd.f32 0.0, %v6852
    %6854 = vmatmul.f32.gmra.mxu0 %v6522
    %v6855 = vpop.f32.mrf.mxu0
    %v6856 = vadd.f32 0.0, %v6855
    %6857 = vmatmul.f32.gmra.mxu0 %v6521
    %v6858 = vpop.f32.mrf.mxu0
    %v6859 = vadd.f32 0.0, %v6858
    %6860 = vmatmul.f32.gmra.mxu0 %v6520
    %v6861 = vpop.f32.mrf.mxu0
    %v6862 = vadd.f32 0.0, %v6861
    %6863 = vmatmul.f32.gmra.mxu0 %v6519
    %v6864 = vpop.f32.mrf.mxu0
    %v6865 = vadd.f32 0.0, %v6864
    %6866 = vmatmul.f32.gmra.mxu0 %v6518
    %v6867 = vpop.f32.mrf.mxu0
    %v6868 = vadd.f32 0.0, %v6867
    %6869 = vmatmul.f32.gmra.mxu0 %v6517
    %v6870 = vpop.f32.mrf.mxu0
    %v6871 = vadd.f32 0.0, %v6870
    %6872 = vmatmul.f32.gmra.mxu0 %v6516
    %v6873 = vpop.f32.mrf.mxu0
    %v6874 = vadd.f32 0.0, %v6873
    %6875 = vdwg.mxu0
    %v6876 = vadd.f32 %v6187, %v6631
    %v6877 = vadd.f32 %v6190, %v6634
    %v6878 = vadd.f32 %v6193, %v6637
    %v6879 = vadd.f32 %v6196, %v6640
    %v6880 = vadd.f32 %v6199, %v6643
    %v6881 = vadd.f32 %v6202, %v6646
    %v6882 = vadd.f32 %v6205, %v6649
    %v6883 = vadd.f32 %v6208, %v6652
    %v6884 = vadd.f32 %v6211, %v6655
    %v6885 = vadd.f32 %v6214, %v6658
    %v6886 = vadd.f32 %v6217, %v6661
    %v6887 = vadd.f32 %v6220, %v6664
    %v6888 = vadd.f32 %v6223, %v6667
    %v6889 = vadd.f32 %v6226, %v6670
    %v6890 = vadd.f32 %v6229, %v6673
    %v6891 = vadd.f32 %v6232, %v6676
    %v6892 = vadd.f32 %v6235, %v6679
    %v6893 = vadd.f32 %v6238, %v6682
    %v6894 = vadd.f32 %v6241, %v6685
    %v6895 = vadd.f32 %v6244, %v6688
    %v6896 = vadd.f32 %v6247, %v6691
    %v6897 = vadd.f32 %v6250, %v6694
    %v6898 = vadd.f32 %v6253, %v6697
    %v6899 = vadd.f32 %v6256, %v6700
    %v6900 = vadd.f32 %v6259, %v6703
    %v6901 = vadd.f32 %v6262, %v6706
    %v6902 = vadd.f32 %v6265, %v6709
    %v6903 = vadd.f32 %v6268, %v6712
    %v6904 = vadd.f32 %v6271, %v6715
    %v6905 = vadd.f32 %v6274, %v6718
    %v6906 = vadd.f32 %v6277, %v6721
    %v6907 = vadd.f32 %v6280, %v6724
    %v6908 = vadd.f32 %v6283, %v6727
    %v6909 = vadd.f32 %v6286, %v6730
    %v6910 = vadd.f32 %v6289, %v6733
    %v6911 = vadd.f32 %v6292, %v6736
    %v6912 = vadd.f32 %v6295, %v6739
    %v6913 = vadd.f32 %v6298, %v6742
    %v6914 = vadd.f32 %v6301, %v6745
    %v6915 = vadd.f32 %v6304, %v6748
    %v6916 = vadd.f32 %v6307, %v6751
    %v6917 = vadd.f32 %v6310, %v6754
    %v6918 = vadd.f32 %v6313, %v6757
    %v6919 = vadd.f32 %v6316, %v6760
    %v6920 = vadd.f32 %v6319, %v6763
    %v6921 = vadd.f32 %v6322, %v6766
    %v6922 = vadd.f32 %v6325, %v6769
    %v6923 = vadd.f32 %v6328, %v6772
    %v6924 = vadd.f32 %v6331, %v6775
    %v6925 = vadd.f32 %v6334, %v6778
    %v6926 = vadd.f32 %v6337, %v6781
    %v6927 = vadd.f32 %v6340, %v6784
    %v6928 = vadd.f32 %v6343, %v6787
    %v6929 = vadd.f32 %v6346, %v6790
    %v6930 = vadd.f32 %v6349, %v6793
    %v6931 = vadd.f32 %v6352, %v6796
    %v6932 = vadd.f32 %v6355, %v6799
    %v6933 = vadd.f32 %v6358, %v6802
    %v6934 = vadd.f32 %v6361, %v6805
    %v6935 = vadd.f32 %v6364, %v6808
    %v6936 = vadd.f32 %v6367, %v6811
    %v6937 = vadd.f32 %v6370, %v6814
    %v6938 = vadd.f32 %v6373, %v6817
    %v6939 = vadd.f32 %v6376, %v6820
    %v6940 = vadd.f32 %v6379, %v6823
    %v6941 = vadd.f32 %v6382, %v6826
    %v6942 = vadd.f32 %v6385, %v6829
    %v6943 = vadd.f32 %v6388, %v6832
    %v6944 = vadd.f32 %v6391, %v6835
    %v6945 = vadd.f32 %v6394, %v6838
    %v6946 = vadd.f32 %v6397, %v6841
    %v6947 = vadd.f32 %v6400, %v6844
    %v6948 = vadd.f32 %v6403, %v6847
    %v6949 = vadd.f32 %v6406, %v6850
    %v6950 = vadd.f32 %v6409, %v6853
    %v6951 = vadd.f32 %v6412, %v6856
    %v6952 = vadd.f32 %v6415, %v6859
    %v6953 = vadd.f32 %v6418, %v6862
    %v6954 = vadd.f32 %v6421, %v6865
    %v6955 = vadd.f32 %v6424, %v6868
    %v6956 = vadd.f32 %v6427, %v6871
    %v6957 = vadd.f32 %v6430, %v6874
    %s6958 = scalar_lea.vmem %s6, 384
    %v6959 = vld [vmem:[%s6958] sm:$0xff]
    %v6960 = vld [vmem:[%s6958 + $0x8] sm:$0xff]
    %v6961 = vld [vmem:[%s6958 + $0x10] sm:$0xff]
    %v6962 = vld [vmem:[%s6958 + $0x18] sm:$0xff]
    %v6963 = vld [vmem:[%s6958 + $0x20] sm:$0xff]
    %v6964 = vld [vmem:[%s6958 + $0x28] sm:$0xff]
    %v6965 = vld [vmem:[%s6958 + $0x30] sm:$0xff]
    %v6966 = vld [vmem:[%s6958 + $0x38] sm:$0xff]
    %v6967 = vld [vmem:[%s6958 + $0x40] sm:$0xff]
    %v6968 = vld [vmem:[%s6958 + $0x48] sm:$0xff]
    %v6969 = vld [vmem:[%s6958 + $0x50] sm:$0xff]
    %v6970 = vld [vmem:[%s6958 + $0x58] sm:$0xff]
    %v6971 = vld [vmem:[%s6958 + $0x60] sm:$0xff]
    %v6972 = vld [vmem:[%s6958 + $0x68] sm:$0xff]
    %v6973 = vld [vmem:[%s6958 + $0x70] sm:$0xff]
    %v6974 = vld [vmem:[%s6958 + $0x78] sm:$0xff]
    %6975 = vmatpush.msra.mxu0 %v6974
    %6976 = vmatpush.msra.mxu0 %v6973
    %6977 = vmatpush.msra.mxu0 %v6972
    %6978 = vmatpush.msra.mxu0 %v6971
    %6979 = vmatpush.msra.mxu0 %v6970
    %6980 = vmatpush.msra.mxu0 %v6969
    %6981 = vmatpush.msra.mxu0 %v6968
    %6982 = vmatpush.msra.mxu0 %v6967
    %6983 = vmatpush.msra.mxu0 %v6966
    %6984 = vmatpush.msra.mxu0 %v6965
    %6985 = vmatpush.msra.mxu0 %v6964
    %6986 = vmatpush.msra.mxu0 %v6963
    %6987 = vmatpush.msra.mxu0 %v6962
    %6988 = vmatpush.msra.mxu0 %v6961
    %6989 = vmatpush.msra.mxu0 %v6960
    %6990 = vmatpush.msra.mxu0 %v6959
    %6991 = vmatmul.f32.gmra.mxu0 %v6595
    %v6992 = vpop.f32.mrf.mxu0
    %v6993 = vadd.f32 0.0, %v6992
    %6994 = vmatmul.f32.gmra.mxu0 %v6594
    %v6995 = vpop.f32.mrf.mxu0
    %v6996 = vadd.f32 0.0, %v6995
    %6997 = vmatmul.f32.gmra.mxu0 %v6593
    %v6998 = vpop.f32.mrf.mxu0
    %v6999 = vadd.f32 0.0, %v6998
    %7000 = vmatmul.f32.gmra.mxu0 %v6592
    %v7001 = vpop.f32.mrf.mxu0
    %v7002 = vadd.f32 0.0, %v7001
    %7003 = vmatmul.f32.gmra.mxu0 %v6591
    %v7004 = vpop.f32.mrf.mxu0
    %v7005 = vadd.f32 0.0, %v7004
    %7006 = vmatmul.f32.gmra.mxu0 %v6590
    %v7007 = vpop.f32.mrf.mxu0
    %v7008 = vadd.f32 0.0, %v7007
    %7009 = vmatmul.f32.gmra.mxu0 %v6589
    %v7010 = vpop.f32.mrf.mxu0
    %v7011 = vadd.f32 0.0, %v7010
    %7012 = vmatmul.f32.gmra.mxu0 %v6588
    %v7013 = vpop.f32.mrf.mxu0
    %v7014 = vadd.f32 0.0, %v7013
    %7015 = vmatmul.f32.gmra.mxu0 %v6587
    %v7016 = vpop.f32.mrf.mxu0
    %v7017 = vadd.f32 0.0, %v7016
    %7018 = vmatmul.f32.gmra.mxu0 %v6586
    %v7019 = vpop.f32.mrf.mxu0
    %v7020 = vadd.f32 0.0, %v7019
    %7021 = vmatmul.f32.gmra.mxu0 %v6585
    %v7022 = vpop.f32.mrf.mxu0
    %v7023 = vadd.f32 0.0, %v7022
    %7024 = vmatmul.f32.gmra.mxu0 %v6584
    %v7025 = vpop.f32.mrf.mxu0
    %v7026 = vadd.f32 0.0, %v7025
    %7027 = vmatmul.f32.gmra.mxu0 %v6583
    %v7028 = vpop.f32.mrf.mxu0
    %v7029 = vadd.f32 0.0, %v7028
    %7030 = vmatmul.f32.gmra.mxu0 %v6582
    %v7031 = vpop.f32.mrf.mxu0
    %v7032 = vadd.f32 0.0, %v7031
    %7033 = vmatmul.f32.gmra.mxu0 %v6581
    %v7034 = vpop.f32.mrf.mxu0
    %v7035 = vadd.f32 0.0, %v7034
    %7036 = vmatmul.f32.gmra.mxu0 %v6580
    %v7037 = vpop.f32.mrf.mxu0
    %v7038 = vadd.f32 0.0, %v7037
    %7039 = vmatmul.f32.gmra.mxu0 %v6579
    %v7040 = vpop.f32.mrf.mxu0
    %v7041 = vadd.f32 0.0, %v7040
    %7042 = vmatmul.f32.gmra.mxu0 %v6578
    %v7043 = vpop.f32.mrf.mxu0
    %v7044 = vadd.f32 0.0, %v7043
    %7045 = vmatmul.f32.gmra.mxu0 %v6577
    %v7046 = vpop.f32.mrf.mxu0
    %v7047 = vadd.f32 0.0, %v7046
    %7048 = vmatmul.f32.gmra.mxu0 %v6576
    %v7049 = vpop.f32.mrf.mxu0
    %v7050 = vadd.f32 0.0, %v7049
    %7051 = vmatmul.f32.gmra.mxu0 %v6575
    %v7052 = vpop.f32.mrf.mxu0
    %v7053 = vadd.f32 0.0, %v7052
    %7054 = vmatmul.f32.gmra.mxu0 %v6574
    %v7055 = vpop.f32.mrf.mxu0
    %v7056 = vadd.f32 0.0, %v7055
    %7057 = vmatmul.f32.gmra.mxu0 %v6573
    %v7058 = vpop.f32.mrf.mxu0
    %v7059 = vadd.f32 0.0, %v7058
    %7060 = vmatmul.f32.gmra.mxu0 %v6572
    %v7061 = vpop.f32.mrf.mxu0
    %v7062 = vadd.f32 0.0, %v7061
    %7063 = vmatmul.f32.gmra.mxu0 %v6571
    %v7064 = vpop.f32.mrf.mxu0
    %v7065 = vadd.f32 0.0, %v7064
    %7066 = vmatmul.f32.gmra.mxu0 %v6570
    %v7067 = vpop.f32.mrf.mxu0
    %v7068 = vadd.f32 0.0, %v7067
    %7069 = vmatmul.f32.gmra.mxu0 %v6569
    %v7070 = vpop.f32.mrf.mxu0
    %v7071 = vadd.f32 0.0, %v7070
    %7072 = vmatmul.f32.gmra.mxu0 %v6568
    %v7073 = vpop.f32.mrf.mxu0
    %v7074 = vadd.f32 0.0, %v7073
    %7075 = vmatmul.f32.gmra.mxu0 %v6567
    %v7076 = vpop.f32.mrf.mxu0
    %v7077 = vadd.f32 0.0, %v7076
    %7078 = vmatmul.f32.gmra.mxu0 %v6566
    %v7079 = vpop.f32.mrf.mxu0
    %v7080 = vadd.f32 0.0, %v7079
    %7081 = vmatmul.f32.gmra.mxu0 %v6565
    %v7082 = vpop.f32.mrf.mxu0
    %v7083 = vadd.f32 0.0, %v7082
    %7084 = vmatmul.f32.gmra.mxu0 %v6564
    %v7085 = vpop.f32.mrf.mxu0
    %v7086 = vadd.f32 0.0, %v7085
    %7087 = vmatmul.f32.gmra.mxu0 %v6563
    %v7088 = vpop.f32.mrf.mxu0
    %v7089 = vadd.f32 0.0, %v7088
    %7090 = vmatmul.f32.gmra.mxu0 %v6562
    %v7091 = vpop.f32.mrf.mxu0
    %v7092 = vadd.f32 0.0, %v7091
    %7093 = vmatmul.f32.gmra.mxu0 %v6561
    %v7094 = vpop.f32.mrf.mxu0
    %v7095 = vadd.f32 0.0, %v7094
    %7096 = vmatmul.f32.gmra.mxu0 %v6560
    %v7097 = vpop.f32.mrf.mxu0
    %v7098 = vadd.f32 0.0, %v7097
    %7099 = vmatmul.f32.gmra.mxu0 %v6559
    %v7100 = vpop.f32.mrf.mxu0
    %v7101 = vadd.f32 0.0, %v7100
    %7102 = vmatmul.f32.gmra.mxu0 %v6558
    %v7103 = vpop.f32.mrf.mxu0
    %v7104 = vadd.f32 0.0, %v7103
    %7105 = vmatmul.f32.gmra.mxu0 %v6557
    %v7106 = vpop.f32.mrf.mxu0
    %v7107 = vadd.f32 0.0, %v7106
    %7108 = vmatmul.f32.gmra.mxu0 %v6556
    %v7109 = vpop.f32.mrf.mxu0
    %v7110 = vadd.f32 0.0, %v7109
    %7111 = vmatmul.f32.gmra.mxu0 %v6555
    %v7112 = vpop.f32.mrf.mxu0
    %v7113 = vadd.f32 0.0, %v7112
    %7114 = vmatmul.f32.gmra.mxu0 %v6554
    %v7115 = vpop.f32.mrf.mxu0
    %v7116 = vadd.f32 0.0, %v7115
    %7117 = vmatmul.f32.gmra.mxu0 %v6553
    %v7118 = vpop.f32.mrf.mxu0
    %v7119 = vadd.f32 0.0, %v7118
    %7120 = vmatmul.f32.gmra.mxu0 %v6552
    %v7121 = vpop.f32.mrf.mxu0
    %v7122 = vadd.f32 0.0, %v7121
    %7123 = vmatmul.f32.gmra.mxu0 %v6551
    %v7124 = vpop.f32.mrf.mxu0
    %v7125 = vadd.f32 0.0, %v7124
    %7126 = vmatmul.f32.gmra.mxu0 %v6550
    %v7127 = vpop.f32.mrf.mxu0
    %v7128 = vadd.f32 0.0, %v7127
    %7129 = vmatmul.f32.gmra.mxu0 %v6549
    %v7130 = vpop.f32.mrf.mxu0
    %v7131 = vadd.f32 0.0, %v7130
    %7132 = vmatmul.f32.gmra.mxu0 %v6548
    %v7133 = vpop.f32.mrf.mxu0
    %v7134 = vadd.f32 0.0, %v7133
    %7135 = vmatmul.f32.gmra.mxu0 %v6547
    %v7136 = vpop.f32.mrf.mxu0
    %v7137 = vadd.f32 0.0, %v7136
    %7138 = vmatmul.f32.gmra.mxu0 %v6546
    %v7139 = vpop.f32.mrf.mxu0
    %v7140 = vadd.f32 0.0, %v7139
    %7141 = vmatmul.f32.gmra.mxu0 %v6545
    %v7142 = vpop.f32.mrf.mxu0
    %v7143 = vadd.f32 0.0, %v7142
    %7144 = vmatmul.f32.gmra.mxu0 %v6544
    %v7145 = vpop.f32.mrf.mxu0
    %v7146 = vadd.f32 0.0, %v7145
    %7147 = vmatmul.f32.gmra.mxu0 %v6543
    %v7148 = vpop.f32.mrf.mxu0
    %v7149 = vadd.f32 0.0, %v7148
    %7150 = vmatmul.f32.gmra.mxu0 %v6542
    %v7151 = vpop.f32.mrf.mxu0
    %v7152 = vadd.f32 0.0, %v7151
    %7153 = vmatmul.f32.gmra.mxu0 %v6541
    %v7154 = vpop.f32.mrf.mxu0
    %v7155 = vadd.f32 0.0, %v7154
    %7156 = vmatmul.f32.gmra.mxu0 %v6540
    %v7157 = vpop.f32.mrf.mxu0
    %v7158 = vadd.f32 0.0, %v7157
    %7159 = vmatmul.f32.gmra.mxu0 %v6539
    %v7160 = vpop.f32.mrf.mxu0
    %v7161 = vadd.f32 0.0, %v7160
    %7162 = vmatmul.f32.gmra.mxu0 %v6538
    %v7163 = vpop.f32.mrf.mxu0
    %v7164 = vadd.f32 0.0, %v7163
    %7165 = vmatmul.f32.gmra.mxu0 %v6537
    %v7166 = vpop.f32.mrf.mxu0
    %v7167 = vadd.f32 0.0, %v7166
    %7168 = vmatmul.f32.gmra.mxu0 %v6536
    %v7169 = vpop.f32.mrf.mxu0
    %v7170 = vadd.f32 0.0, %v7169
    %7171 = vmatmul.f32.gmra.mxu0 %v6535
    %v7172 = vpop.f32.mrf.mxu0
    %v7173 = vadd.f32 0.0, %v7172
    %7174 = vmatmul.f32.gmra.mxu0 %v6534
    %v7175 = vpop.f32.mrf.mxu0
    %v7176 = vadd.f32 0.0, %v7175
    %7177 = vmatmul.f32.gmra.mxu0 %v6533
    %v7178 = vpop.f32.mrf.mxu0
    %v7179 = vadd.f32 0.0, %v7178
    %7180 = vmatmul.f32.gmra.mxu0 %v6532
    %v7181 = vpop.f32.mrf.mxu0
    %v7182 = vadd.f32 0.0, %v7181
    %7183 = vmatmul.f32.gmra.mxu0 %v6531
    %v7184 = vpop.f32.mrf.mxu0
    %v7185 = vadd.f32 0.0, %v7184
    %7186 = vmatmul.f32.gmra.mxu0 %v6530
    %v7187 = vpop.f32.mrf.mxu0
    %v7188 = vadd.f32 0.0, %v7187
    %7189 = vmatmul.f32.gmra.mxu0 %v6529
    %v7190 = vpop.f32.mrf.mxu0
    %v7191 = vadd.f32 0.0, %v7190
    %7192 = vmatmul.f32.gmra.mxu0 %v6528
    %v7193 = vpop.f32.mrf.mxu0
    %v7194 = vadd.f32 0.0, %v7193
    %7195 = vmatmul.f32.gmra.mxu0 %v6527
    %v7196 = vpop.f32.mrf.mxu0
    %v7197 = vadd.f32 0.0, %v7196
    %7198 = vmatmul.f32.gmra.mxu0 %v6526
    %v7199 = vpop.f32.mrf.mxu0
    %v7200 = vadd.f32 0.0, %v7199
    %7201 = vmatmul.f32.gmra.mxu0 %v6525
    %v7202 = vpop.f32.mrf.mxu0
    %v7203 = vadd.f32 0.0, %v7202
    %7204 = vmatmul.f32.gmra.mxu0 %v6524
    %v7205 = vpop.f32.mrf.mxu0
    %v7206 = vadd.f32 0.0, %v7205
    %7207 = vmatmul.f32.gmra.mxu0 %v6523
    %v7208 = vpop.f32.mrf.mxu0
    %v7209 = vadd.f32 0.0, %v7208
    %7210 = vmatmul.f32.gmra.mxu0 %v6522
    %v7211 = vpop.f32.mrf.mxu0
    %v7212 = vadd.f32 0.0, %v7211
    %7213 = vmatmul.f32.gmra.mxu0 %v6521
    %v7214 = vpop.f32.mrf.mxu0
    %v7215 = vadd.f32 0.0, %v7214
    %7216 = vmatmul.f32.gmra.mxu0 %v6520
    %v7217 = vpop.f32.mrf.mxu0
    %v7218 = vadd.f32 0.0, %v7217
    %7219 = vmatmul.f32.gmra.mxu0 %v6519
    %v7220 = vpop.f32.mrf.mxu0
    %v7221 = vadd.f32 0.0, %v7220
    %7222 = vmatmul.f32.gmra.mxu0 %v6518
    %v7223 = vpop.f32.mrf.mxu0
    %v7224 = vadd.f32 0.0, %v7223
    %7225 = vmatmul.f32.gmra.mxu0 %v6517
    %v7226 = vpop.f32.mrf.mxu0
    %v7227 = vadd.f32 0.0, %v7226
    %7228 = vmatmul.f32.gmra.mxu0 %v6516
    %v7229 = vpop.f32.mrf.mxu0
    %v7230 = vadd.f32 0.0, %v7229
    %7231 = vmatmul.f32.gmra.mxu0 %v6515
    %v7232 = vpop.f32.mrf.mxu0
    %v7233 = vadd.f32 0.0, %v7232
    %7234 = vmatmul.f32.gmra.mxu0 %v6514
    %v7235 = vpop.f32.mrf.mxu0
    %v7236 = vadd.f32 0.0, %v7235
    %7237 = vdwg.mxu0
    %v7238 = vadd.f32 %v6876, %v6993
    %v7239 = vadd.f32 %v6877, %v6996
    %v7240 = vadd.f32 %v6878, %v6999
    %v7241 = vadd.f32 %v6879, %v7002
    %v7242 = vadd.f32 %v6880, %v7005
    %v7243 = vadd.f32 %v6881, %v7008
    %v7244 = vadd.f32 %v6882, %v7011
    %v7245 = vadd.f32 %v6883, %v7014
    %v7246 = vadd.f32 %v6884, %v7017
    %v7247 = vadd.f32 %v6885, %v7020
    %v7248 = vadd.f32 %v6886, %v7023
    %v7249 = vadd.f32 %v6887, %v7026
    %v7250 = vadd.f32 %v6888, %v7029
    %v7251 = vadd.f32 %v6889, %v7032
    %v7252 = vadd.f32 %v6890, %v7035
    %v7253 = vadd.f32 %v6891, %v7038
    %v7254 = vadd.f32 %v6892, %v7041
    %v7255 = vadd.f32 %v6893, %v7044
    %v7256 = vadd.f32 %v6894, %v7047
    %v7257 = vadd.f32 %v6895, %v7050
    %v7258 = vadd.f32 %v6896, %v7053
    %v7259 = vadd.f32 %v6897, %v7056
    %v7260 = vadd.f32 %v6898, %v7059
    %v7261 = vadd.f32 %v6899, %v7062
    %v7262 = vadd.f32 %v6900, %v7065
    %v7263 = vadd.f32 %v6901, %v7068
    %v7264 = vadd.f32 %v6902, %v7071
    %v7265 = vadd.f32 %v6903, %v7074
    %v7266 = vadd.f32 %v6904, %v7077
    %v7267 = vadd.f32 %v6905, %v7080
    %v7268 = vadd.f32 %v6906, %v7083
    %v7269 = vadd.f32 %v6907, %v7086
    %v7270 = vadd.f32 %v6908, %v7089
    %v7271 = vadd.f32 %v6909, %v7092
    %v7272 = vadd.f32 %v6910, %v7095
    %v7273 = vadd.f32 %v6911, %v7098
    %v7274 = vadd.f32 %v6912, %v7101
    %v7275 = vadd.f32 %v6913, %v7104
    %v7276 = vadd.f32 %v6914, %v7107
    %v7277 = vadd.f32 %v6915, %v7110
    %v7278 = vadd.f32 %v6916, %v7113
    %v7279 = vadd.f32 %v6917, %v7116
    %v7280 = vadd.f32 %v6918, %v7119
    %v7281 = vadd.f32 %v6919, %v7122
    %v7282 = vadd.f32 %v6920, %v7125
    %v7283 = vadd.f32 %v6921, %v7128
    %v7284 = vadd.f32 %v6922, %v7131
    %v7285 = vadd.f32 %v6923, %v7134
    %v7286 = vadd.f32 %v6924, %v7137
    %v7287 = vadd.f32 %v6925, %v7140
    %v7288 = vadd.f32 %v6926, %v7143
    %v7289 = vadd.f32 %v6927, %v7146
    %v7290 = vadd.f32 %v6928, %v7149
    %v7291 = vadd.f32 %v6929, %v7152
    %v7292 = vadd.f32 %v6930, %v7155
    %v7293 = vadd.f32 %v6931, %v7158
    %v7294 = vadd.f32 %v6932, %v7161
    %v7295 = vadd.f32 %v6933, %v7164
    %v7296 = vadd.f32 %v6934, %v7167
    %v7297 = vadd.f32 %v6935, %v7170
    %v7298 = vadd.f32 %v6936, %v7173
    %v7299 = vadd.f32 %v6937, %v7176
    %v7300 = vadd.f32 %v6938, %v7179
    %v7301 = vadd.f32 %v6939, %v7182
    %v7302 = vadd.f32 %v6940, %v7185
    %v7303 = vadd.f32 %v6941, %v7188
    %v7304 = vadd.f32 %v6942, %v7191
    %v7305 = vadd.f32 %v6943, %v7194
    %v7306 = vadd.f32 %v6944, %v7197
    %v7307 = vadd.f32 %v6945, %v7200
    %v7308 = vadd.f32 %v6946, %v7203
    %v7309 = vadd.f32 %v6947, %v7206
    %v7310 = vadd.f32 %v6948, %v7209
    %v7311 = vadd.f32 %v6949, %v7212
    %v7312 = vadd.f32 %v6950, %v7215
    %v7313 = vadd.f32 %v6951, %v7218
    %v7314 = vadd.f32 %v6952, %v7221
    %v7315 = vadd.f32 %v6953, %v7224
    %v7316 = vadd.f32 %v6954, %v7227
    %v7317 = vadd.f32 %v6955, %v7230
    %v7318 = vadd.f32 %v6956, %v7233
    %v7319 = vadd.f32 %v6957, %v7236
    %s7320 = scalar_lea.vmem %s6, 512
    %v7321 = vld [vmem:[%s7320] sm:$0xff]
    %v7322 = vld [vmem:[%s7320 + $0x8] sm:$0xff]
    %v7323 = vld [vmem:[%s7320 + $0x10] sm:$0xff]
    %v7324 = vld [vmem:[%s7320 + $0x18] sm:$0xff]
    %v7325 = vld [vmem:[%s7320 + $0x20] sm:$0xff]
    %v7326 = vld [vmem:[%s7320 + $0x28] sm:$0xff]
    %v7327 = vld [vmem:[%s7320 + $0x30] sm:$0xff]
    %v7328 = vld [vmem:[%s7320 + $0x38] sm:$0xff]
    %v7329 = vld [vmem:[%s7320 + $0x40] sm:$0xff]
    %v7330 = vld [vmem:[%s7320 + $0x48] sm:$0xff]
    %v7331 = vld [vmem:[%s7320 + $0x50] sm:$0xff]
    %v7332 = vld [vmem:[%s7320 + $0x58] sm:$0xff]
    %v7333 = vld [vmem:[%s7320 + $0x60] sm:$0xff]
    %v7334 = vld [vmem:[%s7320 + $0x68] sm:$0xff]
    %v7335 = vld [vmem:[%s7320 + $0x70] sm:$0xff]
    %v7336 = vld [vmem:[%s7320 + $0x78] sm:$0xff]
    %7337 = vmatpush.msra.mxu0 %v7336
    %7338 = vmatpush.msra.mxu0 %v7335
    %7339 = vmatpush.msra.mxu0 %v7334
    %7340 = vmatpush.msra.mxu0 %v7333
    %7341 = vmatpush.msra.mxu0 %v7332
    %7342 = vmatpush.msra.mxu0 %v7331
    %7343 = vmatpush.msra.mxu0 %v7330
    %7344 = vmatpush.msra.mxu0 %v7329
    %7345 = vmatpush.msra.mxu0 %v7328
    %7346 = vmatpush.msra.mxu0 %v7327
    %7347 = vmatpush.msra.mxu0 %v7326
    %7348 = vmatpush.msra.mxu0 %v7325
    %7349 = vmatpush.msra.mxu0 %v7324
    %7350 = vmatpush.msra.mxu0 %v7323
    %7351 = vmatpush.msra.mxu0 %v7322
    %7352 = vmatpush.msra.mxu0 %v7321
    %7353 = vmatmul.f32.gmra.mxu0 %v5463
    %v7354 = vpop.f32.mrf.mxu0
    %v7355 = vadd.f32 0.0, %v7354
    %7356 = vmatmul.f32.gmra.mxu0 %v5464
    %v7357 = vpop.f32.mrf.mxu0
    %v7358 = vadd.f32 0.0, %v7357
    %7359 = vmatmul.f32.gmra.mxu0 %v5465
    %v7360 = vpop.f32.mrf.mxu0
    %v7361 = vadd.f32 0.0, %v7360
    %7362 = vmatmul.f32.gmra.mxu0 %v5466
    %v7363 = vpop.f32.mrf.mxu0
    %v7364 = vadd.f32 0.0, %v7363
    %7365 = vmatmul.f32.gmra.mxu0 %v5467
    %v7366 = vpop.f32.mrf.mxu0
    %v7367 = vadd.f32 0.0, %v7366
    %7368 = vmatmul.f32.gmra.mxu0 %v5468
    %v7369 = vpop.f32.mrf.mxu0
    %v7370 = vadd.f32 0.0, %v7369
    %7371 = vmatmul.f32.gmra.mxu0 %v5469
    %v7372 = vpop.f32.mrf.mxu0
    %v7373 = vadd.f32 0.0, %v7372
    %7374 = vmatmul.f32.gmra.mxu0 %v5470
    %v7375 = vpop.f32.mrf.mxu0
    %v7376 = vadd.f32 0.0, %v7375
    %7377 = vmatmul.f32.gmra.mxu0 %v5471
    %v7378 = vpop.f32.mrf.mxu0
    %v7379 = vadd.f32 0.0, %v7378
    %7380 = vmatmul.f32.gmra.mxu0 %v5472
    %v7381 = vpop.f32.mrf.mxu0
    %v7382 = vadd.f32 0.0, %v7381
    %7383 = vmatmul.f32.gmra.mxu0 %v5473
    %v7384 = vpop.f32.mrf.mxu0
    %v7385 = vadd.f32 0.0, %v7384
    %7386 = vmatmul.f32.gmra.mxu0 %v5474
    %v7387 = vpop.f32.mrf.mxu0
    %v7388 = vadd.f32 0.0, %v7387
    %7389 = vmatmul.f32.gmra.mxu0 %v5475
    %v7390 = vpop.f32.mrf.mxu0
    %v7391 = vadd.f32 0.0, %v7390
    %7392 = vmatmul.f32.gmra.mxu0 %v5476
    %v7393 = vpop.f32.mrf.mxu0
    %v7394 = vadd.f32 0.0, %v7393
    %7395 = vmatmul.f32.gmra.mxu0 %v5477
    %v7396 = vpop.f32.mrf.mxu0
    %v7397 = vadd.f32 0.0, %v7396
    %7398 = vmatmul.f32.gmra.mxu0 %v5478
    %v7399 = vpop.f32.mrf.mxu0
    %v7400 = vadd.f32 0.0, %v7399
    %7401 = vmatmul.f32.gmra.mxu0 %v5479
    %v7402 = vpop.f32.mrf.mxu0
    %v7403 = vadd.f32 0.0, %v7402
    %7404 = vmatmul.f32.gmra.mxu0 %v5480
    %v7405 = vpop.f32.mrf.mxu0
    %v7406 = vadd.f32 0.0, %v7405
    %7407 = vmatmul.f32.gmra.mxu0 %v5481
    %v7408 = vpop.f32.mrf.mxu0
    %v7409 = vadd.f32 0.0, %v7408
    %7410 = vmatmul.f32.gmra.mxu0 %v5482
    %v7411 = vpop.f32.mrf.mxu0
    %v7412 = vadd.f32 0.0, %v7411
    %7413 = vmatmul.f32.gmra.mxu0 %v5483
    %v7414 = vpop.f32.mrf.mxu0
    %v7415 = vadd.f32 0.0, %v7414
    %7416 = vmatmul.f32.gmra.mxu0 %v5484
    %v7417 = vpop.f32.mrf.mxu0
    %v7418 = vadd.f32 0.0, %v7417
    %7419 = vmatmul.f32.gmra.mxu0 %v5485
    %v7420 = vpop.f32.mrf.mxu0
    %v7421 = vadd.f32 0.0, %v7420
    %7422 = vmatmul.f32.gmra.mxu0 %v5486
    %v7423 = vpop.f32.mrf.mxu0
    %v7424 = vadd.f32 0.0, %v7423
    %7425 = vmatmul.f32.gmra.mxu0 %v5487
    %v7426 = vpop.f32.mrf.mxu0
    %v7427 = vadd.f32 0.0, %v7426
    %7428 = vmatmul.f32.gmra.mxu0 %v5488
    %v7429 = vpop.f32.mrf.mxu0
    %v7430 = vadd.f32 0.0, %v7429
    %7431 = vmatmul.f32.gmra.mxu0 %v5489
    %v7432 = vpop.f32.mrf.mxu0
    %v7433 = vadd.f32 0.0, %v7432
    %7434 = vmatmul.f32.gmra.mxu0 %v5490
    %v7435 = vpop.f32.mrf.mxu0
    %v7436 = vadd.f32 0.0, %v7435
    %7437 = vmatmul.f32.gmra.mxu0 %v5491
    %v7438 = vpop.f32.mrf.mxu0
    %v7439 = vadd.f32 0.0, %v7438
    %7440 = vmatmul.f32.gmra.mxu0 %v5492
    %v7441 = vpop.f32.mrf.mxu0
    %v7442 = vadd.f32 0.0, %v7441
    %7443 = vmatmul.f32.gmra.mxu0 %v5493
    %v7444 = vpop.f32.mrf.mxu0
    %v7445 = vadd.f32 0.0, %v7444
    %7446 = vmatmul.f32.gmra.mxu0 %v5494
    %v7447 = vpop.f32.mrf.mxu0
    %v7448 = vadd.f32 0.0, %v7447
    %7449 = vmatmul.f32.gmra.mxu0 %v5495
    %v7450 = vpop.f32.mrf.mxu0
    %v7451 = vadd.f32 0.0, %v7450
    %7452 = vmatmul.f32.gmra.mxu0 %v5496
    %v7453 = vpop.f32.mrf.mxu0
    %v7454 = vadd.f32 0.0, %v7453
    %7455 = vmatmul.f32.gmra.mxu0 %v5497
    %v7456 = vpop.f32.mrf.mxu0
    %v7457 = vadd.f32 0.0, %v7456
    %7458 = vmatmul.f32.gmra.mxu0 %v5498
    %v7459 = vpop.f32.mrf.mxu0
    %v7460 = vadd.f32 0.0, %v7459
    %7461 = vmatmul.f32.gmra.mxu0 %v5499
    %v7462 = vpop.f32.mrf.mxu0
    %v7463 = vadd.f32 0.0, %v7462
    %7464 = vmatmul.f32.gmra.mxu0 %v5500
    %v7465 = vpop.f32.mrf.mxu0
    %v7466 = vadd.f32 0.0, %v7465
    %7467 = vmatmul.f32.gmra.mxu0 %v5501
    %v7468 = vpop.f32.mrf.mxu0
    %v7469 = vadd.f32 0.0, %v7468
    %7470 = vmatmul.f32.gmra.mxu0 %v5502
    %v7471 = vpop.f32.mrf.mxu0
    %v7472 = vadd.f32 0.0, %v7471
    %7473 = vmatmul.f32.gmra.mxu0 %v5503
    %v7474 = vpop.f32.mrf.mxu0
    %v7475 = vadd.f32 0.0, %v7474
    %7476 = vmatmul.f32.gmra.mxu0 %v5504
    %v7477 = vpop.f32.mrf.mxu0
    %v7478 = vadd.f32 0.0, %v7477
    %7479 = vmatmul.f32.gmra.mxu0 %v5505
    %v7480 = vpop.f32.mrf.mxu0
    %v7481 = vadd.f32 0.0, %v7480
    %7482 = vmatmul.f32.gmra.mxu0 %v5506
    %v7483 = vpop.f32.mrf.mxu0
    %v7484 = vadd.f32 0.0, %v7483
    %7485 = vmatmul.f32.gmra.mxu0 %v5507
    %v7486 = vpop.f32.mrf.mxu0
    %v7487 = vadd.f32 0.0, %v7486
    %7488 = vmatmul.f32.gmra.mxu0 %v5508
    %v7489 = vpop.f32.mrf.mxu0
    %v7490 = vadd.f32 0.0, %v7489
    %7491 = vmatmul.f32.gmra.mxu0 %v5509
    %v7492 = vpop.f32.mrf.mxu0
    %v7493 = vadd.f32 0.0, %v7492
    %7494 = vmatmul.f32.gmra.mxu0 %v5510
    %v7495 = vpop.f32.mrf.mxu0
    %v7496 = vadd.f32 0.0, %v7495
    %7497 = vmatmul.f32.gmra.mxu0 %v5511
    %v7498 = vpop.f32.mrf.mxu0
    %v7499 = vadd.f32 0.0, %v7498
    %7500 = vmatmul.f32.gmra.mxu0 %v5512
    %v7501 = vpop.f32.mrf.mxu0
    %v7502 = vadd.f32 0.0, %v7501
    %7503 = vmatmul.f32.gmra.mxu0 %v5513
    %v7504 = vpop.f32.mrf.mxu0
    %v7505 = vadd.f32 0.0, %v7504
    %7506 = vmatmul.f32.gmra.mxu0 %v5514
    %v7507 = vpop.f32.mrf.mxu0
    %v7508 = vadd.f32 0.0, %v7507
    %7509 = vmatmul.f32.gmra.mxu0 %v5515
    %v7510 = vpop.f32.mrf.mxu0
    %v7511 = vadd.f32 0.0, %v7510
    %7512 = vmatmul.f32.gmra.mxu0 %v5516
    %v7513 = vpop.f32.mrf.mxu0
    %v7514 = vadd.f32 0.0, %v7513
    %7515 = vmatmul.f32.gmra.mxu0 %v5517
    %v7516 = vpop.f32.mrf.mxu0
    %v7517 = vadd.f32 0.0, %v7516
    %7518 = vmatmul.f32.gmra.mxu0 %v5518
    %v7519 = vpop.f32.mrf.mxu0
    %v7520 = vadd.f32 0.0, %v7519
    %7521 = vmatmul.f32.gmra.mxu0 %v5519
    %v7522 = vpop.f32.mrf.mxu0
    %v7523 = vadd.f32 0.0, %v7522
    %7524 = vmatmul.f32.gmra.mxu0 %v5520
    %v7525 = vpop.f32.mrf.mxu0
    %v7526 = vadd.f32 0.0, %v7525
    %7527 = vmatmul.f32.gmra.mxu0 %v5521
    %v7528 = vpop.f32.mrf.mxu0
    %v7529 = vadd.f32 0.0, %v7528
    %7530 = vmatmul.f32.gmra.mxu0 %v5522
    %v7531 = vpop.f32.mrf.mxu0
    %v7532 = vadd.f32 0.0, %v7531
    %7533 = vmatmul.f32.gmra.mxu0 %v5523
    %v7534 = vpop.f32.mrf.mxu0
    %v7535 = vadd.f32 0.0, %v7534
    %7536 = vmatmul.f32.gmra.mxu0 %v5524
    %v7537 = vpop.f32.mrf.mxu0
    %v7538 = vadd.f32 0.0, %v7537
    %7539 = vmatmul.f32.gmra.mxu0 %v5525
    %v7540 = vpop.f32.mrf.mxu0
    %v7541 = vadd.f32 0.0, %v7540
    %7542 = vmatmul.f32.gmra.mxu0 %v5526
    %v7543 = vpop.f32.mrf.mxu0
    %v7544 = vadd.f32 0.0, %v7543
    %7545 = vmatmul.f32.gmra.mxu0 %v5527
    %v7546 = vpop.f32.mrf.mxu0
    %v7547 = vadd.f32 0.0, %v7546
    %7548 = vmatmul.f32.gmra.mxu0 %v5528
    %v7549 = vpop.f32.mrf.mxu0
    %v7550 = vadd.f32 0.0, %v7549
    %7551 = vmatmul.f32.gmra.mxu0 %v5529
    %v7552 = vpop.f32.mrf.mxu0
    %v7553 = vadd.f32 0.0, %v7552
    %7554 = vmatmul.f32.gmra.mxu0 %v5530
    %v7555 = vpop.f32.mrf.mxu0
    %v7556 = vadd.f32 0.0, %v7555
    %7557 = vmatmul.f32.gmra.mxu0 %v5531
    %v7558 = vpop.f32.mrf.mxu0
    %v7559 = vadd.f32 0.0, %v7558
    %7560 = vmatmul.f32.gmra.mxu0 %v5532
    %v7561 = vpop.f32.mrf.mxu0
    %v7562 = vadd.f32 0.0, %v7561
    %7563 = vmatmul.f32.gmra.mxu0 %v5533
    %v7564 = vpop.f32.mrf.mxu0
    %v7565 = vadd.f32 0.0, %v7564
    %7566 = vmatmul.f32.gmra.mxu0 %v5534
    %v7567 = vpop.f32.mrf.mxu0
    %v7568 = vadd.f32 0.0, %v7567
    %7569 = vmatmul.f32.gmra.mxu0 %v5535
    %v7570 = vpop.f32.mrf.mxu0
    %v7571 = vadd.f32 0.0, %v7570
    %7572 = vmatmul.f32.gmra.mxu0 %v5536
    %v7573 = vpop.f32.mrf.mxu0
    %v7574 = vadd.f32 0.0, %v7573
    %7575 = vmatmul.f32.gmra.mxu0 %v5537
    %v7576 = vpop.f32.mrf.mxu0
    %v7577 = vadd.f32 0.0, %v7576
    %7578 = vmatmul.f32.gmra.mxu0 %v5538
    %v7579 = vpop.f32.mrf.mxu0
    %v7580 = vadd.f32 0.0, %v7579
    %7581 = vmatmul.f32.gmra.mxu0 %v5539
    %v7582 = vpop.f32.mrf.mxu0
    %v7583 = vadd.f32 0.0, %v7582
    %7584 = vmatmul.f32.gmra.mxu0 %v5540
    %v7585 = vpop.f32.mrf.mxu0
    %v7586 = vadd.f32 0.0, %v7585
    %7587 = vmatmul.f32.gmra.mxu0 %v5541
    %v7588 = vpop.f32.mrf.mxu0
    %v7589 = vadd.f32 0.0, %v7588
    %7590 = vmatmul.f32.gmra.mxu0 %v5542
    %v7591 = vpop.f32.mrf.mxu0
    %v7592 = vadd.f32 0.0, %v7591
    %7593 = vmatmul.f32.gmra.mxu0 %v5543
    %v7594 = vpop.f32.mrf.mxu0
    %v7595 = vadd.f32 0.0, %v7594
    %7596 = vmatmul.f32.gmra.mxu0 %v5544
    %v7597 = vpop.f32.mrf.mxu0
    %v7598 = vadd.f32 0.0, %v7597
    %7599 = vdwg.mxu0
    %v7600 = vadd.f32 %v7238, %v7355
    %v7601 = vadd.f32 %v7239, %v7358
    %v7602 = vadd.f32 %v7240, %v7361
    %v7603 = vadd.f32 %v7241, %v7364
    %v7604 = vadd.f32 %v7242, %v7367
    %v7605 = vadd.f32 %v7243, %v7370
    %v7606 = vadd.f32 %v7244, %v7373
    %v7607 = vadd.f32 %v7245, %v7376
    %v7608 = vadd.f32 %v7246, %v7379
    %v7609 = vadd.f32 %v7247, %v7382
    %v7610 = vadd.f32 %v7248, %v7385
    %v7611 = vadd.f32 %v7249, %v7388
    %v7612 = vadd.f32 %v7250, %v7391
    %v7613 = vadd.f32 %v7251, %v7394
    %v7614 = vadd.f32 %v7252, %v7397
    %v7615 = vadd.f32 %v7253, %v7400
    %v7616 = vadd.f32 %v7254, %v7403
    %v7617 = vadd.f32 %v7255, %v7406
    %v7618 = vadd.f32 %v7256, %v7409
    %v7619 = vadd.f32 %v7257, %v7412
    %v7620 = vadd.f32 %v7258, %v7415
    %v7621 = vadd.f32 %v7259, %v7418
    %v7622 = vadd.f32 %v7260, %v7421
    %v7623 = vadd.f32 %v7261, %v7424
    %v7624 = vadd.f32 %v7262, %v7427
    %v7625 = vadd.f32 %v7263, %v7430
    %v7626 = vadd.f32 %v7264, %v7433
    %v7627 = vadd.f32 %v7265, %v7436
    %v7628 = vadd.f32 %v7266, %v7439
    %v7629 = vadd.f32 %v7267, %v7442
    %v7630 = vadd.f32 %v7268, %v7445
    %v7631 = vadd.f32 %v7269, %v7448
    %v7632 = vadd.f32 %v7270, %v7451
    %v7633 = vadd.f32 %v7271, %v7454
    %v7634 = vadd.f32 %v7272, %v7457
    %v7635 = vadd.f32 %v7273, %v7460
    %v7636 = vadd.f32 %v7274, %v7463
    %v7637 = vadd.f32 %v7275, %v7466
    %v7638 = vadd.f32 %v7276, %v7469
    %v7639 = vadd.f32 %v7277, %v7472
    %v7640 = vadd.f32 %v7278, %v7475
    %v7641 = vadd.f32 %v7279, %v7478
    %v7642 = vadd.f32 %v7280, %v7481
    %v7643 = vadd.f32 %v7281, %v7484
    %v7644 = vadd.f32 %v7282, %v7487
    %v7645 = vadd.f32 %v7283, %v7490
    %v7646 = vadd.f32 %v7284, %v7493
    %v7647 = vadd.f32 %v7285, %v7496
    %v7648 = vadd.f32 %v7286, %v7499
    %v7649 = vadd.f32 %v7287, %v7502
    %v7650 = vadd.f32 %v7288, %v7505
    %v7651 = vadd.f32 %v7289, %v7508
    %v7652 = vadd.f32 %v7290, %v7511
    %v7653 = vadd.f32 %v7291, %v7514
    %v7654 = vadd.f32 %v7292, %v7517
    %v7655 = vadd.f32 %v7293, %v7520
    %v7656 = vadd.f32 %v7294, %v7523
    %v7657 = vadd.f32 %v7295, %v7526
    %v7658 = vadd.f32 %v7296, %v7529
    %v7659 = vadd.f32 %v7297, %v7532
    %v7660 = vadd.f32 %v7298, %v7535
    %v7661 = vadd.f32 %v7299, %v7538
    %v7662 = vadd.f32 %v7300, %v7541
    %v7663 = vadd.f32 %v7301, %v7544
    %v7664 = vadd.f32 %v7302, %v7547
    %v7665 = vadd.f32 %v7303, %v7550
    %v7666 = vadd.f32 %v7304, %v7553
    %v7667 = vadd.f32 %v7305, %v7556
    %v7668 = vadd.f32 %v7306, %v7559
    %v7669 = vadd.f32 %v7307, %v7562
    %v7670 = vadd.f32 %v7308, %v7565
    %v7671 = vadd.f32 %v7309, %v7568
    %v7672 = vadd.f32 %v7310, %v7571
    %v7673 = vadd.f32 %v7311, %v7574
    %v7674 = vadd.f32 %v7312, %v7577
    %v7675 = vadd.f32 %v7313, %v7580
    %v7676 = vadd.f32 %v7314, %v7583
    %v7677 = vadd.f32 %v7315, %v7586
    %v7678 = vadd.f32 %v7316, %v7589
    %v7679 = vadd.f32 %v7317, %v7592
    %v7680 = vadd.f32 %v7318, %v7595
    %v7681 = vadd.f32 %v7319, %v7598
    %v7682 = vrot.slane %v5463, 1
    %v7683 = vrot.slane %v5464, 1
    %v7684 = vrot.slane %v5465, 1
    %v7685 = vrot.slane %v5466, 1
    %v7686 = vrot.slane %v5467, 1
    %v7687 = vrot.slane %v5468, 1
    %v7688 = vrot.slane %v5469, 1
    %v7689 = vrot.slane %v5470, 1
    %v7690 = vrot.slane %v5471, 1
    %v7691 = vrot.slane %v5472, 1
    %v7692 = vrot.slane %v5473, 1
    %v7693 = vrot.slane %v5474, 1
    %v7694 = vrot.slane %v5475, 1
    %v7695 = vrot.slane %v5476, 1
    %v7696 = vrot.slane %v5477, 1
    %v7697 = vrot.slane %v5478, 1
    %v7698 = vrot.slane %v5479, 1
    %v7699 = vrot.slane %v5480, 1
    %v7700 = vrot.slane %v5481, 1
    %v7701 = vrot.slane %v5482, 1
    %v7702 = vrot.slane %v5483, 1
    %v7703 = vrot.slane %v5484, 1
    %v7704 = vrot.slane %v5485, 1
    %v7705 = vrot.slane %v5486, 1
    %v7706 = vrot.slane %v5487, 1
    %v7707 = vrot.slane %v5488, 1
    %v7708 = vrot.slane %v5489, 1
    %v7709 = vrot.slane %v5490, 1
    %v7710 = vrot.slane %v5491, 1
    %v7711 = vrot.slane %v5492, 1
    %v7712 = vrot.slane %v5493, 1
    %v7713 = vrot.slane %v5494, 1
    %v7714 = vrot.slane %v5495, 1
    %v7715 = vrot.slane %v5496, 1
    %v7716 = vrot.slane %v5497, 1
    %v7717 = vrot.slane %v5498, 1
    %v7718 = vrot.slane %v5499, 1
    %v7719 = vrot.slane %v5500, 1
    %v7720 = vrot.slane %v5501, 1
    %v7721 = vrot.slane %v5502, 1
    %v7722 = vrot.slane %v5503, 1
    %v7723 = vrot.slane %v5504, 1
    %v7724 = vrot.slane %v5505, 1
    %v7725 = vrot.slane %v5506, 1
    %v7726 = vrot.slane %v5507, 1
    %v7727 = vrot.slane %v5508, 1
    %v7728 = vrot.slane %v5509, 1
    %v7729 = vrot.slane %v5510, 1
    %v7730 = vrot.slane %v5511, 1
    %v7731 = vrot.slane %v5512, 1
    %v7732 = vrot.slane %v5513, 1
    %v7733 = vrot.slane %v5514, 1
    %v7734 = vrot.slane %v5515, 1
    %v7735 = vrot.slane %v5516, 1
    %v7736 = vrot.slane %v5517, 1
    %v7737 = vrot.slane %v5518, 1
    %v7738 = vrot.slane %v5519, 1
    %v7739 = vrot.slane %v5520, 1
    %v7740 = vrot.slane %v5521, 1
    %v7741 = vrot.slane %v5522, 1
    %v7742 = vrot.slane %v5523, 1
    %v7743 = vrot.slane %v5524, 1
    %v7744 = vrot.slane %v5525, 1
    %v7745 = vrot.slane %v5526, 1
    %v7746 = vrot.slane %v5527, 1
    %v7747 = vrot.slane %v5528, 1
    %v7748 = vrot.slane %v5529, 1
    %v7749 = vrot.slane %v5530, 1
    %v7750 = vrot.slane %v5531, 1
    %v7751 = vrot.slane %v5532, 1
    %v7752 = vrot.slane %v5533, 1
    %v7753 = vrot.slane %v5534, 1
    %v7754 = vrot.slane %v5535, 1
    %v7755 = vrot.slane %v5536, 1
    %v7756 = vrot.slane %v5537, 1
    %v7757 = vrot.slane %v5538, 1
    %v7758 = vrot.slane %v5539, 1
    %v7759 = vrot.slane %v5540, 1
    %v7760 = vrot.slane %v5541, 1
    %v7761 = vrot.slane %v5542, 1
    %v7762 = vrot.slane %v5543, 1
    %v7763 = vrot.slane %v5544, 1
    %v7764 = vsel %vm3270, %v7762, %v7763
    %v7765 = vsel %vm3270, %v7761, %v7762
    %v7766 = vsel %vm3270, %v7760, %v7761
    %v7767 = vsel %vm3270, %v7759, %v7760
    %v7768 = vsel %vm3270, %v7758, %v7759
    %v7769 = vsel %vm3270, %v7757, %v7758
    %v7770 = vsel %vm3270, %v7756, %v7757
    %v7771 = vsel %vm3270, %v7755, %v7756
    %v7772 = vsel %vm3270, %v7754, %v7755
    %v7773 = vsel %vm3270, %v7753, %v7754
    %v7774 = vsel %vm3270, %v7752, %v7753
    %v7775 = vsel %vm3270, %v7751, %v7752
    %v7776 = vsel %vm3270, %v7750, %v7751
    %v7777 = vsel %vm3270, %v7749, %v7750
    %v7778 = vsel %vm3270, %v7748, %v7749
    %v7779 = vsel %vm3270, %v7747, %v7748
    %v7780 = vsel %vm3270, %v7746, %v7747
    %v7781 = vsel %vm3270, %v7745, %v7746
    %v7782 = vsel %vm3270, %v7744, %v7745
    %v7783 = vsel %vm3270, %v7743, %v7744
    %v7784 = vsel %vm3270, %v7742, %v7743
    %v7785 = vsel %vm3270, %v7741, %v7742
    %v7786 = vsel %vm3270, %v7740, %v7741
    %v7787 = vsel %vm3270, %v7739, %v7740
    %v7788 = vsel %vm3270, %v7738, %v7739
    %v7789 = vsel %vm3270, %v7737, %v7738
    %v7790 = vsel %vm3270, %v7736, %v7737
    %v7791 = vsel %vm3270, %v7735, %v7736
    %v7792 = vsel %vm3270, %v7734, %v7735
    %v7793 = vsel %vm3270, %v7733, %v7734
    %v7794 = vsel %vm3270, %v7732, %v7733
    %v7795 = vsel %vm3270, %v7731, %v7732
    %v7796 = vsel %vm3270, %v7730, %v7731
    %v7797 = vsel %vm3270, %v7729, %v7730
    %v7798 = vsel %vm3270, %v7728, %v7729
    %v7799 = vsel %vm3270, %v7727, %v7728
    %v7800 = vsel %vm3270, %v7726, %v7727
    %v7801 = vsel %vm3270, %v7725, %v7726
    %v7802 = vsel %vm3270, %v7724, %v7725
    %v7803 = vsel %vm3270, %v7723, %v7724
    %v7804 = vsel %vm3270, %v7722, %v7723
    %v7805 = vsel %vm3270, %v7721, %v7722
    %v7806 = vsel %vm3270, %v7720, %v7721
    %v7807 = vsel %vm3270, %v7719, %v7720
    %v7808 = vsel %vm3270, %v7718, %v7719
    %v7809 = vsel %vm3270, %v7717, %v7718
    %v7810 = vsel %vm3270, %v7716, %v7717
    %v7811 = vsel %vm3270, %v7715, %v7716
    %v7812 = vsel %vm3270, %v7714, %v7715
    %v7813 = vsel %vm3270, %v7713, %v7714
    %v7814 = vsel %vm3270, %v7712, %v7713
    %v7815 = vsel %vm3270, %v7711, %v7712
    %v7816 = vsel %vm3270, %v7710, %v7711
    %v7817 = vsel %vm3270, %v7709, %v7710
    %v7818 = vsel %vm3270, %v7708, %v7709
    %v7819 = vsel %vm3270, %v7707, %v7708
    %v7820 = vsel %vm3270, %v7706, %v7707
    %v7821 = vsel %vm3270, %v7705, %v7706
    %v7822 = vsel %vm3270, %v7704, %v7705
    %v7823 = vsel %vm3270, %v7703, %v7704
    %v7824 = vsel %vm3270, %v7702, %v7703
    %v7825 = vsel %vm3270, %v7701, %v7702
    %v7826 = vsel %vm3270, %v7700, %v7701
    %v7827 = vsel %vm3270, %v7699, %v7700
    %v7828 = vsel %vm3270, %v7698, %v7699
    %v7829 = vsel %vm3270, %v7697, %v7698
    %v7830 = vsel %vm3270, %v7696, %v7697
    %v7831 = vsel %vm3270, %v7695, %v7696
    %v7832 = vsel %vm3270, %v7694, %v7695
    %v7833 = vsel %vm3270, %v7693, %v7694
    %v7834 = vsel %vm3270, %v7692, %v7693
    %v7835 = vsel %vm3270, %v7691, %v7692
    %v7836 = vsel %vm3270, %v7690, %v7691
    %v7837 = vsel %vm3270, %v7689, %v7690
    %v7838 = vsel %vm3270, %v7688, %v7689
    %v7839 = vsel %vm3270, %v7687, %v7688
    %v7840 = vsel %vm3270, %v7686, %v7687
    %v7841 = vsel %vm3270, %v7685, %v7686
    %v7842 = vsel %vm3270, %v7684, %v7685
    %v7843 = vsel %vm3270, %v7683, %v7684
    %v7844 = vsel %vm3270, %v7682, %v7683
    %v7845 = vsel %vm3270, %v7763, %v7682
    %s7846 = scalar_lea.vmem %s6, 640
    %v7847 = vld [vmem:[%s7846] sm:$0xff]
    %v7848 = vld [vmem:[%s7846 + $0x8] sm:$0xff]
    %v7849 = vld [vmem:[%s7846 + $0x10] sm:$0xff]
    %v7850 = vld [vmem:[%s7846 + $0x18] sm:$0xff]
    %v7851 = vld [vmem:[%s7846 + $0x20] sm:$0xff]
    %v7852 = vld [vmem:[%s7846 + $0x28] sm:$0xff]
    %v7853 = vld [vmem:[%s7846 + $0x30] sm:$0xff]
    %v7854 = vld [vmem:[%s7846 + $0x38] sm:$0xff]
    %v7855 = vld [vmem:[%s7846 + $0x40] sm:$0xff]
    %v7856 = vld [vmem:[%s7846 + $0x48] sm:$0xff]
    %v7857 = vld [vmem:[%s7846 + $0x50] sm:$0xff]
    %v7858 = vld [vmem:[%s7846 + $0x58] sm:$0xff]
    %v7859 = vld [vmem:[%s7846 + $0x60] sm:$0xff]
    %v7860 = vld [vmem:[%s7846 + $0x68] sm:$0xff]
    %v7861 = vld [vmem:[%s7846 + $0x70] sm:$0xff]
    %v7862 = vld [vmem:[%s7846 + $0x78] sm:$0xff]
    %7863 = vmatpush.msra.mxu0 %v7862
    %7864 = vmatpush.msra.mxu0 %v7861
    %7865 = vmatpush.msra.mxu0 %v7860
    %7866 = vmatpush.msra.mxu0 %v7859
    %7867 = vmatpush.msra.mxu0 %v7858
    %7868 = vmatpush.msra.mxu0 %v7857
    %7869 = vmatpush.msra.mxu0 %v7856
    %7870 = vmatpush.msra.mxu0 %v7855
    %7871 = vmatpush.msra.mxu0 %v7854
    %7872 = vmatpush.msra.mxu0 %v7853
    %7873 = vmatpush.msra.mxu0 %v7852
    %7874 = vmatpush.msra.mxu0 %v7851
    %7875 = vmatpush.msra.mxu0 %v7850
    %7876 = vmatpush.msra.mxu0 %v7849
    %7877 = vmatpush.msra.mxu0 %v7848
    %7878 = vmatpush.msra.mxu0 %v7847
    %7879 = vmatmul.f32.gmra.mxu0 %v7844
    %v7880 = vpop.f32.mrf.mxu0
    %v7881 = vadd.f32 0.0, %v7880
    %7882 = vmatmul.f32.gmra.mxu0 %v7843
    %v7883 = vpop.f32.mrf.mxu0
    %v7884 = vadd.f32 0.0, %v7883
    %7885 = vmatmul.f32.gmra.mxu0 %v7842
    %v7886 = vpop.f32.mrf.mxu0
    %v7887 = vadd.f32 0.0, %v7886
    %7888 = vmatmul.f32.gmra.mxu0 %v7841
    %v7889 = vpop.f32.mrf.mxu0
    %v7890 = vadd.f32 0.0, %v7889
    %7891 = vmatmul.f32.gmra.mxu0 %v7840
    %v7892 = vpop.f32.mrf.mxu0
    %v7893 = vadd.f32 0.0, %v7892
    %7894 = vmatmul.f32.gmra.mxu0 %v7839
    %v7895 = vpop.f32.mrf.mxu0
    %v7896 = vadd.f32 0.0, %v7895
    %7897 = vmatmul.f32.gmra.mxu0 %v7838
    %v7898 = vpop.f32.mrf.mxu0
    %v7899 = vadd.f32 0.0, %v7898
    %7900 = vmatmul.f32.gmra.mxu0 %v7837
    %v7901 = vpop.f32.mrf.mxu0
    %v7902 = vadd.f32 0.0, %v7901
    %7903 = vmatmul.f32.gmra.mxu0 %v7836
    %v7904 = vpop.f32.mrf.mxu0
    %v7905 = vadd.f32 0.0, %v7904
    %7906 = vmatmul.f32.gmra.mxu0 %v7835
    %v7907 = vpop.f32.mrf.mxu0
    %v7908 = vadd.f32 0.0, %v7907
    %7909 = vmatmul.f32.gmra.mxu0 %v7834
    %v7910 = vpop.f32.mrf.mxu0
    %v7911 = vadd.f32 0.0, %v7910
    %7912 = vmatmul.f32.gmra.mxu0 %v7833
    %v7913 = vpop.f32.mrf.mxu0
    %v7914 = vadd.f32 0.0, %v7913
    %7915 = vmatmul.f32.gmra.mxu0 %v7832
    %v7916 = vpop.f32.mrf.mxu0
    %v7917 = vadd.f32 0.0, %v7916
    %7918 = vmatmul.f32.gmra.mxu0 %v7831
    %v7919 = vpop.f32.mrf.mxu0
    %v7920 = vadd.f32 0.0, %v7919
    %7921 = vmatmul.f32.gmra.mxu0 %v7830
    %v7922 = vpop.f32.mrf.mxu0
    %v7923 = vadd.f32 0.0, %v7922
    %7924 = vmatmul.f32.gmra.mxu0 %v7829
    %v7925 = vpop.f32.mrf.mxu0
    %v7926 = vadd.f32 0.0, %v7925
    %7927 = vmatmul.f32.gmra.mxu0 %v7828
    %v7928 = vpop.f32.mrf.mxu0
    %v7929 = vadd.f32 0.0, %v7928
    %7930 = vmatmul.f32.gmra.mxu0 %v7827
    %v7931 = vpop.f32.mrf.mxu0
    %v7932 = vadd.f32 0.0, %v7931
    %7933 = vmatmul.f32.gmra.mxu0 %v7826
    %v7934 = vpop.f32.mrf.mxu0
    %v7935 = vadd.f32 0.0, %v7934
    %7936 = vmatmul.f32.gmra.mxu0 %v7825
    %v7937 = vpop.f32.mrf.mxu0
    %v7938 = vadd.f32 0.0, %v7937
    %7939 = vmatmul.f32.gmra.mxu0 %v7824
    %v7940 = vpop.f32.mrf.mxu0
    %v7941 = vadd.f32 0.0, %v7940
    %7942 = vmatmul.f32.gmra.mxu0 %v7823
    %v7943 = vpop.f32.mrf.mxu0
    %v7944 = vadd.f32 0.0, %v7943
    %7945 = vmatmul.f32.gmra.mxu0 %v7822
    %v7946 = vpop.f32.mrf.mxu0
    %v7947 = vadd.f32 0.0, %v7946
    %7948 = vmatmul.f32.gmra.mxu0 %v7821
    %v7949 = vpop.f32.mrf.mxu0
    %v7950 = vadd.f32 0.0, %v7949
    %7951 = vmatmul.f32.gmra.mxu0 %v7820
    %v7952 = vpop.f32.mrf.mxu0
    %v7953 = vadd.f32 0.0, %v7952
    %7954 = vmatmul.f32.gmra.mxu0 %v7819
    %v7955 = vpop.f32.mrf.mxu0
    %v7956 = vadd.f32 0.0, %v7955
    %7957 = vmatmul.f32.gmra.mxu0 %v7818
    %v7958 = vpop.f32.mrf.mxu0
    %v7959 = vadd.f32 0.0, %v7958
    %7960 = vmatmul.f32.gmra.mxu0 %v7817
    %v7961 = vpop.f32.mrf.mxu0
    %v7962 = vadd.f32 0.0, %v7961
    %7963 = vmatmul.f32.gmra.mxu0 %v7816
    %v7964 = vpop.f32.mrf.mxu0
    %v7965 = vadd.f32 0.0, %v7964
    %7966 = vmatmul.f32.gmra.mxu0 %v7815
    %v7967 = vpop.f32.mrf.mxu0
    %v7968 = vadd.f32 0.0, %v7967
    %7969 = vmatmul.f32.gmra.mxu0 %v7814
    %v7970 = vpop.f32.mrf.mxu0
    %v7971 = vadd.f32 0.0, %v7970
    %7972 = vmatmul.f32.gmra.mxu0 %v7813
    %v7973 = vpop.f32.mrf.mxu0
    %v7974 = vadd.f32 0.0, %v7973
    %7975 = vmatmul.f32.gmra.mxu0 %v7812
    %v7976 = vpop.f32.mrf.mxu0
    %v7977 = vadd.f32 0.0, %v7976
    %7978 = vmatmul.f32.gmra.mxu0 %v7811
    %v7979 = vpop.f32.mrf.mxu0
    %v7980 = vadd.f32 0.0, %v7979
    %7981 = vmatmul.f32.gmra.mxu0 %v7810
    %v7982 = vpop.f32.mrf.mxu0
    %v7983 = vadd.f32 0.0, %v7982
    %7984 = vmatmul.f32.gmra.mxu0 %v7809
    %v7985 = vpop.f32.mrf.mxu0
    %v7986 = vadd.f32 0.0, %v7985
    %7987 = vmatmul.f32.gmra.mxu0 %v7808
    %v7988 = vpop.f32.mrf.mxu0
    %v7989 = vadd.f32 0.0, %v7988
    %7990 = vmatmul.f32.gmra.mxu0 %v7807
    %v7991 = vpop.f32.mrf.mxu0
    %v7992 = vadd.f32 0.0, %v7991
    %7993 = vmatmul.f32.gmra.mxu0 %v7806
    %v7994 = vpop.f32.mrf.mxu0
    %v7995 = vadd.f32 0.0, %v7994
    %7996 = vmatmul.f32.gmra.mxu0 %v7805
    %v7997 = vpop.f32.mrf.mxu0
    %v7998 = vadd.f32 0.0, %v7997
    %7999 = vmatmul.f32.gmra.mxu0 %v7804
    %v8000 = vpop.f32.mrf.mxu0
    %v8001 = vadd.f32 0.0, %v8000
    %8002 = vmatmul.f32.gmra.mxu0 %v7803
    %v8003 = vpop.f32.mrf.mxu0
    %v8004 = vadd.f32 0.0, %v8003
    %8005 = vmatmul.f32.gmra.mxu0 %v7802
    %v8006 = vpop.f32.mrf.mxu0
    %v8007 = vadd.f32 0.0, %v8006
    %8008 = vmatmul.f32.gmra.mxu0 %v7801
    %v8009 = vpop.f32.mrf.mxu0
    %v8010 = vadd.f32 0.0, %v8009
    %8011 = vmatmul.f32.gmra.mxu0 %v7800
    %v8012 = vpop.f32.mrf.mxu0
    %v8013 = vadd.f32 0.0, %v8012
    %8014 = vmatmul.f32.gmra.mxu0 %v7799
    %v8015 = vpop.f32.mrf.mxu0
    %v8016 = vadd.f32 0.0, %v8015
    %8017 = vmatmul.f32.gmra.mxu0 %v7798
    %v8018 = vpop.f32.mrf.mxu0
    %v8019 = vadd.f32 0.0, %v8018
    %8020 = vmatmul.f32.gmra.mxu0 %v7797
    %v8021 = vpop.f32.mrf.mxu0
    %v8022 = vadd.f32 0.0, %v8021
    %8023 = vmatmul.f32.gmra.mxu0 %v7796
    %v8024 = vpop.f32.mrf.mxu0
    %v8025 = vadd.f32 0.0, %v8024
    %8026 = vmatmul.f32.gmra.mxu0 %v7795
    %v8027 = vpop.f32.mrf.mxu0
    %v8028 = vadd.f32 0.0, %v8027
    %8029 = vmatmul.f32.gmra.mxu0 %v7794
    %v8030 = vpop.f32.mrf.mxu0
    %v8031 = vadd.f32 0.0, %v8030
    %8032 = vmatmul.f32.gmra.mxu0 %v7793
    %v8033 = vpop.f32.mrf.mxu0
    %v8034 = vadd.f32 0.0, %v8033
    %8035 = vmatmul.f32.gmra.mxu0 %v7792
    %v8036 = vpop.f32.mrf.mxu0
    %v8037 = vadd.f32 0.0, %v8036
    %8038 = vmatmul.f32.gmra.mxu0 %v7791
    %v8039 = vpop.f32.mrf.mxu0
    %v8040 = vadd.f32 0.0, %v8039
    %8041 = vmatmul.f32.gmra.mxu0 %v7790
    %v8042 = vpop.f32.mrf.mxu0
    %v8043 = vadd.f32 0.0, %v8042
    %8044 = vmatmul.f32.gmra.mxu0 %v7789
    %v8045 = vpop.f32.mrf.mxu0
    %v8046 = vadd.f32 0.0, %v8045
    %8047 = vmatmul.f32.gmra.mxu0 %v7788
    %v8048 = vpop.f32.mrf.mxu0
    %v8049 = vadd.f32 0.0, %v8048
    %8050 = vmatmul.f32.gmra.mxu0 %v7787
    %v8051 = vpop.f32.mrf.mxu0
    %v8052 = vadd.f32 0.0, %v8051
    %8053 = vmatmul.f32.gmra.mxu0 %v7786
    %v8054 = vpop.f32.mrf.mxu0
    %v8055 = vadd.f32 0.0, %v8054
    %8056 = vmatmul.f32.gmra.mxu0 %v7785
    %v8057 = vpop.f32.mrf.mxu0
    %v8058 = vadd.f32 0.0, %v8057
    %8059 = vmatmul.f32.gmra.mxu0 %v7784
    %v8060 = vpop.f32.mrf.mxu0
    %v8061 = vadd.f32 0.0, %v8060
    %8062 = vmatmul.f32.gmra.mxu0 %v7783
    %v8063 = vpop.f32.mrf.mxu0
    %v8064 = vadd.f32 0.0, %v8063
    %8065 = vmatmul.f32.gmra.mxu0 %v7782
    %v8066 = vpop.f32.mrf.mxu0
    %v8067 = vadd.f32 0.0, %v8066
    %8068 = vmatmul.f32.gmra.mxu0 %v7781
    %v8069 = vpop.f32.mrf.mxu0
    %v8070 = vadd.f32 0.0, %v8069
    %8071 = vmatmul.f32.gmra.mxu0 %v7780
    %v8072 = vpop.f32.mrf.mxu0
    %v8073 = vadd.f32 0.0, %v8072
    %8074 = vmatmul.f32.gmra.mxu0 %v7779
    %v8075 = vpop.f32.mrf.mxu0
    %v8076 = vadd.f32 0.0, %v8075
    %8077 = vmatmul.f32.gmra.mxu0 %v7778
    %v8078 = vpop.f32.mrf.mxu0
    %v8079 = vadd.f32 0.0, %v8078
    %8080 = vmatmul.f32.gmra.mxu0 %v7777
    %v8081 = vpop.f32.mrf.mxu0
    %v8082 = vadd.f32 0.0, %v8081
    %8083 = vmatmul.f32.gmra.mxu0 %v7776
    %v8084 = vpop.f32.mrf.mxu0
    %v8085 = vadd.f32 0.0, %v8084
    %8086 = vmatmul.f32.gmra.mxu0 %v7775
    %v8087 = vpop.f32.mrf.mxu0
    %v8088 = vadd.f32 0.0, %v8087
    %8089 = vmatmul.f32.gmra.mxu0 %v7774
    %v8090 = vpop.f32.mrf.mxu0
    %v8091 = vadd.f32 0.0, %v8090
    %8092 = vmatmul.f32.gmra.mxu0 %v7773
    %v8093 = vpop.f32.mrf.mxu0
    %v8094 = vadd.f32 0.0, %v8093
    %8095 = vmatmul.f32.gmra.mxu0 %v7772
    %v8096 = vpop.f32.mrf.mxu0
    %v8097 = vadd.f32 0.0, %v8096
    %8098 = vmatmul.f32.gmra.mxu0 %v7771
    %v8099 = vpop.f32.mrf.mxu0
    %v8100 = vadd.f32 0.0, %v8099
    %8101 = vmatmul.f32.gmra.mxu0 %v7770
    %v8102 = vpop.f32.mrf.mxu0
    %v8103 = vadd.f32 0.0, %v8102
    %8104 = vmatmul.f32.gmra.mxu0 %v7769
    %v8105 = vpop.f32.mrf.mxu0
    %v8106 = vadd.f32 0.0, %v8105
    %8107 = vmatmul.f32.gmra.mxu0 %v7768
    %v8108 = vpop.f32.mrf.mxu0
    %v8109 = vadd.f32 0.0, %v8108
    %8110 = vmatmul.f32.gmra.mxu0 %v7767
    %v8111 = vpop.f32.mrf.mxu0
    %v8112 = vadd.f32 0.0, %v8111
    %8113 = vmatmul.f32.gmra.mxu0 %v7766
    %v8114 = vpop.f32.mrf.mxu0
    %v8115 = vadd.f32 0.0, %v8114
    %8116 = vmatmul.f32.gmra.mxu0 %v7765
    %v8117 = vpop.f32.mrf.mxu0
    %v8118 = vadd.f32 0.0, %v8117
    %8119 = vmatmul.f32.gmra.mxu0 %v7764
    %v8120 = vpop.f32.mrf.mxu0
    %v8121 = vadd.f32 0.0, %v8120
    %8122 = vmatmul.f32.gmra.mxu0 %v7845
    %v8123 = vpop.f32.mrf.mxu0
    %v8124 = vadd.f32 0.0, %v8123
    %8125 = vdwg.mxu0
    %v8126 = vadd.f32 %v7600, %v7881
    %v8127 = vadd.f32 %v7601, %v7884
    %v8128 = vadd.f32 %v7602, %v7887
    %v8129 = vadd.f32 %v7603, %v7890
    %v8130 = vadd.f32 %v7604, %v7893
    %v8131 = vadd.f32 %v7605, %v7896
    %v8132 = vadd.f32 %v7606, %v7899
    %v8133 = vadd.f32 %v7607, %v7902
    %v8134 = vadd.f32 %v7608, %v7905
    %v8135 = vadd.f32 %v7609, %v7908
    %v8136 = vadd.f32 %v7610, %v7911
    %v8137 = vadd.f32 %v7611, %v7914
    %v8138 = vadd.f32 %v7612, %v7917
    %v8139 = vadd.f32 %v7613, %v7920
    %v8140 = vadd.f32 %v7614, %v7923
    %v8141 = vadd.f32 %v7615, %v7926
    %v8142 = vadd.f32 %v7616, %v7929
    %v8143 = vadd.f32 %v7617, %v7932
    %v8144 = vadd.f32 %v7618, %v7935
    %v8145 = vadd.f32 %v7619, %v7938
    %v8146 = vadd.f32 %v7620, %v7941
    %v8147 = vadd.f32 %v7621, %v7944
    %v8148 = vadd.f32 %v7622, %v7947
    %v8149 = vadd.f32 %v7623, %v7950
    %v8150 = vadd.f32 %v7624, %v7953
    %v8151 = vadd.f32 %v7625, %v7956
    %v8152 = vadd.f32 %v7626, %v7959
    %v8153 = vadd.f32 %v7627, %v7962
    %v8154 = vadd.f32 %v7628, %v7965
    %v8155 = vadd.f32 %v7629, %v7968
    %v8156 = vadd.f32 %v7630, %v7971
    %v8157 = vadd.f32 %v7631, %v7974
    %v8158 = vadd.f32 %v7632, %v7977
    %v8159 = vadd.f32 %v7633, %v7980
    %v8160 = vadd.f32 %v7634, %v7983
    %v8161 = vadd.f32 %v7635, %v7986
    %v8162 = vadd.f32 %v7636, %v7989
    %v8163 = vadd.f32 %v7637, %v7992
    %v8164 = vadd.f32 %v7638, %v7995
    %v8165 = vadd.f32 %v7639, %v7998
    %v8166 = vadd.f32 %v7640, %v8001
    %v8167 = vadd.f32 %v7641, %v8004
    %v8168 = vadd.f32 %v7642, %v8007
    %v8169 = vadd.f32 %v7643, %v8010
    %v8170 = vadd.f32 %v7644, %v8013
    %v8171 = vadd.f32 %v7645, %v8016
    %v8172 = vadd.f32 %v7646, %v8019
    %v8173 = vadd.f32 %v7647, %v8022
    %v8174 = vadd.f32 %v7648, %v8025
    %v8175 = vadd.f32 %v7649, %v8028
    %v8176 = vadd.f32 %v7650, %v8031
    %v8177 = vadd.f32 %v7651, %v8034
    %v8178 = vadd.f32 %v7652, %v8037
    %v8179 = vadd.f32 %v7653, %v8040
    %v8180 = vadd.f32 %v7654, %v8043
    %v8181 = vadd.f32 %v7655, %v8046
    %v8182 = vadd.f32 %v7656, %v8049
    %v8183 = vadd.f32 %v7657, %v8052
    %v8184 = vadd.f32 %v7658, %v8055
    %v8185 = vadd.f32 %v7659, %v8058
    %v8186 = vadd.f32 %v7660, %v8061
    %v8187 = vadd.f32 %v7661, %v8064
    %v8188 = vadd.f32 %v7662, %v8067
    %v8189 = vadd.f32 %v7663, %v8070
    %v8190 = vadd.f32 %v7664, %v8073
    %v8191 = vadd.f32 %v7665, %v8076
    %v8192 = vadd.f32 %v7666, %v8079
    %v8193 = vadd.f32 %v7667, %v8082
    %v8194 = vadd.f32 %v7668, %v8085
    %v8195 = vadd.f32 %v7669, %v8088
    %v8196 = vadd.f32 %v7670, %v8091
    %v8197 = vadd.f32 %v7671, %v8094
    %v8198 = vadd.f32 %v7672, %v8097
    %v8199 = vadd.f32 %v7673, %v8100
    %v8200 = vadd.f32 %v7674, %v8103
    %v8201 = vadd.f32 %v7675, %v8106
    %v8202 = vadd.f32 %v7676, %v8109
    %v8203 = vadd.f32 %v7677, %v8112
    %v8204 = vadd.f32 %v7678, %v8115
    %v8205 = vadd.f32 %v7679, %v8118
    %v8206 = vadd.f32 %v7680, %v8121
    %v8207 = vadd.f32 %v7681, %v8124
    %s8208 = scalar_lea.vmem %s6, 768
    %v8209 = vld [vmem:[%s8208] sm:$0xff]
    %v8210 = vld [vmem:[%s8208 + $0x8] sm:$0xff]
    %v8211 = vld [vmem:[%s8208 + $0x10] sm:$0xff]
    %v8212 = vld [vmem:[%s8208 + $0x18] sm:$0xff]
    %v8213 = vld [vmem:[%s8208 + $0x20] sm:$0xff]
    %v8214 = vld [vmem:[%s8208 + $0x28] sm:$0xff]
    %v8215 = vld [vmem:[%s8208 + $0x30] sm:$0xff]
    %v8216 = vld [vmem:[%s8208 + $0x38] sm:$0xff]
    %v8217 = vld [vmem:[%s8208 + $0x40] sm:$0xff]
    %v8218 = vld [vmem:[%s8208 + $0x48] sm:$0xff]
    %v8219 = vld [vmem:[%s8208 + $0x50] sm:$0xff]
    %v8220 = vld [vmem:[%s8208 + $0x58] sm:$0xff]
    %v8221 = vld [vmem:[%s8208 + $0x60] sm:$0xff]
    %v8222 = vld [vmem:[%s8208 + $0x68] sm:$0xff]
    %v8223 = vld [vmem:[%s8208 + $0x70] sm:$0xff]
    %v8224 = vld [vmem:[%s8208 + $0x78] sm:$0xff]
    %8225 = vmatpush.msra.mxu0 %v8224
    %8226 = vmatpush.msra.mxu0 %v8223
    %8227 = vmatpush.msra.mxu0 %v8222
    %8228 = vmatpush.msra.mxu0 %v8221
    %8229 = vmatpush.msra.mxu0 %v8220
    %8230 = vmatpush.msra.mxu0 %v8219
    %8231 = vmatpush.msra.mxu0 %v8218
    %8232 = vmatpush.msra.mxu0 %v8217
    %8233 = vmatpush.msra.mxu0 %v8216
    %8234 = vmatpush.msra.mxu0 %v8215
    %8235 = vmatpush.msra.mxu0 %v8214
    %8236 = vmatpush.msra.mxu0 %v8213
    %8237 = vmatpush.msra.mxu0 %v8212
    %8238 = vmatpush.msra.mxu0 %v8211
    %8239 = vmatpush.msra.mxu0 %v8210
    %8240 = vmatpush.msra.mxu0 %v8209
    %8241 = vmatmul.f32.gmra.mxu0 %v7842
    %v8242 = vpop.f32.mrf.mxu0
    %v8243 = vadd.f32 0.0, %v8242
    %8244 = vmatmul.f32.gmra.mxu0 %v7841
    %v8245 = vpop.f32.mrf.mxu0
    %v8246 = vadd.f32 0.0, %v8245
    %8247 = vmatmul.f32.gmra.mxu0 %v7840
    %v8248 = vpop.f32.mrf.mxu0
    %v8249 = vadd.f32 0.0, %v8248
    %8250 = vmatmul.f32.gmra.mxu0 %v7839
    %v8251 = vpop.f32.mrf.mxu0
    %v8252 = vadd.f32 0.0, %v8251
    %8253 = vmatmul.f32.gmra.mxu0 %v7838
    %v8254 = vpop.f32.mrf.mxu0
    %v8255 = vadd.f32 0.0, %v8254
    %8256 = vmatmul.f32.gmra.mxu0 %v7837
    %v8257 = vpop.f32.mrf.mxu0
    %v8258 = vadd.f32 0.0, %v8257
    %8259 = vmatmul.f32.gmra.mxu0 %v7836
    %v8260 = vpop.f32.mrf.mxu0
    %v8261 = vadd.f32 0.0, %v8260
    %8262 = vmatmul.f32.gmra.mxu0 %v7835
    %v8263 = vpop.f32.mrf.mxu0
    %v8264 = vadd.f32 0.0, %v8263
    %8265 = vmatmul.f32.gmra.mxu0 %v7834
    %v8266 = vpop.f32.mrf.mxu0
    %v8267 = vadd.f32 0.0, %v8266
    %8268 = vmatmul.f32.gmra.mxu0 %v7833
    %v8269 = vpop.f32.mrf.mxu0
    %v8270 = vadd.f32 0.0, %v8269
    %8271 = vmatmul.f32.gmra.mxu0 %v7832
    %v8272 = vpop.f32.mrf.mxu0
    %v8273 = vadd.f32 0.0, %v8272
    %8274 = vmatmul.f32.gmra.mxu0 %v7831
    %v8275 = vpop.f32.mrf.mxu0
    %v8276 = vadd.f32 0.0, %v8275
    %8277 = vmatmul.f32.gmra.mxu0 %v7830
    %v8278 = vpop.f32.mrf.mxu0
    %v8279 = vadd.f32 0.0, %v8278
    %8280 = vmatmul.f32.gmra.mxu0 %v7829
    %v8281 = vpop.f32.mrf.mxu0
    %v8282 = vadd.f32 0.0, %v8281
    %8283 = vmatmul.f32.gmra.mxu0 %v7828
    %v8284 = vpop.f32.mrf.mxu0
    %v8285 = vadd.f32 0.0, %v8284
    %8286 = vmatmul.f32.gmra.mxu0 %v7827
    %v8287 = vpop.f32.mrf.mxu0
    %v8288 = vadd.f32 0.0, %v8287
    %8289 = vmatmul.f32.gmra.mxu0 %v7826
    %v8290 = vpop.f32.mrf.mxu0
    %v8291 = vadd.f32 0.0, %v8290
    %8292 = vmatmul.f32.gmra.mxu0 %v7825
    %v8293 = vpop.f32.mrf.mxu0
    %v8294 = vadd.f32 0.0, %v8293
    %8295 = vmatmul.f32.gmra.mxu0 %v7824
    %v8296 = vpop.f32.mrf.mxu0
    %v8297 = vadd.f32 0.0, %v8296
    %8298 = vmatmul.f32.gmra.mxu0 %v7823
    %v8299 = vpop.f32.mrf.mxu0
    %v8300 = vadd.f32 0.0, %v8299
    %8301 = vmatmul.f32.gmra.mxu0 %v7822
    %v8302 = vpop.f32.mrf.mxu0
    %v8303 = vadd.f32 0.0, %v8302
    %8304 = vmatmul.f32.gmra.mxu0 %v7821
    %v8305 = vpop.f32.mrf.mxu0
    %v8306 = vadd.f32 0.0, %v8305
    %8307 = vmatmul.f32.gmra.mxu0 %v7820
    %v8308 = vpop.f32.mrf.mxu0
    %v8309 = vadd.f32 0.0, %v8308
    %8310 = vmatmul.f32.gmra.mxu0 %v7819
    %v8311 = vpop.f32.mrf.mxu0
    %v8312 = vadd.f32 0.0, %v8311
    %8313 = vmatmul.f32.gmra.mxu0 %v7818
    %v8314 = vpop.f32.mrf.mxu0
    %v8315 = vadd.f32 0.0, %v8314
    %8316 = vmatmul.f32.gmra.mxu0 %v7817
    %v8317 = vpop.f32.mrf.mxu0
    %v8318 = vadd.f32 0.0, %v8317
    %8319 = vmatmul.f32.gmra.mxu0 %v7816
    %v8320 = vpop.f32.mrf.mxu0
    %v8321 = vadd.f32 0.0, %v8320
    %8322 = vmatmul.f32.gmra.mxu0 %v7815
    %v8323 = vpop.f32.mrf.mxu0
    %v8324 = vadd.f32 0.0, %v8323
    %8325 = vmatmul.f32.gmra.mxu0 %v7814
    %v8326 = vpop.f32.mrf.mxu0
    %v8327 = vadd.f32 0.0, %v8326
    %8328 = vmatmul.f32.gmra.mxu0 %v7813
    %v8329 = vpop.f32.mrf.mxu0
    %v8330 = vadd.f32 0.0, %v8329
    %8331 = vmatmul.f32.gmra.mxu0 %v7812
    %v8332 = vpop.f32.mrf.mxu0
    %v8333 = vadd.f32 0.0, %v8332
    %8334 = vmatmul.f32.gmra.mxu0 %v7811
    %v8335 = vpop.f32.mrf.mxu0
    %v8336 = vadd.f32 0.0, %v8335
    %8337 = vmatmul.f32.gmra.mxu0 %v7810
    %v8338 = vpop.f32.mrf.mxu0
    %v8339 = vadd.f32 0.0, %v8338
    %8340 = vmatmul.f32.gmra.mxu0 %v7809
    %v8341 = vpop.f32.mrf.mxu0
    %v8342 = vadd.f32 0.0, %v8341
    %8343 = vmatmul.f32.gmra.mxu0 %v7808
    %v8344 = vpop.f32.mrf.mxu0
    %v8345 = vadd.f32 0.0, %v8344
    %8346 = vmatmul.f32.gmra.mxu0 %v7807
    %v8347 = vpop.f32.mrf.mxu0
    %v8348 = vadd.f32 0.0, %v8347
    %8349 = vmatmul.f32.gmra.mxu0 %v7806
    %v8350 = vpop.f32.mrf.mxu0
    %v8351 = vadd.f32 0.0, %v8350
    %8352 = vmatmul.f32.gmra.mxu0 %v7805
    %v8353 = vpop.f32.mrf.mxu0
    %v8354 = vadd.f32 0.0, %v8353
    %8355 = vmatmul.f32.gmra.mxu0 %v7804
    %v8356 = vpop.f32.mrf.mxu0
    %v8357 = vadd.f32 0.0, %v8356
    %8358 = vmatmul.f32.gmra.mxu0 %v7803
    %v8359 = vpop.f32.mrf.mxu0
    %v8360 = vadd.f32 0.0, %v8359
    %8361 = vmatmul.f32.gmra.mxu0 %v7802
    %v8362 = vpop.f32.mrf.mxu0
    %v8363 = vadd.f32 0.0, %v8362
    %8364 = vmatmul.f32.gmra.mxu0 %v7801
    %v8365 = vpop.f32.mrf.mxu0
    %v8366 = vadd.f32 0.0, %v8365
    %8367 = vmatmul.f32.gmra.mxu0 %v7800
    %v8368 = vpop.f32.mrf.mxu0
    %v8369 = vadd.f32 0.0, %v8368
    %8370 = vmatmul.f32.gmra.mxu0 %v7799
    %v8371 = vpop.f32.mrf.mxu0
    %v8372 = vadd.f32 0.0, %v8371
    %8373 = vmatmul.f32.gmra.mxu0 %v7798
    %v8374 = vpop.f32.mrf.mxu0
    %v8375 = vadd.f32 0.0, %v8374
    %8376 = vmatmul.f32.gmra.mxu0 %v7797
    %v8377 = vpop.f32.mrf.mxu0
    %v8378 = vadd.f32 0.0, %v8377
    %8379 = vmatmul.f32.gmra.mxu0 %v7796
    %v8380 = vpop.f32.mrf.mxu0
    %v8381 = vadd.f32 0.0, %v8380
    %8382 = vmatmul.f32.gmra.mxu0 %v7795
    %v8383 = vpop.f32.mrf.mxu0
    %v8384 = vadd.f32 0.0, %v8383
    %8385 = vmatmul.f32.gmra.mxu0 %v7794
    %v8386 = vpop.f32.mrf.mxu0
    %v8387 = vadd.f32 0.0, %v8386
    %8388 = vmatmul.f32.gmra.mxu0 %v7793
    %v8389 = vpop.f32.mrf.mxu0
    %v8390 = vadd.f32 0.0, %v8389
    %8391 = vmatmul.f32.gmra.mxu0 %v7792
    %v8392 = vpop.f32.mrf.mxu0
    %v8393 = vadd.f32 0.0, %v8392
    %8394 = vmatmul.f32.gmra.mxu0 %v7791
    %v8395 = vpop.f32.mrf.mxu0
    %v8396 = vadd.f32 0.0, %v8395
    %8397 = vmatmul.f32.gmra.mxu0 %v7790
    %v8398 = vpop.f32.mrf.mxu0
    %v8399 = vadd.f32 0.0, %v8398
    %8400 = vmatmul.f32.gmra.mxu0 %v7789
    %v8401 = vpop.f32.mrf.mxu0
    %v8402 = vadd.f32 0.0, %v8401
    %8403 = vmatmul.f32.gmra.mxu0 %v7788
    %v8404 = vpop.f32.mrf.mxu0
    %v8405 = vadd.f32 0.0, %v8404
    %8406 = vmatmul.f32.gmra.mxu0 %v7787
    %v8407 = vpop.f32.mrf.mxu0
    %v8408 = vadd.f32 0.0, %v8407
    %8409 = vmatmul.f32.gmra.mxu0 %v7786
    %v8410 = vpop.f32.mrf.mxu0
    %v8411 = vadd.f32 0.0, %v8410
    %8412 = vmatmul.f32.gmra.mxu0 %v7785
    %v8413 = vpop.f32.mrf.mxu0
    %v8414 = vadd.f32 0.0, %v8413
    %8415 = vmatmul.f32.gmra.mxu0 %v7784
    %v8416 = vpop.f32.mrf.mxu0
    %v8417 = vadd.f32 0.0, %v8416
    %8418 = vmatmul.f32.gmra.mxu0 %v7783
    %v8419 = vpop.f32.mrf.mxu0
    %v8420 = vadd.f32 0.0, %v8419
    %8421 = vmatmul.f32.gmra.mxu0 %v7782
    %v8422 = vpop.f32.mrf.mxu0
    %v8423 = vadd.f32 0.0, %v8422
    %8424 = vmatmul.f32.gmra.mxu0 %v7781
    %v8425 = vpop.f32.mrf.mxu0
    %v8426 = vadd.f32 0.0, %v8425
    %8427 = vmatmul.f32.gmra.mxu0 %v7780
    %v8428 = vpop.f32.mrf.mxu0
    %v8429 = vadd.f32 0.0, %v8428
    %8430 = vmatmul.f32.gmra.mxu0 %v7779
    %v8431 = vpop.f32.mrf.mxu0
    %v8432 = vadd.f32 0.0, %v8431
    %8433 = vmatmul.f32.gmra.mxu0 %v7778
    %v8434 = vpop.f32.mrf.mxu0
    %v8435 = vadd.f32 0.0, %v8434
    %8436 = vmatmul.f32.gmra.mxu0 %v7777
    %v8437 = vpop.f32.mrf.mxu0
    %v8438 = vadd.f32 0.0, %v8437
    %8439 = vmatmul.f32.gmra.mxu0 %v7776
    %v8440 = vpop.f32.mrf.mxu0
    %v8441 = vadd.f32 0.0, %v8440
    %8442 = vmatmul.f32.gmra.mxu0 %v7775
    %v8443 = vpop.f32.mrf.mxu0
    %v8444 = vadd.f32 0.0, %v8443
    %8445 = vmatmul.f32.gmra.mxu0 %v7774
    %v8446 = vpop.f32.mrf.mxu0
    %v8447 = vadd.f32 0.0, %v8446
    %8448 = vmatmul.f32.gmra.mxu0 %v7773
    %v8449 = vpop.f32.mrf.mxu0
    %v8450 = vadd.f32 0.0, %v8449
    %8451 = vmatmul.f32.gmra.mxu0 %v7772
    %v8452 = vpop.f32.mrf.mxu0
    %v8453 = vadd.f32 0.0, %v8452
    %8454 = vmatmul.f32.gmra.mxu0 %v7771
    %v8455 = vpop.f32.mrf.mxu0
    %v8456 = vadd.f32 0.0, %v8455
    %8457 = vmatmul.f32.gmra.mxu0 %v7770
    %v8458 = vpop.f32.mrf.mxu0
    %v8459 = vadd.f32 0.0, %v8458
    %8460 = vmatmul.f32.gmra.mxu0 %v7769
    %v8461 = vpop.f32.mrf.mxu0
    %v8462 = vadd.f32 0.0, %v8461
    %8463 = vmatmul.f32.gmra.mxu0 %v7768
    %v8464 = vpop.f32.mrf.mxu0
    %v8465 = vadd.f32 0.0, %v8464
    %8466 = vmatmul.f32.gmra.mxu0 %v7767
    %v8467 = vpop.f32.mrf.mxu0
    %v8468 = vadd.f32 0.0, %v8467
    %8469 = vmatmul.f32.gmra.mxu0 %v7766
    %v8470 = vpop.f32.mrf.mxu0
    %v8471 = vadd.f32 0.0, %v8470
    %8472 = vmatmul.f32.gmra.mxu0 %v7765
    %v8473 = vpop.f32.mrf.mxu0
    %v8474 = vadd.f32 0.0, %v8473
    %8475 = vmatmul.f32.gmra.mxu0 %v7764
    %v8476 = vpop.f32.mrf.mxu0
    %v8477 = vadd.f32 0.0, %v8476
    %8478 = vmatmul.f32.gmra.mxu0 %v7845
    %v8479 = vpop.f32.mrf.mxu0
    %v8480 = vadd.f32 0.0, %v8479
    %8481 = vmatmul.f32.gmra.mxu0 %v7844
    %v8482 = vpop.f32.mrf.mxu0
    %v8483 = vadd.f32 0.0, %v8482
    %8484 = vmatmul.f32.gmra.mxu0 %v7843
    %v8485 = vpop.f32.mrf.mxu0
    %v8486 = vadd.f32 0.0, %v8485
    %8487 = vdwg.mxu0
    %v8488 = vadd.f32 %v8126, %v8243
    %v8489 = vadd.f32 %v8127, %v8246
    %v8490 = vadd.f32 %v8128, %v8249
    %v8491 = vadd.f32 %v8129, %v8252
    %v8492 = vadd.f32 %v8130, %v8255
    %v8493 = vadd.f32 %v8131, %v8258
    %v8494 = vadd.f32 %v8132, %v8261
    %v8495 = vadd.f32 %v8133, %v8264
    %v8496 = vadd.f32 %v8134, %v8267
    %v8497 = vadd.f32 %v8135, %v8270
    %v8498 = vadd.f32 %v8136, %v8273
    %v8499 = vadd.f32 %v8137, %v8276
    %v8500 = vadd.f32 %v8138, %v8279
    %v8501 = vadd.f32 %v8139, %v8282
    %v8502 = vadd.f32 %v8140, %v8285
    %v8503 = vadd.f32 %v8141, %v8288
    %v8504 = vadd.f32 %v8142, %v8291
    %v8505 = vadd.f32 %v8143, %v8294
    %v8506 = vadd.f32 %v8144, %v8297
    %v8507 = vadd.f32 %v8145, %v8300
    %v8508 = vadd.f32 %v8146, %v8303
    %v8509 = vadd.f32 %v8147, %v8306
    %v8510 = vadd.f32 %v8148, %v8309
    %v8511 = vadd.f32 %v8149, %v8312
    %v8512 = vadd.f32 %v8150, %v8315
    %v8513 = vadd.f32 %v8151, %v8318
    %v8514 = vadd.f32 %v8152, %v8321
    %v8515 = vadd.f32 %v8153, %v8324
    %v8516 = vadd.f32 %v8154, %v8327
    %v8517 = vadd.f32 %v8155, %v8330
    %v8518 = vadd.f32 %v8156, %v8333
    %v8519 = vadd.f32 %v8157, %v8336
    %v8520 = vadd.f32 %v8158, %v8339
    %v8521 = vadd.f32 %v8159, %v8342
    %v8522 = vadd.f32 %v8160, %v8345
    %v8523 = vadd.f32 %v8161, %v8348
    %v8524 = vadd.f32 %v8162, %v8351
    %v8525 = vadd.f32 %v8163, %v8354
    %v8526 = vadd.f32 %v8164, %v8357
    %v8527 = vadd.f32 %v8165, %v8360
    %v8528 = vadd.f32 %v8166, %v8363
    %v8529 = vadd.f32 %v8167, %v8366
    %v8530 = vadd.f32 %v8168, %v8369
    %v8531 = vadd.f32 %v8169, %v8372
    %v8532 = vadd.f32 %v8170, %v8375
    %v8533 = vadd.f32 %v8171, %v8378
    %v8534 = vadd.f32 %v8172, %v8381
    %v8535 = vadd.f32 %v8173, %v8384
    %v8536 = vadd.f32 %v8174, %v8387
    %v8537 = vadd.f32 %v8175, %v8390
    %v8538 = vadd.f32 %v8176, %v8393
    %v8539 = vadd.f32 %v8177, %v8396
    %v8540 = vadd.f32 %v8178, %v8399
    %v8541 = vadd.f32 %v8179, %v8402
    %v8542 = vadd.f32 %v8180, %v8405
    %v8543 = vadd.f32 %v8181, %v8408
    %v8544 = vadd.f32 %v8182, %v8411
    %v8545 = vadd.f32 %v8183, %v8414
    %v8546 = vadd.f32 %v8184, %v8417
    %v8547 = vadd.f32 %v8185, %v8420
    %v8548 = vadd.f32 %v8186, %v8423
    %v8549 = vadd.f32 %v8187, %v8426
    %v8550 = vadd.f32 %v8188, %v8429
    %v8551 = vadd.f32 %v8189, %v8432
    %v8552 = vadd.f32 %v8190, %v8435
    %v8553 = vadd.f32 %v8191, %v8438
    %v8554 = vadd.f32 %v8192, %v8441
    %v8555 = vadd.f32 %v8193, %v8444
    %v8556 = vadd.f32 %v8194, %v8447
    %v8557 = vadd.f32 %v8195, %v8450
    %v8558 = vadd.f32 %v8196, %v8453
    %v8559 = vadd.f32 %v8197, %v8456
    %v8560 = vadd.f32 %v8198, %v8459
    %v8561 = vadd.f32 %v8199, %v8462
    %v8562 = vadd.f32 %v8200, %v8465
    %v8563 = vadd.f32 %v8201, %v8468
    %v8564 = vadd.f32 %v8202, %v8471
    %v8565 = vadd.f32 %v8203, %v8474
    %v8566 = vadd.f32 %v8204, %v8477
    %v8567 = vadd.f32 %v8205, %v8480
    %v8568 = vadd.f32 %v8206, %v8483
    %v8569 = vadd.f32 %v8207, %v8486
    %v8570 = vrot.slane %v5463, 2
    %v8571 = vrot.slane %v5464, 2
    %v8572 = vrot.slane %v5465, 2
    %v8573 = vrot.slane %v5466, 2
    %v8574 = vrot.slane %v5467, 2
    %v8575 = vrot.slane %v5468, 2
    %v8576 = vrot.slane %v5469, 2
    %v8577 = vrot.slane %v5470, 2
    %v8578 = vrot.slane %v5471, 2
    %v8579 = vrot.slane %v5472, 2
    %v8580 = vrot.slane %v5473, 2
    %v8581 = vrot.slane %v5474, 2
    %v8582 = vrot.slane %v5475, 2
    %v8583 = vrot.slane %v5476, 2
    %v8584 = vrot.slane %v5477, 2
    %v8585 = vrot.slane %v5478, 2
    %v8586 = vrot.slane %v5479, 2
    %v8587 = vrot.slane %v5480, 2
    %v8588 = vrot.slane %v5481, 2
    %v8589 = vrot.slane %v5482, 2
    %v8590 = vrot.slane %v5483, 2
    %v8591 = vrot.slane %v5484, 2
    %v8592 = vrot.slane %v5485, 2
    %v8593 = vrot.slane %v5486, 2
    %v8594 = vrot.slane %v5487, 2
    %v8595 = vrot.slane %v5488, 2
    %v8596 = vrot.slane %v5489, 2
    %v8597 = vrot.slane %v5490, 2
    %v8598 = vrot.slane %v5491, 2
    %v8599 = vrot.slane %v5492, 2
    %v8600 = vrot.slane %v5493, 2
    %v8601 = vrot.slane %v5494, 2
    %v8602 = vrot.slane %v5495, 2
    %v8603 = vrot.slane %v5496, 2
    %v8604 = vrot.slane %v5497, 2
    %v8605 = vrot.slane %v5498, 2
    %v8606 = vrot.slane %v5499, 2
    %v8607 = vrot.slane %v5500, 2
    %v8608 = vrot.slane %v5501, 2
    %v8609 = vrot.slane %v5502, 2
    %v8610 = vrot.slane %v5503, 2
    %v8611 = vrot.slane %v5504, 2
    %v8612 = vrot.slane %v5505, 2
    %v8613 = vrot.slane %v5506, 2
    %v8614 = vrot.slane %v5507, 2
    %v8615 = vrot.slane %v5508, 2
    %v8616 = vrot.slane %v5509, 2
    %v8617 = vrot.slane %v5510, 2
    %v8618 = vrot.slane %v5511, 2
    %v8619 = vrot.slane %v5512, 2
    %v8620 = vrot.slane %v5513, 2
    %v8621 = vrot.slane %v5514, 2
    %v8622 = vrot.slane %v5515, 2
    %v8623 = vrot.slane %v5516, 2
    %v8624 = vrot.slane %v5517, 2
    %v8625 = vrot.slane %v5518, 2
    %v8626 = vrot.slane %v5519, 2
    %v8627 = vrot.slane %v5520, 2
    %v8628 = vrot.slane %v5521, 2
    %v8629 = vrot.slane %v5522, 2
    %v8630 = vrot.slane %v5523, 2
    %v8631 = vrot.slane %v5524, 2
    %v8632 = vrot.slane %v5525, 2
    %v8633 = vrot.slane %v5526, 2
    %v8634 = vrot.slane %v5527, 2
    %v8635 = vrot.slane %v5528, 2
    %v8636 = vrot.slane %v5529, 2
    %v8637 = vrot.slane %v5530, 2
    %v8638 = vrot.slane %v5531, 2
    %v8639 = vrot.slane %v5532, 2
    %v8640 = vrot.slane %v5533, 2
    %v8641 = vrot.slane %v5534, 2
    %v8642 = vrot.slane %v5535, 2
    %v8643 = vrot.slane %v5536, 2
    %v8644 = vrot.slane %v5537, 2
    %v8645 = vrot.slane %v5538, 2
    %v8646 = vrot.slane %v5539, 2
    %v8647 = vrot.slane %v5540, 2
    %v8648 = vrot.slane %v5541, 2
    %v8649 = vrot.slane %v5542, 2
    %v8650 = vrot.slane %v5543, 2
    %v8651 = vrot.slane %v5544, 2
    %v8652 = vsel %vm4159, %v8650, %v8651
    %v8653 = vsel %vm4159, %v8649, %v8650
    %v8654 = vsel %vm4159, %v8648, %v8649
    %v8655 = vsel %vm4159, %v8647, %v8648
    %v8656 = vsel %vm4159, %v8646, %v8647
    %v8657 = vsel %vm4159, %v8645, %v8646
    %v8658 = vsel %vm4159, %v8644, %v8645
    %v8659 = vsel %vm4159, %v8643, %v8644
    %v8660 = vsel %vm4159, %v8642, %v8643
    %v8661 = vsel %vm4159, %v8641, %v8642
    %v8662 = vsel %vm4159, %v8640, %v8641
    %v8663 = vsel %vm4159, %v8639, %v8640
    %v8664 = vsel %vm4159, %v8638, %v8639
    %v8665 = vsel %vm4159, %v8637, %v8638
    %v8666 = vsel %vm4159, %v8636, %v8637
    %v8667 = vsel %vm4159, %v8635, %v8636
    %v8668 = vsel %vm4159, %v8634, %v8635
    %v8669 = vsel %vm4159, %v8633, %v8634
    %v8670 = vsel %vm4159, %v8632, %v8633
    %v8671 = vsel %vm4159, %v8631, %v8632
    %v8672 = vsel %vm4159, %v8630, %v8631
    %v8673 = vsel %vm4159, %v8629, %v8630
    %v8674 = vsel %vm4159, %v8628, %v8629
    %v8675 = vsel %vm4159, %v8627, %v8628
    %v8676 = vsel %vm4159, %v8626, %v8627
    %v8677 = vsel %vm4159, %v8625, %v8626
    %v8678 = vsel %vm4159, %v8624, %v8625
    %v8679 = vsel %vm4159, %v8623, %v8624
    %v8680 = vsel %vm4159, %v8622, %v8623
    %v8681 = vsel %vm4159, %v8621, %v8622
    %v8682 = vsel %vm4159, %v8620, %v8621
    %v8683 = vsel %vm4159, %v8619, %v8620
    %v8684 = vsel %vm4159, %v8618, %v8619
    %v8685 = vsel %vm4159, %v8617, %v8618
    %v8686 = vsel %vm4159, %v8616, %v8617
    %v8687 = vsel %vm4159, %v8615, %v8616
    %v8688 = vsel %vm4159, %v8614, %v8615
    %v8689 = vsel %vm4159, %v8613, %v8614
    %v8690 = vsel %vm4159, %v8612, %v8613
    %v8691 = vsel %vm4159, %v8611, %v8612
    %v8692 = vsel %vm4159, %v8610, %v8611
    %v8693 = vsel %vm4159, %v8609, %v8610
    %v8694 = vsel %vm4159, %v8608, %v8609
    %v8695 = vsel %vm4159, %v8607, %v8608
    %v8696 = vsel %vm4159, %v8606, %v8607
    %v8697 = vsel %vm4159, %v8605, %v8606
    %v8698 = vsel %vm4159, %v8604, %v8605
    %v8699 = vsel %vm4159, %v8603, %v8604
    %v8700 = vsel %vm4159, %v8602, %v8603
    %v8701 = vsel %vm4159, %v8601, %v8602
    %v8702 = vsel %vm4159, %v8600, %v8601
    %v8703 = vsel %vm4159, %v8599, %v8600
    %v8704 = vsel %vm4159, %v8598, %v8599
    %v8705 = vsel %vm4159, %v8597, %v8598
    %v8706 = vsel %vm4159, %v8596, %v8597
    %v8707 = vsel %vm4159, %v8595, %v8596
    %v8708 = vsel %vm4159, %v8594, %v8595
    %v8709 = vsel %vm4159, %v8593, %v8594
    %v8710 = vsel %vm4159, %v8592, %v8593
    %v8711 = vsel %vm4159, %v8591, %v8592
    %v8712 = vsel %vm4159, %v8590, %v8591
    %v8713 = vsel %vm4159, %v8589, %v8590
    %v8714 = vsel %vm4159, %v8588, %v8589
    %v8715 = vsel %vm4159, %v8587, %v8588
    %v8716 = vsel %vm4159, %v8586, %v8587
    %v8717 = vsel %vm4159, %v8585, %v8586
    %v8718 = vsel %vm4159, %v8584, %v8585
    %v8719 = vsel %vm4159, %v8583, %v8584
    %v8720 = vsel %vm4159, %v8582, %v8583
    %v8721 = vsel %vm4159, %v8581, %v8582
    %v8722 = vsel %vm4159, %v8580, %v8581
    %v8723 = vsel %vm4159, %v8579, %v8580
    %v8724 = vsel %vm4159, %v8578, %v8579
    %v8725 = vsel %vm4159, %v8577, %v8578
    %v8726 = vsel %vm4159, %v8576, %v8577
    %v8727 = vsel %vm4159, %v8575, %v8576
    %v8728 = vsel %vm4159, %v8574, %v8575
    %v8729 = vsel %vm4159, %v8573, %v8574
    %v8730 = vsel %vm4159, %v8572, %v8573
    %v8731 = vsel %vm4159, %v8571, %v8572
    %v8732 = vsel %vm4159, %v8570, %v8571
    %v8733 = vsel %vm4159, %v8651, %v8570
    %s8734 = scalar_lea.vmem %s6, 896
    %v8735 = vld [vmem:[%s8734] sm:$0xff]
    %v8736 = vld [vmem:[%s8734 + $0x8] sm:$0xff]
    %v8737 = vld [vmem:[%s8734 + $0x10] sm:$0xff]
    %v8738 = vld [vmem:[%s8734 + $0x18] sm:$0xff]
    %v8739 = vld [vmem:[%s8734 + $0x20] sm:$0xff]
    %v8740 = vld [vmem:[%s8734 + $0x28] sm:$0xff]
    %v8741 = vld [vmem:[%s8734 + $0x30] sm:$0xff]
    %v8742 = vld [vmem:[%s8734 + $0x38] sm:$0xff]
    %v8743 = vld [vmem:[%s8734 + $0x40] sm:$0xff]
    %v8744 = vld [vmem:[%s8734 + $0x48] sm:$0xff]
    %v8745 = vld [vmem:[%s8734 + $0x50] sm:$0xff]
    %v8746 = vld [vmem:[%s8734 + $0x58] sm:$0xff]
    %v8747 = vld [vmem:[%s8734 + $0x60] sm:$0xff]
    %v8748 = vld [vmem:[%s8734 + $0x68] sm:$0xff]
    %v8749 = vld [vmem:[%s8734 + $0x70] sm:$0xff]
    %v8750 = vld [vmem:[%s8734 + $0x78] sm:$0xff]
    %8751 = vmatpush.msra.mxu0 %v8750
    %8752 = vmatpush.msra.mxu0 %v8749
    %8753 = vmatpush.msra.mxu0 %v8748
    %8754 = vmatpush.msra.mxu0 %v8747
    %8755 = vmatpush.msra.mxu0 %v8746
    %8756 = vmatpush.msra.mxu0 %v8745
    %8757 = vmatpush.msra.mxu0 %v8744
    %8758 = vmatpush.msra.mxu0 %v8743
    %8759 = vmatpush.msra.mxu0 %v8742
    %8760 = vmatpush.msra.mxu0 %v8741
    %8761 = vmatpush.msra.mxu0 %v8740
    %8762 = vmatpush.msra.mxu0 %v8739
    %8763 = vmatpush.msra.mxu0 %v8738
    %8764 = vmatpush.msra.mxu0 %v8737
    %8765 = vmatpush.msra.mxu0 %v8736
    %8766 = vmatpush.msra.mxu0 %v8735
    %8767 = vmatmul.f32.gmra.mxu0 %v8730
    %v8768 = vpop.f32.mrf.mxu0
    %v8769 = vadd.f32 0.0, %v8768
    %8770 = vmatmul.f32.gmra.mxu0 %v8729
    %v8771 = vpop.f32.mrf.mxu0
    %v8772 = vadd.f32 0.0, %v8771
    %8773 = vmatmul.f32.gmra.mxu0 %v8728
    %v8774 = vpop.f32.mrf.mxu0
    %v8775 = vadd.f32 0.0, %v8774
    %8776 = vmatmul.f32.gmra.mxu0 %v8727
    %v8777 = vpop.f32.mrf.mxu0
    %v8778 = vadd.f32 0.0, %v8777
    %8779 = vmatmul.f32.gmra.mxu0 %v8726
    %v8780 = vpop.f32.mrf.mxu0
    %v8781 = vadd.f32 0.0, %v8780
    %8782 = vmatmul.f32.gmra.mxu0 %v8725
    %v8783 = vpop.f32.mrf.mxu0
    %v8784 = vadd.f32 0.0, %v8783
    %8785 = vmatmul.f32.gmra.mxu0 %v8724
    %v8786 = vpop.f32.mrf.mxu0
    %v8787 = vadd.f32 0.0, %v8786
    %8788 = vmatmul.f32.gmra.mxu0 %v8723
    %v8789 = vpop.f32.mrf.mxu0
    %v8790 = vadd.f32 0.0, %v8789
    %8791 = vmatmul.f32.gmra.mxu0 %v8722
    %v8792 = vpop.f32.mrf.mxu0
    %v8793 = vadd.f32 0.0, %v8792
    %8794 = vmatmul.f32.gmra.mxu0 %v8721
    %v8795 = vpop.f32.mrf.mxu0
    %v8796 = vadd.f32 0.0, %v8795
    %8797 = vmatmul.f32.gmra.mxu0 %v8720
    %v8798 = vpop.f32.mrf.mxu0
    %v8799 = vadd.f32 0.0, %v8798
    %8800 = vmatmul.f32.gmra.mxu0 %v8719
    %v8801 = vpop.f32.mrf.mxu0
    %v8802 = vadd.f32 0.0, %v8801
    %8803 = vmatmul.f32.gmra.mxu0 %v8718
    %v8804 = vpop.f32.mrf.mxu0
    %v8805 = vadd.f32 0.0, %v8804
    %8806 = vmatmul.f32.gmra.mxu0 %v8717
    %v8807 = vpop.f32.mrf.mxu0
    %v8808 = vadd.f32 0.0, %v8807
    %8809 = vmatmul.f32.gmra.mxu0 %v8716
    %v8810 = vpop.f32.mrf.mxu0
    %v8811 = vadd.f32 0.0, %v8810
    %8812 = vmatmul.f32.gmra.mxu0 %v8715
    %v8813 = vpop.f32.mrf.mxu0
    %v8814 = vadd.f32 0.0, %v8813
    %8815 = vmatmul.f32.gmra.mxu0 %v8714
    %v8816 = vpop.f32.mrf.mxu0
    %v8817 = vadd.f32 0.0, %v8816
    %8818 = vmatmul.f32.gmra.mxu0 %v8713
    %v8819 = vpop.f32.mrf.mxu0
    %v8820 = vadd.f32 0.0, %v8819
    %8821 = vmatmul.f32.gmra.mxu0 %v8712
    %v8822 = vpop.f32.mrf.mxu0
    %v8823 = vadd.f32 0.0, %v8822
    %8824 = vmatmul.f32.gmra.mxu0 %v8711
    %v8825 = vpop.f32.mrf.mxu0
    %v8826 = vadd.f32 0.0, %v8825
    %8827 = vmatmul.f32.gmra.mxu0 %v8710
    %v8828 = vpop.f32.mrf.mxu0
    %v8829 = vadd.f32 0.0, %v8828
    %8830 = vmatmul.f32.gmra.mxu0 %v8709
    %v8831 = vpop.f32.mrf.mxu0
    %v8832 = vadd.f32 0.0, %v8831
    %8833 = vmatmul.f32.gmra.mxu0 %v8708
    %v8834 = vpop.f32.mrf.mxu0
    %v8835 = vadd.f32 0.0, %v8834
    %8836 = vmatmul.f32.gmra.mxu0 %v8707
    %v8837 = vpop.f32.mrf.mxu0
    %v8838 = vadd.f32 0.0, %v8837
    %8839 = vmatmul.f32.gmra.mxu0 %v8706
    %v8840 = vpop.f32.mrf.mxu0
    %v8841 = vadd.f32 0.0, %v8840
    %8842 = vmatmul.f32.gmra.mxu0 %v8705
    %v8843 = vpop.f32.mrf.mxu0
    %v8844 = vadd.f32 0.0, %v8843
    %8845 = vmatmul.f32.gmra.mxu0 %v8704
    %v8846 = vpop.f32.mrf.mxu0
    %v8847 = vadd.f32 0.0, %v8846
    %8848 = vmatmul.f32.gmra.mxu0 %v8703
    %v8849 = vpop.f32.mrf.mxu0
    %v8850 = vadd.f32 0.0, %v8849
    %8851 = vmatmul.f32.gmra.mxu0 %v8702
    %v8852 = vpop.f32.mrf.mxu0
    %v8853 = vadd.f32 0.0, %v8852
    %8854 = vmatmul.f32.gmra.mxu0 %v8701
    %v8855 = vpop.f32.mrf.mxu0
    %v8856 = vadd.f32 0.0, %v8855
    %8857 = vmatmul.f32.gmra.mxu0 %v8700
    %v8858 = vpop.f32.mrf.mxu0
    %v8859 = vadd.f32 0.0, %v8858
    %8860 = vmatmul.f32.gmra.mxu0 %v8699
    %v8861 = vpop.f32.mrf.mxu0
    %v8862 = vadd.f32 0.0, %v8861
    %8863 = vmatmul.f32.gmra.mxu0 %v8698
    %v8864 = vpop.f32.mrf.mxu0
    %v8865 = vadd.f32 0.0, %v8864
    %8866 = vmatmul.f32.gmra.mxu0 %v8697
    %v8867 = vpop.f32.mrf.mxu0
    %v8868 = vadd.f32 0.0, %v8867
    %8869 = vmatmul.f32.gmra.mxu0 %v8696
    %v8870 = vpop.f32.mrf.mxu0
    %v8871 = vadd.f32 0.0, %v8870
    %8872 = vmatmul.f32.gmra.mxu0 %v8695
    %v8873 = vpop.f32.mrf.mxu0
    %v8874 = vadd.f32 0.0, %v8873
    %8875 = vmatmul.f32.gmra.mxu0 %v8694
    %v8876 = vpop.f32.mrf.mxu0
    %v8877 = vadd.f32 0.0, %v8876
    %8878 = vmatmul.f32.gmra.mxu0 %v8693
    %v8879 = vpop.f32.mrf.mxu0
    %v8880 = vadd.f32 0.0, %v8879
    %8881 = vmatmul.f32.gmra.mxu0 %v8692
    %v8882 = vpop.f32.mrf.mxu0
    %v8883 = vadd.f32 0.0, %v8882
    %8884 = vmatmul.f32.gmra.mxu0 %v8691
    %v8885 = vpop.f32.mrf.mxu0
    %v8886 = vadd.f32 0.0, %v8885
    %8887 = vmatmul.f32.gmra.mxu0 %v8690
    %v8888 = vpop.f32.mrf.mxu0
    %v8889 = vadd.f32 0.0, %v8888
    %8890 = vmatmul.f32.gmra.mxu0 %v8689
    %v8891 = vpop.f32.mrf.mxu0
    %v8892 = vadd.f32 0.0, %v8891
    %8893 = vmatmul.f32.gmra.mxu0 %v8688
    %v8894 = vpop.f32.mrf.mxu0
    %v8895 = vadd.f32 0.0, %v8894
    %8896 = vmatmul.f32.gmra.mxu0 %v8687
    %v8897 = vpop.f32.mrf.mxu0
    %v8898 = vadd.f32 0.0, %v8897
    %8899 = vmatmul.f32.gmra.mxu0 %v8686
    %v8900 = vpop.f32.mrf.mxu0
    %v8901 = vadd.f32 0.0, %v8900
    %8902 = vmatmul.f32.gmra.mxu0 %v8685
    %v8903 = vpop.f32.mrf.mxu0
    %v8904 = vadd.f32 0.0, %v8903
    %8905 = vmatmul.f32.gmra.mxu0 %v8684
    %v8906 = vpop.f32.mrf.mxu0
    %v8907 = vadd.f32 0.0, %v8906
    %8908 = vmatmul.f32.gmra.mxu0 %v8683
    %v8909 = vpop.f32.mrf.mxu0
    %v8910 = vadd.f32 0.0, %v8909
    %8911 = vmatmul.f32.gmra.mxu0 %v8682
    %v8912 = vpop.f32.mrf.mxu0
    %v8913 = vadd.f32 0.0, %v8912
    %8914 = vmatmul.f32.gmra.mxu0 %v8681
    %v8915 = vpop.f32.mrf.mxu0
    %v8916 = vadd.f32 0.0, %v8915
    %8917 = vmatmul.f32.gmra.mxu0 %v8680
    %v8918 = vpop.f32.mrf.mxu0
    %v8919 = vadd.f32 0.0, %v8918
    %8920 = vmatmul.f32.gmra.mxu0 %v8679
    %v8921 = vpop.f32.mrf.mxu0
    %v8922 = vadd.f32 0.0, %v8921
    %8923 = vmatmul.f32.gmra.mxu0 %v8678
    %v8924 = vpop.f32.mrf.mxu0
    %v8925 = vadd.f32 0.0, %v8924
    %8926 = vmatmul.f32.gmra.mxu0 %v8677
    %v8927 = vpop.f32.mrf.mxu0
    %v8928 = vadd.f32 0.0, %v8927
    %8929 = vmatmul.f32.gmra.mxu0 %v8676
    %v8930 = vpop.f32.mrf.mxu0
    %v8931 = vadd.f32 0.0, %v8930
    %8932 = vmatmul.f32.gmra.mxu0 %v8675
    %v8933 = vpop.f32.mrf.mxu0
    %v8934 = vadd.f32 0.0, %v8933
    %8935 = vmatmul.f32.gmra.mxu0 %v8674
    %v8936 = vpop.f32.mrf.mxu0
    %v8937 = vadd.f32 0.0, %v8936
    %8938 = vmatmul.f32.gmra.mxu0 %v8673
    %v8939 = vpop.f32.mrf.mxu0
    %v8940 = vadd.f32 0.0, %v8939
    %8941 = vmatmul.f32.gmra.mxu0 %v8672
    %v8942 = vpop.f32.mrf.mxu0
    %v8943 = vadd.f32 0.0, %v8942
    %8944 = vmatmul.f32.gmra.mxu0 %v8671
    %v8945 = vpop.f32.mrf.mxu0
    %v8946 = vadd.f32 0.0, %v8945
    %8947 = vmatmul.f32.gmra.mxu0 %v8670
    %v8948 = vpop.f32.mrf.mxu0
    %v8949 = vadd.f32 0.0, %v8948
    %8950 = vmatmul.f32.gmra.mxu0 %v8669
    %v8951 = vpop.f32.mrf.mxu0
    %v8952 = vadd.f32 0.0, %v8951
    %8953 = vmatmul.f32.gmra.mxu0 %v8668
    %v8954 = vpop.f32.mrf.mxu0
    %v8955 = vadd.f32 0.0, %v8954
    %8956 = vmatmul.f32.gmra.mxu0 %v8667
    %v8957 = vpop.f32.mrf.mxu0
    %v8958 = vadd.f32 0.0, %v8957
    %8959 = vmatmul.f32.gmra.mxu0 %v8666
    %v8960 = vpop.f32.mrf.mxu0
    %v8961 = vadd.f32 0.0, %v8960
    %8962 = vmatmul.f32.gmra.mxu0 %v8665
    %v8963 = vpop.f32.mrf.mxu0
    %v8964 = vadd.f32 0.0, %v8963
    %8965 = vmatmul.f32.gmra.mxu0 %v8664
    %v8966 = vpop.f32.mrf.mxu0
    %v8967 = vadd.f32 0.0, %v8966
    %8968 = vmatmul.f32.gmra.mxu0 %v8663
    %v8969 = vpop.f32.mrf.mxu0
    %v8970 = vadd.f32 0.0, %v8969
    %8971 = vmatmul.f32.gmra.mxu0 %v8662
    %v8972 = vpop.f32.mrf.mxu0
    %v8973 = vadd.f32 0.0, %v8972
    %8974 = vmatmul.f32.gmra.mxu0 %v8661
    %v8975 = vpop.f32.mrf.mxu0
    %v8976 = vadd.f32 0.0, %v8975
    %8977 = vmatmul.f32.gmra.mxu0 %v8660
    %v8978 = vpop.f32.mrf.mxu0
    %v8979 = vadd.f32 0.0, %v8978
    %8980 = vmatmul.f32.gmra.mxu0 %v8659
    %v8981 = vpop.f32.mrf.mxu0
    %v8982 = vadd.f32 0.0, %v8981
    %8983 = vmatmul.f32.gmra.mxu0 %v8658
    %v8984 = vpop.f32.mrf.mxu0
    %v8985 = vadd.f32 0.0, %v8984
    %8986 = vmatmul.f32.gmra.mxu0 %v8657
    %v8987 = vpop.f32.mrf.mxu0
    %v8988 = vadd.f32 0.0, %v8987
    %8989 = vmatmul.f32.gmra.mxu0 %v8656
    %v8990 = vpop.f32.mrf.mxu0
    %v8991 = vadd.f32 0.0, %v8990
    %8992 = vmatmul.f32.gmra.mxu0 %v8655
    %v8993 = vpop.f32.mrf.mxu0
    %v8994 = vadd.f32 0.0, %v8993
    %8995 = vmatmul.f32.gmra.mxu0 %v8654
    %v8996 = vpop.f32.mrf.mxu0
    %v8997 = vadd.f32 0.0, %v8996
    %8998 = vmatmul.f32.gmra.mxu0 %v8653
    %v8999 = vpop.f32.mrf.mxu0
    %v9000 = vadd.f32 0.0, %v8999
    %9001 = vmatmul.f32.gmra.mxu0 %v8652
    %v9002 = vpop.f32.mrf.mxu0
    %v9003 = vadd.f32 0.0, %v9002
    %9004 = vmatmul.f32.gmra.mxu0 %v8733
    %v9005 = vpop.f32.mrf.mxu0
    %v9006 = vadd.f32 0.0, %v9005
    %9007 = vmatmul.f32.gmra.mxu0 %v8732
    %v9008 = vpop.f32.mrf.mxu0
    %v9009 = vadd.f32 0.0, %v9008
    %9010 = vmatmul.f32.gmra.mxu0 %v8731
    %v9011 = vpop.f32.mrf.mxu0
    %v9012 = vadd.f32 0.0, %v9011
    %9013 = vdwg.mxu0
    %v9014 = vadd.f32 %v8488, %v8769
    %v9015 = vadd.f32 %v8489, %v8772
    %v9016 = vadd.f32 %v8490, %v8775
    %v9017 = vadd.f32 %v8491, %v8778
    %v9018 = vadd.f32 %v8492, %v8781
    %v9019 = vadd.f32 %v8493, %v8784
    %v9020 = vadd.f32 %v8494, %v8787
    %v9021 = vadd.f32 %v8495, %v8790
    %v9022 = vadd.f32 %v8496, %v8793
    %v9023 = vadd.f32 %v8497, %v8796
    %v9024 = vadd.f32 %v8498, %v8799
    %v9025 = vadd.f32 %v8499, %v8802
    %v9026 = vadd.f32 %v8500, %v8805
    %v9027 = vadd.f32 %v8501, %v8808
    %v9028 = vadd.f32 %v8502, %v8811
    %v9029 = vadd.f32 %v8503, %v8814
    %v9030 = vadd.f32 %v8504, %v8817
    %v9031 = vadd.f32 %v8505, %v8820
    %v9032 = vadd.f32 %v8506, %v8823
    %v9033 = vadd.f32 %v8507, %v8826
    %v9034 = vadd.f32 %v8508, %v8829
    %v9035 = vadd.f32 %v8509, %v8832
    %v9036 = vadd.f32 %v8510, %v8835
    %v9037 = vadd.f32 %v8511, %v8838
    %v9038 = vadd.f32 %v8512, %v8841
    %v9039 = vadd.f32 %v8513, %v8844
    %v9040 = vadd.f32 %v8514, %v8847
    %v9041 = vadd.f32 %v8515, %v8850
    %v9042 = vadd.f32 %v8516, %v8853
    %v9043 = vadd.f32 %v8517, %v8856
    %v9044 = vadd.f32 %v8518, %v8859
    %v9045 = vadd.f32 %v8519, %v8862
    %v9046 = vadd.f32 %v8520, %v8865
    %v9047 = vadd.f32 %v8521, %v8868
    %v9048 = vadd.f32 %v8522, %v8871
    %v9049 = vadd.f32 %v8523, %v8874
    %v9050 = vadd.f32 %v8524, %v8877
    %v9051 = vadd.f32 %v8525, %v8880
    %v9052 = vadd.f32 %v8526, %v8883
    %v9053 = vadd.f32 %v8527, %v8886
    %v9054 = vadd.f32 %v8528, %v8889
    %v9055 = vadd.f32 %v8529, %v8892
    %v9056 = vadd.f32 %v8530, %v8895
    %v9057 = vadd.f32 %v8531, %v8898
    %v9058 = vadd.f32 %v8532, %v8901
    %v9059 = vadd.f32 %v8533, %v8904
    %v9060 = vadd.f32 %v8534, %v8907
    %v9061 = vadd.f32 %v8535, %v8910
    %v9062 = vadd.f32 %v8536, %v8913
    %v9063 = vadd.f32 %v8537, %v8916
    %v9064 = vadd.f32 %v8538, %v8919
    %v9065 = vadd.f32 %v8539, %v8922
    %v9066 = vadd.f32 %v8540, %v8925
    %v9067 = vadd.f32 %v8541, %v8928
    %v9068 = vadd.f32 %v8542, %v8931
    %v9069 = vadd.f32 %v8543, %v8934
    %v9070 = vadd.f32 %v8544, %v8937
    %v9071 = vadd.f32 %v8545, %v8940
    %v9072 = vadd.f32 %v8546, %v8943
    %v9073 = vadd.f32 %v8547, %v8946
    %v9074 = vadd.f32 %v8548, %v8949
    %v9075 = vadd.f32 %v8549, %v8952
    %v9076 = vadd.f32 %v8550, %v8955
    %v9077 = vadd.f32 %v8551, %v8958
    %v9078 = vadd.f32 %v8552, %v8961
    %v9079 = vadd.f32 %v8553, %v8964
    %v9080 = vadd.f32 %v8554, %v8967
    %v9081 = vadd.f32 %v8555, %v8970
    %v9082 = vadd.f32 %v8556, %v8973
    %v9083 = vadd.f32 %v8557, %v8976
    %v9084 = vadd.f32 %v8558, %v8979
    %v9085 = vadd.f32 %v8559, %v8982
    %v9086 = vadd.f32 %v8560, %v8985
    %v9087 = vadd.f32 %v8561, %v8988
    %v9088 = vadd.f32 %v8562, %v8991
    %v9089 = vadd.f32 %v8563, %v8994
    %v9090 = vadd.f32 %v8564, %v8997
    %v9091 = vadd.f32 %v8565, %v9000
    %v9092 = vadd.f32 %v8566, %v9003
    %v9093 = vadd.f32 %v8567, %v9006
    %v9094 = vadd.f32 %v8568, %v9009
    %v9095 = vadd.f32 %v8569, %v9012
    %v9096 = vrot.slane %v5463, 3
    %v9097 = vrot.slane %v5464, 3
    %v9098 = vrot.slane %v5465, 3
    %v9099 = vrot.slane %v5466, 3
    %v9100 = vrot.slane %v5467, 3
    %v9101 = vrot.slane %v5468, 3
    %v9102 = vrot.slane %v5469, 3
    %v9103 = vrot.slane %v5470, 3
    %v9104 = vrot.slane %v5471, 3
    %v9105 = vrot.slane %v5472, 3
    %v9106 = vrot.slane %v5473, 3
    %v9107 = vrot.slane %v5474, 3
    %v9108 = vrot.slane %v5475, 3
    %v9109 = vrot.slane %v5476, 3
    %v9110 = vrot.slane %v5477, 3
    %v9111 = vrot.slane %v5478, 3
    %v9112 = vrot.slane %v5479, 3
    %v9113 = vrot.slane %v5480, 3
    %v9114 = vrot.slane %v5481, 3
    %v9115 = vrot.slane %v5482, 3
    %v9116 = vrot.slane %v5483, 3
    %v9117 = vrot.slane %v5484, 3
    %v9118 = vrot.slane %v5485, 3
    %v9119 = vrot.slane %v5486, 3
    %v9120 = vrot.slane %v5487, 3
    %v9121 = vrot.slane %v5488, 3
    %v9122 = vrot.slane %v5489, 3
    %v9123 = vrot.slane %v5490, 3
    %v9124 = vrot.slane %v5491, 3
    %v9125 = vrot.slane %v5492, 3
    %v9126 = vrot.slane %v5493, 3
    %v9127 = vrot.slane %v5494, 3
    %v9128 = vrot.slane %v5495, 3
    %v9129 = vrot.slane %v5496, 3
    %v9130 = vrot.slane %v5497, 3
    %v9131 = vrot.slane %v5498, 3
    %v9132 = vrot.slane %v5499, 3
    %v9133 = vrot.slane %v5500, 3
    %v9134 = vrot.slane %v5501, 3
    %v9135 = vrot.slane %v5502, 3
    %v9136 = vrot.slane %v5503, 3
    %v9137 = vrot.slane %v5504, 3
    %v9138 = vrot.slane %v5505, 3
    %v9139 = vrot.slane %v5506, 3
    %v9140 = vrot.slane %v5507, 3
    %v9141 = vrot.slane %v5508, 3
    %v9142 = vrot.slane %v5509, 3
    %v9143 = vrot.slane %v5510, 3
    %v9144 = vrot.slane %v5511, 3
    %v9145 = vrot.slane %v5512, 3
    %v9146 = vrot.slane %v5513, 3
    %v9147 = vrot.slane %v5514, 3
    %v9148 = vrot.slane %v5515, 3
    %v9149 = vrot.slane %v5516, 3
    %v9150 = vrot.slane %v5517, 3
    %v9151 = vrot.slane %v5518, 3
    %v9152 = vrot.slane %v5519, 3
    %v9153 = vrot.slane %v5520, 3
    %v9154 = vrot.slane %v5521, 3
    %v9155 = vrot.slane %v5522, 3
    %v9156 = vrot.slane %v5523, 3
    %v9157 = vrot.slane %v5524, 3
    %v9158 = vrot.slane %v5525, 3
    %v9159 = vrot.slane %v5526, 3
    %v9160 = vrot.slane %v5527, 3
    %v9161 = vrot.slane %v5528, 3
    %v9162 = vrot.slane %v5529, 3
    %v9163 = vrot.slane %v5530, 3
    %v9164 = vrot.slane %v5531, 3
    %v9165 = vrot.slane %v5532, 3
    %v9166 = vrot.slane %v5533, 3
    %v9167 = vrot.slane %v5534, 3
    %v9168 = vrot.slane %v5535, 3
    %v9169 = vrot.slane %v5536, 3
    %v9170 = vrot.slane %v5537, 3
    %v9171 = vrot.slane %v5538, 3
    %v9172 = vrot.slane %v5539, 3
    %v9173 = vrot.slane %v5540, 3
    %v9174 = vrot.slane %v5541, 3
    %v9175 = vrot.slane %v5542, 3
    %v9176 = vrot.slane %v5543, 3
    %v9177 = vrot.slane %v5544, 3
    %v9178 = vsel %vm4686, %v9176, %v9177
    %v9179 = vsel %vm4686, %v9175, %v9176
    %v9180 = vsel %vm4686, %v9174, %v9175
    %v9181 = vsel %vm4686, %v9173, %v9174
    %v9182 = vsel %vm4686, %v9172, %v9173
    %v9183 = vsel %vm4686, %v9171, %v9172
    %v9184 = vsel %vm4686, %v9170, %v9171
    %v9185 = vsel %vm4686, %v9169, %v9170
    %v9186 = vsel %vm4686, %v9168, %v9169
    %v9187 = vsel %vm4686, %v9167, %v9168
    %v9188 = vsel %vm4686, %v9166, %v9167
    %v9189 = vsel %vm4686, %v9165, %v9166
    %v9190 = vsel %vm4686, %v9164, %v9165
    %v9191 = vsel %vm4686, %v9163, %v9164
    %v9192 = vsel %vm4686, %v9162, %v9163
    %v9193 = vsel %vm4686, %v9161, %v9162
    %v9194 = vsel %vm4686, %v9160, %v9161
    %v9195 = vsel %vm4686, %v9159, %v9160
    %v9196 = vsel %vm4686, %v9158, %v9159
    %v9197 = vsel %vm4686, %v9157, %v9158
    %v9198 = vsel %vm4686, %v9156, %v9157
    %v9199 = vsel %vm4686, %v9155, %v9156
    %v9200 = vsel %vm4686, %v9154, %v9155
    %v9201 = vsel %vm4686, %v9153, %v9154
    %v9202 = vsel %vm4686, %v9152, %v9153
    %v9203 = vsel %vm4686, %v9151, %v9152
    %v9204 = vsel %vm4686, %v9150, %v9151
    %v9205 = vsel %vm4686, %v9149, %v9150
    %v9206 = vsel %vm4686, %v9148, %v9149
    %v9207 = vsel %vm4686, %v9147, %v9148
    %v9208 = vsel %vm4686, %v9146, %v9147
    %v9209 = vsel %vm4686, %v9145, %v9146
    %v9210 = vsel %vm4686, %v9144, %v9145
    %v9211 = vsel %vm4686, %v9143, %v9144
    %v9212 = vsel %vm4686, %v9142, %v9143
    %v9213 = vsel %vm4686, %v9141, %v9142
    %v9214 = vsel %vm4686, %v9140, %v9141
    %v9215 = vsel %vm4686, %v9139, %v9140
    %v9216 = vsel %vm4686, %v9138, %v9139
    %v9217 = vsel %vm4686, %v9137, %v9138
    %v9218 = vsel %vm4686, %v9136, %v9137
    %v9219 = vsel %vm4686, %v9135, %v9136
    %v9220 = vsel %vm4686, %v9134, %v9135
    %v9221 = vsel %vm4686, %v9133, %v9134
    %v9222 = vsel %vm4686, %v9132, %v9133
    %v9223 = vsel %vm4686, %v9131, %v9132
    %v9224 = vsel %vm4686, %v9130, %v9131
    %v9225 = vsel %vm4686, %v9129, %v9130
    %v9226 = vsel %vm4686, %v9128, %v9129
    %v9227 = vsel %vm4686, %v9127, %v9128
    %v9228 = vsel %vm4686, %v9126, %v9127
    %v9229 = vsel %vm4686, %v9125, %v9126
    %v9230 = vsel %vm4686, %v9124, %v9125
    %v9231 = vsel %vm4686, %v9123, %v9124
    %v9232 = vsel %vm4686, %v9122, %v9123
    %v9233 = vsel %vm4686, %v9121, %v9122
    %v9234 = vsel %vm4686, %v9120, %v9121
    %v9235 = vsel %vm4686, %v9119, %v9120
    %v9236 = vsel %vm4686, %v9118, %v9119
    %v9237 = vsel %vm4686, %v9117, %v9118
    %v9238 = vsel %vm4686, %v9116, %v9117
    %v9239 = vsel %vm4686, %v9115, %v9116
    %v9240 = vsel %vm4686, %v9114, %v9115
    %v9241 = vsel %vm4686, %v9113, %v9114
    %v9242 = vsel %vm4686, %v9112, %v9113
    %v9243 = vsel %vm4686, %v9111, %v9112
    %v9244 = vsel %vm4686, %v9110, %v9111
    %v9245 = vsel %vm4686, %v9109, %v9110
    %v9246 = vsel %vm4686, %v9108, %v9109
    %v9247 = vsel %vm4686, %v9107, %v9108
    %v9248 = vsel %vm4686, %v9106, %v9107
    %v9249 = vsel %vm4686, %v9105, %v9106
    %v9250 = vsel %vm4686, %v9104, %v9105
    %v9251 = vsel %vm4686, %v9103, %v9104
    %v9252 = vsel %vm4686, %v9102, %v9103
    %v9253 = vsel %vm4686, %v9101, %v9102
    %v9254 = vsel %vm4686, %v9100, %v9101
    %v9255 = vsel %vm4686, %v9099, %v9100
    %v9256 = vsel %vm4686, %v9098, %v9099
    %v9257 = vsel %vm4686, %v9097, %v9098
    %v9258 = vsel %vm4686, %v9096, %v9097
    %v9259 = vsel %vm4686, %v9177, %v9096
    %s9260 = scalar_lea.vmem %s6, 1024
    %v9261 = vld [vmem:[%s9260] sm:$0xff]
    %v9262 = vld [vmem:[%s9260 + $0x8] sm:$0xff]
    %v9263 = vld [vmem:[%s9260 + $0x10] sm:$0xff]
    %v9264 = vld [vmem:[%s9260 + $0x18] sm:$0xff]
    %v9265 = vld [vmem:[%s9260 + $0x20] sm:$0xff]
    %v9266 = vld [vmem:[%s9260 + $0x28] sm:$0xff]
    %v9267 = vld [vmem:[%s9260 + $0x30] sm:$0xff]
    %v9268 = vld [vmem:[%s9260 + $0x38] sm:$0xff]
    %v9269 = vld [vmem:[%s9260 + $0x40] sm:$0xff]
    %v9270 = vld [vmem:[%s9260 + $0x48] sm:$0xff]
    %v9271 = vld [vmem:[%s9260 + $0x50] sm:$0xff]
    %v9272 = vld [vmem:[%s9260 + $0x58] sm:$0xff]
    %v9273 = vld [vmem:[%s9260 + $0x60] sm:$0xff]
    %v9274 = vld [vmem:[%s9260 + $0x68] sm:$0xff]
    %v9275 = vld [vmem:[%s9260 + $0x70] sm:$0xff]
    %v9276 = vld [vmem:[%s9260 + $0x78] sm:$0xff]
    %9277 = vmatpush.msra.mxu0 %v9276
    %9278 = vmatpush.msra.mxu0 %v9275
    %9279 = vmatpush.msra.mxu0 %v9274
    %9280 = vmatpush.msra.mxu0 %v9273
    %9281 = vmatpush.msra.mxu0 %v9272
    %9282 = vmatpush.msra.mxu0 %v9271
    %9283 = vmatpush.msra.mxu0 %v9270
    %9284 = vmatpush.msra.mxu0 %v9269
    %9285 = vmatpush.msra.mxu0 %v9268
    %9286 = vmatpush.msra.mxu0 %v9267
    %9287 = vmatpush.msra.mxu0 %v9266
    %9288 = vmatpush.msra.mxu0 %v9265
    %9289 = vmatpush.msra.mxu0 %v9264
    %9290 = vmatpush.msra.mxu0 %v9263
    %9291 = vmatpush.msra.mxu0 %v9262
    %9292 = vmatpush.msra.mxu0 %v9261
    %9293 = vmatmul.f32.gmra.mxu0 %v9256
    %v9294 = vpop.f32.mrf.mxu0
    %v9295 = vadd.f32 0.0, %v9294
    %9296 = vmatmul.f32.gmra.mxu0 %v9255
    %v9297 = vpop.f32.mrf.mxu0
    %v9298 = vadd.f32 0.0, %v9297
    %9299 = vmatmul.f32.gmra.mxu0 %v9254
    %v9300 = vpop.f32.mrf.mxu0
    %v9301 = vadd.f32 0.0, %v9300
    %9302 = vmatmul.f32.gmra.mxu0 %v9253
    %v9303 = vpop.f32.mrf.mxu0
    %v9304 = vadd.f32 0.0, %v9303
    %9305 = vmatmul.f32.gmra.mxu0 %v9252
    %v9306 = vpop.f32.mrf.mxu0
    %v9307 = vadd.f32 0.0, %v9306
    %9308 = vmatmul.f32.gmra.mxu0 %v9251
    %v9309 = vpop.f32.mrf.mxu0
    %v9310 = vadd.f32 0.0, %v9309
    %9311 = vmatmul.f32.gmra.mxu0 %v9250
    %v9312 = vpop.f32.mrf.mxu0
    %v9313 = vadd.f32 0.0, %v9312
    %9314 = vmatmul.f32.gmra.mxu0 %v9249
    %v9315 = vpop.f32.mrf.mxu0
    %v9316 = vadd.f32 0.0, %v9315
    %9317 = vmatmul.f32.gmra.mxu0 %v9248
    %v9318 = vpop.f32.mrf.mxu0
    %v9319 = vadd.f32 0.0, %v9318
    %9320 = vmatmul.f32.gmra.mxu0 %v9247
    %v9321 = vpop.f32.mrf.mxu0
    %v9322 = vadd.f32 0.0, %v9321
    %9323 = vmatmul.f32.gmra.mxu0 %v9246
    %v9324 = vpop.f32.mrf.mxu0
    %v9325 = vadd.f32 0.0, %v9324
    %9326 = vmatmul.f32.gmra.mxu0 %v9245
    %v9327 = vpop.f32.mrf.mxu0
    %v9328 = vadd.f32 0.0, %v9327
    %9329 = vmatmul.f32.gmra.mxu0 %v9244
    %v9330 = vpop.f32.mrf.mxu0
    %v9331 = vadd.f32 0.0, %v9330
    %9332 = vmatmul.f32.gmra.mxu0 %v9243
    %v9333 = vpop.f32.mrf.mxu0
    %v9334 = vadd.f32 0.0, %v9333
    %9335 = vmatmul.f32.gmra.mxu0 %v9242
    %v9336 = vpop.f32.mrf.mxu0
    %v9337 = vadd.f32 0.0, %v9336
    %9338 = vmatmul.f32.gmra.mxu0 %v9241
    %v9339 = vpop.f32.mrf.mxu0
    %v9340 = vadd.f32 0.0, %v9339
    %9341 = vmatmul.f32.gmra.mxu0 %v9240
    %v9342 = vpop.f32.mrf.mxu0
    %v9343 = vadd.f32 0.0, %v9342
    %9344 = vmatmul.f32.gmra.mxu0 %v9239
    %v9345 = vpop.f32.mrf.mxu0
    %v9346 = vadd.f32 0.0, %v9345
    %9347 = vmatmul.f32.gmra.mxu0 %v9238
    %v9348 = vpop.f32.mrf.mxu0
    %v9349 = vadd.f32 0.0, %v9348
    %9350 = vmatmul.f32.gmra.mxu0 %v9237
    %v9351 = vpop.f32.mrf.mxu0
    %v9352 = vadd.f32 0.0, %v9351
    %9353 = vmatmul.f32.gmra.mxu0 %v9236
    %v9354 = vpop.f32.mrf.mxu0
    %v9355 = vadd.f32 0.0, %v9354
    %9356 = vmatmul.f32.gmra.mxu0 %v9235
    %v9357 = vpop.f32.mrf.mxu0
    %v9358 = vadd.f32 0.0, %v9357
    %9359 = vmatmul.f32.gmra.mxu0 %v9234
    %v9360 = vpop.f32.mrf.mxu0
    %v9361 = vadd.f32 0.0, %v9360
    %9362 = vmatmul.f32.gmra.mxu0 %v9233
    %v9363 = vpop.f32.mrf.mxu0
    %v9364 = vadd.f32 0.0, %v9363
    %9365 = vmatmul.f32.gmra.mxu0 %v9232
    %v9366 = vpop.f32.mrf.mxu0
    %v9367 = vadd.f32 0.0, %v9366
    %9368 = vmatmul.f32.gmra.mxu0 %v9231
    %v9369 = vpop.f32.mrf.mxu0
    %v9370 = vadd.f32 0.0, %v9369
    %9371 = vmatmul.f32.gmra.mxu0 %v9230
    %v9372 = vpop.f32.mrf.mxu0
    %v9373 = vadd.f32 0.0, %v9372
    %9374 = vmatmul.f32.gmra.mxu0 %v9229
    %v9375 = vpop.f32.mrf.mxu0
    %v9376 = vadd.f32 0.0, %v9375
    %9377 = vmatmul.f32.gmra.mxu0 %v9228
    %v9378 = vpop.f32.mrf.mxu0
    %v9379 = vadd.f32 0.0, %v9378
    %9380 = vmatmul.f32.gmra.mxu0 %v9227
    %v9381 = vpop.f32.mrf.mxu0
    %v9382 = vadd.f32 0.0, %v9381
    %9383 = vmatmul.f32.gmra.mxu0 %v9226
    %v9384 = vpop.f32.mrf.mxu0
    %v9385 = vadd.f32 0.0, %v9384
    %9386 = vmatmul.f32.gmra.mxu0 %v9225
    %v9387 = vpop.f32.mrf.mxu0
    %v9388 = vadd.f32 0.0, %v9387
    %9389 = vmatmul.f32.gmra.mxu0 %v9224
    %v9390 = vpop.f32.mrf.mxu0
    %v9391 = vadd.f32 0.0, %v9390
    %9392 = vmatmul.f32.gmra.mxu0 %v9223
    %v9393 = vpop.f32.mrf.mxu0
    %v9394 = vadd.f32 0.0, %v9393
    %9395 = vmatmul.f32.gmra.mxu0 %v9222
    %v9396 = vpop.f32.mrf.mxu0
    %v9397 = vadd.f32 0.0, %v9396
    %9398 = vmatmul.f32.gmra.mxu0 %v9221
    %v9399 = vpop.f32.mrf.mxu0
    %v9400 = vadd.f32 0.0, %v9399
    %9401 = vmatmul.f32.gmra.mxu0 %v9220
    %v9402 = vpop.f32.mrf.mxu0
    %v9403 = vadd.f32 0.0, %v9402
    %9404 = vmatmul.f32.gmra.mxu0 %v9219
    %v9405 = vpop.f32.mrf.mxu0
    %v9406 = vadd.f32 0.0, %v9405
    %9407 = vmatmul.f32.gmra.mxu0 %v9218
    %v9408 = vpop.f32.mrf.mxu0
    %v9409 = vadd.f32 0.0, %v9408
    %9410 = vmatmul.f32.gmra.mxu0 %v9217
    %v9411 = vpop.f32.mrf.mxu0
    %v9412 = vadd.f32 0.0, %v9411
    %9413 = vmatmul.f32.gmra.mxu0 %v9216
    %v9414 = vpop.f32.mrf.mxu0
    %v9415 = vadd.f32 0.0, %v9414
    %9416 = vmatmul.f32.gmra.mxu0 %v9215
    %v9417 = vpop.f32.mrf.mxu0
    %v9418 = vadd.f32 0.0, %v9417
    %9419 = vmatmul.f32.gmra.mxu0 %v9214
    %v9420 = vpop.f32.mrf.mxu0
    %v9421 = vadd.f32 0.0, %v9420
    %9422 = vmatmul.f32.gmra.mxu0 %v9213
    %v9423 = vpop.f32.mrf.mxu0
    %v9424 = vadd.f32 0.0, %v9423
    %9425 = vmatmul.f32.gmra.mxu0 %v9212
    %v9426 = vpop.f32.mrf.mxu0
    %v9427 = vadd.f32 0.0, %v9426
    %9428 = vmatmul.f32.gmra.mxu0 %v9211
    %v9429 = vpop.f32.mrf.mxu0
    %v9430 = vadd.f32 0.0, %v9429
    %9431 = vmatmul.f32.gmra.mxu0 %v9210
    %v9432 = vpop.f32.mrf.mxu0
    %v9433 = vadd.f32 0.0, %v9432
    %9434 = vmatmul.f32.gmra.mxu0 %v9209
    %v9435 = vpop.f32.mrf.mxu0
    %v9436 = vadd.f32 0.0, %v9435
    %9437 = vmatmul.f32.gmra.mxu0 %v9208
    %v9438 = vpop.f32.mrf.mxu0
    %v9439 = vadd.f32 0.0, %v9438
    %9440 = vmatmul.f32.gmra.mxu0 %v9207
    %v9441 = vpop.f32.mrf.mxu0
    %v9442 = vadd.f32 0.0, %v9441
    %9443 = vmatmul.f32.gmra.mxu0 %v9206
    %v9444 = vpop.f32.mrf.mxu0
    %v9445 = vadd.f32 0.0, %v9444
    %9446 = vmatmul.f32.gmra.mxu0 %v9205
    %v9447 = vpop.f32.mrf.mxu0
    %v9448 = vadd.f32 0.0, %v9447
    %9449 = vmatmul.f32.gmra.mxu0 %v9204
    %v9450 = vpop.f32.mrf.mxu0
    %v9451 = vadd.f32 0.0, %v9450
    %9452 = vmatmul.f32.gmra.mxu0 %v9203
    %v9453 = vpop.f32.mrf.mxu0
    %v9454 = vadd.f32 0.0, %v9453
    %9455 = vmatmul.f32.gmra.mxu0 %v9202
    %v9456 = vpop.f32.mrf.mxu0
    %v9457 = vadd.f32 0.0, %v9456
    %9458 = vmatmul.f32.gmra.mxu0 %v9201
    %v9459 = vpop.f32.mrf.mxu0
    %v9460 = vadd.f32 0.0, %v9459
    %9461 = vmatmul.f32.gmra.mxu0 %v9200
    %v9462 = vpop.f32.mrf.mxu0
    %v9463 = vadd.f32 0.0, %v9462
    %9464 = vmatmul.f32.gmra.mxu0 %v9199
    %v9465 = vpop.f32.mrf.mxu0
    %v9466 = vadd.f32 0.0, %v9465
    %9467 = vmatmul.f32.gmra.mxu0 %v9198
    %v9468 = vpop.f32.mrf.mxu0
    %v9469 = vadd.f32 0.0, %v9468
    %9470 = vmatmul.f32.gmra.mxu0 %v9197
    %v9471 = vpop.f32.mrf.mxu0
    %v9472 = vadd.f32 0.0, %v9471
    %9473 = vmatmul.f32.gmra.mxu0 %v9196
    %v9474 = vpop.f32.mrf.mxu0
    %v9475 = vadd.f32 0.0, %v9474
    %9476 = vmatmul.f32.gmra.mxu0 %v9195
    %v9477 = vpop.f32.mrf.mxu0
    %v9478 = vadd.f32 0.0, %v9477
    %9479 = vmatmul.f32.gmra.mxu0 %v9194
    %v9480 = vpop.f32.mrf.mxu0
    %v9481 = vadd.f32 0.0, %v9480
    %9482 = vmatmul.f32.gmra.mxu0 %v9193
    %v9483 = vpop.f32.mrf.mxu0
    %v9484 = vadd.f32 0.0, %v9483
    %9485 = vmatmul.f32.gmra.mxu0 %v9192
    %v9486 = vpop.f32.mrf.mxu0
    %v9487 = vadd.f32 0.0, %v9486
    %9488 = vmatmul.f32.gmra.mxu0 %v9191
    %v9489 = vpop.f32.mrf.mxu0
    %v9490 = vadd.f32 0.0, %v9489
    %9491 = vmatmul.f32.gmra.mxu0 %v9190
    %v9492 = vpop.f32.mrf.mxu0
    %v9493 = vadd.f32 0.0, %v9492
    %9494 = vmatmul.f32.gmra.mxu0 %v9189
    %v9495 = vpop.f32.mrf.mxu0
    %v9496 = vadd.f32 0.0, %v9495
    %9497 = vmatmul.f32.gmra.mxu0 %v9188
    %v9498 = vpop.f32.mrf.mxu0
    %v9499 = vadd.f32 0.0, %v9498
    %9500 = vmatmul.f32.gmra.mxu0 %v9187
    %v9501 = vpop.f32.mrf.mxu0
    %v9502 = vadd.f32 0.0, %v9501
    %9503 = vmatmul.f32.gmra.mxu0 %v9186
    %v9504 = vpop.f32.mrf.mxu0
    %v9505 = vadd.f32 0.0, %v9504
    %9506 = vmatmul.f32.gmra.mxu0 %v9185
    %v9507 = vpop.f32.mrf.mxu0
    %v9508 = vadd.f32 0.0, %v9507
    %9509 = vmatmul.f32.gmra.mxu0 %v9184
    %v9510 = vpop.f32.mrf.mxu0
    %v9511 = vadd.f32 0.0, %v9510
    %9512 = vmatmul.f32.gmra.mxu0 %v9183
    %v9513 = vpop.f32.mrf.mxu0
    %v9514 = vadd.f32 0.0, %v9513
    %9515 = vmatmul.f32.gmra.mxu0 %v9182
    %v9516 = vpop.f32.mrf.mxu0
    %v9517 = vadd.f32 0.0, %v9516
    %9518 = vmatmul.f32.gmra.mxu0 %v9181
    %v9519 = vpop.f32.mrf.mxu0
    %v9520 = vadd.f32 0.0, %v9519
    %9521 = vmatmul.f32.gmra.mxu0 %v9180
    %v9522 = vpop.f32.mrf.mxu0
    %v9523 = vadd.f32 0.0, %v9522
    %9524 = vmatmul.f32.gmra.mxu0 %v9179
    %v9525 = vpop.f32.mrf.mxu0
    %v9526 = vadd.f32 0.0, %v9525
    %9527 = vmatmul.f32.gmra.mxu0 %v9178
    %v9528 = vpop.f32.mrf.mxu0
    %v9529 = vadd.f32 0.0, %v9528
    %9530 = vmatmul.f32.gmra.mxu0 %v9259
    %v9531 = vpop.f32.mrf.mxu0
    %v9532 = vadd.f32 0.0, %v9531
    %9533 = vmatmul.f32.gmra.mxu0 %v9258
    %v9534 = vpop.f32.mrf.mxu0
    %v9535 = vadd.f32 0.0, %v9534
    %9536 = vmatmul.f32.gmra.mxu0 %v9257
    %v9537 = vpop.f32.mrf.mxu0
    %v9538 = vadd.f32 0.0, %v9537
    %9539 = vdwg.mxu0
    %v9540 = vadd.f32 %v9014, %v9295
    %v9541 = vadd.f32 %v9015, %v9298
    %v9542 = vadd.f32 %v9016, %v9301
    %v9543 = vadd.f32 %v9017, %v9304
    %v9544 = vadd.f32 %v9018, %v9307
    %v9545 = vadd.f32 %v9019, %v9310
    %v9546 = vadd.f32 %v9020, %v9313
    %v9547 = vadd.f32 %v9021, %v9316
    %v9548 = vadd.f32 %v9022, %v9319
    %v9549 = vadd.f32 %v9023, %v9322
    %v9550 = vadd.f32 %v9024, %v9325
    %v9551 = vadd.f32 %v9025, %v9328
    %v9552 = vadd.f32 %v9026, %v9331
    %v9553 = vadd.f32 %v9027, %v9334
    %v9554 = vadd.f32 %v9028, %v9337
    %v9555 = vadd.f32 %v9029, %v9340
    %v9556 = vadd.f32 %v9030, %v9343
    %v9557 = vadd.f32 %v9031, %v9346
    %v9558 = vadd.f32 %v9032, %v9349
    %v9559 = vadd.f32 %v9033, %v9352
    %v9560 = vadd.f32 %v9034, %v9355
    %v9561 = vadd.f32 %v9035, %v9358
    %v9562 = vadd.f32 %v9036, %v9361
    %v9563 = vadd.f32 %v9037, %v9364
    %v9564 = vadd.f32 %v9038, %v9367
    %v9565 = vadd.f32 %v9039, %v9370
    %v9566 = vadd.f32 %v9040, %v9373
    %v9567 = vadd.f32 %v9041, %v9376
    %v9568 = vadd.f32 %v9042, %v9379
    %v9569 = vadd.f32 %v9043, %v9382
    %v9570 = vadd.f32 %v9044, %v9385
    %v9571 = vadd.f32 %v9045, %v9388
    %v9572 = vadd.f32 %v9046, %v9391
    %v9573 = vadd.f32 %v9047, %v9394
    %v9574 = vadd.f32 %v9048, %v9397
    %v9575 = vadd.f32 %v9049, %v9400
    %v9576 = vadd.f32 %v9050, %v9403
    %v9577 = vadd.f32 %v9051, %v9406
    %v9578 = vadd.f32 %v9052, %v9409
    %v9579 = vadd.f32 %v9053, %v9412
    %v9580 = vadd.f32 %v9054, %v9415
    %v9581 = vadd.f32 %v9055, %v9418
    %v9582 = vadd.f32 %v9056, %v9421
    %v9583 = vadd.f32 %v9057, %v9424
    %v9584 = vadd.f32 %v9058, %v9427
    %v9585 = vadd.f32 %v9059, %v9430
    %v9586 = vadd.f32 %v9060, %v9433
    %v9587 = vadd.f32 %v9061, %v9436
    %v9588 = vadd.f32 %v9062, %v9439
    %v9589 = vadd.f32 %v9063, %v9442
    %v9590 = vadd.f32 %v9064, %v9445
    %v9591 = vadd.f32 %v9065, %v9448
    %v9592 = vadd.f32 %v9066, %v9451
    %v9593 = vadd.f32 %v9067, %v9454
    %v9594 = vadd.f32 %v9068, %v9457
    %v9595 = vadd.f32 %v9069, %v9460
    %v9596 = vadd.f32 %v9070, %v9463
    %v9597 = vadd.f32 %v9071, %v9466
    %v9598 = vadd.f32 %v9072, %v9469
    %v9599 = vadd.f32 %v9073, %v9472
    %v9600 = vadd.f32 %v9074, %v9475
    %v9601 = vadd.f32 %v9075, %v9478
    %v9602 = vadd.f32 %v9076, %v9481
    %v9603 = vadd.f32 %v9077, %v9484
    %v9604 = vadd.f32 %v9078, %v9487
    %v9605 = vadd.f32 %v9079, %v9490
    %v9606 = vadd.f32 %v9080, %v9493
    %v9607 = vadd.f32 %v9081, %v9496
    %v9608 = vadd.f32 %v9082, %v9499
    %v9609 = vadd.f32 %v9083, %v9502
    %v9610 = vadd.f32 %v9084, %v9505
    %v9611 = vadd.f32 %v9085, %v9508
    %v9612 = vadd.f32 %v9086, %v9511
    %v9613 = vadd.f32 %v9087, %v9514
    %v9614 = vadd.f32 %v9088, %v9517
    %v9615 = vadd.f32 %v9089, %v9520
    %v9616 = vadd.f32 %v9090, %v9523
    %v9617 = vadd.f32 %v9091, %v9526
    %v9618 = vadd.f32 %v9092, %v9529
    %v9619 = vadd.f32 %v9093, %v9532
    %v9620 = vadd.f32 %v9094, %v9535
    %v9621 = vadd.f32 %v9095, %v9538
    %v9622 = vld [vmem:[%s7] sm:$0x1]
    %v9624 = vperm.slane %v9622, 0
    %v9626 = vadd.f32 %v9540, %v9624
    %v9627 = vadd.f32 %v9541, %v9624
    %v9628 = vadd.f32 %v9542, %v9624
    %v9629 = vadd.f32 %v9543, %v9624
    %v9630 = vadd.f32 %v9544, %v9624
    %v9631 = vadd.f32 %v9545, %v9624
    %v9632 = vadd.f32 %v9546, %v9624
    %v9633 = vadd.f32 %v9547, %v9624
    %v9634 = vadd.f32 %v9548, %v9624
    %v9635 = vadd.f32 %v9549, %v9624
    %v9636 = vadd.f32 %v9550, %v9624
    %v9637 = vadd.f32 %v9551, %v9624
    %v9638 = vadd.f32 %v9552, %v9624
    %v9639 = vadd.f32 %v9553, %v9624
    %v9640 = vadd.f32 %v9554, %v9624
    %v9641 = vadd.f32 %v9555, %v9624
    %v9642 = vadd.f32 %v9556, %v9624
    %v9643 = vadd.f32 %v9557, %v9624
    %v9644 = vadd.f32 %v9558, %v9624
    %v9645 = vadd.f32 %v9559, %v9624
    %v9646 = vadd.f32 %v9560, %v9624
    %v9647 = vadd.f32 %v9561, %v9624
    %v9648 = vadd.f32 %v9562, %v9624
    %v9649 = vadd.f32 %v9563, %v9624
    %v9650 = vadd.f32 %v9564, %v9624
    %v9651 = vadd.f32 %v9565, %v9624
    %v9652 = vadd.f32 %v9566, %v9624
    %v9653 = vadd.f32 %v9567, %v9624
    %v9654 = vadd.f32 %v9568, %v9624
    %v9655 = vadd.f32 %v9569, %v9624
    %v9656 = vadd.f32 %v9570, %v9624
    %v9657 = vadd.f32 %v9571, %v9624
    %v9658 = vadd.f32 %v9572, %v9624
    %v9659 = vadd.f32 %v9573, %v9624
    %v9660 = vadd.f32 %v9574, %v9624
    %v9661 = vadd.f32 %v9575, %v9624
    %v9662 = vadd.f32 %v9576, %v9624
    %v9663 = vadd.f32 %v9577, %v9624
    %v9664 = vadd.f32 %v9578, %v9624
    %v9665 = vadd.f32 %v9579, %v9624
    %v9666 = vadd.f32 %v9580, %v9624
    %v9667 = vadd.f32 %v9581, %v9624
    %v9668 = vadd.f32 %v9582, %v9624
    %v9669 = vadd.f32 %v9583, %v9624
    %v9670 = vadd.f32 %v9584, %v9624
    %v9671 = vadd.f32 %v9585, %v9624
    %v9672 = vadd.f32 %v9586, %v9624
    %v9673 = vadd.f32 %v9587, %v9624
    %v9674 = vadd.f32 %v9588, %v9624
    %v9675 = vadd.f32 %v9589, %v9624
    %v9676 = vadd.f32 %v9590, %v9624
    %v9677 = vadd.f32 %v9591, %v9624
    %v9678 = vadd.f32 %v9592, %v9624
    %v9679 = vadd.f32 %v9593, %v9624
    %v9680 = vadd.f32 %v9594, %v9624
    %v9681 = vadd.f32 %v9595, %v9624
    %v9682 = vadd.f32 %v9596, %v9624
    %v9683 = vadd.f32 %v9597, %v9624
    %v9684 = vadd.f32 %v9598, %v9624
    %v9685 = vadd.f32 %v9599, %v9624
    %v9686 = vadd.f32 %v9600, %v9624
    %v9687 = vadd.f32 %v9601, %v9624
    %v9688 = vadd.f32 %v9602, %v9624
    %v9689 = vadd.f32 %v9603, %v9624
    %v9690 = vadd.f32 %v9604, %v9624
    %v9691 = vadd.f32 %v9605, %v9624
    %v9692 = vadd.f32 %v9606, %v9624
    %v9693 = vadd.f32 %v9607, %v9624
    %v9694 = vadd.f32 %v9608, %v9624
    %v9695 = vadd.f32 %v9609, %v9624
    %v9696 = vadd.f32 %v9610, %v9624
    %v9697 = vadd.f32 %v9611, %v9624
    %v9698 = vadd.f32 %v9612, %v9624
    %v9699 = vadd.f32 %v9613, %v9624
    %v9700 = vadd.f32 %v9614, %v9624
    %v9701 = vadd.f32 %v9615, %v9624
    %v9702 = vadd.f32 %v9616, %v9624
    %v9703 = vadd.f32 %v9617, %v9624
    %v9704 = vadd.f32 %v9618, %v9624
    %v9705 = vadd.f32 %v9619, %v9624
    %v9706 = vadd.f32 %v9620, %v9624
    %v9707 = vadd.f32 %v9621, %v9624
    %v9708 = vmax.f32 %v9626, 0.0
    %v9709 = vmax.f32 %v9627, 0.0
    %v9710 = vmax.f32 %v9628, 0.0
    %v9711 = vmax.f32 %v9629, 0.0
    %v9712 = vmax.f32 %v9630, 0.0
    %v9713 = vmax.f32 %v9631, 0.0
    %v9714 = vmax.f32 %v9632, 0.0
    %v9715 = vmax.f32 %v9633, 0.0
    %v9716 = vmax.f32 %v9634, 0.0
    %v9717 = vmax.f32 %v9635, 0.0
    %v9718 = vmax.f32 %v9636, 0.0
    %v9719 = vmax.f32 %v9637, 0.0
    %v9720 = vmax.f32 %v9638, 0.0
    %v9721 = vmax.f32 %v9639, 0.0
    %v9722 = vmax.f32 %v9640, 0.0
    %v9723 = vmax.f32 %v9641, 0.0
    %v9724 = vmax.f32 %v9642, 0.0
    %v9725 = vmax.f32 %v9643, 0.0
    %v9726 = vmax.f32 %v9644, 0.0
    %v9727 = vmax.f32 %v9645, 0.0
    %v9728 = vmax.f32 %v9646, 0.0
    %v9729 = vmax.f32 %v9647, 0.0
    %v9730 = vmax.f32 %v9648, 0.0
    %v9731 = vmax.f32 %v9649, 0.0
    %v9732 = vmax.f32 %v9650, 0.0
    %v9733 = vmax.f32 %v9651, 0.0
    %v9734 = vmax.f32 %v9652, 0.0
    %v9735 = vmax.f32 %v9653, 0.0
    %v9736 = vmax.f32 %v9654, 0.0
    %v9737 = vmax.f32 %v9655, 0.0
    %v9738 = vmax.f32 %v9656, 0.0
    %v9739 = vmax.f32 %v9657, 0.0
    %v9740 = vmax.f32 %v9658, 0.0
    %v9741 = vmax.f32 %v9659, 0.0
    %v9742 = vmax.f32 %v9660, 0.0
    %v9743 = vmax.f32 %v9661, 0.0
    %v9744 = vmax.f32 %v9662, 0.0
    %v9745 = vmax.f32 %v9663, 0.0
    %v9746 = vmax.f32 %v9664, 0.0
    %v9747 = vmax.f32 %v9665, 0.0
    %v9748 = vmax.f32 %v9666, 0.0
    %v9749 = vmax.f32 %v9667, 0.0
    %v9750 = vmax.f32 %v9668, 0.0
    %v9751 = vmax.f32 %v9669, 0.0
    %v9752 = vmax.f32 %v9670, 0.0
    %v9753 = vmax.f32 %v9671, 0.0
    %v9754 = vmax.f32 %v9672, 0.0
    %v9755 = vmax.f32 %v9673, 0.0
    %v9756 = vmax.f32 %v9674, 0.0
    %v9757 = vmax.f32 %v9675, 0.0
    %v9758 = vmax.f32 %v9676, 0.0
    %v9759 = vmax.f32 %v9677, 0.0
    %v9760 = vmax.f32 %v9678, 0.0
    %v9761 = vmax.f32 %v9679, 0.0
    %v9762 = vmax.f32 %v9680, 0.0
    %v9763 = vmax.f32 %v9681, 0.0
    %v9764 = vmax.f32 %v9682, 0.0
    %v9765 = vmax.f32 %v9683, 0.0
    %v9766 = vmax.f32 %v9684, 0.0
    %v9767 = vmax.f32 %v9685, 0.0
    %v9768 = vmax.f32 %v9686, 0.0
    %v9769 = vmax.f32 %v9687, 0.0
    %v9770 = vmax.f32 %v9688, 0.0
    %v9771 = vmax.f32 %v9689, 0.0
    %v9772 = vmax.f32 %v9690, 0.0
    %v9773 = vmax.f32 %v9691, 0.0
    %v9774 = vmax.f32 %v9692, 0.0
    %v9775 = vmax.f32 %v9693, 0.0
    %v9776 = vmax.f32 %v9694, 0.0
    %v9777 = vmax.f32 %v9695, 0.0
    %v9778 = vmax.f32 %v9696, 0.0
    %v9779 = vmax.f32 %v9697, 0.0
    %v9780 = vmax.f32 %v9698, 0.0
    %v9781 = vmax.f32 %v9699, 0.0
    %v9782 = vmax.f32 %v9700, 0.0
    %v9783 = vmax.f32 %v9701, 0.0
    %v9784 = vmax.f32 %v9702, 0.0
    %v9785 = vmax.f32 %v9703, 0.0
    %v9786 = vmax.f32 %v9704, 0.0
    %v9787 = vmax.f32 %v9705, 0.0
    %v9788 = vmax.f32 %v9706, 0.0
    %v9789 = vmax.f32 %v9707, 0.0
    %v9790 = vmul.f32 %v9708, %v36
    %v9791 = vmul.f32 %v9709, %v37
    %v9792 = vmul.f32 %v9710, %v38
    %v9793 = vmul.f32 %v9711, %v39
    %v9794 = vmul.f32 %v9712, %v40
    %v9795 = vmul.f32 %v9713, %v41
    %v9796 = vmul.f32 %v9714, %v42
    %v9797 = vmul.f32 %v9715, %v43
    %v9798 = vmul.f32 %v9716, %v44
    %v9799 = vmul.f32 %v9717, %v45
    %v9800 = vmul.f32 %v9718, %v46
    %v9801 = vmul.f32 %v9719, %v47
    %v9802 = vmul.f32 %v9720, %v48
    %v9803 = vmul.f32 %v9721, %v49
    %v9804 = vmul.f32 %v9722, %v50
    %v9805 = vmul.f32 %v9723, %v51
    %v9806 = vmul.f32 %v9724, %v52
    %v9807 = vmul.f32 %v9725, %v53
    %v9808 = vmul.f32 %v9726, %v54
    %v9809 = vmul.f32 %v9727, %v55
    %v9810 = vmul.f32 %v9728, %v56
    %v9811 = vmul.f32 %v9729, %v57
    %v9812 = vmul.f32 %v9730, %v58
    %v9813 = vmul.f32 %v9731, %v59
    %v9814 = vmul.f32 %v9732, %v60
    %v9815 = vmul.f32 %v9733, %v61
    %v9816 = vmul.f32 %v9734, %v62
    %v9817 = vmul.f32 %v9735, %v63
    %v9818 = vmul.f32 %v9736, %v64
    %v9819 = vmul.f32 %v9737, %v65
    %v9820 = vmul.f32 %v9738, %v66
    %v9821 = vmul.f32 %v9739, %v67
    %v9822 = vmul.f32 %v9740, %v68
    %v9823 = vmul.f32 %v9741, %v69
    %v9824 = vmul.f32 %v9742, %v70
    %v9825 = vmul.f32 %v9743, %v71
    %v9826 = vmul.f32 %v9744, %v72
    %v9827 = vmul.f32 %v9745, %v73
    %v9828 = vmul.f32 %v9746, %v74
    %v9829 = vmul.f32 %v9747, %v75
    %v9830 = vmul.f32 %v9748, %v76
    %v9831 = vmul.f32 %v9749, %v77
    %v9832 = vmul.f32 %v9750, %v78
    %v9833 = vmul.f32 %v9751, %v79
    %v9834 = vmul.f32 %v9752, %v80
    %v9835 = vmul.f32 %v9753, %v81
    %v9836 = vmul.f32 %v9754, %v82
    %v9837 = vmul.f32 %v9755, %v83
    %v9838 = vmul.f32 %v9756, %v84
    %v9839 = vmul.f32 %v9757, %v85
    %v9840 = vmul.f32 %v9758, %v86
    %v9841 = vmul.f32 %v9759, %v87
    %v9842 = vmul.f32 %v9760, %v88
    %v9843 = vmul.f32 %v9761, %v89
    %v9844 = vmul.f32 %v9762, %v90
    %v9845 = vmul.f32 %v9763, %v91
    %v9846 = vmul.f32 %v9764, %v92
    %v9847 = vmul.f32 %v9765, %v93
    %v9848 = vmul.f32 %v9766, %v94
    %v9849 = vmul.f32 %v9767, %v95
    %v9850 = vmul.f32 %v9768, %v96
    %v9851 = vmul.f32 %v9769, %v97
    %v9852 = vmul.f32 %v9770, %v98
    %v9853 = vmul.f32 %v9771, %v99
    %v9854 = vmul.f32 %v9772, %v100
    %v9855 = vmul.f32 %v9773, %v101
    %v9856 = vmul.f32 %v9774, %v102
    %v9857 = vmul.f32 %v9775, %v103
    %v9858 = vmul.f32 %v9776, %v104
    %v9859 = vmul.f32 %v9777, %v105
    %v9860 = vmul.f32 %v9778, %v106
    %v9861 = vmul.f32 %v9779, %v107
    %v9862 = vmul.f32 %v9780, %v108
    %v9863 = vmul.f32 %v9781, %v109
    %v9864 = vmul.f32 %v9782, %v110
    %v9865 = vmul.f32 %v9783, %v111
    %v9866 = vmul.f32 %v9784, %v112
    %v9867 = vmul.f32 %v9785, %v113
    %v9868 = vmul.f32 %v9786, %v114
    %v9869 = vmul.f32 %v9787, %v115
    %v9870 = vmul.f32 %v9788, %v116
    %v9871 = vmul.f32 %v9789, %v117
    %v9872 = vadd.f32 %v9790, %v9791
    %v9873 = vadd.f32 %v9872, %v9792
    %v9874 = vadd.f32 %v9873, %v9793
    %v9875 = vadd.f32 %v9874, %v9794
    %v9876 = vadd.f32 %v9875, %v9795
    %v9877 = vadd.f32 %v9876, %v9796
    %v9878 = vadd.f32 %v9877, %v9797
    %v9879 = vadd.f32 %v9878, %v9798
    %v9880 = vadd.f32 %v9879, %v9799
    %v9881 = vadd.f32 %v9880, %v9800
    %v9882 = vadd.f32 %v9881, %v9801
    %v9883 = vadd.f32 %v9882, %v9802
    %v9884 = vadd.f32 %v9883, %v9803
    %v9885 = vadd.f32 %v9884, %v9804
    %v9886 = vadd.f32 %v9885, %v9805
    %v9887 = vadd.f32 %v9886, %v9806
    %v9888 = vadd.f32 %v9887, %v9807
    %v9889 = vadd.f32 %v9888, %v9808
    %v9890 = vadd.f32 %v9889, %v9809
    %v9891 = vadd.f32 %v9890, %v9810
    %v9892 = vadd.f32 %v9891, %v9811
    %v9893 = vadd.f32 %v9892, %v9812
    %v9894 = vadd.f32 %v9893, %v9813
    %v9895 = vadd.f32 %v9894, %v9814
    %v9896 = vadd.f32 %v9895, %v9815
    %v9897 = vadd.f32 %v9896, %v9816
    %v9898 = vadd.f32 %v9897, %v9817
    %v9899 = vadd.f32 %v9898, %v9818
    %v9900 = vadd.f32 %v9899, %v9819
    %v9901 = vadd.f32 %v9900, %v9820
    %v9902 = vadd.f32 %v9901, %v9821
    %v9903 = vadd.f32 %v9902, %v9822
    %v9904 = vadd.f32 %v9903, %v9823
    %v9905 = vadd.f32 %v9904, %v9824
    %v9906 = vadd.f32 %v9905, %v9825
    %v9907 = vadd.f32 %v9906, %v9826
    %v9908 = vadd.f32 %v9907, %v9827
    %v9909 = vadd.f32 %v9908, %v9828
    %v9910 = vadd.f32 %v9909, %v9829
    %v9911 = vadd.f32 %v9910, %v9830
    %v9912 = vrot.slane %v9911, 4
    %v9913 = vadd.f32 %v9911, %v9912
    %v9914 = vrot.slane %v9913, 2
    %v9915 = vadd.f32 %v9913, %v9914
    %v9916 = vrot.slane %v9915, 1
    %v9917 = vadd.f32 %v9915, %v9916
    %v9918 = vadd.f32 %v9831, %v9832
    %v9919 = vadd.f32 %v9918, %v9833
    %v9920 = vadd.f32 %v9919, %v9834
    %v9921 = vadd.f32 %v9920, %v9835
    %v9922 = vadd.f32 %v9921, %v9836
    %v9923 = vadd.f32 %v9922, %v9837
    %v9924 = vadd.f32 %v9923, %v9838
    %v9925 = vadd.f32 %v9924, %v9839
    %v9926 = vadd.f32 %v9925, %v9840
    %v9927 = vadd.f32 %v9926, %v9841
    %v9928 = vadd.f32 %v9927, %v9842
    %v9929 = vadd.f32 %v9928, %v9843
    %v9930 = vadd.f32 %v9929, %v9844
    %v9931 = vadd.f32 %v9930, %v9845
    %v9932 = vadd.f32 %v9931, %v9846
    %v9933 = vadd.f32 %v9932, %v9847
    %v9934 = vadd.f32 %v9933, %v9848
    %v9935 = vadd.f32 %v9934, %v9849
    %v9936 = vadd.f32 %v9935, %v9850
    %v9937 = vadd.f32 %v9936, %v9851
    %v9938 = vadd.f32 %v9937, %v9852
    %v9939 = vadd.f32 %v9938, %v9853
    %v9940 = vadd.f32 %v9939, %v9854
    %v9941 = vadd.f32 %v9940, %v9855
    %v9942 = vadd.f32 %v9941, %v9856
    %v9943 = vadd.f32 %v9942, %v9857
    %v9944 = vadd.f32 %v9943, %v9858
    %v9945 = vadd.f32 %v9944, %v9859
    %v9946 = vadd.f32 %v9945, %v9860
    %v9947 = vadd.f32 %v9946, %v9861
    %v9948 = vadd.f32 %v9947, %v9862
    %v9949 = vadd.f32 %v9948, %v9863
    %v9950 = vadd.f32 %v9949, %v9864
    %v9951 = vadd.f32 %v9950, %v9865
    %v9952 = vadd.f32 %v9951, %v9866
    %v9953 = vadd.f32 %v9952, %v9867
    %v9954 = vadd.f32 %v9953, %v9868
    %v9955 = vadd.f32 %v9954, %v9869
    %v9956 = vadd.f32 %v9955, %v9870
    %v9957 = vadd.f32 %v9956, %v9871
    %v9958 = vrot.slane %v9957, 4
    %v9959 = vadd.f32 %v9957, %v9958
    %v9960 = vrot.slane %v9959, 2
    %v9961 = vadd.f32 %v9959, %v9960
    %v9962 = vrot.slane %v9961, 1
    %v9963 = vadd.f32 %v9961, %v9962
    %vm9964 = vcmask 1040384
    %v9965 = vsel %vm9964, %v9917, %v9963
    %v9966 = vmul.f32 %v9965, 0.00390625
    %v9967 = vld [vmem:[%s8] sm:$0xff]
    %v9968 = vld [vmem:[%s8 + $0x8] sm:$0xff]
    %v9969 = vld [vmem:[%s8 + $0x10] sm:$0xff]
    %v9970 = vld [vmem:[%s8 + $0x18] sm:$0xff]
    %v9971 = vld [vmem:[%s8 + $0x20] sm:$0xff]
    %v9972 = vld [vmem:[%s8 + $0x28] sm:$0xff]
    %v9973 = vld [vmem:[%s8 + $0x30] sm:$0xff]
    %v9974 = vld [vmem:[%s8 + $0x38] sm:$0xff]
    %v9975 = vld [vmem:[%s8 + $0x40] sm:$0xff]
    %v9976 = vld [vmem:[%s8 + $0x48] sm:$0xff]
    %v9977 = vld [vmem:[%s8 + $0x50] sm:$0xff]
    %v9978 = vld [vmem:[%s8 + $0x58] sm:$0xff]
    %v9979 = vld [vmem:[%s8 + $0x60] sm:$0xff]
    %v9980 = vld [vmem:[%s8 + $0x68] sm:$0xff]
    %v9981 = vld [vmem:[%s8 + $0x70] sm:$0xff]
    %v9982 = vld [vmem:[%s8 + $0x78] sm:$0xff]
    %v9983 = vld [vmem:[%s8 + $0x80] sm:$0xff]
    %v9984 = vld [vmem:[%s8 + $0x88] sm:$0xff]
    %v9985 = vld [vmem:[%s8 + $0x90] sm:$0xff]
    %v9986 = vld [vmem:[%s8 + $0x98] sm:$0xff]
    %v9987 = vld [vmem:[%s8 + $0xa0] sm:$0xff]
    %v9988 = vld [vmem:[%s8 + $0xa8] sm:$0xff]
    %v9989 = vld [vmem:[%s8 + $0xb0] sm:$0xff]
    %v9990 = vld [vmem:[%s8 + $0xb8] sm:$0xff]
    %v9991 = vld [vmem:[%s8 + $0xc0] sm:$0xff]
    %v9992 = vld [vmem:[%s8 + $0xc8] sm:$0xff]
    %v9993 = vld [vmem:[%s8 + $0xd0] sm:$0xff]
    %v9994 = vld [vmem:[%s8 + $0xd8] sm:$0xff]
    %v9995 = vld [vmem:[%s8 + $0xe0] sm:$0xff]
    %v9996 = vld [vmem:[%s8 + $0xe8] sm:$0xff]
    %v9997 = vld [vmem:[%s8 + $0xf0] sm:$0xff]
    %v9998 = vld [vmem:[%s8 + $0xf8] sm:$0xff]
    %v9999 = vld [vmem:[%s8 + $0x100] sm:$0xff]
    %v10000 = vld [vmem:[%s8 + $0x108] sm:$0xff]
    %v10001 = vld [vmem:[%s8 + $0x110] sm:$0xff]
    %v10002 = vld [vmem:[%s8 + $0x118] sm:$0xff]
    %v10003 = vld [vmem:[%s8 + $0x120] sm:$0xff]
    %v10004 = vld [vmem:[%s8 + $0x128] sm:$0xff]
    %v10005 = vld [vmem:[%s8 + $0x130] sm:$0xff]
    %v10006 = vld [vmem:[%s8 + $0x138] sm:$0xff]
    %v10007 = vld [vmem:[%s8 + $0x140] sm:$0xff]
    %v10008 = vld [vmem:[%s8 + $0x148] sm:$0xff]
    %v10009 = vld [vmem:[%s8 + $0x150] sm:$0xff]
    %v10010 = vld [vmem:[%s8 + $0x158] sm:$0xff]
    %v10011 = vld [vmem:[%s8 + $0x160] sm:$0xff]
    %v10012 = vld [vmem:[%s8 + $0x168] sm:$0xff]
    %v10013 = vld [vmem:[%s8 + $0x170] sm:$0xff]
    %v10014 = vld [vmem:[%s8 + $0x178] sm:$0xff]
    %v10015 = vld [vmem:[%s8 + $0x180] sm:$0xff]
    %v10016 = vld [vmem:[%s8 + $0x188] sm:$0xff]
    %v10017 = vld [vmem:[%s8 + $0x190] sm:$0xff]
    %v10018 = vld [vmem:[%s8 + $0x198] sm:$0xff]
    %v10019 = vld [vmem:[%s8 + $0x1a0] sm:$0xff]
    %v10020 = vld [vmem:[%s8 + $0x1a8] sm:$0xff]
    %v10021 = vld [vmem:[%s8 + $0x1b0] sm:$0xff]
    %v10022 = vld [vmem:[%s8 + $0x1b8] sm:$0xff]
    %v10023 = vld [vmem:[%s8 + $0x1c0] sm:$0xff]
    %v10024 = vld [vmem:[%s8 + $0x1c8] sm:$0xff]
    %v10025 = vld [vmem:[%s8 + $0x1d0] sm:$0xff]
    %v10026 = vld [vmem:[%s8 + $0x1d8] sm:$0xff]
    %v10027 = vld [vmem:[%s8 + $0x1e0] sm:$0xff]
    %v10028 = vld [vmem:[%s8 + $0x1e8] sm:$0xff]
    %v10029 = vld [vmem:[%s8 + $0x1f0] sm:$0xff]
    %v10030 = vld [vmem:[%s8 + $0x1f8] sm:$0xff]
    %v10031 = vld [vmem:[%s8 + $0x200] sm:$0xff]
    %v10032 = vld [vmem:[%s8 + $0x208] sm:$0xff]
    %v10033 = vld [vmem:[%s8 + $0x210] sm:$0xff]
    %v10034 = vld [vmem:[%s8 + $0x218] sm:$0xff]
    %v10035 = vld [vmem:[%s8 + $0x220] sm:$0xff]
    %v10036 = vld [vmem:[%s8 + $0x228] sm:$0xff]
    %v10037 = vld [vmem:[%s8 + $0x230] sm:$0xff]
    %v10038 = vld [vmem:[%s8 + $0x238] sm:$0xff]
    %v10039 = vld [vmem:[%s8 + $0x240] sm:$0xff]
    %v10040 = vld [vmem:[%s8 + $0x248] sm:$0xff]
    %v10041 = vld [vmem:[%s8 + $0x250] sm:$0xff]
    %v10042 = vld [vmem:[%s8 + $0x258] sm:$0xff]
    %v10043 = vld [vmem:[%s8 + $0x260] sm:$0xff]
    %v10044 = vld [vmem:[%s8 + $0x268] sm:$0xff]
    %v10045 = vld [vmem:[%s8 + $0x270] sm:$0xff]
    %v10046 = vld [vmem:[%s8 + $0x278] sm:$0xff]
    %v10047 = vld [vmem:[%s8 + $0x280] sm:$0xff]
    %v10048 = vld [vmem:[%s8 + $0x288] sm:$0xff]
    %v10049 = vld [vmem:[%s8 + $0x290] sm:$0xff]
    %v10050 = vld [vmem:[%s8 + $0x298] sm:$0xff]
    %v10051 = vld [vmem:[%s8 + $0x2a0] sm:$0xff]
    %v10052 = vld [vmem:[%s8 + $0x2a8] sm:$0xff]
    %v10053 = vld [vmem:[%s8 + $0x2b0] sm:$0xff]
    %v10054 = vld [vmem:[%s8 + $0x2b8] sm:$0xff]
    %v10055 = vld [vmem:[%s8 + $0x2c0] sm:$0xff]
    %v10056 = vld [vmem:[%s8 + $0x2c8] sm:$0xff]
    %v10057 = vld [vmem:[%s8 + $0x2d0] sm:$0xff]
    %v10058 = vld [vmem:[%s8 + $0x2d8] sm:$0xff]
    %v10059 = vld [vmem:[%s8 + $0x2e0] sm:$0xff]
    %v10060 = vld [vmem:[%s8 + $0x2e8] sm:$0xff]
    %v10061 = vld [vmem:[%s8 + $0x2f0] sm:$0xff]
    %v10062 = vld [vmem:[%s8 + $0x2f8] sm:$0xff]
    %v10063 = vld [vmem:[%s8 + $0x300] sm:$0xff]
    %v10064 = vld [vmem:[%s8 + $0x308] sm:$0xff]
    %v10065 = vld [vmem:[%s8 + $0x310] sm:$0xff]
    %v10066 = vld [vmem:[%s8 + $0x318] sm:$0xff]
    %v10067 = vld [vmem:[%s8 + $0x320] sm:$0xff]
    %v10068 = vld [vmem:[%s8 + $0x328] sm:$0xff]
    %v10069 = vld [vmem:[%s8 + $0x330] sm:$0xff]
    %v10070 = vld [vmem:[%s8 + $0x338] sm:$0xff]
    %v10071 = vld [vmem:[%s8 + $0x340] sm:$0xff]
    %v10072 = vld [vmem:[%s8 + $0x348] sm:$0xff]
    %v10073 = vld [vmem:[%s8 + $0x350] sm:$0xff]
    %v10074 = vld [vmem:[%s8 + $0x358] sm:$0xff]
    %v10075 = vld [vmem:[%s8 + $0x360] sm:$0xff]
    %v10076 = vld [vmem:[%s8 + $0x368] sm:$0xff]
    %v10077 = vld [vmem:[%s8 + $0x370] sm:$0xff]
    %v10078 = vld [vmem:[%s8 + $0x378] sm:$0xff]
    %v10079 = vld [vmem:[%s8 + $0x380] sm:$0xff]
    %v10080 = vld [vmem:[%s8 + $0x388] sm:$0xff]
    %v10081 = vld [vmem:[%s8 + $0x390] sm:$0xff]
    %v10082 = vld [vmem:[%s8 + $0x398] sm:$0xff]
    %v10083 = vld [vmem:[%s8 + $0x3a0] sm:$0xff]
    %v10084 = vld [vmem:[%s8 + $0x3a8] sm:$0xff]
    %v10085 = vld [vmem:[%s8 + $0x3b0] sm:$0xff]
    %v10086 = vld [vmem:[%s8 + $0x3b8] sm:$0xff]
    %v10087 = vld [vmem:[%s8 + $0x3c0] sm:$0xff]
    %v10088 = vld [vmem:[%s8 + $0x3c8] sm:$0xff]
    %v10089 = vld [vmem:[%s8 + $0x3d0] sm:$0xff]
    %v10090 = vld [vmem:[%s8 + $0x3d8] sm:$0xff]
    %v10091 = vld [vmem:[%s8 + $0x3e0] sm:$0xff]
    %v10092 = vld [vmem:[%s8 + $0x3e8] sm:$0xff]
    %v10093 = vld [vmem:[%s8 + $0x3f0] sm:$0xff]
    %v10094 = vld [vmem:[%s8 + $0x3f8] sm:$0xff]
    %v10095 = vld [vmem:[%s8 + $0x400] sm:$0xff]
    %v10096 = vld [vmem:[%s8 + $0x408] sm:$0xff]
    %v10097 = vld [vmem:[%s8 + $0x410] sm:$0xff]
    %v10098 = vld [vmem:[%s8 + $0x418] sm:$0xff]
    %v10099 = vld [vmem:[%s8 + $0x420] sm:$0xff]
    %v10100 = vld [vmem:[%s8 + $0x428] sm:$0xff]
    %v10101 = vld [vmem:[%s8 + $0x430] sm:$0xff]
    %v10102 = vld [vmem:[%s8 + $0x438] sm:$0xff]
    %v10103 = vld [vmem:[%s8 + $0x440] sm:$0xff]
    %v10104 = vld [vmem:[%s8 + $0x448] sm:$0xff]
    %v10105 = vld [vmem:[%s8 + $0x450] sm:$0xff]
    %v10106 = vld [vmem:[%s8 + $0x458] sm:$0xff]
    %v10107 = vld [vmem:[%s8 + $0x460] sm:$0xff]
    %v10108 = vld [vmem:[%s8 + $0x468] sm:$0xff]
    %v10109 = vld [vmem:[%s8 + $0x470] sm:$0xff]
    %v10110 = vld [vmem:[%s8 + $0x478] sm:$0xff]
    %v10111 = vld [vmem:[%s9] sm:$0xff]
    %v10112 = vld [vmem:[%s9 + $0x8] sm:$0x1]
    %v10115 = vperm.slane %v10111, 0
    %v10116 = vperm.slane %v10111, 1
    %v10117 = vperm.slane %v10111, 2
    %v10118 = vperm.slane %v10111, 3
    %v10119 = vperm.slane %v10111, 4
    %v10120 = vperm.slane %v10111, 5
    %v10121 = vperm.slane %v10111, 6
    %v10122 = vperm.slane %v10111, 7
    %v10123 = vperm.slane %v10112, 0
    %10133 = vmatpush.msra.mxu0 %v10102
    %10134 = vmatpush.msra.mxu0 %v10093
    %10135 = vmatpush.msra.mxu0 %v10084
    %10136 = vmatpush.msra.mxu0 %v10075
    %10137 = vmatpush.msra.mxu0 %v10066
    %10138 = vmatpush.msra.mxu0 %v10057
    %10139 = vmatpush.msra.mxu0 %v10048
    %10140 = vmatpush.msra.mxu0 %v10039
    %10141 = vmatpush.msra.mxu0 %v10030
    %10142 = vmatpush.msra.mxu0 %v10021
    %10143 = vmatpush.msra.mxu0 %v10012
    %10144 = vmatpush.msra.mxu0 %v10003
    %10145 = vmatpush.msra.mxu0 %v9994
    %10146 = vmatpush.msra.mxu0 %v9985
    %10147 = vmatpush.msra.mxu0 %v9976
    %10148 = vmatpush.msra.mxu0 %v9967
    %10149 = vmatmul.f32.gmra.mxu0 %v9966
    %v10150 = vpop.f32.mrf.mxu0
    %v10151 = vadd.f32 %v10115, %v10150
    %10152 = vdwg.mxu0
    %10153 = vmatpush.msra.mxu0 %v10103
    %10154 = vmatpush.msra.mxu0 %v10094
    %10155 = vmatpush.msra.mxu0 %v10085
    %10156 = vmatpush.msra.mxu0 %v10076
    %10157 = vmatpush.msra.mxu0 %v10067
    %10158 = vmatpush.msra.mxu0 %v10058
    %10159 = vmatpush.msra.mxu0 %v10049
    %10160 = vmatpush.msra.mxu0 %v10040
    %10161 = vmatpush.msra.mxu0 %v10031
    %10162 = vmatpush.msra.mxu0 %v10022
    %10163 = vmatpush.msra.mxu0 %v10013
    %10164 = vmatpush.msra.mxu0 %v10004
    %10165 = vmatpush.msra.mxu0 %v9995
    %10166 = vmatpush.msra.mxu0 %v9986
    %10167 = vmatpush.msra.mxu0 %v9977
    %10168 = vmatpush.msra.mxu0 %v9968
    %10169 = vmatmul.f32.gmra.mxu0 %v9966
    %v10170 = vpop.f32.mrf.mxu0
    %v10171 = vadd.f32 %v10116, %v10170
    %10172 = vdwg.mxu0
    %10173 = vmatpush.msra.mxu0 %v10104
    %10174 = vmatpush.msra.mxu0 %v10095
    %10175 = vmatpush.msra.mxu0 %v10086
    %10176 = vmatpush.msra.mxu0 %v10077
    %10177 = vmatpush.msra.mxu0 %v10068
    %10178 = vmatpush.msra.mxu0 %v10059
    %10179 = vmatpush.msra.mxu0 %v10050
    %10180 = vmatpush.msra.mxu0 %v10041
    %10181 = vmatpush.msra.mxu0 %v10032
    %10182 = vmatpush.msra.mxu0 %v10023
    %10183 = vmatpush.msra.mxu0 %v10014
    %10184 = vmatpush.msra.mxu0 %v10005
    %10185 = vmatpush.msra.mxu0 %v9996
    %10186 = vmatpush.msra.mxu0 %v9987
    %10187 = vmatpush.msra.mxu0 %v9978
    %10188 = vmatpush.msra.mxu0 %v9969
    %10189 = vmatmul.f32.gmra.mxu0 %v9966
    %v10190 = vpop.f32.mrf.mxu0
    %v10191 = vadd.f32 %v10117, %v10190
    %10192 = vdwg.mxu0
    %10193 = vmatpush.msra.mxu0 %v10105
    %10194 = vmatpush.msra.mxu0 %v10096
    %10195 = vmatpush.msra.mxu0 %v10087
    %10196 = vmatpush.msra.mxu0 %v10078
    %10197 = vmatpush.msra.mxu0 %v10069
    %10198 = vmatpush.msra.mxu0 %v10060
    %10199 = vmatpush.msra.mxu0 %v10051
    %10200 = vmatpush.msra.mxu0 %v10042
    %10201 = vmatpush.msra.mxu0 %v10033
    %10202 = vmatpush.msra.mxu0 %v10024
    %10203 = vmatpush.msra.mxu0 %v10015
    %10204 = vmatpush.msra.mxu0 %v10006
    %10205 = vmatpush.msra.mxu0 %v9997
    %10206 = vmatpush.msra.mxu0 %v9988
    %10207 = vmatpush.msra.mxu0 %v9979
    %10208 = vmatpush.msra.mxu0 %v9970
    %10209 = vmatmul.f32.gmra.mxu0 %v9966
    %v10210 = vpop.f32.mrf.mxu0
    %v10211 = vadd.f32 %v10118, %v10210
    %10212 = vdwg.mxu0
    %10213 = vmatpush.msra.mxu0 %v10106
    %10214 = vmatpush.msra.mxu0 %v10097
    %10215 = vmatpush.msra.mxu0 %v10088
    %10216 = vmatpush.msra.mxu0 %v10079
    %10217 = vmatpush.msra.mxu0 %v10070
    %10218 = vmatpush.msra.mxu0 %v10061
    %10219 = vmatpush.msra.mxu0 %v10052
    %10220 = vmatpush.msra.mxu0 %v10043
    %10221 = vmatpush.msra.mxu0 %v10034
    %10222 = vmatpush.msra.mxu0 %v10025
    %10223 = vmatpush.msra.mxu0 %v10016
    %10224 = vmatpush.msra.mxu0 %v10007
    %10225 = vmatpush.msra.mxu0 %v9998
    %10226 = vmatpush.msra.mxu0 %v9989
    %10227 = vmatpush.msra.mxu0 %v9980
    %10228 = vmatpush.msra.mxu0 %v9971
    %10229 = vmatmul.f32.gmra.mxu0 %v9966
    %v10230 = vpop.f32.mrf.mxu0
    %v10231 = vadd.f32 %v10119, %v10230
    %10232 = vdwg.mxu0
    %10233 = vmatpush.msra.mxu0 %v10107
    %10234 = vmatpush.msra.mxu0 %v10098
    %10235 = vmatpush.msra.mxu0 %v10089
    %10236 = vmatpush.msra.mxu0 %v10080
    %10237 = vmatpush.msra.mxu0 %v10071
    %10238 = vmatpush.msra.mxu0 %v10062
    %10239 = vmatpush.msra.mxu0 %v10053
    %10240 = vmatpush.msra.mxu0 %v10044
    %10241 = vmatpush.msra.mxu0 %v10035
    %10242 = vmatpush.msra.mxu0 %v10026
    %10243 = vmatpush.msra.mxu0 %v10017
    %10244 = vmatpush.msra.mxu0 %v10008
    %10245 = vmatpush.msra.mxu0 %v9999
    %10246 = vmatpush.msra.mxu0 %v9990
    %10247 = vmatpush.msra.mxu0 %v9981
    %10248 = vmatpush.msra.mxu0 %v9972
    %10249 = vmatmul.f32.gmra.mxu0 %v9966
    %v10250 = vpop.f32.mrf.mxu0
    %v10251 = vadd.f32 %v10120, %v10250
    %10252 = vdwg.mxu0
    %10253 = vmatpush.msra.mxu0 %v10108
    %10254 = vmatpush.msra.mxu0 %v10099
    %10255 = vmatpush.msra.mxu0 %v10090
    %10256 = vmatpush.msra.mxu0 %v10081
    %10257 = vmatpush.msra.mxu0 %v10072
    %10258 = vmatpush.msra.mxu0 %v10063
    %10259 = vmatpush.msra.mxu0 %v10054
    %10260 = vmatpush.msra.mxu0 %v10045
    %10261 = vmatpush.msra.mxu0 %v10036
    %10262 = vmatpush.msra.mxu0 %v10027
    %10263 = vmatpush.msra.mxu0 %v10018
    %10264 = vmatpush.msra.mxu0 %v10009
    %10265 = vmatpush.msra.mxu0 %v10000
    %10266 = vmatpush.msra.mxu0 %v9991
    %10267 = vmatpush.msra.mxu0 %v9982
    %10268 = vmatpush.msra.mxu0 %v9973
    %10269 = vmatmul.f32.gmra.mxu0 %v9966
    %v10270 = vpop.f32.mrf.mxu0
    %v10271 = vadd.f32 %v10121, %v10270
    %10272 = vdwg.mxu0
    %10273 = vmatpush.msra.mxu0 %v10109
    %10274 = vmatpush.msra.mxu0 %v10100
    %10275 = vmatpush.msra.mxu0 %v10091
    %10276 = vmatpush.msra.mxu0 %v10082
    %10277 = vmatpush.msra.mxu0 %v10073
    %10278 = vmatpush.msra.mxu0 %v10064
    %10279 = vmatpush.msra.mxu0 %v10055
    %10280 = vmatpush.msra.mxu0 %v10046
    %10281 = vmatpush.msra.mxu0 %v10037
    %10282 = vmatpush.msra.mxu0 %v10028
    %10283 = vmatpush.msra.mxu0 %v10019
    %10284 = vmatpush.msra.mxu0 %v10010
    %10285 = vmatpush.msra.mxu0 %v10001
    %10286 = vmatpush.msra.mxu0 %v9992
    %10287 = vmatpush.msra.mxu0 %v9983
    %10288 = vmatpush.msra.mxu0 %v9974
    %10289 = vmatmul.f32.gmra.mxu0 %v9966
    %v10290 = vpop.f32.mrf.mxu0
    %v10291 = vadd.f32 %v10122, %v10290
    %10292 = vdwg.mxu0
    %10293 = vmatpush.msra.mxu0 %v10110
    %10294 = vmatpush.msra.mxu0 %v10101
    %10295 = vmatpush.msra.mxu0 %v10092
    %10296 = vmatpush.msra.mxu0 %v10083
    %10297 = vmatpush.msra.mxu0 %v10074
    %10298 = vmatpush.msra.mxu0 %v10065
    %10299 = vmatpush.msra.mxu0 %v10056
    %10300 = vmatpush.msra.mxu0 %v10047
    %10301 = vmatpush.msra.mxu0 %v10038
    %10302 = vmatpush.msra.mxu0 %v10029
    %10303 = vmatpush.msra.mxu0 %v10020
    %10304 = vmatpush.msra.mxu0 %v10011
    %10305 = vmatpush.msra.mxu0 %v10002
    %10306 = vmatpush.msra.mxu0 %v9993
    %10307 = vmatpush.msra.mxu0 %v9984
    %10308 = vmatpush.msra.mxu0 %v9975
    %10309 = vmatmul.f32.gmra.mxu0 %v9966
    %v10310 = vpop.f32.mrf.mxu0
    %v10311 = vadd.f32 %v10123, %v10310
    %10312 = vdwg.mxu0
    %v10321 = vrot.slane %v10171, 6
    %v10322 = vrot.slane %v10191, 4
    %v10323 = vrot.slane %v10211, 2
    %v10324 = vrot.slane %v10251, 6
    %v10325 = vrot.slane %v10271, 4
    %v10326 = vrot.slane %v10291, 2
    %vm10327 = vcmask 1041408
    %v10328 = vsel %vm10327, %v10151, %v10321
    %vm10329 = vcmask 1045508
    %v10330 = vsel %vm10329, %v10322, %v10323
    %vm10331 = vcmask 1043456
    %v10332 = vsel %vm10331, %v10328, %v10330
    %v10333 = vsel %vm10327, %v10231, %v10324
    %v10334 = vsel %vm10329, %v10325, %v10326
    %v10335 = vsel %vm10331, %v10333, %v10334
    %10338 = vst [vmem:[#allocation3] sm:$0xff] %v10332
    %10339 = vst [vmem:[#allocation3 + $0x8] sm:$0xff] %v10335
    %10340 = vst [vmem:[#allocation3 + $0x10] sm:$0x3] %v10311
    // Predicated region
    $region42: #{efficientnet_forward.1} parent=1 // pred_check
      _
    $region43: #{efficientnet_forward.1} parent=1 // pred_check_branch
      %10342 = sbr.rel (0) target = $region45
    $region44: #{efficientnet_forward.1} parent=1 // pred_region
      %10344 = vsyncadd [#allocation4], 0
      %s10346 = sshll.u32 [#allocation3], 4
      %s10347 = int_to_ptr.vmem [resolvable:$true] %s10346
      %s10348 = sshll.u32 %s10, 4
      %s10349 = int_to_ptr.hbm [resolvable:$true] %s10348
      %10351 = dma.vmem_to_hbm [thread:$0]  %s10347, 288, %s10349, [#allocation4]
    $region45: #{efficientnet_forward.1} parent=1 // pred_fallthru
      _
    // Predicated region
    $region46: #{efficientnet_forward.1} parent=1 // pred_check
      _
    $region47: #{efficientnet_forward.1} parent=1 // pred_check_branch
      %10353 = sbr.rel (0) target = $region49
    $region48: #{efficientnet_forward.1} parent=1 // pred_region
      %10355 = dma.done [#allocation4], 288
    $region49: #{efficientnet_forward.1} parent=1 // pred_fallthru
      _
    %10356 = vsyncpa [#allocation4], 1

</llo_original>
